<compile_context>
chip_gen: v6e
topology: v6e:2x2x1
jax: 0.10.0
libtpu: 0.0.40
codegen_flags: <defaults>
</compile_context>

<pallas_src>
import numpy as np
import jax
import jax.numpy as jnp
from jax.experimental import pallas as pl
from jax.experimental.pallas import tpu as pltpu

H_IMG = 16      # MyConfig train.h (must be a multiple of 16)
W_IMG = 16      # MyConfig train.w
EPS_BN = 0.8    # nn.BatchNorm2d(out_filters, 0.8) -> eps = 0.8
CPAD = 128      # all conv output channels zero-padded to 128 lanes
CHANS = [(3, 16, False), (16, 32, True), (32, 64, True), (64, 128, True)]


# ------------------------------ Pallas kernel -------------------------------

def _disc_kernel(img_ref, g1_ref, g2_ref, g3_ref, g4_ref,
                 w1_ref, w2_ref, w3_ref, w4_ref,
                 bias_ref, scale_ref, shift_ref,
                 advw_ref, advb_ref, o_ref):
    """Whole Discriminator forward in one kernel; activations never leave VMEM."""

    def conv_block(x, g_ref, w_ref, layer):
        # x: (Hin*Win, Cin_lanes).  For each of the 9 kernel taps, a constant
        # 0/1 gather matrix selects the stride-2 / pad-1 source rows
        # (in-kernel im2col as a matmul), then the tap weight is applied.
        # The 9-tap loop is a static Python unroll (LLO sees the full chain).
        acc = None
        for t in range(9):
            gx = jnp.dot(g_ref[t], x, preferred_element_type=jnp.float32)
            y = jnp.dot(gx, w_ref[t], preferred_element_type=jnp.float32)
            acc = y if acc is None else acc + y
        acc = acc + bias_ref[layer]                        # conv bias (pre-activation)
        acc = jnp.maximum(acc, 0.2 * acc)                  # LeakyReLU(0.2)
        # Dropout2d(0.25) in eval mode == identity.
        return acc * scale_ref[layer] + shift_ref[layer]   # folded BatchNorm2d (eval)

    x = img_ref[...]                                       # (H*W, 3)
    x = conv_block(x, g1_ref, w1_ref, 0)                   # (H/2*W/2, 128)
    x = conv_block(x, g2_ref, w2_ref, 1)                   # (H/4*W/4, 128)
    x = conv_block(x, g3_ref, w3_ref, 2)                   # (H/8*W/8, 128)
    x = conv_block(x, g4_ref, w4_ref, 3)                   # (H/16*W/16, 128)

    # Linear(128 * h/16 * w/16, 1) + Sigmoid.  The NCHW flatten is folded into
    # the row ordering of advw, so this is an elementwise mul + full reduce.
    z = jnp.sum(x * advw_ref[...], axis=1, keepdims=True)
    z = jnp.sum(z, axis=0, keepdims=True) + advb_ref[...]
    o_ref[...] = 1.0 / (1.0 + jnp.exp(-z))


# ------------------------------- JAX wrapper --------------------------------

def discriminator_forward(img_hwc, kp):
    """img_hwc: (H, W, 3)  ->  validity (1, 1). Single fused pallas_call."""
    h, w, _ = img_hwc.shape
    x0 = img_hwc.astype(jnp.float32).reshape(h * w, 3)     # HWC -> (spatial, chan)
    return pl.pallas_call(
        _disc_kernel,
        out_shape=jax.ShapeDtypeStruct((1, 1), jnp.float32),
        in_specs=[pl.BlockSpec(memory_space=pltpu.MemorySpace.VMEM)] * 14,
        out_specs=pl.BlockSpec(memory_space=pltpu.MemorySpace.VMEM),
    )(x0, kp["g"][0], kp["g"][1], kp["g"][2], kp["g"][3],
      kp["w"][0], kp["w"][1], kp["w"][2], kp["w"][3],
      kp["bias"], kp["scale"], kp["shift"], kp["adv_w"], kp["adv_b"])


# --------------------------- parameter preparation --------------------------

def _gather_matrices(h, w):
    """(9, (h//2)*(w//2), h*w) constant 0/1 matrices: tap t gathers the
    stride-2 / zero-pad-1 source pixel for each output position (0 if padded)."""
    ho, wo = h // 2, w // 2
    g = np.zeros((9, ho * wo, h * w), np.float32)
    for kh in range(3):
        for kw in range(3):
            t = kh * 3 + kw
            for i in range(ho):
                for j in range(wo):
                    hi, wi = 2 * i + kh - 1, 2 * j + kw - 1
                    if 0 <= hi < h and 0 <= wi < w:
                        g[t, i * wo + j, hi * w + wi] = 1.0
    return jnp.asarray(g)


def init_params(key):
    """Deterministic synthetic parameters matching the PyTorch module shapes."""
    blocks = []
    for (cin, cout, bn) in CHANS:
        key, kw_, kb_, kg_, kbe_, km_, kv_ = jax.random.split(key, 7)
        blk = {
            "w": 0.1 * jax.random.normal(kw_, (3, 3, cin, cout), jnp.float32),  # HWIO
            "b": 0.1 * jax.random.normal(kb_, (cout,), jnp.float32),
            "bn": bn,
        }
        if bn:
            blk["gamma"] = 1.0 + 0.1 * jax.random.normal(kg_, (cout,), jnp.float32)
            blk["beta"] = 0.1 * jax.random.normal(kbe_, (cout,), jnp.float32)
            blk["mean"] = 0.1 * jax.random.normal(km_, (cout,), jnp.float32)
            blk["var"] = 1.0 + 0.1 * jnp.abs(jax.random.normal(kv_, (cout,), jnp.float32))
        blocks.append(blk)
    dh, dw = H_IMG // 16, W_IMG // 16
    feat = 128 * dh * dw
    key, kaw, kab = jax.random.split(key, 3)
    return {
        "blocks": blocks,
        "adv_w": 0.1 * jax.random.normal(kaw, (feat, 1), jnp.float32),  # NCHW-flatten row order
        "adv_b": 0.1 * jax.random.normal(kab, (1, 1), jnp.float32),
    }


def prepare_kernel_params(params, h=H_IMG, w=W_IMG):
    """Pad channels to 128 lanes, fold BN into scale/shift, build gather
    matrices, and fold the NCHW flatten into the adv weight ordering."""
    g_list, w_list, bias_rows, scale_rows, shift_rows = [], [], [], [], []
    hin, win = h, w
    for li, blk in enumerate(params["blocks"]):
        cin, cout = blk["w"].shape[2], blk["w"].shape[3]
        g_list.append(_gather_matrices(hin, win))
        cin_pad = cin if li == 0 else CPAD     # layer l>0 input carries 128 lanes
        wk = blk["w"].reshape(9, cin, cout)    # tap index t = kh*3 + kw
        w_list.append(jnp.pad(wk, ((0, 0), (0, cin_pad - cin), (0, CPAD - cout))))
        bias_rows.append(jnp.pad(blk["b"], (0, CPAD - cout)))
        if blk["bn"]:
            sc = blk["gamma"] / jnp.sqrt(blk["var"] + EPS_BN)
            sh = blk["beta"] - blk["mean"] * sc
        else:
            sc = jnp.ones((cout,), jnp.float32)
            sh = jnp.zeros((cout,), jnp.float32)
        scale_rows.append(jnp.pad(sc, (0, CPAD - cout)))
        shift_rows.append(jnp.pad(sh, (0, CPAD - cout)))
        hin, win = hin // 2, win // 2
    dh, dw = h // 16, w // 16
    # PyTorch flattens NCHW (index c*dh*dw + p); the kernel activation is
    # (p, c) -> reorder the Linear weight rows once, here, for free.
    adv_wk = params["adv_w"].reshape(128, dh * dw).T       # (dh*dw, 128)
    return {
        "g": g_list,
        "w": w_list,
        "bias": jnp.stack(bias_rows)[:, None, :],          # (4, 1, 128)
        "scale": jnp.stack(scale_rows)[:, None, :],
        "shift": jnp.stack(shift_rows)[:, None, :],
        "adv_w": adv_wk,
        "adv_b": params["adv_b"],
    }


# ------------------------- pure-JAX reference (check) -----------------------

def reference_forward(img_hwc, params):
    x = img_hwc.astype(jnp.float32)[None]                  # (1, H, W, 3) NHWC
    for blk in params["blocks"]:
        x = jax.lax.conv_general_dilated(
            x, blk["w"], window_strides=(2, 2), padding=((1, 1), (1, 1)),
            dimension_numbers=("NHWC", "HWIO", "NHWC"))
        x = x + blk["b"][None, None, None, :]
        x = jnp.where(x >= 0.0, x, 0.2 * x)                # LeakyReLU(0.2); Dropout2d eval = id
        if blk["bn"]:
            x = (x - blk["mean"]) / jnp.sqrt(blk["var"] + EPS_BN) * blk["gamma"] + blk["beta"]
    flat = jnp.transpose(x, (0, 3, 1, 2)).reshape(1, -1)   # out.view(1, -1) on NCHW
    z = flat @ params["adv_w"] + params["adv_b"]
    return jax.nn.sigmoid(z)


if __name__ == "__main__":
    key = jax.random.PRNGKey(0)
    key, kimg = jax.random.split(key)
    img = jax.random.normal(kimg, (H_IMG, W_IMG, 3), jnp.float32)  # HWC, as forward expects
    params = init_params(key)
    kparams = prepare_kernel_params(params)

    fwd = jax.jit(discriminator_forward)
    out = fwd(img, kparams)
    out = jax.block_until_ready(out)

    assert out.shape == (1, 1)
    assert bool(jnp.all(jnp.isfinite(out)))

    ref = reference_forward(img, params)
    assert bool(jnp.allclose(out, ref, atol=5e-3)), (out, ref)

    print("KERNEL_OK")
</pallas_src>

<mosaic_0001>
module attributes {stable_mosaic.version = 11 : i64} {
  func.func @_disc_kernel(%arg0: memref<256x3xf32, #tpu.memory_space<vmem>>, %arg1: memref<9x64x256xf32, #tpu.memory_space<vmem>>, %arg2: memref<9x16x64xf32, #tpu.memory_space<vmem>>, %arg3: memref<9x4x16xf32, #tpu.memory_space<vmem>>, %arg4: memref<9x1x4xf32, #tpu.memory_space<vmem>>, %arg5: memref<9x3x128xf32, #tpu.memory_space<vmem>>, %arg6: memref<9x128x128xf32, #tpu.memory_space<vmem>>, %arg7: memref<9x128x128xf32, #tpu.memory_space<vmem>>, %arg8: memref<9x128x128xf32, #tpu.memory_space<vmem>>, %arg9: memref<4x1x128xf32, #tpu.memory_space<vmem>>, %arg10: memref<4x1x128xf32, #tpu.memory_space<vmem>>, %arg11: memref<4x1x128xf32, #tpu.memory_space<vmem>>, %arg12: memref<1x128xf32, #tpu.memory_space<vmem>>, %arg13: memref<1x1xf32, #tpu.memory_space<vmem>>, %arg14: memref<1x1xf32, #tpu.memory_space<vmem>>) attributes {dimension_semantics = [], scalar_prefetch = 0 : i64, scratch_operands = 0 : i64, tpu.core_type = #tpu.core_type<tc>} {
    %c0 = arith.constant 0 : index
    %c0_0 = arith.constant 0 : index
    %0 = vector.load %arg0[%c0, %c0_0] : memref<256x3xf32, #tpu.memory_space<vmem>>, vector<256x3xf32>
    %c0_1 = arith.constant 0 : index
    %c0_2 = arith.constant 0 : index
    %c0_3 = arith.constant 0 : index
    %1 = vector.load %arg1[%c0_1, %c0_2, %c0_3] : memref<9x64x256xf32, #tpu.memory_space<vmem>>, vector<1x64x256xf32>
    %2 = vector.shape_cast %1 : vector<1x64x256xf32> to vector<64x256xf32>
    %cst = arith.constant dense<0.000000e+00> : vector<64x3xf32>
    %3 = tpu.matmul %2, %0, %cst {dimension_numbers = #tpu.dot_dimension_numbers<[1], [0], [0], [1], [0, 0, 1, 1], [], []>} : vector<64x256xf32>, vector<256x3xf32>, vector<64x3xf32> -> vector<64x3xf32>
    %c0_4 = arith.constant 0 : index
    %c0_5 = arith.constant 0 : index
    %c0_6 = arith.constant 0 : index
    %4 = vector.load %arg5[%c0_4, %c0_5, %c0_6] : memref<9x3x128xf32, #tpu.memory_space<vmem>>, vector<1x3x128xf32>
    %5 = vector.shape_cast %4 : vector<1x3x128xf32> to vector<3x128xf32>
    %cst_7 = arith.constant dense<0.000000e+00> : vector<64x128xf32>
    %6 = tpu.matmul %3, %5, %cst_7 {dimension_numbers = #tpu.dot_dimension_numbers<[1], [0], [0], [1], [0, 0, 1, 1], [], []>} : vector<64x3xf32>, vector<3x128xf32>, vector<64x128xf32> -> vector<64x128xf32>
    %c1 = arith.constant 1 : index
    %c0_8 = arith.constant 0 : index
    %c0_9 = arith.constant 0 : index
    %7 = vector.load %arg1[%c1, %c0_8, %c0_9] : memref<9x64x256xf32, #tpu.memory_space<vmem>>, vector<1x64x256xf32>
    %8 = vector.shape_cast %7 : vector<1x64x256xf32> to vector<64x256xf32>
    %cst_10 = arith.constant dense<0.000000e+00> : vector<64x3xf32>
    %9 = tpu.matmul %8, %0, %cst_10 {dimension_numbers = #tpu.dot_dimension_numbers<[1], [0], [0], [1], [0, 0, 1, 1], [], []>} : vector<64x256xf32>, vector<256x3xf32>, vector<64x3xf32> -> vector<64x3xf32>
    %c1_11 = arith.constant 1 : index
    %c0_12 = arith.constant 0 : index
    %c0_13 = arith.constant 0 : index
    %10 = vector.load %arg5[%c1_11, %c0_12, %c0_13] : memref<9x3x128xf32, #tpu.memory_space<vmem>>, vector<1x3x128xf32>
    %11 = vector.shape_cast %10 : vector<1x3x128xf32> to vector<3x128xf32>
    %cst_14 = arith.constant dense<0.000000e+00> : vector<64x128xf32>
    %12 = tpu.matmul %9, %11, %cst_14 {dimension_numbers = #tpu.dot_dimension_numbers<[1], [0], [0], [1], [0, 0, 1, 1], [], []>} : vector<64x3xf32>, vector<3x128xf32>, vector<64x128xf32> -> vector<64x128xf32>
    %13 = arith.addf %6, %12 : vector<64x128xf32>
    %c2 = arith.constant 2 : index
    %c0_15 = arith.constant 0 : index
    %c0_16 = arith.constant 0 : index
    %14 = vector.load %arg1[%c2, %c0_15, %c0_16] : memref<9x64x256xf32, #tpu.memory_space<vmem>>, vector<1x64x256xf32>
    %15 = vector.shape_cast %14 : vector<1x64x256xf32> to vector<64x256xf32>
    %cst_17 = arith.constant dense<0.000000e+00> : vector<64x3xf32>
    %16 = tpu.matmul %15, %0, %cst_17 {dimension_numbers = #tpu.dot_dimension_numbers<[1], [0], [0], [1], [0, 0, 1, 1], [], []>} : vector<64x256xf32>, vector<256x3xf32>, vector<64x3xf32> -> vector<64x3xf32>
    %c2_18 = arith.constant 2 : index
    %c0_19 = arith.constant 0 : index
    %c0_20 = arith.constant 0 : index
    %17 = vector.load %arg5[%c2_18, %c0_19, %c0_20] : memref<9x3x128xf32, #tpu.memory_space<vmem>>, vector<1x3x128xf32>
    %18 = vector.shape_cast %17 : vector<1x3x128xf32> to vector<3x128xf32>
    %cst_21 = arith.constant dense<0.000000e+00> : vector<64x128xf32>
    %19 = tpu.matmul %16, %18, %cst_21 {dimension_numbers = #tpu.dot_dimension_numbers<[1], [0], [0], [1], [0, 0, 1, 1], [], []>} : vector<64x3xf32>, vector<3x128xf32>, vector<64x128xf32> -> vector<64x128xf32>
    %20 = arith.addf %13, %19 : vector<64x128xf32>
    %c3 = arith.constant 3 : index
    %c0_22 = arith.constant 0 : index
    %c0_23 = arith.constant 0 : index
    %21 = vector.load %arg1[%c3, %c0_22, %c0_23] : memref<9x64x256xf32, #tpu.memory_space<vmem>>, vector<1x64x256xf32>
    %22 = vector.shape_cast %21 : vector<1x64x256xf32> to vector<64x256xf32>
    %cst_24 = arith.constant dense<0.000000e+00> : vector<64x3xf32>
    %23 = tpu.matmul %22, %0, %cst_24 {dimension_numbers = #tpu.dot_dimension_numbers<[1], [0], [0], [1], [0, 0, 1, 1], [], []>} : vector<64x256xf32>, vector<256x3xf32>, vector<64x3xf32> -> vector<64x3xf32>
    %c3_25 = arith.constant 3 : index
    %c0_26 = arith.constant 0 : index
    %c0_27 = arith.constant 0 : index
    %24 = vector.load %arg5[%c3_25, %c0_26, %c0_27] : memref<9x3x128xf32, #tpu.memory_space<vmem>>, vector<1x3x128xf32>
    %25 = vector.shape_cast %24 : vector<1x3x128xf32> to vector<3x128xf32>
    %cst_28 = arith.constant dense<0.000000e+00> : vector<64x128xf32>
    %26 = tpu.matmul %23, %25, %cst_28 {dimension_numbers = #tpu.dot_dimension_numbers<[1], [0], [0], [1], [0, 0, 1, 1], [], []>} : vector<64x3xf32>, vector<3x128xf32>, vector<64x128xf32> -> vector<64x128xf32>
    %27 = arith.addf %20, %26 : vector<64x128xf32>
    %c4 = arith.constant 4 : index
    %c0_29 = arith.constant 0 : index
    %c0_30 = arith.constant 0 : index
    %28 = vector.load %arg1[%c4, %c0_29, %c0_30] : memref<9x64x256xf32, #tpu.memory_space<vmem>>, vector<1x64x256xf32>
    %29 = vector.shape_cast %28 : vector<1x64x256xf32> to vector<64x256xf32>
    %cst_31 = arith.constant dense<0.000000e+00> : vector<64x3xf32>
    %30 = tpu.matmul %29, %0, %cst_31 {dimension_numbers = #tpu.dot_dimension_numbers<[1], [0], [0], [1], [0, 0, 1, 1], [], []>} : vector<64x256xf32>, vector<256x3xf32>, vector<64x3xf32> -> vector<64x3xf32>
    %c4_32 = arith.constant 4 : index
    %c0_33 = arith.constant 0 : index
    %c0_34 = arith.constant 0 : index
    %31 = vector.load %arg5[%c4_32, %c0_33, %c0_34] : memref<9x3x128xf32, #tpu.memory_space<vmem>>, vector<1x3x128xf32>
    %32 = vector.shape_cast %31 : vector<1x3x128xf32> to vector<3x128xf32>
    %cst_35 = arith.constant dense<0.000000e+00> : vector<64x128xf32>
    %33 = tpu.matmul %30, %32, %cst_35 {dimension_numbers = #tpu.dot_dimension_numbers<[1], [0], [0], [1], [0, 0, 1, 1], [], []>} : vector<64x3xf32>, vector<3x128xf32>, vector<64x128xf32> -> vector<64x128xf32>
    %34 = arith.addf %27, %33 : vector<64x128xf32>
    %c5 = arith.constant 5 : index
    %c0_36 = arith.constant 0 : index
    %c0_37 = arith.constant 0 : index
    %35 = vector.load %arg1[%c5, %c0_36, %c0_37] : memref<9x64x256xf32, #tpu.memory_space<vmem>>, vector<1x64x256xf32>
    %36 = vector.shape_cast %35 : vector<1x64x256xf32> to vector<64x256xf32>
    %cst_38 = arith.constant dense<0.000000e+00> : vector<64x3xf32>
    %37 = tpu.matmul %36, %0, %cst_38 {dimension_numbers = #tpu.dot_dimension_numbers<[1], [0], [0], [1], [0, 0, 1, 1], [], []>} : vector<64x256xf32>, vector<256x3xf32>, vector<64x3xf32> -> vector<64x3xf32>
    %c5_39 = arith.constant 5 : index
    %c0_40 = arith.constant 0 : index
    %c0_41 = arith.constant 0 : index
    %38 = vector.load %arg5[%c5_39, %c0_40, %c0_41] : memref<9x3x128xf32, #tpu.memory_space<vmem>>, vector<1x3x128xf32>
    %39 = vector.shape_cast %38 : vector<1x3x128xf32> to vector<3x128xf32>
    %cst_42 = arith.constant dense<0.000000e+00> : vector<64x128xf32>
    %40 = tpu.matmul %37, %39, %cst_42 {dimension_numbers = #tpu.dot_dimension_numbers<[1], [0], [0], [1], [0, 0, 1, 1], [], []>} : vector<64x3xf32>, vector<3x128xf32>, vector<64x128xf32> -> vector<64x128xf32>
    %41 = arith.addf %34, %40 : vector<64x128xf32>
    %c6 = arith.constant 6 : index
    %c0_43 = arith.constant 0 : index
    %c0_44 = arith.constant 0 : index
    %42 = vector.load %arg1[%c6, %c0_43, %c0_44] : memref<9x64x256xf32, #tpu.memory_space<vmem>>, vector<1x64x256xf32>
    %43 = vector.shape_cast %42 : vector<1x64x256xf32> to vector<64x256xf32>
    %cst_45 = arith.constant dense<0.000000e+00> : vector<64x3xf32>
    %44 = tpu.matmul %43, %0, %cst_45 {dimension_numbers = #tpu.dot_dimension_numbers<[1], [0], [0], [1], [0, 0, 1, 1], [], []>} : vector<64x256xf32>, vector<256x3xf32>, vector<64x3xf32> -> vector<64x3xf32>
    %c6_46 = arith.constant 6 : index
    %c0_47 = arith.constant 0 : index
    %c0_48 = arith.constant 0 : index
    %45 = vector.load %arg5[%c6_46, %c0_47, %c0_48] : memref<9x3x128xf32, #tpu.memory_space<vmem>>, vector<1x3x128xf32>
    %46 = vector.shape_cast %45 : vector<1x3x128xf32> to vector<3x128xf32>
    %cst_49 = arith.constant dense<0.000000e+00> : vector<64x128xf32>
    %47 = tpu.matmul %44, %46, %cst_49 {dimension_numbers = #tpu.dot_dimension_numbers<[1], [0], [0], [1], [0, 0, 1, 1], [], []>} : vector<64x3xf32>, vector<3x128xf32>, vector<64x128xf32> -> vector<64x128xf32>
    %48 = arith.addf %41, %47 : vector<64x128xf32>
    %c7 = arith.constant 7 : index
    %c0_50 = arith.constant 0 : index
    %c0_51 = arith.constant 0 : index
    %49 = vector.load %arg1[%c7, %c0_50, %c0_51] : memref<9x64x256xf32, #tpu.memory_space<vmem>>, vector<1x64x256xf32>
    %50 = vector.shape_cast %49 : vector<1x64x256xf32> to vector<64x256xf32>
    %cst_52 = arith.constant dense<0.000000e+00> : vector<64x3xf32>
    %51 = tpu.matmul %50, %0, %cst_52 {dimension_numbers = #tpu.dot_dimension_numbers<[1], [0], [0], [1], [0, 0, 1, 1], [], []>} : vector<64x256xf32>, vector<256x3xf32>, vector<64x3xf32> -> vector<64x3xf32>
    %c7_53 = arith.constant 7 : index
    %c0_54 = arith.constant 0 : index
    %c0_55 = arith.constant 0 : index
    %52 = vector.load %arg5[%c7_53, %c0_54, %c0_55] : memref<9x3x128xf32, #tpu.memory_space<vmem>>, vector<1x3x128xf32>
    %53 = vector.shape_cast %52 : vector<1x3x128xf32> to vector<3x128xf32>
    %cst_56 = arith.constant dense<0.000000e+00> : vector<64x128xf32>
    %54 = tpu.matmul %51, %53, %cst_56 {dimension_numbers = #tpu.dot_dimension_numbers<[1], [0], [0], [1], [0, 0, 1, 1], [], []>} : vector<64x3xf32>, vector<3x128xf32>, vector<64x128xf32> -> vector<64x128xf32>
    %55 = arith.addf %48, %54 : vector<64x128xf32>
    %c8 = arith.constant 8 : index
    %c0_57 = arith.constant 0 : index
    %c0_58 = arith.constant 0 : index
    %56 = vector.load %arg1[%c8, %c0_57, %c0_58] : memref<9x64x256xf32, #tpu.memory_space<vmem>>, vector<1x64x256xf32>
    %57 = vector.shape_cast %56 : vector<1x64x256xf32> to vector<64x256xf32>
    %cst_59 = arith.constant dense<0.000000e+00> : vector<64x3xf32>
    %58 = tpu.matmul %57, %0, %cst_59 {dimension_numbers = #tpu.dot_dimension_numbers<[1], [0], [0], [1], [0, 0, 1, 1], [], []>} : vector<64x256xf32>, vector<256x3xf32>, vector<64x3xf32> -> vector<64x3xf32>
    %c8_60 = arith.constant 8 : index
    %c0_61 = arith.constant 0 : index
    %c0_62 = arith.constant 0 : index
    %59 = vector.load %arg5[%c8_60, %c0_61, %c0_62] : memref<9x3x128xf32, #tpu.memory_space<vmem>>, vector<1x3x128xf32>
    %60 = vector.shape_cast %59 : vector<1x3x128xf32> to vector<3x128xf32>
    %cst_63 = arith.constant dense<0.000000e+00> : vector<64x128xf32>
    %61 = tpu.matmul %58, %60, %cst_63 {dimension_numbers = #tpu.dot_dimension_numbers<[1], [0], [0], [1], [0, 0, 1, 1], [], []>} : vector<64x3xf32>, vector<3x128xf32>, vector<64x128xf32> -> vector<64x128xf32>
    %62 = arith.addf %55, %61 : vector<64x128xf32>
    %c0_64 = arith.constant 0 : index
    %c0_65 = arith.constant 0 : index
    %c0_66 = arith.constant 0 : index
    %63 = vector.load %arg9[%c0_64, %c0_65, %c0_66] : memref<4x1x128xf32, #tpu.memory_space<vmem>>, vector<1x1x128xf32>
    %64 = vector.shape_cast %63 : vector<1x1x128xf32> to vector<1x128xf32>
    %65 = vector.broadcast %64 : vector<1x128xf32> to vector<64x128xf32>
    %66 = arith.addf %62, %65 : vector<64x128xf32>
    %cst_67 = arith.constant 2.000000e-01 : f32
    %67 = vector.broadcast %cst_67 : f32 to vector<64x128xf32>
    %68 = arith.mulf %67, %66 : vector<64x128xf32>
    %69 = arith.maximumf %66, %68 : vector<64x128xf32>
    %c0_68 = arith.constant 0 : index
    %c0_69 = arith.constant 0 : index
    %c0_70 = arith.constant 0 : index
    %70 = vector.load %arg10[%c0_68, %c0_69, %c0_70] : memref<4x1x128xf32, #tpu.memory_space<vmem>>, vector<1x1x128xf32>
    %71 = vector.shape_cast %70 : vector<1x1x128xf32> to vector<1x128xf32>
    %72 = vector.broadcast %71 : vector<1x128xf32> to vector<64x128xf32>
    %73 = arith.mulf %69, %72 : vector<64x128xf32>
    %c0_71 = arith.constant 0 : index
    %c0_72 = arith.constant 0 : index
    %c0_73 = arith.constant 0 : index
    %74 = vector.load %arg11[%c0_71, %c0_72, %c0_73] : memref<4x1x128xf32, #tpu.memory_space<vmem>>, vector<1x1x128xf32>
    %75 = vector.shape_cast %74 : vector<1x1x128xf32> to vector<1x128xf32>
    %76 = vector.broadcast %75 : vector<1x128xf32> to vector<64x128xf32>
    %77 = arith.addf %73, %76 : vector<64x128xf32>
    %c0_74 = arith.constant 0 : index
    %c0_75 = arith.constant 0 : index
    %c0_76 = arith.constant 0 : index
    %78 = vector.load %arg2[%c0_74, %c0_75, %c0_76] : memref<9x16x64xf32, #tpu.memory_space<vmem>>, vector<1x16x64xf32>
    %79 = vector.shape_cast %78 : vector<1x16x64xf32> to vector<16x64xf32>
    %cst_77 = arith.constant dense<0.000000e+00> : vector<16x128xf32>
    %80 = tpu.matmul %79, %77, %cst_77 {dimension_numbers = #tpu.dot_dimension_numbers<[1], [0], [0], [1], [0, 0, 1, 1], [], []>} : vector<16x64xf32>, vector<64x128xf32>, vector<16x128xf32> -> vector<16x128xf32>
    %c0_78 = arith.constant 0 : index
    %c0_79 = arith.constant 0 : index
    %c0_80 = arith.constant 0 : index
    %81 = vector.load %arg6[%c0_78, %c0_79, %c0_80] : memref<9x128x128xf32, #tpu.memory_space<vmem>>, vector<1x128x128xf32>
    %82 = vector.shape_cast %81 : vector<1x128x128xf32> to vector<128x128xf32>
    %cst_81 = arith.constant dense<0.000000e+00> : vector<16x128xf32>
    %83 = tpu.matmul %80, %82, %cst_81 {dimension_numbers = #tpu.dot_dimension_numbers<[1], [0], [0], [1], [0, 0, 1, 1], [], []>} : vector<16x128xf32>, vector<128x128xf32>, vector<16x128xf32> -> vector<16x128xf32>
    %c1_82 = arith.constant 1 : index
    %c0_83 = arith.constant 0 : index
    %c0_84 = arith.constant 0 : index
    %84 = vector.load %arg2[%c1_82, %c0_83, %c0_84] : memref<9x16x64xf32, #tpu.memory_space<vmem>>, vector<1x16x64xf32>
    %85 = vector.shape_cast %84 : vector<1x16x64xf32> to vector<16x64xf32>
    %cst_85 = arith.constant dense<0.000000e+00> : vector<16x128xf32>
    %86 = tpu.matmul %85, %77, %cst_85 {dimension_numbers = #tpu.dot_dimension_numbers<[1], [0], [0], [1], [0, 0, 1, 1], [], []>} : vector<16x64xf32>, vector<64x128xf32>, vector<16x128xf32> -> vector<16x128xf32>
    %c1_86 = arith.constant 1 : index
    %c0_87 = arith.constant 0 : index
    %c0_88 = arith.constant 0 : index
    %87 = vector.load %arg6[%c1_86, %c0_87, %c0_88] : memref<9x128x128xf32, #tpu.memory_space<vmem>>, vector<1x128x128xf32>
    %88 = vector.shape_cast %87 : vector<1x128x128xf32> to vector<128x128xf32>
    %cst_89 = arith.constant dense<0.000000e+00> : vector<16x128xf32>
    %89 = tpu.matmul %86, %88, %cst_89 {dimension_numbers = #tpu.dot_dimension_numbers<[1], [0], [0], [1], [0, 0, 1, 1], [], []>} : vector<16x128xf32>, vector<128x128xf32>, vector<16x128xf32> -> vector<16x128xf32>
    %90 = arith.addf %83, %89 : vector<16x128xf32>
    %c2_90 = arith.constant 2 : index
    %c0_91 = arith.constant 0 : index
    %c0_92 = arith.constant 0 : index
    %91 = vector.load %arg2[%c2_90, %c0_91, %c0_92] : memref<9x16x64xf32, #tpu.memory_space<vmem>>, vector<1x16x64xf32>
    %92 = vector.shape_cast %91 : vector<1x16x64xf32> to vector<16x64xf32>
    %cst_93 = arith.constant dense<0.000000e+00> : vector<16x128xf32>
    %93 = tpu.matmul %92, %77, %cst_93 {dimension_numbers = #tpu.dot_dimension_numbers<[1], [0], [0], [1], [0, 0, 1, 1], [], []>} : vector<16x64xf32>, vector<64x128xf32>, vector<16x128xf32> -> vector<16x128xf32>
    %c2_94 = arith.constant 2 : index
    %c0_95 = arith.constant 0 : index
    %c0_96 = arith.constant 0 : index
    %94 = vector.load %arg6[%c2_94, %c0_95, %c0_96] : memref<9x128x128xf32, #tpu.memory_space<vmem>>, vector<1x128x128xf32>
    %95 = vector.shape_cast %94 : vector<1x128x128xf32> to vector<128x128xf32>
    %cst_97 = arith.constant dense<0.000000e+00> : vector<16x128xf32>
    %96 = tpu.matmul %93, %95, %cst_97 {dimension_numbers = #tpu.dot_dimension_numbers<[1], [0], [0], [1], [0, 0, 1, 1], [], []>} : vector<16x128xf32>, vector<128x128xf32>, vector<16x128xf32> -> vector<16x128xf32>
    %97 = arith.addf %90, %96 : vector<16x128xf32>
    %c3_98 = arith.constant 3 : index
    %c0_99 = arith.constant 0 : index
    %c0_100 = arith.constant 0 : index
    %98 = vector.load %arg2[%c3_98, %c0_99, %c0_100] : memref<9x16x64xf32, #tpu.memory_space<vmem>>, vector<1x16x64xf32>
    %99 = vector.shape_cast %98 : vector<1x16x64xf32> to vector<16x64xf32>
    %cst_101 = arith.constant dense<0.000000e+00> : vector<16x128xf32>
    %100 = tpu.matmul %99, %77, %cst_101 {dimension_numbers = #tpu.dot_dimension_numbers<[1], [0], [0], [1], [0, 0, 1, 1], [], []>} : vector<16x64xf32>, vector<64x128xf32>, vector<16x128xf32> -> vector<16x128xf32>
    %c3_102 = arith.constant 3 : index
    %c0_103 = arith.constant 0 : index
    %c0_104 = arith.constant 0 : index
    %101 = vector.load %arg6[%c3_102, %c0_103, %c0_104] : memref<9x128x128xf32, #tpu.memory_space<vmem>>, vector<1x128x128xf32>
    %102 = vector.shape_cast %101 : vector<1x128x128xf32> to vector<128x128xf32>
    %cst_105 = arith.constant dense<0.000000e+00> : vector<16x128xf32>
    %103 = tpu.matmul %100, %102, %cst_105 {dimension_numbers = #tpu.dot_dimension_numbers<[1], [0], [0], [1], [0, 0, 1, 1], [], []>} : vector<16x128xf32>, vector<128x128xf32>, vector<16x128xf32> -> vector<16x128xf32>
    %104 = arith.addf %97, %103 : vector<16x128xf32>
    %c4_106 = arith.constant 4 : index
    %c0_107 = arith.constant 0 : index
    %c0_108 = arith.constant 0 : index
    %105 = vector.load %arg2[%c4_106, %c0_107, %c0_108] : memref<9x16x64xf32, #tpu.memory_space<vmem>>, vector<1x16x64xf32>
    %106 = vector.shape_cast %105 : vector<1x16x64xf32> to vector<16x64xf32>
    %cst_109 = arith.constant dense<0.000000e+00> : vector<16x128xf32>
    %107 = tpu.matmul %106, %77, %cst_109 {dimension_numbers = #tpu.dot_dimension_numbers<[1], [0], [0], [1], [0, 0, 1, 1], [], []>} : vector<16x64xf32>, vector<64x128xf32>, vector<16x128xf32> -> vector<16x128xf32>
    %c4_110 = arith.constant 4 : index
    %c0_111 = arith.constant 0 : index
    %c0_112 = arith.constant 0 : index
    %108 = vector.load %arg6[%c4_110, %c0_111, %c0_112] : memref<9x128x128xf32, #tpu.memory_space<vmem>>, vector<1x128x128xf32>
    %109 = vector.shape_cast %108 : vector<1x128x128xf32> to vector<128x128xf32>
    %cst_113 = arith.constant dense<0.000000e+00> : vector<16x128xf32>
    %110 = tpu.matmul %107, %109, %cst_113 {dimension_numbers = #tpu.dot_dimension_numbers<[1], [0], [0], [1], [0, 0, 1, 1], [], []>} : vector<16x128xf32>, vector<128x128xf32>, vector<16x128xf32> -> vector<16x128xf32>
    %111 = arith.addf %104, %110 : vector<16x128xf32>
    %c5_114 = arith.constant 5 : index
    %c0_115 = arith.constant 0 : index
    %c0_116 = arith.constant 0 : index
    %112 = vector.load %arg2[%c5_114, %c0_115, %c0_116] : memref<9x16x64xf32, #tpu.memory_space<vmem>>, vector<1x16x64xf32>
    %113 = vector.shape_cast %112 : vector<1x16x64xf32> to vector<16x64xf32>
    %cst_117 = arith.constant dense<0.000000e+00> : vector<16x128xf32>
    %114 = tpu.matmul %113, %77, %cst_117 {dimension_numbers = #tpu.dot_dimension_numbers<[1], [0], [0], [1], [0, 0, 1, 1], [], []>} : vector<16x64xf32>, vector<64x128xf32>, vector<16x128xf32> -> vector<16x128xf32>
    %c5_118 = arith.constant 5 : index
    %c0_119 = arith.constant 0 : index
    %c0_120 = arith.constant 0 : index
    %115 = vector.load %arg6[%c5_118, %c0_119, %c0_120] : memref<9x128x128xf32, #tpu.memory_space<vmem>>, vector<1x128x128xf32>
    %116 = vector.shape_cast %115 : vector<1x128x128xf32> to vector<128x128xf32>
    %cst_121 = arith.constant dense<0.000000e+00> : vector<16x128xf32>
    %117 = tpu.matmul %114, %116, %cst_121 {dimension_numbers = #tpu.dot_dimension_numbers<[1], [0], [0], [1], [0, 0, 1, 1], [], []>} : vector<16x128xf32>, vector<128x128xf32>, vector<16x128xf32> -> vector<16x128xf32>
    %118 = arith.addf %111, %117 : vector<16x128xf32>
    %c6_122 = arith.constant 6 : index
    %c0_123 = arith.constant 0 : index
    %c0_124 = arith.constant 0 : index
    %119 = vector.load %arg2[%c6_122, %c0_123, %c0_124] : memref<9x16x64xf32, #tpu.memory_space<vmem>>, vector<1x16x64xf32>
    %120 = vector.shape_cast %119 : vector<1x16x64xf32> to vector<16x64xf32>
    %cst_125 = arith.constant dense<0.000000e+00> : vector<16x128xf32>
    %121 = tpu.matmul %120, %77, %cst_125 {dimension_numbers = #tpu.dot_dimension_numbers<[1], [0], [0], [1], [0, 0, 1, 1], [], []>} : vector<16x64xf32>, vector<64x128xf32>, vector<16x128xf32> -> vector<16x128xf32>
    %c6_126 = arith.constant 6 : index
    %c0_127 = arith.constant 0 : index
    %c0_128 = arith.constant 0 : index
    %122 = vector.load %arg6[%c6_126, %c0_127, %c0_128] : memref<9x128x128xf32, #tpu.memory_space<vmem>>, vector<1x128x128xf32>
    %123 = vector.shape_cast %122 : vector<1x128x128xf32> to vector<128x128xf32>
    %cst_129 = arith.constant dense<0.000000e+00> : vector<16x128xf32>
    %124 = tpu.matmul %121, %123, %cst_129 {dimension_numbers = #tpu.dot_dimension_numbers<[1], [0], [0], [1], [0, 0, 1, 1], [], []>} : vector<16x128xf32>, vector<128x128xf32>, vector<16x128xf32> -> vector<16x128xf32>
    %125 = arith.addf %118, %124 : vector<16x128xf32>
    %c7_130 = arith.constant 7 : index
    %c0_131 = arith.constant 0 : index
    %c0_132 = arith.constant 0 : index
    %126 = vector.load %arg2[%c7_130, %c0_131, %c0_132] : memref<9x16x64xf32, #tpu.memory_space<vmem>>, vector<1x16x64xf32>
    %127 = vector.shape_cast %126 : vector<1x16x64xf32> to vector<16x64xf32>
    %cst_133 = arith.constant dense<0.000000e+00> : vector<16x128xf32>
    %128 = tpu.matmul %127, %77, %cst_133 {dimension_numbers = #tpu.dot_dimension_numbers<[1], [0], [0], [1], [0, 0, 1, 1], [], []>} : vector<16x64xf32>, vector<64x128xf32>, vector<16x128xf32> -> vector<16x128xf32>
    %c7_134 = arith.constant 7 : index
    %c0_135 = arith.constant 0 : index
    %c0_136 = arith.constant 0 : index
    %129 = vector.load %arg6[%c7_134, %c0_135, %c0_136] : memref<9x128x128xf32, #tpu.memory_space<vmem>>, vector<1x128x128xf32>
    %130 = vector.shape_cast %129 : vector<1x128x128xf32> to vector<128x128xf32>
    %cst_137 = arith.constant dense<0.000000e+00> : vector<16x128xf32>
    %131 = tpu.matmul %128, %130, %cst_137 {dimension_numbers = #tpu.dot_dimension_numbers<[1], [0], [0], [1], [0, 0, 1, 1], [], []>} : vector<16x128xf32>, vector<128x128xf32>, vector<16x128xf32> -> vector<16x128xf32>
    %132 = arith.addf %125, %131 : vector<16x128xf32>
    %c8_138 = arith.constant 8 : index
    %c0_139 = arith.constant 0 : index
    %c0_140 = arith.constant 0 : index
    %133 = vector.load %arg2[%c8_138, %c0_139, %c0_140] : memref<9x16x64xf32, #tpu.memory_space<vmem>>, vector<1x16x64xf32>
    %134 = vector.shape_cast %133 : vector<1x16x64xf32> to vector<16x64xf32>
    %cst_141 = arith.constant dense<0.000000e+00> : vector<16x128xf32>
    %135 = tpu.matmul %134, %77, %cst_141 {dimension_numbers = #tpu.dot_dimension_numbers<[1], [0], [0], [1], [0, 0, 1, 1], [], []>} : vector<16x64xf32>, vector<64x128xf32>, vector<16x128xf32> -> vector<16x128xf32>
    %c8_142 = arith.constant 8 : index
    %c0_143 = arith.constant 0 : index
    %c0_144 = arith.constant 0 : index
    %136 = vector.load %arg6[%c8_142, %c0_143, %c0_144] : memref<9x128x128xf32, #tpu.memory_space<vmem>>, vector<1x128x128xf32>
    %137 = vector.shape_cast %136 : vector<1x128x128xf32> to vector<128x128xf32>
    %cst_145 = arith.constant dense<0.000000e+00> : vector<16x128xf32>
    %138 = tpu.matmul %135, %137, %cst_145 {dimension_numbers = #tpu.dot_dimension_numbers<[1], [0], [0], [1], [0, 0, 1, 1], [], []>} : vector<16x128xf32>, vector<128x128xf32>, vector<16x128xf32> -> vector<16x128xf32>
    %139 = arith.addf %132, %138 : vector<16x128xf32>
    %c1_146 = arith.constant 1 : index
    %c0_147 = arith.constant 0 : index
    %c0_148 = arith.constant 0 : index
    %140 = vector.load %arg9[%c1_146, %c0_147, %c0_148] : memref<4x1x128xf32, #tpu.memory_space<vmem>>, vector<1x1x128xf32>
    %141 = vector.shape_cast %140 : vector<1x1x128xf32> to vector<1x128xf32>
    %142 = vector.broadcast %141 : vector<1x128xf32> to vector<16x128xf32>
    %143 = arith.addf %139, %142 : vector<16x128xf32>
    %cst_149 = arith.constant 2.000000e-01 : f32
    %144 = vector.broadcast %cst_149 : f32 to vector<16x128xf32>
    %145 = arith.mulf %144, %143 : vector<16x128xf32>
    %146 = arith.maximumf %143, %145 : vector<16x128xf32>
    %c1_150 = arith.constant 1 : index
    %c0_151 = arith.constant 0 : index
    %c0_152 = arith.constant 0 : index
    %147 = vector.load %arg10[%c1_150, %c0_151, %c0_152] : memref<4x1x128xf32, #tpu.memory_space<vmem>>, vector<1x1x128xf32>
    %148 = vector.shape_cast %147 : vector<1x1x128xf32> to vector<1x128xf32>
    %149 = vector.broadcast %148 : vector<1x128xf32> to vector<16x128xf32>
    %150 = arith.mulf %146, %149 : vector<16x128xf32>
    %c1_153 = arith.constant 1 : index
    %c0_154 = arith.constant 0 : index
    %c0_155 = arith.constant 0 : index
    %151 = vector.load %arg11[%c1_153, %c0_154, %c0_155] : memref<4x1x128xf32, #tpu.memory_space<vmem>>, vector<1x1x128xf32>
    %152 = vector.shape_cast %151 : vector<1x1x128xf32> to vector<1x128xf32>
    %153 = vector.broadcast %152 : vector<1x128xf32> to vector<16x128xf32>
    %154 = arith.addf %150, %153 : vector<16x128xf32>
    %c0_156 = arith.constant 0 : index
    %c0_157 = arith.constant 0 : index
    %c0_158 = arith.constant 0 : index
    %155 = vector.load %arg3[%c0_156, %c0_157, %c0_158] : memref<9x4x16xf32, #tpu.memory_space<vmem>>, vector<1x4x16xf32>
    %156 = vector.shape_cast %155 : vector<1x4x16xf32> to vector<4x16xf32>
    %cst_159 = arith.constant dense<0.000000e+00> : vector<4x128xf32>
    %157 = tpu.matmul %156, %154, %cst_159 {dimension_numbers = #tpu.dot_dimension_numbers<[1], [0], [0], [1], [0, 0, 1, 1], [], []>} : vector<4x16xf32>, vector<16x128xf32>, vector<4x128xf32> -> vector<4x128xf32>
    %c0_160 = arith.constant 0 : index
    %c0_161 = arith.constant 0 : index
    %c0_162 = arith.constant 0 : index
    %158 = vector.load %arg7[%c0_160, %c0_161, %c0_162] : memref<9x128x128xf32, #tpu.memory_space<vmem>>, vector<1x128x128xf32>
    %159 = vector.shape_cast %158 : vector<1x128x128xf32> to vector<128x128xf32>
    %cst_163 = arith.constant dense<0.000000e+00> : vector<4x128xf32>
    %160 = tpu.matmul %157, %159, %cst_163 {dimension_numbers = #tpu.dot_dimension_numbers<[1], [0], [0], [1], [0, 0, 1, 1], [], []>} : vector<4x128xf32>, vector<128x128xf32>, vector<4x128xf32> -> vector<4x128xf32>
    %c1_164 = arith.constant 1 : index
    %c0_165 = arith.constant 0 : index
    %c0_166 = arith.constant 0 : index
    %161 = vector.load %arg3[%c1_164, %c0_165, %c0_166] : memref<9x4x16xf32, #tpu.memory_space<vmem>>, vector<1x4x16xf32>
    %162 = vector.shape_cast %161 : vector<1x4x16xf32> to vector<4x16xf32>
    %cst_167 = arith.constant dense<0.000000e+00> : vector<4x128xf32>
    %163 = tpu.matmul %162, %154, %cst_167 {dimension_numbers = #tpu.dot_dimension_numbers<[1], [0], [0], [1], [0, 0, 1, 1], [], []>} : vector<4x16xf32>, vector<16x128xf32>, vector<4x128xf32> -> vector<4x128xf32>
    %c1_168 = arith.constant 1 : index
    %c0_169 = arith.constant 0 : index
    %c0_170 = arith.constant 0 : index
    %164 = vector.load %arg7[%c1_168, %c0_169, %c0_170] : memref<9x128x128xf32, #tpu.memory_space<vmem>>, vector<1x128x128xf32>
    %165 = vector.shape_cast %164 : vector<1x128x128xf32> to vector<128x128xf32>
    %cst_171 = arith.constant dense<0.000000e+00> : vector<4x128xf32>
    %166 = tpu.matmul %163, %165, %cst_171 {dimension_numbers = #tpu.dot_dimension_numbers<[1], [0], [0], [1], [0, 0, 1, 1], [], []>} : vector<4x128xf32>, vector<128x128xf32>, vector<4x128xf32> -> vector<4x128xf32>
    %167 = arith.addf %160, %166 : vector<4x128xf32>
    %c2_172 = arith.constant 2 : index
    %c0_173 = arith.constant 0 : index
    %c0_174 = arith.constant 0 : index
    %168 = vector.load %arg3[%c2_172, %c0_173, %c0_174] : memref<9x4x16xf32, #tpu.memory_space<vmem>>, vector<1x4x16xf32>
    %169 = vector.shape_cast %168 : vector<1x4x16xf32> to vector<4x16xf32>
    %cst_175 = arith.constant dense<0.000000e+00> : vector<4x128xf32>
    %170 = tpu.matmul %169, %154, %cst_175 {dimension_numbers = #tpu.dot_dimension_numbers<[1], [0], [0], [1], [0, 0, 1, 1], [], []>} : vector<4x16xf32>, vector<16x128xf32>, vector<4x128xf32> -> vector<4x128xf32>
    %c2_176 = arith.constant 2 : index
    %c0_177 = arith.constant 0 : index
    %c0_178 = arith.constant 0 : index
    %171 = vector.load %arg7[%c2_176, %c0_177, %c0_178] : memref<9x128x128xf32, #tpu.memory_space<vmem>>, vector<1x128x128xf32>
    %172 = vector.shape_cast %171 : vector<1x128x128xf32> to vector<128x128xf32>
    %cst_179 = arith.constant dense<0.000000e+00> : vector<4x128xf32>
    %173 = tpu.matmul %170, %172, %cst_179 {dimension_numbers = #tpu.dot_dimension_numbers<[1], [0], [0], [1], [0, 0, 1, 1], [], []>} : vector<4x128xf32>, vector<128x128xf32>, vector<4x128xf32> -> vector<4x128xf32>
    %174 = arith.addf %167, %173 : vector<4x128xf32>
    %c3_180 = arith.constant 3 : index
    %c0_181 = arith.constant 0 : index
    %c0_182 = arith.constant 0 : index
    %175 = vector.load %arg3[%c3_180, %c0_181, %c0_182] : memref<9x4x16xf32, #tpu.memory_space<vmem>>, vector<1x4x16xf32>
    %176 = vector.shape_cast %175 : vector<1x4x16xf32> to vector<4x16xf32>
    %cst_183 = arith.constant dense<0.000000e+00> : vector<4x128xf32>
    %177 = tpu.matmul %176, %154, %cst_183 {dimension_numbers = #tpu.dot_dimension_numbers<[1], [0], [0], [1], [0, 0, 1, 1], [], []>} : vector<4x16xf32>, vector<16x128xf32>, vector<4x128xf32> -> vector<4x128xf32>
    %c3_184 = arith.constant 3 : index
    %c0_185 = arith.constant 0 : index
    %c0_186 = arith.constant 0 : index
    %178 = vector.load %arg7[%c3_184, %c0_185, %c0_186] : memref<9x128x128xf32, #tpu.memory_space<vmem>>, vector<1x128x128xf32>
    %179 = vector.shape_cast %178 : vector<1x128x128xf32> to vector<128x128xf32>
    %cst_187 = arith.constant dense<0.000000e+00> : vector<4x128xf32>
    %180 = tpu.matmul %177, %179, %cst_187 {dimension_numbers = #tpu.dot_dimension_numbers<[1], [0], [0], [1], [0, 0, 1, 1], [], []>} : vector<4x128xf32>, vector<128x128xf32>, vector<4x128xf32> -> vector<4x128xf32>
    %181 = arith.addf %174, %180 : vector<4x128xf32>
    %c4_188 = arith.constant 4 : index
    %c0_189 = arith.constant 0 : index
    %c0_190 = arith.constant 0 : index
    %182 = vector.load %arg3[%c4_188, %c0_189, %c0_190] : memref<9x4x16xf32, #tpu.memory_space<vmem>>, vector<1x4x16xf32>
    %183 = vector.shape_cast %182 : vector<1x4x16xf32> to vector<4x16xf32>
    %cst_191 = arith.constant dense<0.000000e+00> : vector<4x128xf32>
    %184 = tpu.matmul %183, %154, %cst_191 {dimension_numbers = #tpu.dot_dimension_numbers<[1], [0], [0], [1], [0, 0, 1, 1], [], []>} : vector<4x16xf32>, vector<16x128xf32>, vector<4x128xf32> -> vector<4x128xf32>
    %c4_192 = arith.constant 4 : index
    %c0_193 = arith.constant 0 : index
    %c0_194 = arith.constant 0 : index
    %185 = vector.load %arg7[%c4_192, %c0_193, %c0_194] : memref<9x128x128xf32, #tpu.memory_space<vmem>>, vector<1x128x128xf32>
    %186 = vector.shape_cast %185 : vector<1x128x128xf32> to vector<128x128xf32>
    %cst_195 = arith.constant dense<0.000000e+00> : vector<4x128xf32>
    %187 = tpu.matmul %184, %186, %cst_195 {dimension_numbers = #tpu.dot_dimension_numbers<[1], [0], [0], [1], [0, 0, 1, 1], [], []>} : vector<4x128xf32>, vector<128x128xf32>, vector<4x128xf32> -> vector<4x128xf32>
    %188 = arith.addf %181, %187 : vector<4x128xf32>
    %c5_196 = arith.constant 5 : index
    %c0_197 = arith.constant 0 : index
    %c0_198 = arith.constant 0 : index
    %189 = vector.load %arg3[%c5_196, %c0_197, %c0_198] : memref<9x4x16xf32, #tpu.memory_space<vmem>>, vector<1x4x16xf32>
    %190 = vector.shape_cast %189 : vector<1x4x16xf32> to vector<4x16xf32>
    %cst_199 = arith.constant dense<0.000000e+00> : vector<4x128xf32>
    %191 = tpu.matmul %190, %154, %cst_199 {dimension_numbers = #tpu.dot_dimension_numbers<[1], [0], [0], [1], [0, 0, 1, 1], [], []>} : vector<4x16xf32>, vector<16x128xf32>, vector<4x128xf32> -> vector<4x128xf32>
    %c5_200 = arith.constant 5 : index
    %c0_201 = arith.constant 0 : index
    %c0_202 = arith.constant 0 : index
    %192 = vector.load %arg7[%c5_200, %c0_201, %c0_202] : memref<9x128x128xf32, #tpu.memory_space<vmem>>, vector<1x128x128xf32>
    %193 = vector.shape_cast %192 : vector<1x128x128xf32> to vector<128x128xf32>
    %cst_203 = arith.constant dense<0.000000e+00> : vector<4x128xf32>
    %194 = tpu.matmul %191, %193, %cst_203 {dimension_numbers = #tpu.dot_dimension_numbers<[1], [0], [0], [1], [0, 0, 1, 1], [], []>} : vector<4x128xf32>, vector<128x128xf32>, vector<4x128xf32> -> vector<4x128xf32>
    %195 = arith.addf %188, %194 : vector<4x128xf32>
    %c6_204 = arith.constant 6 : index
    %c0_205 = arith.constant 0 : index
    %c0_206 = arith.constant 0 : index
    %196 = vector.load %arg3[%c6_204, %c0_205, %c0_206] : memref<9x4x16xf32, #tpu.memory_space<vmem>>, vector<1x4x16xf32>
    %197 = vector.shape_cast %196 : vector<1x4x16xf32> to vector<4x16xf32>
    %cst_207 = arith.constant dense<0.000000e+00> : vector<4x128xf32>
    %198 = tpu.matmul %197, %154, %cst_207 {dimension_numbers = #tpu.dot_dimension_numbers<[1], [0], [0], [1], [0, 0, 1, 1], [], []>} : vector<4x16xf32>, vector<16x128xf32>, vector<4x128xf32> -> vector<4x128xf32>
    %c6_208 = arith.constant 6 : index
    %c0_209 = arith.constant 0 : index
    %c0_210 = arith.constant 0 : index
    %199 = vector.load %arg7[%c6_208, %c0_209, %c0_210] : memref<9x128x128xf32, #tpu.memory_space<vmem>>, vector<1x128x128xf32>
    %200 = vector.shape_cast %199 : vector<1x128x128xf32> to vector<128x128xf32>
    %cst_211 = arith.constant dense<0.000000e+00> : vector<4x128xf32>
    %201 = tpu.matmul %198, %200, %cst_211 {dimension_numbers = #tpu.dot_dimension_numbers<[1], [0], [0], [1], [0, 0, 1, 1], [], []>} : vector<4x128xf32>, vector<128x128xf32>, vector<4x128xf32> -> vector<4x128xf32>
    %202 = arith.addf %195, %201 : vector<4x128xf32>
    %c7_212 = arith.constant 7 : index
    %c0_213 = arith.constant 0 : index
    %c0_214 = arith.constant 0 : index
    %203 = vector.load %arg3[%c7_212, %c0_213, %c0_214] : memref<9x4x16xf32, #tpu.memory_space<vmem>>, vector<1x4x16xf32>
    %204 = vector.shape_cast %203 : vector<1x4x16xf32> to vector<4x16xf32>
    %cst_215 = arith.constant dense<0.000000e+00> : vector<4x128xf32>
    %205 = tpu.matmul %204, %154, %cst_215 {dimension_numbers = #tpu.dot_dimension_numbers<[1], [0], [0], [1], [0, 0, 1, 1], [], []>} : vector<4x16xf32>, vector<16x128xf32>, vector<4x128xf32> -> vector<4x128xf32>
    %c7_216 = arith.constant 7 : index
    %c0_217 = arith.constant 0 : index
    %c0_218 = arith.constant 0 : index
    %206 = vector.load %arg7[%c7_216, %c0_217, %c0_218] : memref<9x128x128xf32, #tpu.memory_space<vmem>>, vector<1x128x128xf32>
    %207 = vector.shape_cast %206 : vector<1x128x128xf32> to vector<128x128xf32>
    %cst_219 = arith.constant dense<0.000000e+00> : vector<4x128xf32>
    %208 = tpu.matmul %205, %207, %cst_219 {dimension_numbers = #tpu.dot_dimension_numbers<[1], [0], [0], [1], [0, 0, 1, 1], [], []>} : vector<4x128xf32>, vector<128x128xf32>, vector<4x128xf32> -> vector<4x128xf32>
    %209 = arith.addf %202, %208 : vector<4x128xf32>
    %c8_220 = arith.constant 8 : index
    %c0_221 = arith.constant 0 : index
    %c0_222 = arith.constant 0 : index
    %210 = vector.load %arg3[%c8_220, %c0_221, %c0_222] : memref<9x4x16xf32, #tpu.memory_space<vmem>>, vector<1x4x16xf32>
    %211 = vector.shape_cast %210 : vector<1x4x16xf32> to vector<4x16xf32>
    %cst_223 = arith.constant dense<0.000000e+00> : vector<4x128xf32>
    %212 = tpu.matmul %211, %154, %cst_223 {dimension_numbers = #tpu.dot_dimension_numbers<[1], [0], [0], [1], [0, 0, 1, 1], [], []>} : vector<4x16xf32>, vector<16x128xf32>, vector<4x128xf32> -> vector<4x128xf32>
    %c8_224 = arith.constant 8 : index
    %c0_225 = arith.constant 0 : index
    %c0_226 = arith.constant 0 : index
    %213 = vector.load %arg7[%c8_224, %c0_225, %c0_226] : memref<9x128x128xf32, #tpu.memory_space<vmem>>, vector<1x128x128xf32>
    %214 = vector.shape_cast %213 : vector<1x128x128xf32> to vector<128x128xf32>
    %cst_227 = arith.constant dense<0.000000e+00> : vector<4x128xf32>
    %215 = tpu.matmul %212, %214, %cst_227 {dimension_numbers = #tpu.dot_dimension_numbers<[1], [0], [0], [1], [0, 0, 1, 1], [], []>} : vector<4x128xf32>, vector<128x128xf32>, vector<4x128xf32> -> vector<4x128xf32>
    %216 = arith.addf %209, %215 : vector<4x128xf32>
    %c2_228 = arith.constant 2 : index
    %c0_229 = arith.constant 0 : index
    %c0_230 = arith.constant 0 : index
    %217 = vector.load %arg9[%c2_228, %c0_229, %c0_230] : memref<4x1x128xf32, #tpu.memory_space<vmem>>, vector<1x1x128xf32>
    %218 = vector.shape_cast %217 : vector<1x1x128xf32> to vector<1x128xf32>
    %219 = vector.broadcast %218 : vector<1x128xf32> to vector<4x128xf32>
    %220 = arith.addf %216, %219 : vector<4x128xf32>
    %cst_231 = arith.constant 2.000000e-01 : f32
    %221 = vector.broadcast %cst_231 : f32 to vector<4x128xf32>
    %222 = arith.mulf %221, %220 : vector<4x128xf32>
    %223 = arith.maximumf %220, %222 : vector<4x128xf32>
    %c2_232 = arith.constant 2 : index
    %c0_233 = arith.constant 0 : index
    %c0_234 = arith.constant 0 : index
    %224 = vector.load %arg10[%c2_232, %c0_233, %c0_234] : memref<4x1x128xf32, #tpu.memory_space<vmem>>, vector<1x1x128xf32>
    %225 = vector.shape_cast %224 : vector<1x1x128xf32> to vector<1x128xf32>
    %226 = vector.broadcast %225 : vector<1x128xf32> to vector<4x128xf32>
    %227 = arith.mulf %223, %226 : vector<4x128xf32>
    %c2_235 = arith.constant 2 : index
    %c0_236 = arith.constant 0 : index
    %c0_237 = arith.constant 0 : index
    %228 = vector.load %arg11[%c2_235, %c0_236, %c0_237] : memref<4x1x128xf32, #tpu.memory_space<vmem>>, vector<1x1x128xf32>
    %229 = vector.shape_cast %228 : vector<1x1x128xf32> to vector<1x128xf32>
    %230 = vector.broadcast %229 : vector<1x128xf32> to vector<4x128xf32>
    %231 = arith.addf %227, %230 : vector<4x128xf32>
    %c0_238 = arith.constant 0 : index
    %c0_239 = arith.constant 0 : index
    %c0_240 = arith.constant 0 : index
    %232 = vector.load %arg4[%c0_238, %c0_239, %c0_240] : memref<9x1x4xf32, #tpu.memory_space<vmem>>, vector<1x1x4xf32>
    %233 = vector.shape_cast %232 : vector<1x1x4xf32> to vector<1x4xf32>
    %cst_241 = arith.constant dense<0.000000e+00> : vector<1x128xf32>
    %234 = tpu.matmul %233, %231, %cst_241 {dimension_numbers = #tpu.dot_dimension_numbers<[1], [0], [0], [1], [0, 0, 1, 1], [], []>} : vector<1x4xf32>, vector<4x128xf32>, vector<1x128xf32> -> vector<1x128xf32>
    %c0_242 = arith.constant 0 : index
    %c0_243 = arith.constant 0 : index
    %c0_244 = arith.constant 0 : index
    %235 = vector.load %arg8[%c0_242, %c0_243, %c0_244] : memref<9x128x128xf32, #tpu.memory_space<vmem>>, vector<1x128x128xf32>
    %236 = vector.shape_cast %235 : vector<1x128x128xf32> to vector<128x128xf32>
    %cst_245 = arith.constant dense<0.000000e+00> : vector<1x128xf32>
    %237 = tpu.matmul %234, %236, %cst_245 {dimension_numbers = #tpu.dot_dimension_numbers<[1], [0], [0], [1], [0, 0, 1, 1], [], []>} : vector<1x128xf32>, vector<128x128xf32>, vector<1x128xf32> -> vector<1x128xf32>
    %c1_246 = arith.constant 1 : index
    %c0_247 = arith.constant 0 : index
    %c0_248 = arith.constant 0 : index
    %238 = vector.load %arg4[%c1_246, %c0_247, %c0_248] : memref<9x1x4xf32, #tpu.memory_space<vmem>>, vector<1x1x4xf32>
    %239 = vector.shape_cast %238 : vector<1x1x4xf32> to vector<1x4xf32>
    %cst_249 = arith.constant dense<0.000000e+00> : vector<1x128xf32>
    %240 = tpu.matmul %239, %231, %cst_249 {dimension_numbers = #tpu.dot_dimension_numbers<[1], [0], [0], [1], [0, 0, 1, 1], [], []>} : vector<1x4xf32>, vector<4x128xf32>, vector<1x128xf32> -> vector<1x128xf32>
    %c1_250 = arith.constant 1 : index
    %c0_251 = arith.constant 0 : index
    %c0_252 = arith.constant 0 : index
    %241 = vector.load %arg8[%c1_250, %c0_251, %c0_252] : memref<9x128x128xf32, #tpu.memory_space<vmem>>, vector<1x128x128xf32>
    %242 = vector.shape_cast %241 : vector<1x128x128xf32> to vector<128x128xf32>
    %cst_253 = arith.constant dense<0.000000e+00> : vector<1x128xf32>
    %243 = tpu.matmul %240, %242, %cst_253 {dimension_numbers = #tpu.dot_dimension_numbers<[1], [0], [0], [1], [0, 0, 1, 1], [], []>} : vector<1x128xf32>, vector<128x128xf32>, vector<1x128xf32> -> vector<1x128xf32>
    %244 = arith.addf %237, %243 : vector<1x128xf32>
    %c2_254 = arith.constant 2 : index
    %c0_255 = arith.constant 0 : index
    %c0_256 = arith.constant 0 : index
    %245 = vector.load %arg4[%c2_254, %c0_255, %c0_256] : memref<9x1x4xf32, #tpu.memory_space<vmem>>, vector<1x1x4xf32>
    %246 = vector.shape_cast %245 : vector<1x1x4xf32> to vector<1x4xf32>
    %cst_257 = arith.constant dense<0.000000e+00> : vector<1x128xf32>
    %247 = tpu.matmul %246, %231, %cst_257 {dimension_numbers = #tpu.dot_dimension_numbers<[1], [0], [0], [1], [0, 0, 1, 1], [], []>} : vector<1x4xf32>, vector<4x128xf32>, vector<1x128xf32> -> vector<1x128xf32>
    %c2_258 = arith.constant 2 : index
    %c0_259 = arith.constant 0 : index
    %c0_260 = arith.constant 0 : index
    %248 = vector.load %arg8[%c2_258, %c0_259, %c0_260] : memref<9x128x128xf32, #tpu.memory_space<vmem>>, vector<1x128x128xf32>
    %249 = vector.shape_cast %248 : vector<1x128x128xf32> to vector<128x128xf32>
    %cst_261 = arith.constant dense<0.000000e+00> : vector<1x128xf32>
    %250 = tpu.matmul %247, %249, %cst_261 {dimension_numbers = #tpu.dot_dimension_numbers<[1], [0], [0], [1], [0, 0, 1, 1], [], []>} : vector<1x128xf32>, vector<128x128xf32>, vector<1x128xf32> -> vector<1x128xf32>
    %251 = arith.addf %244, %250 : vector<1x128xf32>
    %c3_262 = arith.constant 3 : index
    %c0_263 = arith.constant 0 : index
    %c0_264 = arith.constant 0 : index
    %252 = vector.load %arg4[%c3_262, %c0_263, %c0_264] : memref<9x1x4xf32, #tpu.memory_space<vmem>>, vector<1x1x4xf32>
    %253 = vector.shape_cast %252 : vector<1x1x4xf32> to vector<1x4xf32>
    %cst_265 = arith.constant dense<0.000000e+00> : vector<1x128xf32>
    %254 = tpu.matmul %253, %231, %cst_265 {dimension_numbers = #tpu.dot_dimension_numbers<[1], [0], [0], [1], [0, 0, 1, 1], [], []>} : vector<1x4xf32>, vector<4x128xf32>, vector<1x128xf32> -> vector<1x128xf32>
    %c3_266 = arith.constant 3 : index
    %c0_267 = arith.constant 0 : index
    %c0_268 = arith.constant 0 : index
    %255 = vector.load %arg8[%c3_266, %c0_267, %c0_268] : memref<9x128x128xf32, #tpu.memory_space<vmem>>, vector<1x128x128xf32>
    %256 = vector.shape_cast %255 : vector<1x128x128xf32> to vector<128x128xf32>
    %cst_269 = arith.constant dense<0.000000e+00> : vector<1x128xf32>
    %257 = tpu.matmul %254, %256, %cst_269 {dimension_numbers = #tpu.dot_dimension_numbers<[1], [0], [0], [1], [0, 0, 1, 1], [], []>} : vector<1x128xf32>, vector<128x128xf32>, vector<1x128xf32> -> vector<1x128xf32>
    %258 = arith.addf %251, %257 : vector<1x128xf32>
    %c4_270 = arith.constant 4 : index
    %c0_271 = arith.constant 0 : index
    %c0_272 = arith.constant 0 : index
    %259 = vector.load %arg4[%c4_270, %c0_271, %c0_272] : memref<9x1x4xf32, #tpu.memory_space<vmem>>, vector<1x1x4xf32>
    %260 = vector.shape_cast %259 : vector<1x1x4xf32> to vector<1x4xf32>
    %cst_273 = arith.constant dense<0.000000e+00> : vector<1x128xf32>
    %261 = tpu.matmul %260, %231, %cst_273 {dimension_numbers = #tpu.dot_dimension_numbers<[1], [0], [0], [1], [0, 0, 1, 1], [], []>} : vector<1x4xf32>, vector<4x128xf32>, vector<1x128xf32> -> vector<1x128xf32>
    %c4_274 = arith.constant 4 : index
    %c0_275 = arith.constant 0 : index
    %c0_276 = arith.constant 0 : index
    %262 = vector.load %arg8[%c4_274, %c0_275, %c0_276] : memref<9x128x128xf32, #tpu.memory_space<vmem>>, vector<1x128x128xf32>
    %263 = vector.shape_cast %262 : vector<1x128x128xf32> to vector<128x128xf32>
    %cst_277 = arith.constant dense<0.000000e+00> : vector<1x128xf32>
    %264 = tpu.matmul %261, %263, %cst_277 {dimension_numbers = #tpu.dot_dimension_numbers<[1], [0], [0], [1], [0, 0, 1, 1], [], []>} : vector<1x128xf32>, vector<128x128xf32>, vector<1x128xf32> -> vector<1x128xf32>
    %265 = arith.addf %258, %264 : vector<1x128xf32>
    %c5_278 = arith.constant 5 : index
    %c0_279 = arith.constant 0 : index
    %c0_280 = arith.constant 0 : index
    %266 = vector.load %arg4[%c5_278, %c0_279, %c0_280] : memref<9x1x4xf32, #tpu.memory_space<vmem>>, vector<1x1x4xf32>
    %267 = vector.shape_cast %266 : vector<1x1x4xf32> to vector<1x4xf32>
    %cst_281 = arith.constant dense<0.000000e+00> : vector<1x128xf32>
    %268 = tpu.matmul %267, %231, %cst_281 {dimension_numbers = #tpu.dot_dimension_numbers<[1], [0], [0], [1], [0, 0, 1, 1], [], []>} : vector<1x4xf32>, vector<4x128xf32>, vector<1x128xf32> -> vector<1x128xf32>
    %c5_282 = arith.constant 5 : index
    %c0_283 = arith.constant 0 : index
    %c0_284 = arith.constant 0 : index
    %269 = vector.load %arg8[%c5_282, %c0_283, %c0_284] : memref<9x128x128xf32, #tpu.memory_space<vmem>>, vector<1x128x128xf32>
    %270 = vector.shape_cast %269 : vector<1x128x128xf32> to vector<128x128xf32>
    %cst_285 = arith.constant dense<0.000000e+00> : vector<1x128xf32>
    %271 = tpu.matmul %268, %270, %cst_285 {dimension_numbers = #tpu.dot_dimension_numbers<[1], [0], [0], [1], [0, 0, 1, 1], [], []>} : vector<1x128xf32>, vector<128x128xf32>, vector<1x128xf32> -> vector<1x128xf32>
    %272 = arith.addf %265, %271 : vector<1x128xf32>
    %c6_286 = arith.constant 6 : index
    %c0_287 = arith.constant 0 : index
    %c0_288 = arith.constant 0 : index
    %273 = vector.load %arg4[%c6_286, %c0_287, %c0_288] : memref<9x1x4xf32, #tpu.memory_space<vmem>>, vector<1x1x4xf32>
    %274 = vector.shape_cast %273 : vector<1x1x4xf32> to vector<1x4xf32>
    %cst_289 = arith.constant dense<0.000000e+00> : vector<1x128xf32>
    %275 = tpu.matmul %274, %231, %cst_289 {dimension_numbers = #tpu.dot_dimension_numbers<[1], [0], [0], [1], [0, 0, 1, 1], [], []>} : vector<1x4xf32>, vector<4x128xf32>, vector<1x128xf32> -> vector<1x128xf32>
    %c6_290 = arith.constant 6 : index
    %c0_291 = arith.constant 0 : index
    %c0_292 = arith.constant 0 : index
    %276 = vector.load %arg8[%c6_290, %c0_291, %c0_292] : memref<9x128x128xf32, #tpu.memory_space<vmem>>, vector<1x128x128xf32>
    %277 = vector.shape_cast %276 : vector<1x128x128xf32> to vector<128x128xf32>
    %cst_293 = arith.constant dense<0.000000e+00> : vector<1x128xf32>
    %278 = tpu.matmul %275, %277, %cst_293 {dimension_numbers = #tpu.dot_dimension_numbers<[1], [0], [0], [1], [0, 0, 1, 1], [], []>} : vector<1x128xf32>, vector<128x128xf32>, vector<1x128xf32> -> vector<1x128xf32>
    %279 = arith.addf %272, %278 : vector<1x128xf32>
    %c7_294 = arith.constant 7 : index
    %c0_295 = arith.constant 0 : index
    %c0_296 = arith.constant 0 : index
    %280 = vector.load %arg4[%c7_294, %c0_295, %c0_296] : memref<9x1x4xf32, #tpu.memory_space<vmem>>, vector<1x1x4xf32>
    %281 = vector.shape_cast %280 : vector<1x1x4xf32> to vector<1x4xf32>
    %cst_297 = arith.constant dense<0.000000e+00> : vector<1x128xf32>
    %282 = tpu.matmul %281, %231, %cst_297 {dimension_numbers = #tpu.dot_dimension_numbers<[1], [0], [0], [1], [0, 0, 1, 1], [], []>} : vector<1x4xf32>, vector<4x128xf32>, vector<1x128xf32> -> vector<1x128xf32>
    %c7_298 = arith.constant 7 : index
    %c0_299 = arith.constant 0 : index
    %c0_300 = arith.constant 0 : index
    %283 = vector.load %arg8[%c7_298, %c0_299, %c0_300] : memref<9x128x128xf32, #tpu.memory_space<vmem>>, vector<1x128x128xf32>
    %284 = vector.shape_cast %283 : vector<1x128x128xf32> to vector<128x128xf32>
    %cst_301 = arith.constant dense<0.000000e+00> : vector<1x128xf32>
    %285 = tpu.matmul %282, %284, %cst_301 {dimension_numbers = #tpu.dot_dimension_numbers<[1], [0], [0], [1], [0, 0, 1, 1], [], []>} : vector<1x128xf32>, vector<128x128xf32>, vector<1x128xf32> -> vector<1x128xf32>
    %286 = arith.addf %279, %285 : vector<1x128xf32>
    %c8_302 = arith.constant 8 : index
    %c0_303 = arith.constant 0 : index
    %c0_304 = arith.constant 0 : index
    %287 = vector.load %arg4[%c8_302, %c0_303, %c0_304] : memref<9x1x4xf32, #tpu.memory_space<vmem>>, vector<1x1x4xf32>
    %288 = vector.shape_cast %287 : vector<1x1x4xf32> to vector<1x4xf32>
    %cst_305 = arith.constant dense<0.000000e+00> : vector<1x128xf32>
    %289 = tpu.matmul %288, %231, %cst_305 {dimension_numbers = #tpu.dot_dimension_numbers<[1], [0], [0], [1], [0, 0, 1, 1], [], []>} : vector<1x4xf32>, vector<4x128xf32>, vector<1x128xf32> -> vector<1x128xf32>
    %c8_306 = arith.constant 8 : index
    %c0_307 = arith.constant 0 : index
    %c0_308 = arith.constant 0 : index
    %290 = vector.load %arg8[%c8_306, %c0_307, %c0_308] : memref<9x128x128xf32, #tpu.memory_space<vmem>>, vector<1x128x128xf32>
    %291 = vector.shape_cast %290 : vector<1x128x128xf32> to vector<128x128xf32>
    %cst_309 = arith.constant dense<0.000000e+00> : vector<1x128xf32>
    %292 = tpu.matmul %289, %291, %cst_309 {dimension_numbers = #tpu.dot_dimension_numbers<[1], [0], [0], [1], [0, 0, 1, 1], [], []>} : vector<1x128xf32>, vector<128x128xf32>, vector<1x128xf32> -> vector<1x128xf32>
    %293 = arith.addf %286, %292 : vector<1x128xf32>
    %c3_310 = arith.constant 3 : index
    %c0_311 = arith.constant 0 : index
    %c0_312 = arith.constant 0 : index
    %294 = vector.load %arg9[%c3_310, %c0_311, %c0_312] : memref<4x1x128xf32, #tpu.memory_space<vmem>>, vector<1x1x128xf32>
    %295 = vector.shape_cast %294 : vector<1x1x128xf32> to vector<1x128xf32>
    %296 = arith.addf %293, %295 : vector<1x128xf32>
    %cst_313 = arith.constant 2.000000e-01 : f32
    %297 = vector.broadcast %cst_313 : f32 to vector<1x128xf32>
    %298 = arith.mulf %297, %296 : vector<1x128xf32>
    %299 = arith.maximumf %296, %298 : vector<1x128xf32>
    %c3_314 = arith.constant 3 : index
    %c0_315 = arith.constant 0 : index
    %c0_316 = arith.constant 0 : index
    %300 = vector.load %arg10[%c3_314, %c0_315, %c0_316] : memref<4x1x128xf32, #tpu.memory_space<vmem>>, vector<1x1x128xf32>
    %301 = vector.shape_cast %300 : vector<1x1x128xf32> to vector<1x128xf32>
    %302 = arith.mulf %299, %301 : vector<1x128xf32>
    %c3_317 = arith.constant 3 : index
    %c0_318 = arith.constant 0 : index
    %c0_319 = arith.constant 0 : index
    %303 = vector.load %arg11[%c3_317, %c0_318, %c0_319] : memref<4x1x128xf32, #tpu.memory_space<vmem>>, vector<1x1x128xf32>
    %304 = vector.shape_cast %303 : vector<1x1x128xf32> to vector<1x128xf32>
    %305 = arith.addf %302, %304 : vector<1x128xf32>
    %c0_320 = arith.constant 0 : index
    %c0_321 = arith.constant 0 : index
    %306 = vector.load %arg12[%c0_320, %c0_321] : memref<1x128xf32, #tpu.memory_space<vmem>>, vector<1x128xf32>
    %307 = arith.mulf %305, %306 : vector<1x128xf32>
    %cst_322 = arith.constant dense<0.000000e+00> : vector<1xf32>
    %308 = vector.multi_reduction <add>, %307, %cst_322 [1] : vector<1x128xf32> to vector<1xf32>
    %309 = vector.shape_cast %308 : vector<1xf32> to vector<1x1xf32>
    %cst_323 = arith.constant dense<0.000000e+00> : vector<1xf32>
    %310 = vector.multi_reduction <add>, %309, %cst_323 [0] : vector<1x1xf32> to vector<1xf32>
    %311 = vector.shape_cast %310 : vector<1xf32> to vector<1x1xf32>
    %c0_324 = arith.constant 0 : index
    %c0_325 = arith.constant 0 : index
    %312 = vector.load %arg13[%c0_324, %c0_325] : memref<1x1xf32, #tpu.memory_space<vmem>>, vector<1x1xf32>
    %313 = arith.addf %311, %312 : vector<1x1xf32>
    %cst_326 = arith.constant 0.000000e+00 : f32
    %314 = vector.broadcast %cst_326 : f32 to vector<1x1xf32>
    %315 = arith.subf %314, %313 : vector<1x1xf32>
    %316 = math.exp %315 : vector<1x1xf32>
    %cst_327 = arith.constant 1.000000e+00 : f32
    %317 = vector.broadcast %cst_327 : f32 to vector<1x1xf32>
    %318 = arith.addf %317, %316 : vector<1x1xf32>
    %cst_328 = arith.constant 1.000000e+00 : f32
    %319 = vector.broadcast %cst_328 : f32 to vector<1x1xf32>
    %320 = arith.divf %319, %318 : vector<1x1xf32>
    %c0_329 = arith.constant 0 : index
    %c0_330 = arith.constant 0 : index
    %321 = vector.load %arg14[%c0_329, %c0_330] : memref<1x1xf32, #tpu.memory_space<vmem>>, vector<1x1xf32>
    tpu.vector_store %arg14[%c0_329, %c0_330], %320 {strides = array<i32>} : memref<1x1xf32, #tpu.memory_space<vmem>>, vector<1x1xf32>,
    return
  }
}

</mosaic_0001>

<llo_original>
// kernel: discriminator_forward.1
$region0: #{discriminator_forward.1}
  #allocation0 [shape = 'u32[]', space=smem, size = 0x4, offset = 0x4, fixed_abs, tag = 'smem constant byte address 0x4 - core index']
  #allocation1 [shape = 'u32[144,128]{1,0:T(1,128)}', space=vmem, size = 0x12000, scoped, tag = 'internal scratch']
  #allocation2 [shape = 'f32[1,1]{1,0:T(1,128)S(1)}', space=vmem, size = 0x200, scoped, tag = 'scoped memory for discriminator_forward.1']
  %s0 = inlined_call_operand.vmem [shape: f32[256,3], index: 0, kind: input, shape index: {}]
  %s1 = inlined_call_operand.hbm [shape: f32[9,64,256], index: 1, kind: input, shape index: {}]
  %s2 = inlined_call_operand.vmem [shape: f32[9,16,64], index: 2, kind: input, shape index: {}]
  %s3 = inlined_call_operand.vmem [shape: f32[9,4,16], index: 3, kind: input, shape index: {}]
  %s4 = inlined_call_operand.vmem [shape: f32[9,1,4], index: 4, kind: input, shape index: {}]
  %s5 = inlined_call_operand.vmem [shape: f32[9,3,128], index: 5, kind: input, shape index: {}]
  %s6 = inlined_call_operand.hbm [shape: f32[9,128,128], index: 6, kind: input, shape index: {}]
  %s7 = inlined_call_operand.hbm [shape: f32[9,128,128], index: 7, kind: input, shape index: {}]
  %s8 = inlined_call_operand.hbm [shape: f32[9,128,128], index: 8, kind: input, shape index: {}]
  %s9 = inlined_call_operand.vmem [shape: f32[4,1,128], index: 9, kind: input, shape index: {}]
  %s10 = inlined_call_operand.vmem [shape: f32[4,1,128], index: 10, kind: input, shape index: {}]
  %s11 = inlined_call_operand.vmem [shape: f32[4,1,128], index: 11, kind: input, shape index: {}]
  %s12 = inlined_call_operand.vmem [shape: f32[1,128], index: 12, kind: input, shape index: {}]
  %s13 = inlined_call_operand.<no memory space> [shape: f32[1,1], index: 13, kind: input, shape index: {}]
  %s14 = inlined_call_operand.hbm [shape: f32[1,1], index: 14, kind: output, shape index: {}]
  %s15 = sld [smem:[#allocation0]]
  $region82: #{discriminator_forward.1} parent=0
    _
  %s17 = ssub.s32 1, %s15
  %s18 = scalar_select 0, %s17, %s15
  %v19 = vstv %s13
  %20 = vst [vmem:[#allocation2] sm:$0x1] %v19
  $region1: #{discriminator_forward.1} parent=0
    #allocation3 [shape = 'u8[589824]{0}', space=vmem, size = 0x90000, scoped, tag = 'input window, operand 1, single buffered']
    #allocation4 [shape = 's32[1]{0}', space=sflag, size = 0x4, scoped, tag = 'scoped memory for discriminator_forward.1']
    #allocation5 [shape = 's32[1]{0}', space=sflag, size = 0x4, scoped, tag = 'scoped memory for discriminator_forward.1']
    #allocation6 [shape = 'u8[589824]{0}', space=vmem, size = 0x90000, scoped, tag = 'input window, operand 6, single buffered']
    #allocation7 [shape = 's32[1]{0}', space=sflag, size = 0x4, scoped, tag = 'scoped memory for discriminator_forward.1']
    #allocation8 [shape = 'u8[589824]{0}', space=vmem, size = 0x90000, scoped, tag = 'input window, operand 7, single buffered']
    #allocation9 [shape = 'u8[589824]{0}', space=vmem, size = 0x90000, scoped, tag = 'input window, operand 8, single buffered']
    #allocation10 [shape = 's32[1]{0}', space=sflag, size = 0x4, scoped, tag = 'scoped memory for discriminator_forward.1']
    #allocation11 [shape = 'u8[512]{0}', space=vmem, size = 0x400, scoped, tag = 'output window, operand 0, single buffered']
    %21 = vsyncpa [#allocation4], 0
    %22 = vsyncpa [#allocation7], 0
    %23 = vsyncpa [#allocation10], 0
    %24 = vsyncpa [#allocation5], 0
    // Predicated region
    $region2: #{discriminator_forward.1} parent=1 // pred_check
      _
    $region3: #{discriminator_forward.1} parent=1 // pred_check_branch
      %26 = sbr.rel (0) target = $region5
    $region4: #{discriminator_forward.1} parent=1 // pred_region
      _
    $region5: #{discriminator_forward.1} parent=1 // pred_fallthru
      _
    // Predicated region
    $region6: #{discriminator_forward.1} parent=1 // pred_check
      _
    $region7: #{discriminator_forward.1} parent=1 // pred_check_branch
      %28 = sbr.rel (0) target = $region9
    $region8: #{discriminator_forward.1} parent=1 // pred_region
      %s30 = ssub.s32 18432, 18432
      %31 = vsyncadd [#allocation4], %s30
      %s32 = sshll.u32 [#allocation3], 4
      %s33 = int_to_ptr.vmem [resolvable:$true] %s32
      %38 = dma.hbm_to_vmem [thread:$0]  %s1, 18432, %s33, [#allocation4], 256, 256, 16
    $region9: #{discriminator_forward.1} parent=1 // pred_fallthru
      _
    // Predicated region
    $region10: #{discriminator_forward.1} parent=1 // pred_check
      _
    $region11: #{discriminator_forward.1} parent=1 // pred_check_branch
      %40 = sbr.rel (0) target = $region13
    $region12: #{discriminator_forward.1} parent=1 // pred_region
      _
    $region13: #{discriminator_forward.1} parent=1 // pred_fallthru
      _
    // Predicated region
    $region14: #{discriminator_forward.1} parent=1 // pred_check
      _
    $region15: #{discriminator_forward.1} parent=1 // pred_check_branch
      %42 = sbr.rel (0) target = $region17
    $region16: #{discriminator_forward.1} parent=1 // pred_region
      _
    $region17: #{discriminator_forward.1} parent=1 // pred_fallthru
      _
    // Predicated region
    $region18: #{discriminator_forward.1} parent=1 // pred_check
      _
    $region19: #{discriminator_forward.1} parent=1 // pred_check_branch
      %44 = sbr.rel (0) target = $region21
    $region20: #{discriminator_forward.1} parent=1 // pred_region
      _
    $region21: #{discriminator_forward.1} parent=1 // pred_fallthru
      _
    // Predicated region
    $region22: #{discriminator_forward.1} parent=1 // pred_check
      _
    $region23: #{discriminator_forward.1} parent=1 // pred_check_branch
      %46 = sbr.rel (0) target = $region25
    $region24: #{discriminator_forward.1} parent=1 // pred_region
      _
    $region25: #{discriminator_forward.1} parent=1 // pred_fallthru
      _
    // Predicated region
    $region26: #{discriminator_forward.1} parent=1 // pred_check
      _
    $region27: #{discriminator_forward.1} parent=1 // pred_check_branch
      %48 = sbr.rel (0) target = $region29
    $region28: #{discriminator_forward.1} parent=1 // pred_region
      %s50 = ssub.s32 18432, 18432
      %51 = vsyncadd [#allocation7], %s50
      %s52 = sshll.u32 [#allocation6], 4
      %s53 = int_to_ptr.vmem [resolvable:$true] %s52
      %58 = dma.hbm_to_vmem [thread:$0]  %s6, 18432, %s53, [#allocation7], 128, 128, 8
    $region29: #{discriminator_forward.1} parent=1 // pred_fallthru
      _
    // Predicated region
    $region30: #{discriminator_forward.1} parent=1 // pred_check
      _
    $region31: #{discriminator_forward.1} parent=1 // pred_check_branch
      %60 = sbr.rel (0) target = $region33
    $region32: #{discriminator_forward.1} parent=1 // pred_region
      %s62 = ssub.s32 18432, 18432
      %63 = vsyncadd [#allocation7], %s62
      %s64 = sshll.u32 [#allocation8], 4
      %s65 = int_to_ptr.vmem [resolvable:$true] %s64
      %70 = dma.hbm_to_vmem [thread:$0]  %s7, 18432, %s65, [#allocation7], 128, 128, 8
    $region33: #{discriminator_forward.1} parent=1 // pred_fallthru
      _
    // Predicated region
    $region34: #{discriminator_forward.1} parent=1 // pred_check
      _
    $region35: #{discriminator_forward.1} parent=1 // pred_check_branch
      %72 = sbr.rel (0) target = $region37
    $region36: #{discriminator_forward.1} parent=1 // pred_region
      %s74 = ssub.s32 18432, 18432
      %75 = vsyncadd [#allocation10], %s74
      %s76 = sshll.u32 [#allocation9], 4
      %s77 = int_to_ptr.vmem [resolvable:$true] %s76
      %82 = dma.hbm_to_vmem [thread:$0]  %s8, 18432, %s77, [#allocation10], 128, 128, 8
    $region37: #{discriminator_forward.1} parent=1 // pred_fallthru
      _
    // Predicated region
    $region38: #{discriminator_forward.1} parent=1 // pred_check
      _
    $region39: #{discriminator_forward.1} parent=1 // pred_check_branch
      %84 = sbr.rel (0) target = $region41
    $region40: #{discriminator_forward.1} parent=1 // pred_region
      _
    $region41: #{discriminator_forward.1} parent=1 // pred_fallthru
      _
    // Predicated region
    $region42: #{discriminator_forward.1} parent=1 // pred_check
      _
    $region43: #{discriminator_forward.1} parent=1 // pred_check_branch
      %86 = sbr.rel (0) target = $region45
    $region44: #{discriminator_forward.1} parent=1 // pred_region
      _
    $region45: #{discriminator_forward.1} parent=1 // pred_fallthru
      _
    // Predicated region
    $region46: #{discriminator_forward.1} parent=1 // pred_check
      _
    $region47: #{discriminator_forward.1} parent=1 // pred_check_branch
      %88 = sbr.rel (0) target = $region49
    $region48: #{discriminator_forward.1} parent=1 // pred_region
      _
    $region49: #{discriminator_forward.1} parent=1 // pred_fallthru
      _
    // Predicated region
    $region50: #{discriminator_forward.1} parent=1 // pred_check
      _
    $region51: #{discriminator_forward.1} parent=1 // pred_check_branch
      %90 = sbr.rel (0) target = $region53
    $region52: #{discriminator_forward.1} parent=1 // pred_region
      _
    $region53: #{discriminator_forward.1} parent=1 // pred_fallthru
      _
    // Predicated region
    $region54: #{discriminator_forward.1} parent=1 // pred_check
      _
    $region55: #{discriminator_forward.1} parent=1 // pred_check_branch
      %92 = sbr.rel (0) target = $region57
    $region56: #{discriminator_forward.1} parent=1 // pred_region
      _
    $region57: #{discriminator_forward.1} parent=1 // pred_fallthru
      _
    // Predicated region
    $region58: #{discriminator_forward.1} parent=1 // pred_check
      _
    $region59: #{discriminator_forward.1} parent=1 // pred_check_branch
      %94 = sbr.rel (0) target = $region61
    $region60: #{discriminator_forward.1} parent=1 // pred_region
      %95 = dma.done [#allocation4], 18432
    $region61: #{discriminator_forward.1} parent=1 // pred_fallthru
      _
    // Predicated region
    $region62: #{discriminator_forward.1} parent=1 // pred_check
      _
    $region63: #{discriminator_forward.1} parent=1 // pred_check_branch
      %97 = sbr.rel (0) target = $region65
    $region64: #{discriminator_forward.1} parent=1 // pred_region
      %98 = dma.done [#allocation7], 18432
    $region65: #{discriminator_forward.1} parent=1 // pred_fallthru
      _
    // Predicated region
    $region66: #{discriminator_forward.1} parent=1 // pred_check
      _
    $region67: #{discriminator_forward.1} parent=1 // pred_check_branch
      %100 = sbr.rel (0) target = $region69
    $region68: #{discriminator_forward.1} parent=1 // pred_region
      %101 = dma.done [#allocation7], 18432
    $region69: #{discriminator_forward.1} parent=1 // pred_fallthru
      _
    // Predicated region
    $region70: #{discriminator_forward.1} parent=1 // pred_check
      _
    $region71: #{discriminator_forward.1} parent=1 // pred_check_branch
      %103 = sbr.rel (0) target = $region73
    $region72: #{discriminator_forward.1} parent=1 // pred_region
      %104 = dma.done [#allocation10], 18432
    $region73: #{discriminator_forward.1} parent=1 // pred_fallthru
      _
    %v105 = vld [vmem:[%s0] sm:$0xff]
    %v106 = vld [vmem:[%s0 + $0x8] sm:$0xff]
    %v107 = vld [vmem:[%s0 + $0x10] sm:$0xff]
    %v108 = vld [vmem:[%s0 + $0x18] sm:$0xff]
    %v109 = vld [vmem:[%s0 + $0x20] sm:$0xff]
    %v110 = vld [vmem:[%s0 + $0x28] sm:$0xff]
    %v111 = vld [vmem:[%s0 + $0x30] sm:$0xff]
    %v112 = vld [vmem:[%s0 + $0x38] sm:$0xff]
    %v113 = vld [vmem:[%s0 + $0x40] sm:$0xff]
    %v114 = vld [vmem:[%s0 + $0x48] sm:$0xff]
    %v115 = vld [vmem:[%s0 + $0x50] sm:$0xff]
    %v116 = vld [vmem:[%s0 + $0x58] sm:$0xff]
    %v117 = vld [vmem:[%s0 + $0x60] sm:$0xff]
    %v118 = vld [vmem:[%s0 + $0x68] sm:$0xff]
    %v119 = vld [vmem:[%s0 + $0x70] sm:$0xff]
    %v120 = vld [vmem:[%s0 + $0x78] sm:$0xff]
    %v121 = vld [vmem:[%s0 + $0x80] sm:$0xff]
    %v122 = vld [vmem:[%s0 + $0x88] sm:$0xff]
    %v123 = vld [vmem:[%s0 + $0x90] sm:$0xff]
    %v124 = vld [vmem:[%s0 + $0x98] sm:$0xff]
    %v125 = vld [vmem:[%s0 + $0xa0] sm:$0xff]
    %v126 = vld [vmem:[%s0 + $0xa8] sm:$0xff]
    %v127 = vld [vmem:[%s0 + $0xb0] sm:$0xff]
    %v128 = vld [vmem:[%s0 + $0xb8] sm:$0xff]
    %v129 = vld [vmem:[%s0 + $0xc0] sm:$0xff]
    %v130 = vld [vmem:[%s0 + $0xc8] sm:$0xff]
    %v131 = vld [vmem:[%s0 + $0xd0] sm:$0xff]
    %v132 = vld [vmem:[%s0 + $0xd8] sm:$0xff]
    %v133 = vld [vmem:[%s0 + $0xe0] sm:$0xff]
    %v134 = vld [vmem:[%s0 + $0xe8] sm:$0xff]
    %v135 = vld [vmem:[%s0 + $0xf0] sm:$0xff]
    %v136 = vld [vmem:[%s0 + $0xf8] sm:$0xff]
    %v137 = vld [vmem:[#allocation3] sm:$0xff]
    %v138 = vld [vmem:[#allocation3 + $0x8] sm:$0xff]
    %v139 = vld [vmem:[#allocation3 + $0x10] sm:$0xff]
    %v140 = vld [vmem:[#allocation3 + $0x18] sm:$0xff]
    %v141 = vld [vmem:[#allocation3 + $0x20] sm:$0xff]
    %v142 = vld [vmem:[#allocation3 + $0x28] sm:$0xff]
    %v143 = vld [vmem:[#allocation3 + $0x30] sm:$0xff]
    %v144 = vld [vmem:[#allocation3 + $0x38] sm:$0xff]
    %v145 = vld [vmem:[#allocation3 + $0x40] sm:$0xff]
    %v146 = vld [vmem:[#allocation3 + $0x48] sm:$0xff]
    %v147 = vld [vmem:[#allocation3 + $0x50] sm:$0xff]
    %v148 = vld [vmem:[#allocation3 + $0x58] sm:$0xff]
    %v149 = vld [vmem:[#allocation3 + $0x60] sm:$0xff]
    %v150 = vld [vmem:[#allocation3 + $0x68] sm:$0xff]
    %v151 = vld [vmem:[#allocation3 + $0x70] sm:$0xff]
    %v152 = vld [vmem:[#allocation3 + $0x78] sm:$0xff]
    %153 = vmatprep.subr.mxu0 0.0
    %154 = vmatpush1.msra.mxu0 %v120
    %155 = vmatprep.subr.mxu0 0.0
    %156 = vmatpush1.msra.mxu0 %v119
    %157 = vmatprep.subr.mxu0 0.0
    %158 = vmatpush1.msra.mxu0 %v118
    %159 = vmatprep.subr.mxu0 0.0
    %160 = vmatpush1.msra.mxu0 %v117
    %161 = vmatprep.subr.mxu0 0.0
    %162 = vmatpush1.msra.mxu0 %v116
    %163 = vmatprep.subr.mxu0 0.0
    %164 = vmatpush1.msra.mxu0 %v115
    %165 = vmatprep.subr.mxu0 0.0
    %166 = vmatpush1.msra.mxu0 %v114
    %167 = vmatprep.subr.mxu0 0.0
    %168 = vmatpush1.msra.mxu0 %v113
    %169 = vmatprep.subr.mxu0 0.0
    %170 = vmatpush1.msra.mxu0 %v112
    %171 = vmatprep.subr.mxu0 0.0
    %172 = vmatpush1.msra.mxu0 %v111
    %173 = vmatprep.subr.mxu0 0.0
    %174 = vmatpush1.msra.mxu0 %v110
    %175 = vmatprep.subr.mxu0 0.0
    %176 = vmatpush1.msra.mxu0 %v109
    %177 = vmatprep.subr.mxu0 0.0
    %178 = vmatpush1.msra.mxu0 %v108
    %179 = vmatprep.subr.mxu0 0.0
    %180 = vmatpush1.msra.mxu0 %v107
    %181 = vmatprep.subr.mxu0 0.0
    %182 = vmatpush1.msra.mxu0 %v106
    %183 = vmatprep.subr.mxu0 0.0
    %184 = vmatpush1.msra.mxu0 %v105
    %185 = vmatprep.subr.mxu0 0.0
    %186 = vmatpush2.msra.mxu0 %v136
    %187 = vmatprep.subr.mxu0 0.0
    %188 = vmatpush2.msra.mxu0 %v135
    %189 = vmatprep.subr.mxu0 0.0
    %190 = vmatpush2.msra.mxu0 %v134
    %191 = vmatprep.subr.mxu0 0.0
    %192 = vmatpush2.msra.mxu0 %v133
    %193 = vmatprep.subr.mxu0 0.0
    %194 = vmatpush2.msra.mxu0 %v132
    %195 = vmatprep.subr.mxu0 0.0
    %196 = vmatpush2.msra.mxu0 %v131
    %197 = vmatprep.subr.mxu0 0.0
    %198 = vmatpush2.msra.mxu0 %v130
    %199 = vmatprep.subr.mxu0 0.0
    %200 = vmatpush2.msra.mxu0 %v129
    %201 = vmatprep.subr.mxu0 0.0
    %202 = vmatpush2.msra.mxu0 %v128
    %203 = vmatprep.subr.mxu0 0.0
    %204 = vmatpush2.msra.mxu0 %v127
    %205 = vmatprep.subr.mxu0 0.0
    %206 = vmatpush2.msra.mxu0 %v126
    %207 = vmatprep.subr.mxu0 0.0
    %208 = vmatpush2.msra.mxu0 %v125
    %209 = vmatprep.subr.mxu0 0.0
    %210 = vmatpush2.msra.mxu0 %v124
    %211 = vmatprep.subr.mxu0 0.0
    %212 = vmatpush2.msra.mxu0 %v123
    %213 = vmatprep.subr.mxu0 0.0
    %214 = vmatpush2.msra.mxu0 %v122
    %215 = vmatprep.subr.mxu0 0.0
    %216 = vmatpush2.msra.mxu0 %v121
    %217 = vmatprep.mubr.f32.mxu0 %v138
    %218 = vmatmul.mubr.f32.gmra.mxu0 %v137
    %v219 = vpop.f32.mrf.mxu0
    %v220 = vadd.f32 0.0, %v219
    %v221 = vpop.f32.mrf.mxu0
    %222 = vmatprep.mubr.f32.mxu0 %v140
    %223 = vmatmul.mubr.f32.gmra.mxu0 %v139
    %v224 = vpop.f32.mrf.mxu0
    %v225 = vadd.f32 0.0, %v224
    %v226 = vpop.f32.mrf.mxu0
    %227 = vmatprep.mubr.f32.mxu0 %v142
    %228 = vmatmul.mubr.f32.gmra.mxu0 %v141
    %v229 = vpop.f32.mrf.mxu0
    %v230 = vadd.f32 0.0, %v229
    %v231 = vpop.f32.mrf.mxu0
    %232 = vmatprep.mubr.f32.mxu0 %v144
    %233 = vmatmul.mubr.f32.gmra.mxu0 %v143
    %v234 = vpop.f32.mrf.mxu0
    %v235 = vadd.f32 0.0, %v234
    %v236 = vpop.f32.mrf.mxu0
    %237 = vmatprep.mubr.f32.mxu0 %v146
    %238 = vmatmul.mubr.f32.gmra.mxu0 %v145
    %v239 = vpop.f32.mrf.mxu0
    %v240 = vadd.f32 0.0, %v239
    %v241 = vpop.f32.mrf.mxu0
    %242 = vmatprep.mubr.f32.mxu0 %v148
    %243 = vmatmul.mubr.f32.gmra.mxu0 %v147
    %v244 = vpop.f32.mrf.mxu0
    %v245 = vadd.f32 0.0, %v244
    %v246 = vpop.f32.mrf.mxu0
    %247 = vmatprep.mubr.f32.mxu0 %v150
    %248 = vmatmul.mubr.f32.gmra.mxu0 %v149
    %v249 = vpop.f32.mrf.mxu0
    %v250 = vadd.f32 0.0, %v249
    %v251 = vpop.f32.mrf.mxu0
    %252 = vmatprep.mubr.f32.mxu0 %v152
    %253 = vmatmul.mubr.f32.gmra.mxu0 %v151
    %v254 = vpop.f32.mrf.mxu0
    %v255 = vadd.f32 0.0, %v254
    %v256 = vpop.f32.mrf.mxu0
    %257 = vdwg.mxu0
    %v258 = vld [vmem:[%s5] sm:$0x7]
    %s259 = scalar_lea.vmem [#allocation3], 128
    %v260 = vld [vmem:[%s259] sm:$0xff]
    %v261 = vld [vmem:[%s259 + $0x8] sm:$0xff]
    %v262 = vld [vmem:[%s259 + $0x10] sm:$0xff]
    %v263 = vld [vmem:[%s259 + $0x18] sm:$0xff]
    %v264 = vld [vmem:[%s259 + $0x20] sm:$0xff]
    %v265 = vld [vmem:[%s259 + $0x28] sm:$0xff]
    %v266 = vld [vmem:[%s259 + $0x30] sm:$0xff]
    %v267 = vld [vmem:[%s259 + $0x38] sm:$0xff]
    %v268 = vld [vmem:[%s259 + $0x40] sm:$0xff]
    %v269 = vld [vmem:[%s259 + $0x48] sm:$0xff]
    %v270 = vld [vmem:[%s259 + $0x50] sm:$0xff]
    %v271 = vld [vmem:[%s259 + $0x58] sm:$0xff]
    %v272 = vld [vmem:[%s259 + $0x60] sm:$0xff]
    %v273 = vld [vmem:[%s259 + $0x68] sm:$0xff]
    %v274 = vld [vmem:[%s259 + $0x70] sm:$0xff]
    %v275 = vld [vmem:[%s259 + $0x78] sm:$0xff]
    %276 = vmatprep.subr.mxu0 0.0
    %277 = vmatpush1.msra.mxu0 %v120
    %278 = vmatprep.subr.mxu0 0.0
    %279 = vmatpush1.msra.mxu0 %v119
    %280 = vmatprep.subr.mxu0 0.0
    %281 = vmatpush1.msra.mxu0 %v118
    %282 = vmatprep.subr.mxu0 0.0
    %283 = vmatpush1.msra.mxu0 %v117
    %284 = vmatprep.subr.mxu0 0.0
    %285 = vmatpush1.msra.mxu0 %v116
    %286 = vmatprep.subr.mxu0 0.0
    %287 = vmatpush1.msra.mxu0 %v115
    %288 = vmatprep.subr.mxu0 0.0
    %289 = vmatpush1.msra.mxu0 %v114
    %290 = vmatprep.subr.mxu0 0.0
    %291 = vmatpush1.msra.mxu0 %v113
    %292 = vmatprep.subr.mxu0 0.0
    %293 = vmatpush1.msra.mxu0 %v112
    %294 = vmatprep.subr.mxu0 0.0
    %295 = vmatpush1.msra.mxu0 %v111
    %296 = vmatprep.subr.mxu0 0.0
    %297 = vmatpush1.msra.mxu0 %v110
    %298 = vmatprep.subr.mxu0 0.0
    %299 = vmatpush1.msra.mxu0 %v109
    %300 = vmatprep.subr.mxu0 0.0
    %301 = vmatpush1.msra.mxu0 %v108
    %302 = vmatprep.subr.mxu0 0.0
    %303 = vmatpush1.msra.mxu0 %v107
    %304 = vmatprep.subr.mxu0 0.0
    %305 = vmatpush1.msra.mxu0 %v106
    %306 = vmatprep.subr.mxu0 0.0
    %307 = vmatpush1.msra.mxu0 %v105
    %308 = vmatprep.subr.mxu0 0.0
    %309 = vmatpush2.msra.mxu0 %v136
    %310 = vmatprep.subr.mxu0 0.0
    %311 = vmatpush2.msra.mxu0 %v135
    %312 = vmatprep.subr.mxu0 0.0
    %313 = vmatpush2.msra.mxu0 %v134
    %314 = vmatprep.subr.mxu0 0.0
    %315 = vmatpush2.msra.mxu0 %v133
    %316 = vmatprep.subr.mxu0 0.0
    %317 = vmatpush2.msra.mxu0 %v132
    %318 = vmatprep.subr.mxu0 0.0
    %319 = vmatpush2.msra.mxu0 %v131
    %320 = vmatprep.subr.mxu0 0.0
    %321 = vmatpush2.msra.mxu0 %v130
    %322 = vmatprep.subr.mxu0 0.0
    %323 = vmatpush2.msra.mxu0 %v129
    %324 = vmatprep.subr.mxu0 0.0
    %325 = vmatpush2.msra.mxu0 %v128
    %326 = vmatprep.subr.mxu0 0.0
    %327 = vmatpush2.msra.mxu0 %v127
    %328 = vmatprep.subr.mxu0 0.0
    %329 = vmatpush2.msra.mxu0 %v126
    %330 = vmatprep.subr.mxu0 0.0
    %331 = vmatpush2.msra.mxu0 %v125
    %332 = vmatprep.subr.mxu0 0.0
    %333 = vmatpush2.msra.mxu0 %v124
    %334 = vmatprep.subr.mxu0 0.0
    %335 = vmatpush2.msra.mxu0 %v123
    %336 = vmatprep.subr.mxu0 0.0
    %337 = vmatpush2.msra.mxu0 %v122
    %338 = vmatprep.subr.mxu0 0.0
    %339 = vmatpush2.msra.mxu0 %v121
    %340 = vmatprep.mubr.f32.mxu0 %v261
    %341 = vmatmul.mubr.f32.gmra.mxu0 %v260
    %v342 = vpop.f32.mrf.mxu0
    %v343 = vadd.f32 0.0, %v342
    %v344 = vpop.f32.mrf.mxu0
    %345 = vmatprep.mubr.f32.mxu0 %v263
    %346 = vmatmul.mubr.f32.gmra.mxu0 %v262
    %v347 = vpop.f32.mrf.mxu0
    %v348 = vadd.f32 0.0, %v347
    %v349 = vpop.f32.mrf.mxu0
    %350 = vmatprep.mubr.f32.mxu0 %v265
    %351 = vmatmul.mubr.f32.gmra.mxu0 %v264
    %v352 = vpop.f32.mrf.mxu0
    %v353 = vadd.f32 0.0, %v352
    %v354 = vpop.f32.mrf.mxu0
    %355 = vmatprep.mubr.f32.mxu0 %v267
    %356 = vmatmul.mubr.f32.gmra.mxu0 %v266
    %v357 = vpop.f32.mrf.mxu0
    %v358 = vadd.f32 0.0, %v357
    %v359 = vpop.f32.mrf.mxu0
    %360 = vmatprep.mubr.f32.mxu0 %v269
    %361 = vmatmul.mubr.f32.gmra.mxu0 %v268
    %v362 = vpop.f32.mrf.mxu0
    %v363 = vadd.f32 0.0, %v362
    %v364 = vpop.f32.mrf.mxu0
    %365 = vmatprep.mubr.f32.mxu0 %v271
    %366 = vmatmul.mubr.f32.gmra.mxu0 %v270
    %v367 = vpop.f32.mrf.mxu0
    %v368 = vadd.f32 0.0, %v367
    %v369 = vpop.f32.mrf.mxu0
    %370 = vmatprep.mubr.f32.mxu0 %v273
    %371 = vmatmul.mubr.f32.gmra.mxu0 %v272
    %v372 = vpop.f32.mrf.mxu0
    %v373 = vadd.f32 0.0, %v372
    %v374 = vpop.f32.mrf.mxu0
    %375 = vmatprep.mubr.f32.mxu0 %v275
    %376 = vmatmul.mubr.f32.gmra.mxu0 %v274
    %v377 = vpop.f32.mrf.mxu0
    %v378 = vadd.f32 0.0, %v377
    %v379 = vpop.f32.mrf.mxu0
    %380 = vdwg.mxu0
    %s381 = scalar_lea.vmem %s5, 4
    %v382 = vld [vmem:[%s381] sm:$0x7]
    %vm383 = vcmask 23552
    %v385 = vsel %vm383, %v343, 0
    %v388 = vsel %vm383, %v348, 0
    %v391 = vsel %vm383, %v353, 0
    %v394 = vsel %vm383, %v358, 0
    %v397 = vsel %vm383, %v363, 0
    %v400 = vsel %vm383, %v368, 0
    %v403 = vsel %vm383, %v373, 0
    %v406 = vsel %vm383, %v378, 0
    %vm408 = vcmask 1042432
    %v410 = vsel %vm408, %v382, 0
    %412 = vmatprep.subr.mxu0 0.0
    %413 = vmatpush1.msra.mxu0 0.0
    %414 = vmatprep.subr.mxu0 0.0
    %415 = vmatpush1.msra.mxu0 0.0
    %416 = vmatprep.subr.mxu0 0.0
    %417 = vmatpush1.msra.mxu0 0.0
    %418 = vmatprep.subr.mxu0 0.0
    %419 = vmatpush1.msra.mxu0 0.0
    %420 = vmatprep.subr.mxu0 0.0
    %421 = vmatpush1.msra.mxu0 0.0
    %422 = vmatprep.subr.mxu0 0.0
    %423 = vmatpush1.msra.mxu0 0.0
    %424 = vmatprep.subr.mxu0 0.0
    %425 = vmatpush1.msra.mxu0 0.0
    %426 = vmatprep.subr.mxu0 0.0
    %427 = vmatpush1.msra.mxu0 0.0
    %428 = vmatprep.subr.mxu0 0.0
    %429 = vmatpush1.msra.mxu0 0.0
    %430 = vmatprep.subr.mxu0 0.0
    %431 = vmatpush1.msra.mxu0 0.0
    %432 = vmatprep.subr.mxu0 0.0
    %433 = vmatpush1.msra.mxu0 0.0
    %434 = vmatprep.subr.mxu0 0.0
    %435 = vmatpush1.msra.mxu0 0.0
    %436 = vmatprep.subr.mxu0 0.0
    %437 = vmatpush1.msra.mxu0 0.0
    %438 = vmatprep.subr.mxu0 0.0
    %439 = vmatpush1.msra.mxu0 0.0
    %440 = vmatprep.subr.mxu0 0.0
    %441 = vmatpush1.msra.mxu0 0.0
    %442 = vmatprep.subr.mxu0 0.0
    %443 = vmatpush1.msra.mxu0 %v410
    %444 = vmatprep.subr.mxu0 0.0
    %445 = vmatpush2.msra.mxu0 0.0
    %446 = vmatprep.subr.mxu0 0.0
    %447 = vmatpush2.msra.mxu0 0.0
    %448 = vmatprep.subr.mxu0 0.0
    %449 = vmatpush2.msra.mxu0 0.0
    %450 = vmatprep.subr.mxu0 0.0
    %451 = vmatpush2.msra.mxu0 0.0
    %452 = vmatprep.subr.mxu0 0.0
    %453 = vmatpush2.msra.mxu0 0.0
    %454 = vmatprep.subr.mxu0 0.0
    %455 = vmatpush2.msra.mxu0 0.0
    %456 = vmatprep.subr.mxu0 0.0
    %457 = vmatpush2.msra.mxu0 0.0
    %458 = vmatprep.subr.mxu0 0.0
    %459 = vmatpush2.msra.mxu0 0.0
    %460 = vmatprep.subr.mxu0 0.0
    %461 = vmatpush2.msra.mxu0 0.0
    %462 = vmatprep.subr.mxu0 0.0
    %463 = vmatpush2.msra.mxu0 0.0
    %464 = vmatprep.subr.mxu0 0.0
    %465 = vmatpush2.msra.mxu0 0.0
    %466 = vmatprep.subr.mxu0 0.0
    %467 = vmatpush2.msra.mxu0 0.0
    %468 = vmatprep.subr.mxu0 0.0
    %469 = vmatpush2.msra.mxu0 0.0
    %470 = vmatprep.subr.mxu0 0.0
    %471 = vmatpush2.msra.mxu0 0.0
    %472 = vmatprep.subr.mxu0 0.0
    %473 = vmatpush2.msra.mxu0 0.0
    %474 = vmatprep.subr.mxu0 0.0
    %475 = vmatpush2.msra.mxu0 0.0
    %476 = vmatprep.mubr.f32.mxu0 0.0
    %477 = vmatmul.mubr.f32.gmra.mxu0 %v385
    %v478 = vpop.f32.mrf.mxu0
    %v479 = vadd.f32 0.0, %v478
    %v480 = vpop.f32.mrf.mxu0
    %481 = vmatprep.mubr.f32.mxu0 0.0
    %482 = vmatmul.mubr.f32.gmra.mxu0 %v388
    %v483 = vpop.f32.mrf.mxu0
    %v484 = vadd.f32 0.0, %v483
    %v485 = vpop.f32.mrf.mxu0
    %486 = vmatprep.mubr.f32.mxu0 0.0
    %487 = vmatmul.mubr.f32.gmra.mxu0 %v391
    %v488 = vpop.f32.mrf.mxu0
    %v489 = vadd.f32 0.0, %v488
    %v490 = vpop.f32.mrf.mxu0
    %491 = vmatprep.mubr.f32.mxu0 0.0
    %492 = vmatmul.mubr.f32.gmra.mxu0 %v394
    %v493 = vpop.f32.mrf.mxu0
    %v494 = vadd.f32 0.0, %v493
    %v495 = vpop.f32.mrf.mxu0
    %496 = vmatprep.mubr.f32.mxu0 0.0
    %497 = vmatmul.mubr.f32.gmra.mxu0 %v397
    %v498 = vpop.f32.mrf.mxu0
    %v499 = vadd.f32 0.0, %v498
    %v500 = vpop.f32.mrf.mxu0
    %501 = vmatprep.mubr.f32.mxu0 0.0
    %502 = vmatmul.mubr.f32.gmra.mxu0 %v400
    %v503 = vpop.f32.mrf.mxu0
    %v504 = vadd.f32 0.0, %v503
    %v505 = vpop.f32.mrf.mxu0
    %506 = vmatprep.mubr.f32.mxu0 0.0
    %507 = vmatmul.mubr.f32.gmra.mxu0 %v403
    %v508 = vpop.f32.mrf.mxu0
    %v509 = vadd.f32 0.0, %v508
    %v510 = vpop.f32.mrf.mxu0
    %511 = vmatprep.mubr.f32.mxu0 0.0
    %512 = vmatmul.mubr.f32.gmra.mxu0 %v406
    %v513 = vpop.f32.mrf.mxu0
    %v514 = vadd.f32 0.0, %v513
    %v515 = vpop.f32.mrf.mxu0
    %516 = vdwg.mxu0
    %v518 = vsel %vm383, %v220, 0
    %v521 = vsel %vm383, %v225, 0
    %v524 = vsel %vm383, %v230, 0
    %v527 = vsel %vm383, %v235, 0
    %v530 = vsel %vm383, %v240, 0
    %v533 = vsel %vm383, %v245, 0
    %v536 = vsel %vm383, %v250, 0
    %v539 = vsel %vm383, %v255, 0
    %v542 = vsel %vm408, %v258, 0
    %544 = vmatprep.subr.mxu0 0.0
    %545 = vmatpush1.msra.mxu0 0.0
    %546 = vmatprep.subr.mxu0 0.0
    %547 = vmatpush1.msra.mxu0 0.0
    %548 = vmatprep.subr.mxu0 0.0
    %549 = vmatpush1.msra.mxu0 0.0
    %550 = vmatprep.subr.mxu0 0.0
    %551 = vmatpush1.msra.mxu0 0.0
    %552 = vmatprep.subr.mxu0 0.0
    %553 = vmatpush1.msra.mxu0 0.0
    %554 = vmatprep.subr.mxu0 0.0
    %555 = vmatpush1.msra.mxu0 0.0
    %556 = vmatprep.subr.mxu0 0.0
    %557 = vmatpush1.msra.mxu0 0.0
    %558 = vmatprep.subr.mxu0 0.0
    %559 = vmatpush1.msra.mxu0 0.0
    %560 = vmatprep.subr.mxu0 0.0
    %561 = vmatpush1.msra.mxu0 0.0
    %562 = vmatprep.subr.mxu0 0.0
    %563 = vmatpush1.msra.mxu0 0.0
    %564 = vmatprep.subr.mxu0 0.0
    %565 = vmatpush1.msra.mxu0 0.0
    %566 = vmatprep.subr.mxu0 0.0
    %567 = vmatpush1.msra.mxu0 0.0
    %568 = vmatprep.subr.mxu0 0.0
    %569 = vmatpush1.msra.mxu0 0.0
    %570 = vmatprep.subr.mxu0 0.0
    %571 = vmatpush1.msra.mxu0 0.0
    %572 = vmatprep.subr.mxu0 0.0
    %573 = vmatpush1.msra.mxu0 0.0
    %574 = vmatprep.subr.mxu0 0.0
    %575 = vmatpush1.msra.mxu0 %v542
    %576 = vmatprep.subr.mxu0 0.0
    %577 = vmatpush2.msra.mxu0 0.0
    %578 = vmatprep.subr.mxu0 0.0
    %579 = vmatpush2.msra.mxu0 0.0
    %580 = vmatprep.subr.mxu0 0.0
    %581 = vmatpush2.msra.mxu0 0.0
    %582 = vmatprep.subr.mxu0 0.0
    %583 = vmatpush2.msra.mxu0 0.0
    %584 = vmatprep.subr.mxu0 0.0
    %585 = vmatpush2.msra.mxu0 0.0
    %586 = vmatprep.subr.mxu0 0.0
    %587 = vmatpush2.msra.mxu0 0.0
    %588 = vmatprep.subr.mxu0 0.0
    %589 = vmatpush2.msra.mxu0 0.0
    %590 = vmatprep.subr.mxu0 0.0
    %591 = vmatpush2.msra.mxu0 0.0
    %592 = vmatprep.subr.mxu0 0.0
    %593 = vmatpush2.msra.mxu0 0.0
    %594 = vmatprep.subr.mxu0 0.0
    %595 = vmatpush2.msra.mxu0 0.0
    %596 = vmatprep.subr.mxu0 0.0
    %597 = vmatpush2.msra.mxu0 0.0
    %598 = vmatprep.subr.mxu0 0.0
    %599 = vmatpush2.msra.mxu0 0.0
    %600 = vmatprep.subr.mxu0 0.0
    %601 = vmatpush2.msra.mxu0 0.0
    %602 = vmatprep.subr.mxu0 0.0
    %603 = vmatpush2.msra.mxu0 0.0
    %604 = vmatprep.subr.mxu0 0.0
    %605 = vmatpush2.msra.mxu0 0.0
    %606 = vmatprep.subr.mxu0 0.0
    %607 = vmatpush2.msra.mxu0 0.0
    %608 = vmatprep.mubr.f32.mxu0 0.0
    %609 = vmatmul.mubr.f32.gmra.mxu0 %v518
    %v610 = vpop.f32.mrf.mxu0
    %v611 = vadd.f32 %v479, %v610
    %v612 = vpop.f32.mrf.mxu0
    %613 = vmatprep.mubr.f32.mxu0 0.0
    %614 = vmatmul.mubr.f32.gmra.mxu0 %v521
    %v615 = vpop.f32.mrf.mxu0
    %v616 = vadd.f32 %v484, %v615
    %v617 = vpop.f32.mrf.mxu0
    %618 = vmatprep.mubr.f32.mxu0 0.0
    %619 = vmatmul.mubr.f32.gmra.mxu0 %v524
    %v620 = vpop.f32.mrf.mxu0
    %v621 = vadd.f32 %v489, %v620
    %v622 = vpop.f32.mrf.mxu0
    %623 = vmatprep.mubr.f32.mxu0 0.0
    %624 = vmatmul.mubr.f32.gmra.mxu0 %v527
    %v625 = vpop.f32.mrf.mxu0
    %v626 = vadd.f32 %v494, %v625
    %v627 = vpop.f32.mrf.mxu0
    %628 = vmatprep.mubr.f32.mxu0 0.0
    %629 = vmatmul.mubr.f32.gmra.mxu0 %v530
    %v630 = vpop.f32.mrf.mxu0
    %v631 = vadd.f32 %v499, %v630
    %v632 = vpop.f32.mrf.mxu0
    %633 = vmatprep.mubr.f32.mxu0 0.0
    %634 = vmatmul.mubr.f32.gmra.mxu0 %v533
    %v635 = vpop.f32.mrf.mxu0
    %v636 = vadd.f32 %v504, %v635
    %v637 = vpop.f32.mrf.mxu0
    %638 = vmatprep.mubr.f32.mxu0 0.0
    %639 = vmatmul.mubr.f32.gmra.mxu0 %v536
    %v640 = vpop.f32.mrf.mxu0
    %v641 = vadd.f32 %v509, %v640
    %v642 = vpop.f32.mrf.mxu0
    %643 = vmatprep.mubr.f32.mxu0 0.0
    %644 = vmatmul.mubr.f32.gmra.mxu0 %v539
    %v645 = vpop.f32.mrf.mxu0
    %v646 = vadd.f32 %v514, %v645
    %v647 = vpop.f32.mrf.mxu0
    %648 = vdwg.mxu0
    %s649 = scalar_lea.vmem [#allocation3], 256
    %v650 = vld [vmem:[%s649] sm:$0xff]
    %v651 = vld [vmem:[%s649 + $0x8] sm:$0xff]
    %v652 = vld [vmem:[%s649 + $0x10] sm:$0xff]
    %v653 = vld [vmem:[%s649 + $0x18] sm:$0xff]
    %v654 = vld [vmem:[%s649 + $0x20] sm:$0xff]
    %v655 = vld [vmem:[%s649 + $0x28] sm:$0xff]
    %v656 = vld [vmem:[%s649 + $0x30] sm:$0xff]
    %v657 = vld [vmem:[%s649 + $0x38] sm:$0xff]
    %v658 = vld [vmem:[%s649 + $0x40] sm:$0xff]
    %v659 = vld [vmem:[%s649 + $0x48] sm:$0xff]
    %v660 = vld [vmem:[%s649 + $0x50] sm:$0xff]
    %v661 = vld [vmem:[%s649 + $0x58] sm:$0xff]
    %v662 = vld [vmem:[%s649 + $0x60] sm:$0xff]
    %v663 = vld [vmem:[%s649 + $0x68] sm:$0xff]
    %v664 = vld [vmem:[%s649 + $0x70] sm:$0xff]
    %v665 = vld [vmem:[%s649 + $0x78] sm:$0xff]
    %666 = vmatprep.subr.mxu0 0.0
    %667 = vmatpush1.msra.mxu0 %v120
    %668 = vmatprep.subr.mxu0 0.0
    %669 = vmatpush1.msra.mxu0 %v119
    %670 = vmatprep.subr.mxu0 0.0
    %671 = vmatpush1.msra.mxu0 %v118
    %672 = vmatprep.subr.mxu0 0.0
    %673 = vmatpush1.msra.mxu0 %v117
    %674 = vmatprep.subr.mxu0 0.0
    %675 = vmatpush1.msra.mxu0 %v116
    %676 = vmatprep.subr.mxu0 0.0
    %677 = vmatpush1.msra.mxu0 %v115
    %678 = vmatprep.subr.mxu0 0.0
    %679 = vmatpush1.msra.mxu0 %v114
    %680 = vmatprep.subr.mxu0 0.0
    %681 = vmatpush1.msra.mxu0 %v113
    %682 = vmatprep.subr.mxu0 0.0
    %683 = vmatpush1.msra.mxu0 %v112
    %684 = vmatprep.subr.mxu0 0.0
    %685 = vmatpush1.msra.mxu0 %v111
    %686 = vmatprep.subr.mxu0 0.0
    %687 = vmatpush1.msra.mxu0 %v110
    %688 = vmatprep.subr.mxu0 0.0
    %689 = vmatpush1.msra.mxu0 %v109
    %690 = vmatprep.subr.mxu0 0.0
    %691 = vmatpush1.msra.mxu0 %v108
    %692 = vmatprep.subr.mxu0 0.0
    %693 = vmatpush1.msra.mxu0 %v107
    %694 = vmatprep.subr.mxu0 0.0
    %695 = vmatpush1.msra.mxu0 %v106
    %696 = vmatprep.subr.mxu0 0.0
    %697 = vmatpush1.msra.mxu0 %v105
    %698 = vmatprep.subr.mxu0 0.0
    %699 = vmatpush2.msra.mxu0 %v136
    %700 = vmatprep.subr.mxu0 0.0
    %701 = vmatpush2.msra.mxu0 %v135
    %702 = vmatprep.subr.mxu0 0.0
    %703 = vmatpush2.msra.mxu0 %v134
    %704 = vmatprep.subr.mxu0 0.0
    %705 = vmatpush2.msra.mxu0 %v133
    %706 = vmatprep.subr.mxu0 0.0
    %707 = vmatpush2.msra.mxu0 %v132
    %708 = vmatprep.subr.mxu0 0.0
    %709 = vmatpush2.msra.mxu0 %v131
    %710 = vmatprep.subr.mxu0 0.0
    %711 = vmatpush2.msra.mxu0 %v130
    %712 = vmatprep.subr.mxu0 0.0
    %713 = vmatpush2.msra.mxu0 %v129
    %714 = vmatprep.subr.mxu0 0.0
    %715 = vmatpush2.msra.mxu0 %v128
    %716 = vmatprep.subr.mxu0 0.0
    %717 = vmatpush2.msra.mxu0 %v127
    %718 = vmatprep.subr.mxu0 0.0
    %719 = vmatpush2.msra.mxu0 %v126
    %720 = vmatprep.subr.mxu0 0.0
    %721 = vmatpush2.msra.mxu0 %v125
    %722 = vmatprep.subr.mxu0 0.0
    %723 = vmatpush2.msra.mxu0 %v124
    %724 = vmatprep.subr.mxu0 0.0
    %725 = vmatpush2.msra.mxu0 %v123
    %726 = vmatprep.subr.mxu0 0.0
    %727 = vmatpush2.msra.mxu0 %v122
    %728 = vmatprep.subr.mxu0 0.0
    %729 = vmatpush2.msra.mxu0 %v121
    %730 = vmatprep.mubr.f32.mxu0 %v651
    %731 = vmatmul.mubr.f32.gmra.mxu0 %v650
    %v732 = vpop.f32.mrf.mxu0
    %v733 = vadd.f32 0.0, %v732
    %v734 = vpop.f32.mrf.mxu0
    %735 = vmatprep.mubr.f32.mxu0 %v653
    %736 = vmatmul.mubr.f32.gmra.mxu0 %v652
    %v737 = vpop.f32.mrf.mxu0
    %v738 = vadd.f32 0.0, %v737
    %v739 = vpop.f32.mrf.mxu0
    %740 = vmatprep.mubr.f32.mxu0 %v655
    %741 = vmatmul.mubr.f32.gmra.mxu0 %v654
    %v742 = vpop.f32.mrf.mxu0
    %v743 = vadd.f32 0.0, %v742
    %v744 = vpop.f32.mrf.mxu0
    %745 = vmatprep.mubr.f32.mxu0 %v657
    %746 = vmatmul.mubr.f32.gmra.mxu0 %v656
    %v747 = vpop.f32.mrf.mxu0
    %v748 = vadd.f32 0.0, %v747
    %v749 = vpop.f32.mrf.mxu0
    %750 = vmatprep.mubr.f32.mxu0 %v659
    %751 = vmatmul.mubr.f32.gmra.mxu0 %v658
    %v752 = vpop.f32.mrf.mxu0
    %v753 = vadd.f32 0.0, %v752
    %v754 = vpop.f32.mrf.mxu0
    %755 = vmatprep.mubr.f32.mxu0 %v661
    %756 = vmatmul.mubr.f32.gmra.mxu0 %v660
    %v757 = vpop.f32.mrf.mxu0
    %v758 = vadd.f32 0.0, %v757
    %v759 = vpop.f32.mrf.mxu0
    %760 = vmatprep.mubr.f32.mxu0 %v663
    %761 = vmatmul.mubr.f32.gmra.mxu0 %v662
    %v762 = vpop.f32.mrf.mxu0
    %v763 = vadd.f32 0.0, %v762
    %v764 = vpop.f32.mrf.mxu0
    %765 = vmatprep.mubr.f32.mxu0 %v665
    %766 = vmatmul.mubr.f32.gmra.mxu0 %v664
    %v767 = vpop.f32.mrf.mxu0
    %v768 = vadd.f32 0.0, %v767
    %v769 = vpop.f32.mrf.mxu0
    %770 = vdwg.mxu0
    %s771 = scalar_lea.vmem %s5, 8
    %v772 = vld [vmem:[%s771] sm:$0x7]
    %v774 = vsel %vm383, %v733, 0
    %v777 = vsel %vm383, %v738, 0
    %v780 = vsel %vm383, %v743, 0
    %v783 = vsel %vm383, %v748, 0
    %v786 = vsel %vm383, %v753, 0
    %v789 = vsel %vm383, %v758, 0
    %v792 = vsel %vm383, %v763, 0
    %v795 = vsel %vm383, %v768, 0
    %v798 = vsel %vm408, %v772, 0
    %800 = vmatprep.subr.mxu0 0.0
    %801 = vmatpush1.msra.mxu0 0.0
    %802 = vmatprep.subr.mxu0 0.0
    %803 = vmatpush1.msra.mxu0 0.0
    %804 = vmatprep.subr.mxu0 0.0
    %805 = vmatpush1.msra.mxu0 0.0
    %806 = vmatprep.subr.mxu0 0.0
    %807 = vmatpush1.msra.mxu0 0.0
    %808 = vmatprep.subr.mxu0 0.0
    %809 = vmatpush1.msra.mxu0 0.0
    %810 = vmatprep.subr.mxu0 0.0
    %811 = vmatpush1.msra.mxu0 0.0
    %812 = vmatprep.subr.mxu0 0.0
    %813 = vmatpush1.msra.mxu0 0.0
    %814 = vmatprep.subr.mxu0 0.0
    %815 = vmatpush1.msra.mxu0 0.0
    %816 = vmatprep.subr.mxu0 0.0
    %817 = vmatpush1.msra.mxu0 0.0
    %818 = vmatprep.subr.mxu0 0.0
    %819 = vmatpush1.msra.mxu0 0.0
    %820 = vmatprep.subr.mxu0 0.0
    %821 = vmatpush1.msra.mxu0 0.0
    %822 = vmatprep.subr.mxu0 0.0
    %823 = vmatpush1.msra.mxu0 0.0
    %824 = vmatprep.subr.mxu0 0.0
    %825 = vmatpush1.msra.mxu0 0.0
    %826 = vmatprep.subr.mxu0 0.0
    %827 = vmatpush1.msra.mxu0 0.0
    %828 = vmatprep.subr.mxu0 0.0
    %829 = vmatpush1.msra.mxu0 0.0
    %830 = vmatprep.subr.mxu0 0.0
    %831 = vmatpush1.msra.mxu0 %v798
    %832 = vmatprep.subr.mxu0 0.0
    %833 = vmatpush2.msra.mxu0 0.0
    %834 = vmatprep.subr.mxu0 0.0
    %835 = vmatpush2.msra.mxu0 0.0
    %836 = vmatprep.subr.mxu0 0.0
    %837 = vmatpush2.msra.mxu0 0.0
    %838 = vmatprep.subr.mxu0 0.0
    %839 = vmatpush2.msra.mxu0 0.0
    %840 = vmatprep.subr.mxu0 0.0
    %841 = vmatpush2.msra.mxu0 0.0
    %842 = vmatprep.subr.mxu0 0.0
    %843 = vmatpush2.msra.mxu0 0.0
    %844 = vmatprep.subr.mxu0 0.0
    %845 = vmatpush2.msra.mxu0 0.0
    %846 = vmatprep.subr.mxu0 0.0
    %847 = vmatpush2.msra.mxu0 0.0
    %848 = vmatprep.subr.mxu0 0.0
    %849 = vmatpush2.msra.mxu0 0.0
    %850 = vmatprep.subr.mxu0 0.0
    %851 = vmatpush2.msra.mxu0 0.0
    %852 = vmatprep.subr.mxu0 0.0
    %853 = vmatpush2.msra.mxu0 0.0
    %854 = vmatprep.subr.mxu0 0.0
    %855 = vmatpush2.msra.mxu0 0.0
    %856 = vmatprep.subr.mxu0 0.0
    %857 = vmatpush2.msra.mxu0 0.0
    %858 = vmatprep.subr.mxu0 0.0
    %859 = vmatpush2.msra.mxu0 0.0
    %860 = vmatprep.subr.mxu0 0.0
    %861 = vmatpush2.msra.mxu0 0.0
    %862 = vmatprep.subr.mxu0 0.0
    %863 = vmatpush2.msra.mxu0 0.0
    %864 = vmatprep.mubr.f32.mxu0 0.0
    %865 = vmatmul.mubr.f32.gmra.mxu0 %v774
    %v866 = vpop.f32.mrf.mxu0
    %v867 = vadd.f32 0.0, %v866
    %v868 = vpop.f32.mrf.mxu0
    %869 = vmatprep.mubr.f32.mxu0 0.0
    %870 = vmatmul.mubr.f32.gmra.mxu0 %v777
    %v871 = vpop.f32.mrf.mxu0
    %v872 = vadd.f32 0.0, %v871
    %v873 = vpop.f32.mrf.mxu0
    %874 = vmatprep.mubr.f32.mxu0 0.0
    %875 = vmatmul.mubr.f32.gmra.mxu0 %v780
    %v876 = vpop.f32.mrf.mxu0
    %v877 = vadd.f32 0.0, %v876
    %v878 = vpop.f32.mrf.mxu0
    %879 = vmatprep.mubr.f32.mxu0 0.0
    %880 = vmatmul.mubr.f32.gmra.mxu0 %v783
    %v881 = vpop.f32.mrf.mxu0
    %v882 = vadd.f32 0.0, %v881
    %v883 = vpop.f32.mrf.mxu0
    %884 = vmatprep.mubr.f32.mxu0 0.0
    %885 = vmatmul.mubr.f32.gmra.mxu0 %v786
    %v886 = vpop.f32.mrf.mxu0
    %v887 = vadd.f32 0.0, %v886
    %v888 = vpop.f32.mrf.mxu0
    %889 = vmatprep.mubr.f32.mxu0 0.0
    %890 = vmatmul.mubr.f32.gmra.mxu0 %v789
    %v891 = vpop.f32.mrf.mxu0
    %v892 = vadd.f32 0.0, %v891
    %v893 = vpop.f32.mrf.mxu0
    %894 = vmatprep.mubr.f32.mxu0 0.0
    %895 = vmatmul.mubr.f32.gmra.mxu0 %v792
    %v896 = vpop.f32.mrf.mxu0
    %v897 = vadd.f32 0.0, %v896
    %v898 = vpop.f32.mrf.mxu0
    %899 = vmatprep.mubr.f32.mxu0 0.0
    %900 = vmatmul.mubr.f32.gmra.mxu0 %v795
    %v901 = vpop.f32.mrf.mxu0
    %v902 = vadd.f32 0.0, %v901
    %v903 = vpop.f32.mrf.mxu0
    %904 = vdwg.mxu0
    %v905 = vadd.f32 %v611, %v867
    %v906 = vadd.f32 %v616, %v872
    %v907 = vadd.f32 %v621, %v877
    %v908 = vadd.f32 %v626, %v882
    %v909 = vadd.f32 %v631, %v887
    %v910 = vadd.f32 %v636, %v892
    %v911 = vadd.f32 %v641, %v897
    %v912 = vadd.f32 %v646, %v902
    %s913 = scalar_lea.vmem [#allocation3], 384
    %v914 = vld [vmem:[%s913] sm:$0xff]
    %v915 = vld [vmem:[%s913 + $0x8] sm:$0xff]
    %v916 = vld [vmem:[%s913 + $0x10] sm:$0xff]
    %v917 = vld [vmem:[%s913 + $0x18] sm:$0xff]
    %v918 = vld [vmem:[%s913 + $0x20] sm:$0xff]
    %v919 = vld [vmem:[%s913 + $0x28] sm:$0xff]
    %v920 = vld [vmem:[%s913 + $0x30] sm:$0xff]
    %v921 = vld [vmem:[%s913 + $0x38] sm:$0xff]
    %v922 = vld [vmem:[%s913 + $0x40] sm:$0xff]
    %v923 = vld [vmem:[%s913 + $0x48] sm:$0xff]
    %v924 = vld [vmem:[%s913 + $0x50] sm:$0xff]
    %v925 = vld [vmem:[%s913 + $0x58] sm:$0xff]
    %v926 = vld [vmem:[%s913 + $0x60] sm:$0xff]
    %v927 = vld [vmem:[%s913 + $0x68] sm:$0xff]
    %v928 = vld [vmem:[%s913 + $0x70] sm:$0xff]
    %v929 = vld [vmem:[%s913 + $0x78] sm:$0xff]
    %930 = vmatprep.subr.mxu0 0.0
    %931 = vmatpush1.msra.mxu0 %v120
    %932 = vmatprep.subr.mxu0 0.0
    %933 = vmatpush1.msra.mxu0 %v119
    %934 = vmatprep.subr.mxu0 0.0
    %935 = vmatpush1.msra.mxu0 %v118
    %936 = vmatprep.subr.mxu0 0.0
    %937 = vmatpush1.msra.mxu0 %v117
    %938 = vmatprep.subr.mxu0 0.0
    %939 = vmatpush1.msra.mxu0 %v116
    %940 = vmatprep.subr.mxu0 0.0
    %941 = vmatpush1.msra.mxu0 %v115
    %942 = vmatprep.subr.mxu0 0.0
    %943 = vmatpush1.msra.mxu0 %v114
    %944 = vmatprep.subr.mxu0 0.0
    %945 = vmatpush1.msra.mxu0 %v113
    %946 = vmatprep.subr.mxu0 0.0
    %947 = vmatpush1.msra.mxu0 %v112
    %948 = vmatprep.subr.mxu0 0.0
    %949 = vmatpush1.msra.mxu0 %v111
    %950 = vmatprep.subr.mxu0 0.0
    %951 = vmatpush1.msra.mxu0 %v110
    %952 = vmatprep.subr.mxu0 0.0
    %953 = vmatpush1.msra.mxu0 %v109
    %954 = vmatprep.subr.mxu0 0.0
    %955 = vmatpush1.msra.mxu0 %v108
    %956 = vmatprep.subr.mxu0 0.0
    %957 = vmatpush1.msra.mxu0 %v107
    %958 = vmatprep.subr.mxu0 0.0
    %959 = vmatpush1.msra.mxu0 %v106
    %960 = vmatprep.subr.mxu0 0.0
    %961 = vmatpush1.msra.mxu0 %v105
    %962 = vmatprep.subr.mxu0 0.0
    %963 = vmatpush2.msra.mxu0 %v136
    %964 = vmatprep.subr.mxu0 0.0
    %965 = vmatpush2.msra.mxu0 %v135
    %966 = vmatprep.subr.mxu0 0.0
    %967 = vmatpush2.msra.mxu0 %v134
    %968 = vmatprep.subr.mxu0 0.0
    %969 = vmatpush2.msra.mxu0 %v133
    %970 = vmatprep.subr.mxu0 0.0
    %971 = vmatpush2.msra.mxu0 %v132
    %972 = vmatprep.subr.mxu0 0.0
    %973 = vmatpush2.msra.mxu0 %v131
    %974 = vmatprep.subr.mxu0 0.0
    %975 = vmatpush2.msra.mxu0 %v130
    %976 = vmatprep.subr.mxu0 0.0
    %977 = vmatpush2.msra.mxu0 %v129
    %978 = vmatprep.subr.mxu0 0.0
    %979 = vmatpush2.msra.mxu0 %v128
    %980 = vmatprep.subr.mxu0 0.0
    %981 = vmatpush2.msra.mxu0 %v127
    %982 = vmatprep.subr.mxu0 0.0
    %983 = vmatpush2.msra.mxu0 %v126
    %984 = vmatprep.subr.mxu0 0.0
    %985 = vmatpush2.msra.mxu0 %v125
    %986 = vmatprep.subr.mxu0 0.0
    %987 = vmatpush2.msra.mxu0 %v124
    %988 = vmatprep.subr.mxu0 0.0
    %989 = vmatpush2.msra.mxu0 %v123
    %990 = vmatprep.subr.mxu0 0.0
    %991 = vmatpush2.msra.mxu0 %v122
    %992 = vmatprep.subr.mxu0 0.0
    %993 = vmatpush2.msra.mxu0 %v121
    %994 = vmatprep.mubr.f32.mxu0 %v915
    %995 = vmatmul.mubr.f32.gmra.mxu0 %v914
    %v996 = vpop.f32.mrf.mxu0
    %v997 = vadd.f32 0.0, %v996
    %v998 = vpop.f32.mrf.mxu0
    %999 = vmatprep.mubr.f32.mxu0 %v917
    %1000 = vmatmul.mubr.f32.gmra.mxu0 %v916
    %v1001 = vpop.f32.mrf.mxu0
    %v1002 = vadd.f32 0.0, %v1001
    %v1003 = vpop.f32.mrf.mxu0
    %1004 = vmatprep.mubr.f32.mxu0 %v919
    %1005 = vmatmul.mubr.f32.gmra.mxu0 %v918
    %v1006 = vpop.f32.mrf.mxu0
    %v1007 = vadd.f32 0.0, %v1006
    %v1008 = vpop.f32.mrf.mxu0
    %1009 = vmatprep.mubr.f32.mxu0 %v921
    %1010 = vmatmul.mubr.f32.gmra.mxu0 %v920
    %v1011 = vpop.f32.mrf.mxu0
    %v1012 = vadd.f32 0.0, %v1011
    %v1013 = vpop.f32.mrf.mxu0
    %1014 = vmatprep.mubr.f32.mxu0 %v923
    %1015 = vmatmul.mubr.f32.gmra.mxu0 %v922
    %v1016 = vpop.f32.mrf.mxu0
    %v1017 = vadd.f32 0.0, %v1016
    %v1018 = vpop.f32.mrf.mxu0
    %1019 = vmatprep.mubr.f32.mxu0 %v925
    %1020 = vmatmul.mubr.f32.gmra.mxu0 %v924
    %v1021 = vpop.f32.mrf.mxu0
    %v1022 = vadd.f32 0.0, %v1021
    %v1023 = vpop.f32.mrf.mxu0
    %1024 = vmatprep.mubr.f32.mxu0 %v927
    %1025 = vmatmul.mubr.f32.gmra.mxu0 %v926
    %v1026 = vpop.f32.mrf.mxu0
    %v1027 = vadd.f32 0.0, %v1026
    %v1028 = vpop.f32.mrf.mxu0
    %1029 = vmatprep.mubr.f32.mxu0 %v929
    %1030 = vmatmul.mubr.f32.gmra.mxu0 %v928
    %v1031 = vpop.f32.mrf.mxu0
    %v1032 = vadd.f32 0.0, %v1031
    %v1033 = vpop.f32.mrf.mxu0
    %1034 = vdwg.mxu0
    %s1035 = scalar_lea.vmem %s5, 12
    %v1036 = vld [vmem:[%s1035] sm:$0x7]
    %v1038 = vsel %vm383, %v997, 0
    %v1041 = vsel %vm383, %v1002, 0
    %v1044 = vsel %vm383, %v1007, 0
    %v1047 = vsel %vm383, %v1012, 0
    %v1050 = vsel %vm383, %v1017, 0
    %v1053 = vsel %vm383, %v1022, 0
    %v1056 = vsel %vm383, %v1027, 0
    %v1059 = vsel %vm383, %v1032, 0
    %v1062 = vsel %vm408, %v1036, 0
    %1064 = vmatprep.subr.mxu0 0.0
    %1065 = vmatpush1.msra.mxu0 0.0
    %1066 = vmatprep.subr.mxu0 0.0
    %1067 = vmatpush1.msra.mxu0 0.0
    %1068 = vmatprep.subr.mxu0 0.0
    %1069 = vmatpush1.msra.mxu0 0.0
    %1070 = vmatprep.subr.mxu0 0.0
    %1071 = vmatpush1.msra.mxu0 0.0
    %1072 = vmatprep.subr.mxu0 0.0
    %1073 = vmatpush1.msra.mxu0 0.0
    %1074 = vmatprep.subr.mxu0 0.0
    %1075 = vmatpush1.msra.mxu0 0.0
    %1076 = vmatprep.subr.mxu0 0.0
    %1077 = vmatpush1.msra.mxu0 0.0
    %1078 = vmatprep.subr.mxu0 0.0
    %1079 = vmatpush1.msra.mxu0 0.0
    %1080 = vmatprep.subr.mxu0 0.0
    %1081 = vmatpush1.msra.mxu0 0.0
    %1082 = vmatprep.subr.mxu0 0.0
    %1083 = vmatpush1.msra.mxu0 0.0
    %1084 = vmatprep.subr.mxu0 0.0
    %1085 = vmatpush1.msra.mxu0 0.0
    %1086 = vmatprep.subr.mxu0 0.0
    %1087 = vmatpush1.msra.mxu0 0.0
    %1088 = vmatprep.subr.mxu0 0.0
    %1089 = vmatpush1.msra.mxu0 0.0
    %1090 = vmatprep.subr.mxu0 0.0
    %1091 = vmatpush1.msra.mxu0 0.0
    %1092 = vmatprep.subr.mxu0 0.0
    %1093 = vmatpush1.msra.mxu0 0.0
    %1094 = vmatprep.subr.mxu0 0.0
    %1095 = vmatpush1.msra.mxu0 %v1062
    %1096 = vmatprep.subr.mxu0 0.0
    %1097 = vmatpush2.msra.mxu0 0.0
    %1098 = vmatprep.subr.mxu0 0.0
    %1099 = vmatpush2.msra.mxu0 0.0
    %1100 = vmatprep.subr.mxu0 0.0
    %1101 = vmatpush2.msra.mxu0 0.0
    %1102 = vmatprep.subr.mxu0 0.0
    %1103 = vmatpush2.msra.mxu0 0.0
    %1104 = vmatprep.subr.mxu0 0.0
    %1105 = vmatpush2.msra.mxu0 0.0
    %1106 = vmatprep.subr.mxu0 0.0
    %1107 = vmatpush2.msra.mxu0 0.0
    %1108 = vmatprep.subr.mxu0 0.0
    %1109 = vmatpush2.msra.mxu0 0.0
    %1110 = vmatprep.subr.mxu0 0.0
    %1111 = vmatpush2.msra.mxu0 0.0
    %1112 = vmatprep.subr.mxu0 0.0
    %1113 = vmatpush2.msra.mxu0 0.0
    %1114 = vmatprep.subr.mxu0 0.0
    %1115 = vmatpush2.msra.mxu0 0.0
    %1116 = vmatprep.subr.mxu0 0.0
    %1117 = vmatpush2.msra.mxu0 0.0
    %1118 = vmatprep.subr.mxu0 0.0
    %1119 = vmatpush2.msra.mxu0 0.0
    %1120 = vmatprep.subr.mxu0 0.0
    %1121 = vmatpush2.msra.mxu0 0.0
    %1122 = vmatprep.subr.mxu0 0.0
    %1123 = vmatpush2.msra.mxu0 0.0
    %1124 = vmatprep.subr.mxu0 0.0
    %1125 = vmatpush2.msra.mxu0 0.0
    %1126 = vmatprep.subr.mxu0 0.0
    %1127 = vmatpush2.msra.mxu0 0.0
    %1128 = vmatprep.mubr.f32.mxu0 0.0
    %1129 = vmatmul.mubr.f32.gmra.mxu0 %v1038
    %v1130 = vpop.f32.mrf.mxu0
    %v1131 = vadd.f32 0.0, %v1130
    %v1132 = vpop.f32.mrf.mxu0
    %1133 = vmatprep.mubr.f32.mxu0 0.0
    %1134 = vmatmul.mubr.f32.gmra.mxu0 %v1041
    %v1135 = vpop.f32.mrf.mxu0
    %v1136 = vadd.f32 0.0, %v1135
    %v1137 = vpop.f32.mrf.mxu0
    %1138 = vmatprep.mubr.f32.mxu0 0.0
    %1139 = vmatmul.mubr.f32.gmra.mxu0 %v1044
    %v1140 = vpop.f32.mrf.mxu0
    %v1141 = vadd.f32 0.0, %v1140
    %v1142 = vpop.f32.mrf.mxu0
    %1143 = vmatprep.mubr.f32.mxu0 0.0
    %1144 = vmatmul.mubr.f32.gmra.mxu0 %v1047
    %v1145 = vpop.f32.mrf.mxu0
    %v1146 = vadd.f32 0.0, %v1145
    %v1147 = vpop.f32.mrf.mxu0
    %1148 = vmatprep.mubr.f32.mxu0 0.0
    %1149 = vmatmul.mubr.f32.gmra.mxu0 %v1050
    %v1150 = vpop.f32.mrf.mxu0
    %v1151 = vadd.f32 0.0, %v1150
    %v1152 = vpop.f32.mrf.mxu0
    %1153 = vmatprep.mubr.f32.mxu0 0.0
    %1154 = vmatmul.mubr.f32.gmra.mxu0 %v1053
    %v1155 = vpop.f32.mrf.mxu0
    %v1156 = vadd.f32 0.0, %v1155
    %v1157 = vpop.f32.mrf.mxu0
    %1158 = vmatprep.mubr.f32.mxu0 0.0
    %1159 = vmatmul.mubr.f32.gmra.mxu0 %v1056
    %v1160 = vpop.f32.mrf.mxu0
    %v1161 = vadd.f32 0.0, %v1160
    %v1162 = vpop.f32.mrf.mxu0
    %1163 = vmatprep.mubr.f32.mxu0 0.0
    %1164 = vmatmul.mubr.f32.gmra.mxu0 %v1059
    %v1165 = vpop.f32.mrf.mxu0
    %v1166 = vadd.f32 0.0, %v1165
    %v1167 = vpop.f32.mrf.mxu0
    %1168 = vdwg.mxu0
    %v1169 = vadd.f32 %v905, %v1131
    %v1170 = vadd.f32 %v906, %v1136
    %v1171 = vadd.f32 %v907, %v1141
    %v1172 = vadd.f32 %v908, %v1146
    %v1173 = vadd.f32 %v909, %v1151
    %v1174 = vadd.f32 %v910, %v1156
    %v1175 = vadd.f32 %v911, %v1161
    %v1176 = vadd.f32 %v912, %v1166
    %s1177 = scalar_lea.vmem [#allocation3], 512
    %v1178 = vld [vmem:[%s1177] sm:$0xff]
    %v1179 = vld [vmem:[%s1177 + $0x8] sm:$0xff]
    %v1180 = vld [vmem:[%s1177 + $0x10] sm:$0xff]
    %v1181 = vld [vmem:[%s1177 + $0x18] sm:$0xff]
    %v1182 = vld [vmem:[%s1177 + $0x20] sm:$0xff]
    %v1183 = vld [vmem:[%s1177 + $0x28] sm:$0xff]
    %v1184 = vld [vmem:[%s1177 + $0x30] sm:$0xff]
    %v1185 = vld [vmem:[%s1177 + $0x38] sm:$0xff]
    %v1186 = vld [vmem:[%s1177 + $0x40] sm:$0xff]
    %v1187 = vld [vmem:[%s1177 + $0x48] sm:$0xff]
    %v1188 = vld [vmem:[%s1177 + $0x50] sm:$0xff]
    %v1189 = vld [vmem:[%s1177 + $0x58] sm:$0xff]
    %v1190 = vld [vmem:[%s1177 + $0x60] sm:$0xff]
    %v1191 = vld [vmem:[%s1177 + $0x68] sm:$0xff]
    %v1192 = vld [vmem:[%s1177 + $0x70] sm:$0xff]
    %v1193 = vld [vmem:[%s1177 + $0x78] sm:$0xff]
    %1194 = vmatprep.subr.mxu0 0.0
    %1195 = vmatpush1.msra.mxu0 %v120
    %1196 = vmatprep.subr.mxu0 0.0
    %1197 = vmatpush1.msra.mxu0 %v119
    %1198 = vmatprep.subr.mxu0 0.0
    %1199 = vmatpush1.msra.mxu0 %v118
    %1200 = vmatprep.subr.mxu0 0.0
    %1201 = vmatpush1.msra.mxu0 %v117
    %1202 = vmatprep.subr.mxu0 0.0
    %1203 = vmatpush1.msra.mxu0 %v116
    %1204 = vmatprep.subr.mxu0 0.0
    %1205 = vmatpush1.msra.mxu0 %v115
    %1206 = vmatprep.subr.mxu0 0.0
    %1207 = vmatpush1.msra.mxu0 %v114
    %1208 = vmatprep.subr.mxu0 0.0
    %1209 = vmatpush1.msra.mxu0 %v113
    %1210 = vmatprep.subr.mxu0 0.0
    %1211 = vmatpush1.msra.mxu0 %v112
    %1212 = vmatprep.subr.mxu0 0.0
    %1213 = vmatpush1.msra.mxu0 %v111
    %1214 = vmatprep.subr.mxu0 0.0
    %1215 = vmatpush1.msra.mxu0 %v110
    %1216 = vmatprep.subr.mxu0 0.0
    %1217 = vmatpush1.msra.mxu0 %v109
    %1218 = vmatprep.subr.mxu0 0.0
    %1219 = vmatpush1.msra.mxu0 %v108
    %1220 = vmatprep.subr.mxu0 0.0
    %1221 = vmatpush1.msra.mxu0 %v107
    %1222 = vmatprep.subr.mxu0 0.0
    %1223 = vmatpush1.msra.mxu0 %v106
    %1224 = vmatprep.subr.mxu0 0.0
    %1225 = vmatpush1.msra.mxu0 %v105
    %1226 = vmatprep.subr.mxu0 0.0
    %1227 = vmatpush2.msra.mxu0 %v136
    %1228 = vmatprep.subr.mxu0 0.0
    %1229 = vmatpush2.msra.mxu0 %v135
    %1230 = vmatprep.subr.mxu0 0.0
    %1231 = vmatpush2.msra.mxu0 %v134
    %1232 = vmatprep.subr.mxu0 0.0
    %1233 = vmatpush2.msra.mxu0 %v133
    %1234 = vmatprep.subr.mxu0 0.0
    %1235 = vmatpush2.msra.mxu0 %v132
    %1236 = vmatprep.subr.mxu0 0.0
    %1237 = vmatpush2.msra.mxu0 %v131
    %1238 = vmatprep.subr.mxu0 0.0
    %1239 = vmatpush2.msra.mxu0 %v130
    %1240 = vmatprep.subr.mxu0 0.0
    %1241 = vmatpush2.msra.mxu0 %v129
    %1242 = vmatprep.subr.mxu0 0.0
    %1243 = vmatpush2.msra.mxu0 %v128
    %1244 = vmatprep.subr.mxu0 0.0
    %1245 = vmatpush2.msra.mxu0 %v127
    %1246 = vmatprep.subr.mxu0 0.0
    %1247 = vmatpush2.msra.mxu0 %v126
    %1248 = vmatprep.subr.mxu0 0.0
    %1249 = vmatpush2.msra.mxu0 %v125
    %1250 = vmatprep.subr.mxu0 0.0
    %1251 = vmatpush2.msra.mxu0 %v124
    %1252 = vmatprep.subr.mxu0 0.0
    %1253 = vmatpush2.msra.mxu0 %v123
    %1254 = vmatprep.subr.mxu0 0.0
    %1255 = vmatpush2.msra.mxu0 %v122
    %1256 = vmatprep.subr.mxu0 0.0
    %1257 = vmatpush2.msra.mxu0 %v121
    %1258 = vmatprep.mubr.f32.mxu0 %v1179
    %1259 = vmatmul.mubr.f32.gmra.mxu0 %v1178
    %v1260 = vpop.f32.mrf.mxu0
    %v1261 = vadd.f32 0.0, %v1260
    %v1262 = vpop.f32.mrf.mxu0
    %1263 = vmatprep.mubr.f32.mxu0 %v1181
    %1264 = vmatmul.mubr.f32.gmra.mxu0 %v1180
    %v1265 = vpop.f32.mrf.mxu0
    %v1266 = vadd.f32 0.0, %v1265
    %v1267 = vpop.f32.mrf.mxu0
    %1268 = vmatprep.mubr.f32.mxu0 %v1183
    %1269 = vmatmul.mubr.f32.gmra.mxu0 %v1182
    %v1270 = vpop.f32.mrf.mxu0
    %v1271 = vadd.f32 0.0, %v1270
    %v1272 = vpop.f32.mrf.mxu0
    %1273 = vmatprep.mubr.f32.mxu0 %v1185
    %1274 = vmatmul.mubr.f32.gmra.mxu0 %v1184
    %v1275 = vpop.f32.mrf.mxu0
    %v1276 = vadd.f32 0.0, %v1275
    %v1277 = vpop.f32.mrf.mxu0
    %1278 = vmatprep.mubr.f32.mxu0 %v1187
    %1279 = vmatmul.mubr.f32.gmra.mxu0 %v1186
    %v1280 = vpop.f32.mrf.mxu0
    %v1281 = vadd.f32 0.0, %v1280
    %v1282 = vpop.f32.mrf.mxu0
    %1283 = vmatprep.mubr.f32.mxu0 %v1189
    %1284 = vmatmul.mubr.f32.gmra.mxu0 %v1188
    %v1285 = vpop.f32.mrf.mxu0
    %v1286 = vadd.f32 0.0, %v1285
    %v1287 = vpop.f32.mrf.mxu0
    %1288 = vmatprep.mubr.f32.mxu0 %v1191
    %1289 = vmatmul.mubr.f32.gmra.mxu0 %v1190
    %v1290 = vpop.f32.mrf.mxu0
    %v1291 = vadd.f32 0.0, %v1290
    %v1292 = vpop.f32.mrf.mxu0
    %1293 = vmatprep.mubr.f32.mxu0 %v1193
    %1294 = vmatmul.mubr.f32.gmra.mxu0 %v1192
    %v1295 = vpop.f32.mrf.mxu0
    %v1296 = vadd.f32 0.0, %v1295
    %v1297 = vpop.f32.mrf.mxu0
    %1298 = vdwg.mxu0
    %s1299 = scalar_lea.vmem %s5, 16
    %v1300 = vld [vmem:[%s1299] sm:$0x7]
    %v1302 = vsel %vm383, %v1261, 0
    %v1305 = vsel %vm383, %v1266, 0
    %v1308 = vsel %vm383, %v1271, 0
    %v1311 = vsel %vm383, %v1276, 0
    %v1314 = vsel %vm383, %v1281, 0
    %v1317 = vsel %vm383, %v1286, 0
    %v1320 = vsel %vm383, %v1291, 0
    %v1323 = vsel %vm383, %v1296, 0
    %v1326 = vsel %vm408, %v1300, 0
    %1328 = vmatprep.subr.mxu0 0.0
    %1329 = vmatpush1.msra.mxu0 0.0
    %1330 = vmatprep.subr.mxu0 0.0
    %1331 = vmatpush1.msra.mxu0 0.0
    %1332 = vmatprep.subr.mxu0 0.0
    %1333 = vmatpush1.msra.mxu0 0.0
    %1334 = vmatprep.subr.mxu0 0.0
    %1335 = vmatpush1.msra.mxu0 0.0
    %1336 = vmatprep.subr.mxu0 0.0
    %1337 = vmatpush1.msra.mxu0 0.0
    %1338 = vmatprep.subr.mxu0 0.0
    %1339 = vmatpush1.msra.mxu0 0.0
    %1340 = vmatprep.subr.mxu0 0.0
    %1341 = vmatpush1.msra.mxu0 0.0
    %1342 = vmatprep.subr.mxu0 0.0
    %1343 = vmatpush1.msra.mxu0 0.0
    %1344 = vmatprep.subr.mxu0 0.0
    %1345 = vmatpush1.msra.mxu0 0.0
    %1346 = vmatprep.subr.mxu0 0.0
    %1347 = vmatpush1.msra.mxu0 0.0
    %1348 = vmatprep.subr.mxu0 0.0
    %1349 = vmatpush1.msra.mxu0 0.0
    %1350 = vmatprep.subr.mxu0 0.0
    %1351 = vmatpush1.msra.mxu0 0.0
    %1352 = vmatprep.subr.mxu0 0.0
    %1353 = vmatpush1.msra.mxu0 0.0
    %1354 = vmatprep.subr.mxu0 0.0
    %1355 = vmatpush1.msra.mxu0 0.0
    %1356 = vmatprep.subr.mxu0 0.0
    %1357 = vmatpush1.msra.mxu0 0.0
    %1358 = vmatprep.subr.mxu0 0.0
    %1359 = vmatpush1.msra.mxu0 %v1326
    %1360 = vmatprep.subr.mxu0 0.0
    %1361 = vmatpush2.msra.mxu0 0.0
    %1362 = vmatprep.subr.mxu0 0.0
    %1363 = vmatpush2.msra.mxu0 0.0
    %1364 = vmatprep.subr.mxu0 0.0
    %1365 = vmatpush2.msra.mxu0 0.0
    %1366 = vmatprep.subr.mxu0 0.0
    %1367 = vmatpush2.msra.mxu0 0.0
    %1368 = vmatprep.subr.mxu0 0.0
    %1369 = vmatpush2.msra.mxu0 0.0
    %1370 = vmatprep.subr.mxu0 0.0
    %1371 = vmatpush2.msra.mxu0 0.0
    %1372 = vmatprep.subr.mxu0 0.0
    %1373 = vmatpush2.msra.mxu0 0.0
    %1374 = vmatprep.subr.mxu0 0.0
    %1375 = vmatpush2.msra.mxu0 0.0
    %1376 = vmatprep.subr.mxu0 0.0
    %1377 = vmatpush2.msra.mxu0 0.0
    %1378 = vmatprep.subr.mxu0 0.0
    %1379 = vmatpush2.msra.mxu0 0.0
    %1380 = vmatprep.subr.mxu0 0.0
    %1381 = vmatpush2.msra.mxu0 0.0
    %1382 = vmatprep.subr.mxu0 0.0
    %1383 = vmatpush2.msra.mxu0 0.0
    %1384 = vmatprep.subr.mxu0 0.0
    %1385 = vmatpush2.msra.mxu0 0.0
    %1386 = vmatprep.subr.mxu0 0.0
    %1387 = vmatpush2.msra.mxu0 0.0
    %1388 = vmatprep.subr.mxu0 0.0
    %1389 = vmatpush2.msra.mxu0 0.0
    %1390 = vmatprep.subr.mxu0 0.0
    %1391 = vmatpush2.msra.mxu0 0.0
    %1392 = vmatprep.mubr.f32.mxu0 0.0
    %1393 = vmatmul.mubr.f32.gmra.mxu0 %v1302
    %v1394 = vpop.f32.mrf.mxu0
    %v1395 = vadd.f32 0.0, %v1394
    %v1396 = vpop.f32.mrf.mxu0
    %1397 = vmatprep.mubr.f32.mxu0 0.0
    %1398 = vmatmul.mubr.f32.gmra.mxu0 %v1305
    %v1399 = vpop.f32.mrf.mxu0
    %v1400 = vadd.f32 0.0, %v1399
    %v1401 = vpop.f32.mrf.mxu0
    %1402 = vmatprep.mubr.f32.mxu0 0.0
    %1403 = vmatmul.mubr.f32.gmra.mxu0 %v1308
    %v1404 = vpop.f32.mrf.mxu0
    %v1405 = vadd.f32 0.0, %v1404
    %v1406 = vpop.f32.mrf.mxu0
    %1407 = vmatprep.mubr.f32.mxu0 0.0
    %1408 = vmatmul.mubr.f32.gmra.mxu0 %v1311
    %v1409 = vpop.f32.mrf.mxu0
    %v1410 = vadd.f32 0.0, %v1409
    %v1411 = vpop.f32.mrf.mxu0
    %1412 = vmatprep.mubr.f32.mxu0 0.0
    %1413 = vmatmul.mubr.f32.gmra.mxu0 %v1314
    %v1414 = vpop.f32.mrf.mxu0
    %v1415 = vadd.f32 0.0, %v1414
    %v1416 = vpop.f32.mrf.mxu0
    %1417 = vmatprep.mubr.f32.mxu0 0.0
    %1418 = vmatmul.mubr.f32.gmra.mxu0 %v1317
    %v1419 = vpop.f32.mrf.mxu0
    %v1420 = vadd.f32 0.0, %v1419
    %v1421 = vpop.f32.mrf.mxu0
    %1422 = vmatprep.mubr.f32.mxu0 0.0
    %1423 = vmatmul.mubr.f32.gmra.mxu0 %v1320
    %v1424 = vpop.f32.mrf.mxu0
    %v1425 = vadd.f32 0.0, %v1424
    %v1426 = vpop.f32.mrf.mxu0
    %1427 = vmatprep.mubr.f32.mxu0 0.0
    %1428 = vmatmul.mubr.f32.gmra.mxu0 %v1323
    %v1429 = vpop.f32.mrf.mxu0
    %v1430 = vadd.f32 0.0, %v1429
    %v1431 = vpop.f32.mrf.mxu0
    %1432 = vdwg.mxu0
    %v1433 = vadd.f32 %v1169, %v1395
    %v1434 = vadd.f32 %v1170, %v1400
    %v1435 = vadd.f32 %v1171, %v1405
    %v1436 = vadd.f32 %v1172, %v1410
    %v1437 = vadd.f32 %v1173, %v1415
    %v1438 = vadd.f32 %v1174, %v1420
    %v1439 = vadd.f32 %v1175, %v1425
    %v1440 = vadd.f32 %v1176, %v1430
    %s1441 = scalar_lea.vmem [#allocation3], 640
    %v1442 = vld [vmem:[%s1441] sm:$0xff]
    %v1443 = vld [vmem:[%s1441 + $0x8] sm:$0xff]
    %v1444 = vld [vmem:[%s1441 + $0x10] sm:$0xff]
    %v1445 = vld [vmem:[%s1441 + $0x18] sm:$0xff]
    %v1446 = vld [vmem:[%s1441 + $0x20] sm:$0xff]
    %v1447 = vld [vmem:[%s1441 + $0x28] sm:$0xff]
    %v1448 = vld [vmem:[%s1441 + $0x30] sm:$0xff]
    %v1449 = vld [vmem:[%s1441 + $0x38] sm:$0xff]
    %v1450 = vld [vmem:[%s1441 + $0x40] sm:$0xff]
    %v1451 = vld [vmem:[%s1441 + $0x48] sm:$0xff]
    %v1452 = vld [vmem:[%s1441 + $0x50] sm:$0xff]
    %v1453 = vld [vmem:[%s1441 + $0x58] sm:$0xff]
    %v1454 = vld [vmem:[%s1441 + $0x60] sm:$0xff]
    %v1455 = vld [vmem:[%s1441 + $0x68] sm:$0xff]
    %v1456 = vld [vmem:[%s1441 + $0x70] sm:$0xff]
    %v1457 = vld [vmem:[%s1441 + $0x78] sm:$0xff]
    %1458 = vmatprep.subr.mxu0 0.0
    %1459 = vmatpush1.msra.mxu0 %v120
    %1460 = vmatprep.subr.mxu0 0.0
    %1461 = vmatpush1.msra.mxu0 %v119
    %1462 = vmatprep.subr.mxu0 0.0
    %1463 = vmatpush1.msra.mxu0 %v118
    %1464 = vmatprep.subr.mxu0 0.0
    %1465 = vmatpush1.msra.mxu0 %v117
    %1466 = vmatprep.subr.mxu0 0.0
    %1467 = vmatpush1.msra.mxu0 %v116
    %1468 = vmatprep.subr.mxu0 0.0
    %1469 = vmatpush1.msra.mxu0 %v115
    %1470 = vmatprep.subr.mxu0 0.0
    %1471 = vmatpush1.msra.mxu0 %v114
    %1472 = vmatprep.subr.mxu0 0.0
    %1473 = vmatpush1.msra.mxu0 %v113
    %1474 = vmatprep.subr.mxu0 0.0
    %1475 = vmatpush1.msra.mxu0 %v112
    %1476 = vmatprep.subr.mxu0 0.0
    %1477 = vmatpush1.msra.mxu0 %v111
    %1478 = vmatprep.subr.mxu0 0.0
    %1479 = vmatpush1.msra.mxu0 %v110
    %1480 = vmatprep.subr.mxu0 0.0
    %1481 = vmatpush1.msra.mxu0 %v109
    %1482 = vmatprep.subr.mxu0 0.0
    %1483 = vmatpush1.msra.mxu0 %v108
    %1484 = vmatprep.subr.mxu0 0.0
    %1485 = vmatpush1.msra.mxu0 %v107
    %1486 = vmatprep.subr.mxu0 0.0
    %1487 = vmatpush1.msra.mxu0 %v106
    %1488 = vmatprep.subr.mxu0 0.0
    %1489 = vmatpush1.msra.mxu0 %v105
    %1490 = vmatprep.subr.mxu0 0.0
    %1491 = vmatpush2.msra.mxu0 %v136
    %1492 = vmatprep.subr.mxu0 0.0
    %1493 = vmatpush2.msra.mxu0 %v135
    %1494 = vmatprep.subr.mxu0 0.0
    %1495 = vmatpush2.msra.mxu0 %v134
    %1496 = vmatprep.subr.mxu0 0.0
    %1497 = vmatpush2.msra.mxu0 %v133
    %1498 = vmatprep.subr.mxu0 0.0
    %1499 = vmatpush2.msra.mxu0 %v132
    %1500 = vmatprep.subr.mxu0 0.0
    %1501 = vmatpush2.msra.mxu0 %v131
    %1502 = vmatprep.subr.mxu0 0.0
    %1503 = vmatpush2.msra.mxu0 %v130
    %1504 = vmatprep.subr.mxu0 0.0
    %1505 = vmatpush2.msra.mxu0 %v129
    %1506 = vmatprep.subr.mxu0 0.0
    %1507 = vmatpush2.msra.mxu0 %v128
    %1508 = vmatprep.subr.mxu0 0.0
    %1509 = vmatpush2.msra.mxu0 %v127
    %1510 = vmatprep.subr.mxu0 0.0
    %1511 = vmatpush2.msra.mxu0 %v126
    %1512 = vmatprep.subr.mxu0 0.0
    %1513 = vmatpush2.msra.mxu0 %v125
    %1514 = vmatprep.subr.mxu0 0.0
    %1515 = vmatpush2.msra.mxu0 %v124
    %1516 = vmatprep.subr.mxu0 0.0
    %1517 = vmatpush2.msra.mxu0 %v123
    %1518 = vmatprep.subr.mxu0 0.0
    %1519 = vmatpush2.msra.mxu0 %v122
    %1520 = vmatprep.subr.mxu0 0.0
    %1521 = vmatpush2.msra.mxu0 %v121
    %1522 = vmatprep.mubr.f32.mxu0 %v1443
    %1523 = vmatmul.mubr.f32.gmra.mxu0 %v1442
    %v1524 = vpop.f32.mrf.mxu0
    %v1525 = vadd.f32 0.0, %v1524
    %v1526 = vpop.f32.mrf.mxu0
    %1527 = vmatprep.mubr.f32.mxu0 %v1445
    %1528 = vmatmul.mubr.f32.gmra.mxu0 %v1444
    %v1529 = vpop.f32.mrf.mxu0
    %v1530 = vadd.f32 0.0, %v1529
    %v1531 = vpop.f32.mrf.mxu0
    %1532 = vmatprep.mubr.f32.mxu0 %v1447
    %1533 = vmatmul.mubr.f32.gmra.mxu0 %v1446
    %v1534 = vpop.f32.mrf.mxu0
    %v1535 = vadd.f32 0.0, %v1534
    %v1536 = vpop.f32.mrf.mxu0
    %1537 = vmatprep.mubr.f32.mxu0 %v1449
    %1538 = vmatmul.mubr.f32.gmra.mxu0 %v1448
    %v1539 = vpop.f32.mrf.mxu0
    %v1540 = vadd.f32 0.0, %v1539
    %v1541 = vpop.f32.mrf.mxu0
    %1542 = vmatprep.mubr.f32.mxu0 %v1451
    %1543 = vmatmul.mubr.f32.gmra.mxu0 %v1450
    %v1544 = vpop.f32.mrf.mxu0
    %v1545 = vadd.f32 0.0, %v1544
    %v1546 = vpop.f32.mrf.mxu0
    %1547 = vmatprep.mubr.f32.mxu0 %v1453
    %1548 = vmatmul.mubr.f32.gmra.mxu0 %v1452
    %v1549 = vpop.f32.mrf.mxu0
    %v1550 = vadd.f32 0.0, %v1549
    %v1551 = vpop.f32.mrf.mxu0
    %1552 = vmatprep.mubr.f32.mxu0 %v1455
    %1553 = vmatmul.mubr.f32.gmra.mxu0 %v1454
    %v1554 = vpop.f32.mrf.mxu0
    %v1555 = vadd.f32 0.0, %v1554
    %v1556 = vpop.f32.mrf.mxu0
    %1557 = vmatprep.mubr.f32.mxu0 %v1457
    %1558 = vmatmul.mubr.f32.gmra.mxu0 %v1456
    %v1559 = vpop.f32.mrf.mxu0
    %v1560 = vadd.f32 0.0, %v1559
    %v1561 = vpop.f32.mrf.mxu0
    %1562 = vdwg.mxu0
    %s1563 = scalar_lea.vmem %s5, 20
    %v1564 = vld [vmem:[%s1563] sm:$0x7]
    %v1566 = vsel %vm383, %v1525, 0
    %v1569 = vsel %vm383, %v1530, 0
    %v1572 = vsel %vm383, %v1535, 0
    %v1575 = vsel %vm383, %v1540, 0
    %v1578 = vsel %vm383, %v1545, 0
    %v1581 = vsel %vm383, %v1550, 0
    %v1584 = vsel %vm383, %v1555, 0
    %v1587 = vsel %vm383, %v1560, 0
    %v1590 = vsel %vm408, %v1564, 0
    %1592 = vmatprep.subr.mxu0 0.0
    %1593 = vmatpush1.msra.mxu0 0.0
    %1594 = vmatprep.subr.mxu0 0.0
    %1595 = vmatpush1.msra.mxu0 0.0
    %1596 = vmatprep.subr.mxu0 0.0
    %1597 = vmatpush1.msra.mxu0 0.0
    %1598 = vmatprep.subr.mxu0 0.0
    %1599 = vmatpush1.msra.mxu0 0.0
    %1600 = vmatprep.subr.mxu0 0.0
    %1601 = vmatpush1.msra.mxu0 0.0
    %1602 = vmatprep.subr.mxu0 0.0
    %1603 = vmatpush1.msra.mxu0 0.0
    %1604 = vmatprep.subr.mxu0 0.0
    %1605 = vmatpush1.msra.mxu0 0.0
    %1606 = vmatprep.subr.mxu0 0.0
    %1607 = vmatpush1.msra.mxu0 0.0
    %1608 = vmatprep.subr.mxu0 0.0
    %1609 = vmatpush1.msra.mxu0 0.0
    %1610 = vmatprep.subr.mxu0 0.0
    %1611 = vmatpush1.msra.mxu0 0.0
    %1612 = vmatprep.subr.mxu0 0.0
    %1613 = vmatpush1.msra.mxu0 0.0
    %1614 = vmatprep.subr.mxu0 0.0
    %1615 = vmatpush1.msra.mxu0 0.0
    %1616 = vmatprep.subr.mxu0 0.0
    %1617 = vmatpush1.msra.mxu0 0.0
    %1618 = vmatprep.subr.mxu0 0.0
    %1619 = vmatpush1.msra.mxu0 0.0
    %1620 = vmatprep.subr.mxu0 0.0
    %1621 = vmatpush1.msra.mxu0 0.0
    %1622 = vmatprep.subr.mxu0 0.0
    %1623 = vmatpush1.msra.mxu0 %v1590
    %1624 = vmatprep.subr.mxu0 0.0
    %1625 = vmatpush2.msra.mxu0 0.0
    %1626 = vmatprep.subr.mxu0 0.0
    %1627 = vmatpush2.msra.mxu0 0.0
    %1628 = vmatprep.subr.mxu0 0.0
    %1629 = vmatpush2.msra.mxu0 0.0
    %1630 = vmatprep.subr.mxu0 0.0
    %1631 = vmatpush2.msra.mxu0 0.0
    %1632 = vmatprep.subr.mxu0 0.0
    %1633 = vmatpush2.msra.mxu0 0.0
    %1634 = vmatprep.subr.mxu0 0.0
    %1635 = vmatpush2.msra.mxu0 0.0
    %1636 = vmatprep.subr.mxu0 0.0
    %1637 = vmatpush2.msra.mxu0 0.0
    %1638 = vmatprep.subr.mxu0 0.0
    %1639 = vmatpush2.msra.mxu0 0.0
    %1640 = vmatprep.subr.mxu0 0.0
    %1641 = vmatpush2.msra.mxu0 0.0
    %1642 = vmatprep.subr.mxu0 0.0
    %1643 = vmatpush2.msra.mxu0 0.0
    %1644 = vmatprep.subr.mxu0 0.0
    %1645 = vmatpush2.msra.mxu0 0.0
    %1646 = vmatprep.subr.mxu0 0.0
    %1647 = vmatpush2.msra.mxu0 0.0
    %1648 = vmatprep.subr.mxu0 0.0
    %1649 = vmatpush2.msra.mxu0 0.0
    %1650 = vmatprep.subr.mxu0 0.0
    %1651 = vmatpush2.msra.mxu0 0.0
    %1652 = vmatprep.subr.mxu0 0.0
    %1653 = vmatpush2.msra.mxu0 0.0
    %1654 = vmatprep.subr.mxu0 0.0
    %1655 = vmatpush2.msra.mxu0 0.0
    %1656 = vmatprep.mubr.f32.mxu0 0.0
    %1657 = vmatmul.mubr.f32.gmra.mxu0 %v1566
    %v1658 = vpop.f32.mrf.mxu0
    %v1659 = vadd.f32 0.0, %v1658
    %v1660 = vpop.f32.mrf.mxu0
    %1661 = vmatprep.mubr.f32.mxu0 0.0
    %1662 = vmatmul.mubr.f32.gmra.mxu0 %v1569
    %v1663 = vpop.f32.mrf.mxu0
    %v1664 = vadd.f32 0.0, %v1663
    %v1665 = vpop.f32.mrf.mxu0
    %1666 = vmatprep.mubr.f32.mxu0 0.0
    %1667 = vmatmul.mubr.f32.gmra.mxu0 %v1572
    %v1668 = vpop.f32.mrf.mxu0
    %v1669 = vadd.f32 0.0, %v1668
    %v1670 = vpop.f32.mrf.mxu0
    %1671 = vmatprep.mubr.f32.mxu0 0.0
    %1672 = vmatmul.mubr.f32.gmra.mxu0 %v1575
    %v1673 = vpop.f32.mrf.mxu0
    %v1674 = vadd.f32 0.0, %v1673
    %v1675 = vpop.f32.mrf.mxu0
    %1676 = vmatprep.mubr.f32.mxu0 0.0
    %1677 = vmatmul.mubr.f32.gmra.mxu0 %v1578
    %v1678 = vpop.f32.mrf.mxu0
    %v1679 = vadd.f32 0.0, %v1678
    %v1680 = vpop.f32.mrf.mxu0
    %1681 = vmatprep.mubr.f32.mxu0 0.0
    %1682 = vmatmul.mubr.f32.gmra.mxu0 %v1581
    %v1683 = vpop.f32.mrf.mxu0
    %v1684 = vadd.f32 0.0, %v1683
    %v1685 = vpop.f32.mrf.mxu0
    %1686 = vmatprep.mubr.f32.mxu0 0.0
    %1687 = vmatmul.mubr.f32.gmra.mxu0 %v1584
    %v1688 = vpop.f32.mrf.mxu0
    %v1689 = vadd.f32 0.0, %v1688
    %v1690 = vpop.f32.mrf.mxu0
    %1691 = vmatprep.mubr.f32.mxu0 0.0
    %1692 = vmatmul.mubr.f32.gmra.mxu0 %v1587
    %v1693 = vpop.f32.mrf.mxu0
    %v1694 = vadd.f32 0.0, %v1693
    %v1695 = vpop.f32.mrf.mxu0
    %1696 = vdwg.mxu0
    %v1697 = vadd.f32 %v1433, %v1659
    %v1698 = vadd.f32 %v1434, %v1664
    %v1699 = vadd.f32 %v1435, %v1669
    %v1700 = vadd.f32 %v1436, %v1674
    %v1701 = vadd.f32 %v1437, %v1679
    %v1702 = vadd.f32 %v1438, %v1684
    %v1703 = vadd.f32 %v1439, %v1689
    %v1704 = vadd.f32 %v1440, %v1694
    %s1705 = scalar_lea.vmem [#allocation3], 768
    %v1706 = vld [vmem:[%s1705] sm:$0xff]
    %v1707 = vld [vmem:[%s1705 + $0x8] sm:$0xff]
    %v1708 = vld [vmem:[%s1705 + $0x10] sm:$0xff]
    %v1709 = vld [vmem:[%s1705 + $0x18] sm:$0xff]
    %v1710 = vld [vmem:[%s1705 + $0x20] sm:$0xff]
    %v1711 = vld [vmem:[%s1705 + $0x28] sm:$0xff]
    %v1712 = vld [vmem:[%s1705 + $0x30] sm:$0xff]
    %v1713 = vld [vmem:[%s1705 + $0x38] sm:$0xff]
    %v1714 = vld [vmem:[%s1705 + $0x40] sm:$0xff]
    %v1715 = vld [vmem:[%s1705 + $0x48] sm:$0xff]
    %v1716 = vld [vmem:[%s1705 + $0x50] sm:$0xff]
    %v1717 = vld [vmem:[%s1705 + $0x58] sm:$0xff]
    %v1718 = vld [vmem:[%s1705 + $0x60] sm:$0xff]
    %v1719 = vld [vmem:[%s1705 + $0x68] sm:$0xff]
    %v1720 = vld [vmem:[%s1705 + $0x70] sm:$0xff]
    %v1721 = vld [vmem:[%s1705 + $0x78] sm:$0xff]
    %1722 = vmatprep.subr.mxu0 0.0
    %1723 = vmatpush1.msra.mxu0 %v120
    %1724 = vmatprep.subr.mxu0 0.0
    %1725 = vmatpush1.msra.mxu0 %v119
    %1726 = vmatprep.subr.mxu0 0.0
    %1727 = vmatpush1.msra.mxu0 %v118
    %1728 = vmatprep.subr.mxu0 0.0
    %1729 = vmatpush1.msra.mxu0 %v117
    %1730 = vmatprep.subr.mxu0 0.0
    %1731 = vmatpush1.msra.mxu0 %v116
    %1732 = vmatprep.subr.mxu0 0.0
    %1733 = vmatpush1.msra.mxu0 %v115
    %1734 = vmatprep.subr.mxu0 0.0
    %1735 = vmatpush1.msra.mxu0 %v114
    %1736 = vmatprep.subr.mxu0 0.0
    %1737 = vmatpush1.msra.mxu0 %v113
    %1738 = vmatprep.subr.mxu0 0.0
    %1739 = vmatpush1.msra.mxu0 %v112
    %1740 = vmatprep.subr.mxu0 0.0
    %1741 = vmatpush1.msra.mxu0 %v111
    %1742 = vmatprep.subr.mxu0 0.0
    %1743 = vmatpush1.msra.mxu0 %v110
    %1744 = vmatprep.subr.mxu0 0.0
    %1745 = vmatpush1.msra.mxu0 %v109
    %1746 = vmatprep.subr.mxu0 0.0
    %1747 = vmatpush1.msra.mxu0 %v108
    %1748 = vmatprep.subr.mxu0 0.0
    %1749 = vmatpush1.msra.mxu0 %v107
    %1750 = vmatprep.subr.mxu0 0.0
    %1751 = vmatpush1.msra.mxu0 %v106
    %1752 = vmatprep.subr.mxu0 0.0
    %1753 = vmatpush1.msra.mxu0 %v105
    %1754 = vmatprep.subr.mxu0 0.0
    %1755 = vmatpush2.msra.mxu0 %v136
    %1756 = vmatprep.subr.mxu0 0.0
    %1757 = vmatpush2.msra.mxu0 %v135
    %1758 = vmatprep.subr.mxu0 0.0
    %1759 = vmatpush2.msra.mxu0 %v134
    %1760 = vmatprep.subr.mxu0 0.0
    %1761 = vmatpush2.msra.mxu0 %v133
    %1762 = vmatprep.subr.mxu0 0.0
    %1763 = vmatpush2.msra.mxu0 %v132
    %1764 = vmatprep.subr.mxu0 0.0
    %1765 = vmatpush2.msra.mxu0 %v131
    %1766 = vmatprep.subr.mxu0 0.0
    %1767 = vmatpush2.msra.mxu0 %v130
    %1768 = vmatprep.subr.mxu0 0.0
    %1769 = vmatpush2.msra.mxu0 %v129
    %1770 = vmatprep.subr.mxu0 0.0
    %1771 = vmatpush2.msra.mxu0 %v128
    %1772 = vmatprep.subr.mxu0 0.0
    %1773 = vmatpush2.msra.mxu0 %v127
    %1774 = vmatprep.subr.mxu0 0.0
    %1775 = vmatpush2.msra.mxu0 %v126
    %1776 = vmatprep.subr.mxu0 0.0
    %1777 = vmatpush2.msra.mxu0 %v125
    %1778 = vmatprep.subr.mxu0 0.0
    %1779 = vmatpush2.msra.mxu0 %v124
    %1780 = vmatprep.subr.mxu0 0.0
    %1781 = vmatpush2.msra.mxu0 %v123
    %1782 = vmatprep.subr.mxu0 0.0
    %1783 = vmatpush2.msra.mxu0 %v122
    %1784 = vmatprep.subr.mxu0 0.0
    %1785 = vmatpush2.msra.mxu0 %v121
    %1786 = vmatprep.mubr.f32.mxu0 %v1707
    %1787 = vmatmul.mubr.f32.gmra.mxu0 %v1706
    %v1788 = vpop.f32.mrf.mxu0
    %v1789 = vadd.f32 0.0, %v1788
    %v1790 = vpop.f32.mrf.mxu0
    %1791 = vmatprep.mubr.f32.mxu0 %v1709
    %1792 = vmatmul.mubr.f32.gmra.mxu0 %v1708
    %v1793 = vpop.f32.mrf.mxu0
    %v1794 = vadd.f32 0.0, %v1793
    %v1795 = vpop.f32.mrf.mxu0
    %1796 = vmatprep.mubr.f32.mxu0 %v1711
    %1797 = vmatmul.mubr.f32.gmra.mxu0 %v1710
    %v1798 = vpop.f32.mrf.mxu0
    %v1799 = vadd.f32 0.0, %v1798
    %v1800 = vpop.f32.mrf.mxu0
    %1801 = vmatprep.mubr.f32.mxu0 %v1713
    %1802 = vmatmul.mubr.f32.gmra.mxu0 %v1712
    %v1803 = vpop.f32.mrf.mxu0
    %v1804 = vadd.f32 0.0, %v1803
    %v1805 = vpop.f32.mrf.mxu0
    %1806 = vmatprep.mubr.f32.mxu0 %v1715
    %1807 = vmatmul.mubr.f32.gmra.mxu0 %v1714
    %v1808 = vpop.f32.mrf.mxu0
    %v1809 = vadd.f32 0.0, %v1808
    %v1810 = vpop.f32.mrf.mxu0
    %1811 = vmatprep.mubr.f32.mxu0 %v1717
    %1812 = vmatmul.mubr.f32.gmra.mxu0 %v1716
    %v1813 = vpop.f32.mrf.mxu0
    %v1814 = vadd.f32 0.0, %v1813
    %v1815 = vpop.f32.mrf.mxu0
    %1816 = vmatprep.mubr.f32.mxu0 %v1719
    %1817 = vmatmul.mubr.f32.gmra.mxu0 %v1718
    %v1818 = vpop.f32.mrf.mxu0
    %v1819 = vadd.f32 0.0, %v1818
    %v1820 = vpop.f32.mrf.mxu0
    %1821 = vmatprep.mubr.f32.mxu0 %v1721
    %1822 = vmatmul.mubr.f32.gmra.mxu0 %v1720
    %v1823 = vpop.f32.mrf.mxu0
    %v1824 = vadd.f32 0.0, %v1823
    %v1825 = vpop.f32.mrf.mxu0
    %1826 = vdwg.mxu0
    %s1827 = scalar_lea.vmem %s5, 24
    %v1828 = vld [vmem:[%s1827] sm:$0x7]
    %v1830 = vsel %vm383, %v1789, 0
    %v1833 = vsel %vm383, %v1794, 0
    %v1836 = vsel %vm383, %v1799, 0
    %v1839 = vsel %vm383, %v1804, 0
    %v1842 = vsel %vm383, %v1809, 0
    %v1845 = vsel %vm383, %v1814, 0
    %v1848 = vsel %vm383, %v1819, 0
    %v1851 = vsel %vm383, %v1824, 0
    %v1854 = vsel %vm408, %v1828, 0
    %1856 = vmatprep.subr.mxu0 0.0
    %1857 = vmatpush1.msra.mxu0 0.0
    %1858 = vmatprep.subr.mxu0 0.0
    %1859 = vmatpush1.msra.mxu0 0.0
    %1860 = vmatprep.subr.mxu0 0.0
    %1861 = vmatpush1.msra.mxu0 0.0
    %1862 = vmatprep.subr.mxu0 0.0
    %1863 = vmatpush1.msra.mxu0 0.0
    %1864 = vmatprep.subr.mxu0 0.0
    %1865 = vmatpush1.msra.mxu0 0.0
    %1866 = vmatprep.subr.mxu0 0.0
    %1867 = vmatpush1.msra.mxu0 0.0
    %1868 = vmatprep.subr.mxu0 0.0
    %1869 = vmatpush1.msra.mxu0 0.0
    %1870 = vmatprep.subr.mxu0 0.0
    %1871 = vmatpush1.msra.mxu0 0.0
    %1872 = vmatprep.subr.mxu0 0.0
    %1873 = vmatpush1.msra.mxu0 0.0
    %1874 = vmatprep.subr.mxu0 0.0
    %1875 = vmatpush1.msra.mxu0 0.0
    %1876 = vmatprep.subr.mxu0 0.0
    %1877 = vmatpush1.msra.mxu0 0.0
    %1878 = vmatprep.subr.mxu0 0.0
    %1879 = vmatpush1.msra.mxu0 0.0
    %1880 = vmatprep.subr.mxu0 0.0
    %1881 = vmatpush1.msra.mxu0 0.0
    %1882 = vmatprep.subr.mxu0 0.0
    %1883 = vmatpush1.msra.mxu0 0.0
    %1884 = vmatprep.subr.mxu0 0.0
    %1885 = vmatpush1.msra.mxu0 0.0
    %1886 = vmatprep.subr.mxu0 0.0
    %1887 = vmatpush1.msra.mxu0 %v1854
    %1888 = vmatprep.subr.mxu0 0.0
    %1889 = vmatpush2.msra.mxu0 0.0
    %1890 = vmatprep.subr.mxu0 0.0
    %1891 = vmatpush2.msra.mxu0 0.0
    %1892 = vmatprep.subr.mxu0 0.0
    %1893 = vmatpush2.msra.mxu0 0.0
    %1894 = vmatprep.subr.mxu0 0.0
    %1895 = vmatpush2.msra.mxu0 0.0
    %1896 = vmatprep.subr.mxu0 0.0
    %1897 = vmatpush2.msra.mxu0 0.0
    %1898 = vmatprep.subr.mxu0 0.0
    %1899 = vmatpush2.msra.mxu0 0.0
    %1900 = vmatprep.subr.mxu0 0.0
    %1901 = vmatpush2.msra.mxu0 0.0
    %1902 = vmatprep.subr.mxu0 0.0
    %1903 = vmatpush2.msra.mxu0 0.0
    %1904 = vmatprep.subr.mxu0 0.0
    %1905 = vmatpush2.msra.mxu0 0.0
    %1906 = vmatprep.subr.mxu0 0.0
    %1907 = vmatpush2.msra.mxu0 0.0
    %1908 = vmatprep.subr.mxu0 0.0
    %1909 = vmatpush2.msra.mxu0 0.0
    %1910 = vmatprep.subr.mxu0 0.0
    %1911 = vmatpush2.msra.mxu0 0.0
    %1912 = vmatprep.subr.mxu0 0.0
    %1913 = vmatpush2.msra.mxu0 0.0
    %1914 = vmatprep.subr.mxu0 0.0
    %1915 = vmatpush2.msra.mxu0 0.0
    %1916 = vmatprep.subr.mxu0 0.0
    %1917 = vmatpush2.msra.mxu0 0.0
    %1918 = vmatprep.subr.mxu0 0.0
    %1919 = vmatpush2.msra.mxu0 0.0
    %1920 = vmatprep.mubr.f32.mxu0 0.0
    %1921 = vmatmul.mubr.f32.gmra.mxu0 %v1830
    %v1922 = vpop.f32.mrf.mxu0
    %v1923 = vadd.f32 0.0, %v1922
    %v1924 = vpop.f32.mrf.mxu0
    %1925 = vmatprep.mubr.f32.mxu0 0.0
    %1926 = vmatmul.mubr.f32.gmra.mxu0 %v1833
    %v1927 = vpop.f32.mrf.mxu0
    %v1928 = vadd.f32 0.0, %v1927
    %v1929 = vpop.f32.mrf.mxu0
    %1930 = vmatprep.mubr.f32.mxu0 0.0
    %1931 = vmatmul.mubr.f32.gmra.mxu0 %v1836
    %v1932 = vpop.f32.mrf.mxu0
    %v1933 = vadd.f32 0.0, %v1932
    %v1934 = vpop.f32.mrf.mxu0
    %1935 = vmatprep.mubr.f32.mxu0 0.0
    %1936 = vmatmul.mubr.f32.gmra.mxu0 %v1839
    %v1937 = vpop.f32.mrf.mxu0
    %v1938 = vadd.f32 0.0, %v1937
    %v1939 = vpop.f32.mrf.mxu0
    %1940 = vmatprep.mubr.f32.mxu0 0.0
    %1941 = vmatmul.mubr.f32.gmra.mxu0 %v1842
    %v1942 = vpop.f32.mrf.mxu0
    %v1943 = vadd.f32 0.0, %v1942
    %v1944 = vpop.f32.mrf.mxu0
    %1945 = vmatprep.mubr.f32.mxu0 0.0
    %1946 = vmatmul.mubr.f32.gmra.mxu0 %v1845
    %v1947 = vpop.f32.mrf.mxu0
    %v1948 = vadd.f32 0.0, %v1947
    %v1949 = vpop.f32.mrf.mxu0
    %1950 = vmatprep.mubr.f32.mxu0 0.0
    %1951 = vmatmul.mubr.f32.gmra.mxu0 %v1848
    %v1952 = vpop.f32.mrf.mxu0
    %v1953 = vadd.f32 0.0, %v1952
    %v1954 = vpop.f32.mrf.mxu0
    %1955 = vmatprep.mubr.f32.mxu0 0.0
    %1956 = vmatmul.mubr.f32.gmra.mxu0 %v1851
    %v1957 = vpop.f32.mrf.mxu0
    %v1958 = vadd.f32 0.0, %v1957
    %v1959 = vpop.f32.mrf.mxu0
    %1960 = vdwg.mxu0
    %v1961 = vadd.f32 %v1697, %v1923
    %v1962 = vadd.f32 %v1698, %v1928
    %v1963 = vadd.f32 %v1699, %v1933
    %v1964 = vadd.f32 %v1700, %v1938
    %v1965 = vadd.f32 %v1701, %v1943
    %v1966 = vadd.f32 %v1702, %v1948
    %v1967 = vadd.f32 %v1703, %v1953
    %v1968 = vadd.f32 %v1704, %v1958
    %s1969 = scalar_lea.vmem [#allocation3], 896
    %v1970 = vld [vmem:[%s1969] sm:$0xff]
    %v1971 = vld [vmem:[%s1969 + $0x8] sm:$0xff]
    %v1972 = vld [vmem:[%s1969 + $0x10] sm:$0xff]
    %v1973 = vld [vmem:[%s1969 + $0x18] sm:$0xff]
    %v1974 = vld [vmem:[%s1969 + $0x20] sm:$0xff]
    %v1975 = vld [vmem:[%s1969 + $0x28] sm:$0xff]
    %v1976 = vld [vmem:[%s1969 + $0x30] sm:$0xff]
    %v1977 = vld [vmem:[%s1969 + $0x38] sm:$0xff]
    %v1978 = vld [vmem:[%s1969 + $0x40] sm:$0xff]
    %v1979 = vld [vmem:[%s1969 + $0x48] sm:$0xff]
    %v1980 = vld [vmem:[%s1969 + $0x50] sm:$0xff]
    %v1981 = vld [vmem:[%s1969 + $0x58] sm:$0xff]
    %v1982 = vld [vmem:[%s1969 + $0x60] sm:$0xff]
    %v1983 = vld [vmem:[%s1969 + $0x68] sm:$0xff]
    %v1984 = vld [vmem:[%s1969 + $0x70] sm:$0xff]
    %v1985 = vld [vmem:[%s1969 + $0x78] sm:$0xff]
    %1986 = vmatprep.subr.mxu0 0.0
    %1987 = vmatpush1.msra.mxu0 %v120
    %1988 = vmatprep.subr.mxu0 0.0
    %1989 = vmatpush1.msra.mxu0 %v119
    %1990 = vmatprep.subr.mxu0 0.0
    %1991 = vmatpush1.msra.mxu0 %v118
    %1992 = vmatprep.subr.mxu0 0.0
    %1993 = vmatpush1.msra.mxu0 %v117
    %1994 = vmatprep.subr.mxu0 0.0
    %1995 = vmatpush1.msra.mxu0 %v116
    %1996 = vmatprep.subr.mxu0 0.0
    %1997 = vmatpush1.msra.mxu0 %v115
    %1998 = vmatprep.subr.mxu0 0.0
    %1999 = vmatpush1.msra.mxu0 %v114
    %2000 = vmatprep.subr.mxu0 0.0
    %2001 = vmatpush1.msra.mxu0 %v113
    %2002 = vmatprep.subr.mxu0 0.0
    %2003 = vmatpush1.msra.mxu0 %v112
    %2004 = vmatprep.subr.mxu0 0.0
    %2005 = vmatpush1.msra.mxu0 %v111
    %2006 = vmatprep.subr.mxu0 0.0
    %2007 = vmatpush1.msra.mxu0 %v110
    %2008 = vmatprep.subr.mxu0 0.0
    %2009 = vmatpush1.msra.mxu0 %v109
    %2010 = vmatprep.subr.mxu0 0.0
    %2011 = vmatpush1.msra.mxu0 %v108
    %2012 = vmatprep.subr.mxu0 0.0
    %2013 = vmatpush1.msra.mxu0 %v107
    %2014 = vmatprep.subr.mxu0 0.0
    %2015 = vmatpush1.msra.mxu0 %v106
    %2016 = vmatprep.subr.mxu0 0.0
    %2017 = vmatpush1.msra.mxu0 %v105
    %2018 = vmatprep.subr.mxu0 0.0
    %2019 = vmatpush2.msra.mxu0 %v136
    %2020 = vmatprep.subr.mxu0 0.0
    %2021 = vmatpush2.msra.mxu0 %v135
    %2022 = vmatprep.subr.mxu0 0.0
    %2023 = vmatpush2.msra.mxu0 %v134
    %2024 = vmatprep.subr.mxu0 0.0
    %2025 = vmatpush2.msra.mxu0 %v133
    %2026 = vmatprep.subr.mxu0 0.0
    %2027 = vmatpush2.msra.mxu0 %v132
    %2028 = vmatprep.subr.mxu0 0.0
    %2029 = vmatpush2.msra.mxu0 %v131
    %2030 = vmatprep.subr.mxu0 0.0
    %2031 = vmatpush2.msra.mxu0 %v130
    %2032 = vmatprep.subr.mxu0 0.0
    %2033 = vmatpush2.msra.mxu0 %v129
    %2034 = vmatprep.subr.mxu0 0.0
    %2035 = vmatpush2.msra.mxu0 %v128
    %2036 = vmatprep.subr.mxu0 0.0
    %2037 = vmatpush2.msra.mxu0 %v127
    %2038 = vmatprep.subr.mxu0 0.0
    %2039 = vmatpush2.msra.mxu0 %v126
    %2040 = vmatprep.subr.mxu0 0.0
    %2041 = vmatpush2.msra.mxu0 %v125
    %2042 = vmatprep.subr.mxu0 0.0
    %2043 = vmatpush2.msra.mxu0 %v124
    %2044 = vmatprep.subr.mxu0 0.0
    %2045 = vmatpush2.msra.mxu0 %v123
    %2046 = vmatprep.subr.mxu0 0.0
    %2047 = vmatpush2.msra.mxu0 %v122
    %2048 = vmatprep.subr.mxu0 0.0
    %2049 = vmatpush2.msra.mxu0 %v121
    %2050 = vmatprep.mubr.f32.mxu0 %v1971
    %2051 = vmatmul.mubr.f32.gmra.mxu0 %v1970
    %v2052 = vpop.f32.mrf.mxu0
    %v2053 = vadd.f32 0.0, %v2052
    %v2054 = vpop.f32.mrf.mxu0
    %2055 = vmatprep.mubr.f32.mxu0 %v1973
    %2056 = vmatmul.mubr.f32.gmra.mxu0 %v1972
    %v2057 = vpop.f32.mrf.mxu0
    %v2058 = vadd.f32 0.0, %v2057
    %v2059 = vpop.f32.mrf.mxu0
    %2060 = vmatprep.mubr.f32.mxu0 %v1975
    %2061 = vmatmul.mubr.f32.gmra.mxu0 %v1974
    %v2062 = vpop.f32.mrf.mxu0
    %v2063 = vadd.f32 0.0, %v2062
    %v2064 = vpop.f32.mrf.mxu0
    %2065 = vmatprep.mubr.f32.mxu0 %v1977
    %2066 = vmatmul.mubr.f32.gmra.mxu0 %v1976
    %v2067 = vpop.f32.mrf.mxu0
    %v2068 = vadd.f32 0.0, %v2067
    %v2069 = vpop.f32.mrf.mxu0
    %2070 = vmatprep.mubr.f32.mxu0 %v1979
    %2071 = vmatmul.mubr.f32.gmra.mxu0 %v1978
    %v2072 = vpop.f32.mrf.mxu0
    %v2073 = vadd.f32 0.0, %v2072
    %v2074 = vpop.f32.mrf.mxu0
    %2075 = vmatprep.mubr.f32.mxu0 %v1981
    %2076 = vmatmul.mubr.f32.gmra.mxu0 %v1980
    %v2077 = vpop.f32.mrf.mxu0
    %v2078 = vadd.f32 0.0, %v2077
    %v2079 = vpop.f32.mrf.mxu0
    %2080 = vmatprep.mubr.f32.mxu0 %v1983
    %2081 = vmatmul.mubr.f32.gmra.mxu0 %v1982
    %v2082 = vpop.f32.mrf.mxu0
    %v2083 = vadd.f32 0.0, %v2082
    %v2084 = vpop.f32.mrf.mxu0
    %2085 = vmatprep.mubr.f32.mxu0 %v1985
    %2086 = vmatmul.mubr.f32.gmra.mxu0 %v1984
    %v2087 = vpop.f32.mrf.mxu0
    %v2088 = vadd.f32 0.0, %v2087
    %v2089 = vpop.f32.mrf.mxu0
    %2090 = vdwg.mxu0
    %s2091 = scalar_lea.vmem %s5, 28
    %v2092 = vld [vmem:[%s2091] sm:$0x7]
    %v2094 = vsel %vm383, %v2053, 0
    %v2097 = vsel %vm383, %v2058, 0
    %v2100 = vsel %vm383, %v2063, 0
    %v2103 = vsel %vm383, %v2068, 0
    %v2106 = vsel %vm383, %v2073, 0
    %v2109 = vsel %vm383, %v2078, 0
    %v2112 = vsel %vm383, %v2083, 0
    %v2115 = vsel %vm383, %v2088, 0
    %v2118 = vsel %vm408, %v2092, 0
    %2120 = vmatprep.subr.mxu0 0.0
    %2121 = vmatpush1.msra.mxu0 0.0
    %2122 = vmatprep.subr.mxu0 0.0
    %2123 = vmatpush1.msra.mxu0 0.0
    %2124 = vmatprep.subr.mxu0 0.0
    %2125 = vmatpush1.msra.mxu0 0.0
    %2126 = vmatprep.subr.mxu0 0.0
    %2127 = vmatpush1.msra.mxu0 0.0
    %2128 = vmatprep.subr.mxu0 0.0
    %2129 = vmatpush1.msra.mxu0 0.0
    %2130 = vmatprep.subr.mxu0 0.0
    %2131 = vmatpush1.msra.mxu0 0.0
    %2132 = vmatprep.subr.mxu0 0.0
    %2133 = vmatpush1.msra.mxu0 0.0
    %2134 = vmatprep.subr.mxu0 0.0
    %2135 = vmatpush1.msra.mxu0 0.0
    %2136 = vmatprep.subr.mxu0 0.0
    %2137 = vmatpush1.msra.mxu0 0.0
    %2138 = vmatprep.subr.mxu0 0.0
    %2139 = vmatpush1.msra.mxu0 0.0
    %2140 = vmatprep.subr.mxu0 0.0
    %2141 = vmatpush1.msra.mxu0 0.0
    %2142 = vmatprep.subr.mxu0 0.0
    %2143 = vmatpush1.msra.mxu0 0.0
    %2144 = vmatprep.subr.mxu0 0.0
    %2145 = vmatpush1.msra.mxu0 0.0
    %2146 = vmatprep.subr.mxu0 0.0
    %2147 = vmatpush1.msra.mxu0 0.0
    %2148 = vmatprep.subr.mxu0 0.0
    %2149 = vmatpush1.msra.mxu0 0.0
    %2150 = vmatprep.subr.mxu0 0.0
    %2151 = vmatpush1.msra.mxu0 %v2118
    %2152 = vmatprep.subr.mxu0 0.0
    %2153 = vmatpush2.msra.mxu0 0.0
    %2154 = vmatprep.subr.mxu0 0.0
    %2155 = vmatpush2.msra.mxu0 0.0
    %2156 = vmatprep.subr.mxu0 0.0
    %2157 = vmatpush2.msra.mxu0 0.0
    %2158 = vmatprep.subr.mxu0 0.0
    %2159 = vmatpush2.msra.mxu0 0.0
    %2160 = vmatprep.subr.mxu0 0.0
    %2161 = vmatpush2.msra.mxu0 0.0
    %2162 = vmatprep.subr.mxu0 0.0
    %2163 = vmatpush2.msra.mxu0 0.0
    %2164 = vmatprep.subr.mxu0 0.0
    %2165 = vmatpush2.msra.mxu0 0.0
    %2166 = vmatprep.subr.mxu0 0.0
    %2167 = vmatpush2.msra.mxu0 0.0
    %2168 = vmatprep.subr.mxu0 0.0
    %2169 = vmatpush2.msra.mxu0 0.0
    %2170 = vmatprep.subr.mxu0 0.0
    %2171 = vmatpush2.msra.mxu0 0.0
    %2172 = vmatprep.subr.mxu0 0.0
    %2173 = vmatpush2.msra.mxu0 0.0
    %2174 = vmatprep.subr.mxu0 0.0
    %2175 = vmatpush2.msra.mxu0 0.0
    %2176 = vmatprep.subr.mxu0 0.0
    %2177 = vmatpush2.msra.mxu0 0.0
    %2178 = vmatprep.subr.mxu0 0.0
    %2179 = vmatpush2.msra.mxu0 0.0
    %2180 = vmatprep.subr.mxu0 0.0
    %2181 = vmatpush2.msra.mxu0 0.0
    %2182 = vmatprep.subr.mxu0 0.0
    %2183 = vmatpush2.msra.mxu0 0.0
    %2184 = vmatprep.mubr.f32.mxu0 0.0
    %2185 = vmatmul.mubr.f32.gmra.mxu0 %v2094
    %v2186 = vpop.f32.mrf.mxu0
    %v2187 = vadd.f32 0.0, %v2186
    %v2188 = vpop.f32.mrf.mxu0
    %2189 = vmatprep.mubr.f32.mxu0 0.0
    %2190 = vmatmul.mubr.f32.gmra.mxu0 %v2097
    %v2191 = vpop.f32.mrf.mxu0
    %v2192 = vadd.f32 0.0, %v2191
    %v2193 = vpop.f32.mrf.mxu0
    %2194 = vmatprep.mubr.f32.mxu0 0.0
    %2195 = vmatmul.mubr.f32.gmra.mxu0 %v2100
    %v2196 = vpop.f32.mrf.mxu0
    %v2197 = vadd.f32 0.0, %v2196
    %v2198 = vpop.f32.mrf.mxu0
    %2199 = vmatprep.mubr.f32.mxu0 0.0
    %2200 = vmatmul.mubr.f32.gmra.mxu0 %v2103
    %v2201 = vpop.f32.mrf.mxu0
    %v2202 = vadd.f32 0.0, %v2201
    %v2203 = vpop.f32.mrf.mxu0
    %2204 = vmatprep.mubr.f32.mxu0 0.0
    %2205 = vmatmul.mubr.f32.gmra.mxu0 %v2106
    %v2206 = vpop.f32.mrf.mxu0
    %v2207 = vadd.f32 0.0, %v2206
    %v2208 = vpop.f32.mrf.mxu0
    %2209 = vmatprep.mubr.f32.mxu0 0.0
    %2210 = vmatmul.mubr.f32.gmra.mxu0 %v2109
    %v2211 = vpop.f32.mrf.mxu0
    %v2212 = vadd.f32 0.0, %v2211
    %v2213 = vpop.f32.mrf.mxu0
    %2214 = vmatprep.mubr.f32.mxu0 0.0
    %2215 = vmatmul.mubr.f32.gmra.mxu0 %v2112
    %v2216 = vpop.f32.mrf.mxu0
    %v2217 = vadd.f32 0.0, %v2216
    %v2218 = vpop.f32.mrf.mxu0
    %2219 = vmatprep.mubr.f32.mxu0 0.0
    %2220 = vmatmul.mubr.f32.gmra.mxu0 %v2115
    %v2221 = vpop.f32.mrf.mxu0
    %v2222 = vadd.f32 0.0, %v2221
    %v2223 = vpop.f32.mrf.mxu0
    %2224 = vdwg.mxu0
    %v2225 = vadd.f32 %v1961, %v2187
    %v2226 = vadd.f32 %v1962, %v2192
    %v2227 = vadd.f32 %v1963, %v2197
    %v2228 = vadd.f32 %v1964, %v2202
    %v2229 = vadd.f32 %v1965, %v2207
    %v2230 = vadd.f32 %v1966, %v2212
    %v2231 = vadd.f32 %v1967, %v2217
    %v2232 = vadd.f32 %v1968, %v2222
    %s2233 = scalar_lea.vmem [#allocation3], 1024
    %v2234 = vld [vmem:[%s2233] sm:$0xff]
    %v2235 = vld [vmem:[%s2233 + $0x8] sm:$0xff]
    %v2236 = vld [vmem:[%s2233 + $0x10] sm:$0xff]
    %v2237 = vld [vmem:[%s2233 + $0x18] sm:$0xff]
    %v2238 = vld [vmem:[%s2233 + $0x20] sm:$0xff]
    %v2239 = vld [vmem:[%s2233 + $0x28] sm:$0xff]
    %v2240 = vld [vmem:[%s2233 + $0x30] sm:$0xff]
    %v2241 = vld [vmem:[%s2233 + $0x38] sm:$0xff]
    %v2242 = vld [vmem:[%s2233 + $0x40] sm:$0xff]
    %v2243 = vld [vmem:[%s2233 + $0x48] sm:$0xff]
    %v2244 = vld [vmem:[%s2233 + $0x50] sm:$0xff]
    %v2245 = vld [vmem:[%s2233 + $0x58] sm:$0xff]
    %v2246 = vld [vmem:[%s2233 + $0x60] sm:$0xff]
    %v2247 = vld [vmem:[%s2233 + $0x68] sm:$0xff]
    %v2248 = vld [vmem:[%s2233 + $0x70] sm:$0xff]
    %v2249 = vld [vmem:[%s2233 + $0x78] sm:$0xff]
    %2250 = vmatprep.subr.mxu0 0.0
    %2251 = vmatpush1.msra.mxu0 %v120
    %2252 = vmatprep.subr.mxu0 0.0
    %2253 = vmatpush1.msra.mxu0 %v119
    %2254 = vmatprep.subr.mxu0 0.0
    %2255 = vmatpush1.msra.mxu0 %v118
    %2256 = vmatprep.subr.mxu0 0.0
    %2257 = vmatpush1.msra.mxu0 %v117
    %2258 = vmatprep.subr.mxu0 0.0
    %2259 = vmatpush1.msra.mxu0 %v116
    %2260 = vmatprep.subr.mxu0 0.0
    %2261 = vmatpush1.msra.mxu0 %v115
    %2262 = vmatprep.subr.mxu0 0.0
    %2263 = vmatpush1.msra.mxu0 %v114
    %2264 = vmatprep.subr.mxu0 0.0
    %2265 = vmatpush1.msra.mxu0 %v113
    %2266 = vmatprep.subr.mxu0 0.0
    %2267 = vmatpush1.msra.mxu0 %v112
    %2268 = vmatprep.subr.mxu0 0.0
    %2269 = vmatpush1.msra.mxu0 %v111
    %2270 = vmatprep.subr.mxu0 0.0
    %2271 = vmatpush1.msra.mxu0 %v110
    %2272 = vmatprep.subr.mxu0 0.0
    %2273 = vmatpush1.msra.mxu0 %v109
    %2274 = vmatprep.subr.mxu0 0.0
    %2275 = vmatpush1.msra.mxu0 %v108
    %2276 = vmatprep.subr.mxu0 0.0
    %2277 = vmatpush1.msra.mxu0 %v107
    %2278 = vmatprep.subr.mxu0 0.0
    %2279 = vmatpush1.msra.mxu0 %v106
    %2280 = vmatprep.subr.mxu0 0.0
    %2281 = vmatpush1.msra.mxu0 %v105
    %2282 = vmatprep.subr.mxu0 0.0
    %2283 = vmatpush2.msra.mxu0 %v136
    %2284 = vmatprep.subr.mxu0 0.0
    %2285 = vmatpush2.msra.mxu0 %v135
    %2286 = vmatprep.subr.mxu0 0.0
    %2287 = vmatpush2.msra.mxu0 %v134
    %2288 = vmatprep.subr.mxu0 0.0
    %2289 = vmatpush2.msra.mxu0 %v133
    %2290 = vmatprep.subr.mxu0 0.0
    %2291 = vmatpush2.msra.mxu0 %v132
    %2292 = vmatprep.subr.mxu0 0.0
    %2293 = vmatpush2.msra.mxu0 %v131
    %2294 = vmatprep.subr.mxu0 0.0
    %2295 = vmatpush2.msra.mxu0 %v130
    %2296 = vmatprep.subr.mxu0 0.0
    %2297 = vmatpush2.msra.mxu0 %v129
    %2298 = vmatprep.subr.mxu0 0.0
    %2299 = vmatpush2.msra.mxu0 %v128
    %2300 = vmatprep.subr.mxu0 0.0
    %2301 = vmatpush2.msra.mxu0 %v127
    %2302 = vmatprep.subr.mxu0 0.0
    %2303 = vmatpush2.msra.mxu0 %v126
    %2304 = vmatprep.subr.mxu0 0.0
    %2305 = vmatpush2.msra.mxu0 %v125
    %2306 = vmatprep.subr.mxu0 0.0
    %2307 = vmatpush2.msra.mxu0 %v124
    %2308 = vmatprep.subr.mxu0 0.0
    %2309 = vmatpush2.msra.mxu0 %v123
    %2310 = vmatprep.subr.mxu0 0.0
    %2311 = vmatpush2.msra.mxu0 %v122
    %2312 = vmatprep.subr.mxu0 0.0
    %2313 = vmatpush2.msra.mxu0 %v121
    %2314 = vmatprep.mubr.f32.mxu0 %v2235
    %2315 = vmatmul.mubr.f32.gmra.mxu0 %v2234
    %v2316 = vpop.f32.mrf.mxu0
    %v2317 = vadd.f32 0.0, %v2316
    %v2318 = vpop.f32.mrf.mxu0
    %2319 = vmatprep.mubr.f32.mxu0 %v2237
    %2320 = vmatmul.mubr.f32.gmra.mxu0 %v2236
    %v2321 = vpop.f32.mrf.mxu0
    %v2322 = vadd.f32 0.0, %v2321
    %v2323 = vpop.f32.mrf.mxu0
    %2324 = vmatprep.mubr.f32.mxu0 %v2239
    %2325 = vmatmul.mubr.f32.gmra.mxu0 %v2238
    %v2326 = vpop.f32.mrf.mxu0
    %v2327 = vadd.f32 0.0, %v2326
    %v2328 = vpop.f32.mrf.mxu0
    %2329 = vmatprep.mubr.f32.mxu0 %v2241
    %2330 = vmatmul.mubr.f32.gmra.mxu0 %v2240
    %v2331 = vpop.f32.mrf.mxu0
    %v2332 = vadd.f32 0.0, %v2331
    %v2333 = vpop.f32.mrf.mxu0
    %2334 = vmatprep.mubr.f32.mxu0 %v2243
    %2335 = vmatmul.mubr.f32.gmra.mxu0 %v2242
    %v2336 = vpop.f32.mrf.mxu0
    %v2337 = vadd.f32 0.0, %v2336
    %v2338 = vpop.f32.mrf.mxu0
    %2339 = vmatprep.mubr.f32.mxu0 %v2245
    %2340 = vmatmul.mubr.f32.gmra.mxu0 %v2244
    %v2341 = vpop.f32.mrf.mxu0
    %v2342 = vadd.f32 0.0, %v2341
    %v2343 = vpop.f32.mrf.mxu0
    %2344 = vmatprep.mubr.f32.mxu0 %v2247
    %2345 = vmatmul.mubr.f32.gmra.mxu0 %v2246
    %v2346 = vpop.f32.mrf.mxu0
    %v2347 = vadd.f32 0.0, %v2346
    %v2348 = vpop.f32.mrf.mxu0
    %2349 = vmatprep.mubr.f32.mxu0 %v2249
    %2350 = vmatmul.mubr.f32.gmra.mxu0 %v2248
    %v2351 = vpop.f32.mrf.mxu0
    %v2352 = vadd.f32 0.0, %v2351
    %v2353 = vpop.f32.mrf.mxu0
    %2354 = vdwg.mxu0
    %s2355 = scalar_lea.vmem %s5, 32
    %v2356 = vld [vmem:[%s2355] sm:$0x7]
    %v2358 = vsel %vm383, %v2317, 0
    %v2361 = vsel %vm383, %v2322, 0
    %v2364 = vsel %vm383, %v2327, 0
    %v2367 = vsel %vm383, %v2332, 0
    %v2370 = vsel %vm383, %v2337, 0
    %v2373 = vsel %vm383, %v2342, 0
    %v2376 = vsel %vm383, %v2347, 0
    %v2379 = vsel %vm383, %v2352, 0
    %v2382 = vsel %vm408, %v2356, 0
    %2384 = vmatprep.subr.mxu0 0.0
    %2385 = vmatpush1.msra.mxu0 0.0
    %2386 = vmatprep.subr.mxu0 0.0
    %2387 = vmatpush1.msra.mxu0 0.0
    %2388 = vmatprep.subr.mxu0 0.0
    %2389 = vmatpush1.msra.mxu0 0.0
    %2390 = vmatprep.subr.mxu0 0.0
    %2391 = vmatpush1.msra.mxu0 0.0
    %2392 = vmatprep.subr.mxu0 0.0
    %2393 = vmatpush1.msra.mxu0 0.0
    %2394 = vmatprep.subr.mxu0 0.0
    %2395 = vmatpush1.msra.mxu0 0.0
    %2396 = vmatprep.subr.mxu0 0.0
    %2397 = vmatpush1.msra.mxu0 0.0
    %2398 = vmatprep.subr.mxu0 0.0
    %2399 = vmatpush1.msra.mxu0 0.0
    %2400 = vmatprep.subr.mxu0 0.0
    %2401 = vmatpush1.msra.mxu0 0.0
    %2402 = vmatprep.subr.mxu0 0.0
    %2403 = vmatpush1.msra.mxu0 0.0
    %2404 = vmatprep.subr.mxu0 0.0
    %2405 = vmatpush1.msra.mxu0 0.0
    %2406 = vmatprep.subr.mxu0 0.0
    %2407 = vmatpush1.msra.mxu0 0.0
    %2408 = vmatprep.subr.mxu0 0.0
    %2409 = vmatpush1.msra.mxu0 0.0
    %2410 = vmatprep.subr.mxu0 0.0
    %2411 = vmatpush1.msra.mxu0 0.0
    %2412 = vmatprep.subr.mxu0 0.0
    %2413 = vmatpush1.msra.mxu0 0.0
    %2414 = vmatprep.subr.mxu0 0.0
    %2415 = vmatpush1.msra.mxu0 %v2382
    %2416 = vmatprep.subr.mxu0 0.0
    %2417 = vmatpush2.msra.mxu0 0.0
    %2418 = vmatprep.subr.mxu0 0.0
    %2419 = vmatpush2.msra.mxu0 0.0
    %2420 = vmatprep.subr.mxu0 0.0
    %2421 = vmatpush2.msra.mxu0 0.0
    %2422 = vmatprep.subr.mxu0 0.0
    %2423 = vmatpush2.msra.mxu0 0.0
    %2424 = vmatprep.subr.mxu0 0.0
    %2425 = vmatpush2.msra.mxu0 0.0
    %2426 = vmatprep.subr.mxu0 0.0
    %2427 = vmatpush2.msra.mxu0 0.0
    %2428 = vmatprep.subr.mxu0 0.0
    %2429 = vmatpush2.msra.mxu0 0.0
    %2430 = vmatprep.subr.mxu0 0.0
    %2431 = vmatpush2.msra.mxu0 0.0
    %2432 = vmatprep.subr.mxu0 0.0
    %2433 = vmatpush2.msra.mxu0 0.0
    %2434 = vmatprep.subr.mxu0 0.0
    %2435 = vmatpush2.msra.mxu0 0.0
    %2436 = vmatprep.subr.mxu0 0.0
    %2437 = vmatpush2.msra.mxu0 0.0
    %2438 = vmatprep.subr.mxu0 0.0
    %2439 = vmatpush2.msra.mxu0 0.0
    %2440 = vmatprep.subr.mxu0 0.0
    %2441 = vmatpush2.msra.mxu0 0.0
    %2442 = vmatprep.subr.mxu0 0.0
    %2443 = vmatpush2.msra.mxu0 0.0
    %2444 = vmatprep.subr.mxu0 0.0
    %2445 = vmatpush2.msra.mxu0 0.0
    %2446 = vmatprep.subr.mxu0 0.0
    %2447 = vmatpush2.msra.mxu0 0.0
    %2448 = vmatprep.mubr.f32.mxu0 0.0
    %2449 = vmatmul.mubr.f32.gmra.mxu0 %v2358
    %v2450 = vpop.f32.mrf.mxu0
    %v2451 = vadd.f32 0.0, %v2450
    %v2452 = vpop.f32.mrf.mxu0
    %2453 = vmatprep.mubr.f32.mxu0 0.0
    %2454 = vmatmul.mubr.f32.gmra.mxu0 %v2361
    %v2455 = vpop.f32.mrf.mxu0
    %v2456 = vadd.f32 0.0, %v2455
    %v2457 = vpop.f32.mrf.mxu0
    %2458 = vmatprep.mubr.f32.mxu0 0.0
    %2459 = vmatmul.mubr.f32.gmra.mxu0 %v2364
    %v2460 = vpop.f32.mrf.mxu0
    %v2461 = vadd.f32 0.0, %v2460
    %v2462 = vpop.f32.mrf.mxu0
    %2463 = vmatprep.mubr.f32.mxu0 0.0
    %2464 = vmatmul.mubr.f32.gmra.mxu0 %v2367
    %v2465 = vpop.f32.mrf.mxu0
    %v2466 = vadd.f32 0.0, %v2465
    %v2467 = vpop.f32.mrf.mxu0
    %2468 = vmatprep.mubr.f32.mxu0 0.0
    %2469 = vmatmul.mubr.f32.gmra.mxu0 %v2370
    %v2470 = vpop.f32.mrf.mxu0
    %v2471 = vadd.f32 0.0, %v2470
    %v2472 = vpop.f32.mrf.mxu0
    %2473 = vmatprep.mubr.f32.mxu0 0.0
    %2474 = vmatmul.mubr.f32.gmra.mxu0 %v2373
    %v2475 = vpop.f32.mrf.mxu0
    %v2476 = vadd.f32 0.0, %v2475
    %v2477 = vpop.f32.mrf.mxu0
    %2478 = vmatprep.mubr.f32.mxu0 0.0
    %2479 = vmatmul.mubr.f32.gmra.mxu0 %v2376
    %v2480 = vpop.f32.mrf.mxu0
    %v2481 = vadd.f32 0.0, %v2480
    %v2482 = vpop.f32.mrf.mxu0
    %2483 = vmatprep.mubr.f32.mxu0 0.0
    %2484 = vmatmul.mubr.f32.gmra.mxu0 %v2379
    %v2485 = vpop.f32.mrf.mxu0
    %v2486 = vadd.f32 0.0, %v2485
    %v2487 = vpop.f32.mrf.mxu0
    %2488 = vdwg.mxu0
    %v2489 = vadd.f32 %v2225, %v2451
    %v2490 = vadd.f32 %v2226, %v2456
    %v2491 = vadd.f32 %v2227, %v2461
    %v2492 = vadd.f32 %v2228, %v2466
    %v2493 = vadd.f32 %v2229, %v2471
    %v2494 = vadd.f32 %v2230, %v2476
    %v2495 = vadd.f32 %v2231, %v2481
    %v2496 = vadd.f32 %v2232, %v2486
    %v2497 = vld [vmem:[%s9] sm:$0x1]
    %v2499 = vlaneseq
    %v2500 = vshrl.u32 %v2499, 7
    %v2501 = vsub.s32 0, %v2500
    %v2502 = vrot.slane %v2497, %v2501
    %v2504 = vadd.f32 %v2489, %v2502
    %v2505 = vadd.f32 %v2490, %v2502
    %v2506 = vadd.f32 %v2491, %v2502
    %v2507 = vadd.f32 %v2492, %v2502
    %v2508 = vadd.f32 %v2493, %v2502
    %v2509 = vadd.f32 %v2494, %v2502
    %v2510 = vadd.f32 %v2495, %v2502
    %v2511 = vadd.f32 %v2496, %v2502
    %v2512 = vmul.f32 %v2504, 0.2
    %v2513 = vmul.f32 %v2505, 0.2
    %v2514 = vmul.f32 %v2506, 0.2
    %v2515 = vmul.f32 %v2507, 0.2
    %v2516 = vmul.f32 %v2508, 0.2
    %v2517 = vmul.f32 %v2509, 0.2
    %v2518 = vmul.f32 %v2510, 0.2
    %v2519 = vmul.f32 %v2511, 0.2
    %v2520 = vmax.f32 %v2504, %v2512
    %v2521 = vmax.f32 %v2505, %v2513
    %v2522 = vmax.f32 %v2506, %v2514
    %v2523 = vmax.f32 %v2507, %v2515
    %v2524 = vmax.f32 %v2508, %v2516
    %v2525 = vmax.f32 %v2509, %v2517
    %v2526 = vmax.f32 %v2510, %v2518
    %v2527 = vmax.f32 %v2511, %v2519
    %v2528 = vld [vmem:[%s10] sm:$0x1]
    %v2530 = vlaneseq
    %v2531 = vshrl.u32 %v2530, 7
    %v2532 = vsub.s32 0, %v2531
    %v2533 = vrot.slane %v2528, %v2532
    %v2535 = vmul.f32 %v2520, %v2533
    %v2536 = vmul.f32 %v2521, %v2533
    %v2537 = vmul.f32 %v2522, %v2533
    %v2538 = vmul.f32 %v2523, %v2533
    %v2539 = vmul.f32 %v2524, %v2533
    %v2540 = vmul.f32 %v2525, %v2533
    %v2541 = vmul.f32 %v2526, %v2533
    %v2542 = vmul.f32 %v2527, %v2533
    %v2543 = vld [vmem:[%s11] sm:$0x1]
    %v2545 = vlaneseq
    %v2546 = vshrl.u32 %v2545, 7
    %v2547 = vsub.s32 0, %v2546
    %v2548 = vrot.slane %v2543, %v2547
    %v2550 = vadd.f32 %v2535, %v2548
    %v2551 = vadd.f32 %v2536, %v2548
    %v2552 = vadd.f32 %v2537, %v2548
    %v2553 = vadd.f32 %v2538, %v2548
    %v2554 = vadd.f32 %v2539, %v2548
    %v2555 = vadd.f32 %v2540, %v2548
    %v2556 = vadd.f32 %v2541, %v2548
    %v2557 = vadd.f32 %v2542, %v2548
    %v2558 = vld [vmem:[%s2] sm:$0xff]
    %v2559 = vld [vmem:[%s2 + $0x8] sm:$0xff]
    %vm2560 = vcmask 523264
    %v2562 = vsel %vm2560, %v2558, 0
    %v2565 = vsel %vm2560, %v2559, 0
    %2567 = vmatprep.subr.mxu0 0.0
    %2568 = vmatpush1.msra.mxu0 0.0
    %2569 = vmatprep.subr.mxu0 0.0
    %2570 = vmatpush1.msra.mxu0 0.0
    %2571 = vmatprep.subr.mxu0 0.0
    %2572 = vmatpush1.msra.mxu0 0.0
    %2573 = vmatprep.subr.mxu0 0.0
    %2574 = vmatpush1.msra.mxu0 0.0
    %2575 = vmatprep.subr.mxu0 0.0
    %2576 = vmatpush1.msra.mxu0 0.0
    %2577 = vmatprep.subr.mxu0 0.0
    %2578 = vmatpush1.msra.mxu0 0.0
    %2579 = vmatprep.subr.mxu0 0.0
    %2580 = vmatpush1.msra.mxu0 0.0
    %2581 = vmatprep.subr.mxu0 0.0
    %2582 = vmatpush1.msra.mxu0 0.0
    %2583 = vmatprep.subr.mxu0 0.0
    %2584 = vmatpush1.msra.mxu0 %v2557
    %2585 = vmatprep.subr.mxu0 0.0
    %2586 = vmatpush1.msra.mxu0 %v2556
    %2587 = vmatprep.subr.mxu0 0.0
    %2588 = vmatpush1.msra.mxu0 %v2555
    %2589 = vmatprep.subr.mxu0 0.0
    %2590 = vmatpush1.msra.mxu0 %v2554
    %2591 = vmatprep.subr.mxu0 0.0
    %2592 = vmatpush1.msra.mxu0 %v2553
    %2593 = vmatprep.subr.mxu0 0.0
    %2594 = vmatpush1.msra.mxu0 %v2552
    %2595 = vmatprep.subr.mxu0 0.0
    %2596 = vmatpush1.msra.mxu0 %v2551
    %2597 = vmatprep.subr.mxu0 0.0
    %2598 = vmatpush1.msra.mxu0 %v2550
    %2599 = vmatprep.subr.mxu0 0.0
    %2600 = vmatpush2.msra.mxu0 0.0
    %2601 = vmatprep.subr.mxu0 0.0
    %2602 = vmatpush2.msra.mxu0 0.0
    %2603 = vmatprep.subr.mxu0 0.0
    %2604 = vmatpush2.msra.mxu0 0.0
    %2605 = vmatprep.subr.mxu0 0.0
    %2606 = vmatpush2.msra.mxu0 0.0
    %2607 = vmatprep.subr.mxu0 0.0
    %2608 = vmatpush2.msra.mxu0 0.0
    %2609 = vmatprep.subr.mxu0 0.0
    %2610 = vmatpush2.msra.mxu0 0.0
    %2611 = vmatprep.subr.mxu0 0.0
    %2612 = vmatpush2.msra.mxu0 0.0
    %2613 = vmatprep.subr.mxu0 0.0
    %2614 = vmatpush2.msra.mxu0 0.0
    %2615 = vmatprep.subr.mxu0 0.0
    %2616 = vmatpush2.msra.mxu0 0.0
    %2617 = vmatprep.subr.mxu0 0.0
    %2618 = vmatpush2.msra.mxu0 0.0
    %2619 = vmatprep.subr.mxu0 0.0
    %2620 = vmatpush2.msra.mxu0 0.0
    %2621 = vmatprep.subr.mxu0 0.0
    %2622 = vmatpush2.msra.mxu0 0.0
    %2623 = vmatprep.subr.mxu0 0.0
    %2624 = vmatpush2.msra.mxu0 0.0
    %2625 = vmatprep.subr.mxu0 0.0
    %2626 = vmatpush2.msra.mxu0 0.0
    %2627 = vmatprep.subr.mxu0 0.0
    %2628 = vmatpush2.msra.mxu0 0.0
    %2629 = vmatprep.subr.mxu0 0.0
    %2630 = vmatpush2.msra.mxu0 0.0
    %2631 = vmatprep.mubr.f32.mxu0 0.0
    %2632 = vmatmul.mubr.f32.gmra.mxu0 %v2562
    %v2633 = vpop.f32.mrf.mxu0
    %v2634 = vadd.f32 0.0, %v2633
    %v2635 = vpop.f32.mrf.mxu0
    %2636 = vmatprep.mubr.f32.mxu0 0.0
    %2637 = vmatmul.mubr.f32.gmra.mxu0 %v2565
    %v2638 = vpop.f32.mrf.mxu0
    %v2639 = vadd.f32 0.0, %v2638
    %v2640 = vpop.f32.mrf.mxu0
    %2641 = vdwg.mxu0
    %v2642 = vld [vmem:[#allocation6] sm:$0xff]
    %v2643 = vld [vmem:[#allocation6 + $0x8] sm:$0xff]
    %v2644 = vld [vmem:[#allocation6 + $0x10] sm:$0xff]
    %v2645 = vld [vmem:[#allocation6 + $0x18] sm:$0xff]
    %v2646 = vld [vmem:[#allocation6 + $0x20] sm:$0xff]
    %v2647 = vld [vmem:[#allocation6 + $0x28] sm:$0xff]
    %v2648 = vld [vmem:[#allocation6 + $0x30] sm:$0xff]
    %v2649 = vld [vmem:[#allocation6 + $0x38] sm:$0xff]
    %v2650 = vld [vmem:[#allocation6 + $0x40] sm:$0xff]
    %v2651 = vld [vmem:[#allocation6 + $0x48] sm:$0xff]
    %v2652 = vld [vmem:[#allocation6 + $0x50] sm:$0xff]
    %v2653 = vld [vmem:[#allocation6 + $0x58] sm:$0xff]
    %v2654 = vld [vmem:[#allocation6 + $0x60] sm:$0xff]
    %v2655 = vld [vmem:[#allocation6 + $0x68] sm:$0xff]
    %v2656 = vld [vmem:[#allocation6 + $0x70] sm:$0xff]
    %v2657 = vld [vmem:[#allocation6 + $0x78] sm:$0xff]
    %s2658 = scalar_lea.vmem %s2, 16
    %v2659 = vld [vmem:[%s2658] sm:$0xff]
    %v2660 = vld [vmem:[%s2658 + $0x8] sm:$0xff]
    %v2662 = vsel %vm2560, %v2659, 0
    %v2665 = vsel %vm2560, %v2660, 0
    %2667 = vmatprep.subr.mxu0 0.0
    %2668 = vmatpush1.msra.mxu0 0.0
    %2669 = vmatprep.subr.mxu0 0.0
    %2670 = vmatpush1.msra.mxu0 0.0
    %2671 = vmatprep.subr.mxu0 0.0
    %2672 = vmatpush1.msra.mxu0 0.0
    %2673 = vmatprep.subr.mxu0 0.0
    %2674 = vmatpush1.msra.mxu0 0.0
    %2675 = vmatprep.subr.mxu0 0.0
    %2676 = vmatpush1.msra.mxu0 0.0
    %2677 = vmatprep.subr.mxu0 0.0
    %2678 = vmatpush1.msra.mxu0 0.0
    %2679 = vmatprep.subr.mxu0 0.0
    %2680 = vmatpush1.msra.mxu0 0.0
    %2681 = vmatprep.subr.mxu0 0.0
    %2682 = vmatpush1.msra.mxu0 0.0
    %2683 = vmatprep.subr.mxu0 0.0
    %2684 = vmatpush1.msra.mxu0 %v2557
    %2685 = vmatprep.subr.mxu0 0.0
    %2686 = vmatpush1.msra.mxu0 %v2556
    %2687 = vmatprep.subr.mxu0 0.0
    %2688 = vmatpush1.msra.mxu0 %v2555
    %2689 = vmatprep.subr.mxu0 0.0
    %2690 = vmatpush1.msra.mxu0 %v2554
    %2691 = vmatprep.subr.mxu0 0.0
    %2692 = vmatpush1.msra.mxu0 %v2553
    %2693 = vmatprep.subr.mxu0 0.0
    %2694 = vmatpush1.msra.mxu0 %v2552
    %2695 = vmatprep.subr.mxu0 0.0
    %2696 = vmatpush1.msra.mxu0 %v2551
    %2697 = vmatprep.subr.mxu0 0.0
    %2698 = vmatpush1.msra.mxu0 %v2550
    %2699 = vmatprep.subr.mxu0 0.0
    %2700 = vmatpush2.msra.mxu0 0.0
    %2701 = vmatprep.subr.mxu0 0.0
    %2702 = vmatpush2.msra.mxu0 0.0
    %2703 = vmatprep.subr.mxu0 0.0
    %2704 = vmatpush2.msra.mxu0 0.0
    %2705 = vmatprep.subr.mxu0 0.0
    %2706 = vmatpush2.msra.mxu0 0.0
    %2707 = vmatprep.subr.mxu0 0.0
    %2708 = vmatpush2.msra.mxu0 0.0
    %2709 = vmatprep.subr.mxu0 0.0
    %2710 = vmatpush2.msra.mxu0 0.0
    %2711 = vmatprep.subr.mxu0 0.0
    %2712 = vmatpush2.msra.mxu0 0.0
    %2713 = vmatprep.subr.mxu0 0.0
    %2714 = vmatpush2.msra.mxu0 0.0
    %2715 = vmatprep.subr.mxu0 0.0
    %2716 = vmatpush2.msra.mxu0 0.0
    %2717 = vmatprep.subr.mxu0 0.0
    %2718 = vmatpush2.msra.mxu0 0.0
    %2719 = vmatprep.subr.mxu0 0.0
    %2720 = vmatpush2.msra.mxu0 0.0
    %2721 = vmatprep.subr.mxu0 0.0
    %2722 = vmatpush2.msra.mxu0 0.0
    %2723 = vmatprep.subr.mxu0 0.0
    %2724 = vmatpush2.msra.mxu0 0.0
    %2725 = vmatprep.subr.mxu0 0.0
    %2726 = vmatpush2.msra.mxu0 0.0
    %2727 = vmatprep.subr.mxu0 0.0
    %2728 = vmatpush2.msra.mxu0 0.0
    %2729 = vmatprep.subr.mxu0 0.0
    %2730 = vmatpush2.msra.mxu0 0.0
    %2731 = vmatprep.mubr.f32.mxu0 0.0
    %2732 = vmatmul.mubr.f32.gmra.mxu0 %v2662
    %v2733 = vpop.f32.mrf.mxu0
    %v2734 = vadd.f32 0.0, %v2733
    %v2735 = vpop.f32.mrf.mxu0
    %2736 = vmatprep.mubr.f32.mxu0 0.0
    %2737 = vmatmul.mubr.f32.gmra.mxu0 %v2665
    %v2738 = vpop.f32.mrf.mxu0
    %v2739 = vadd.f32 0.0, %v2738
    %v2740 = vpop.f32.mrf.mxu0
    %2741 = vdwg.mxu0
    %s2742 = scalar_lea.vmem [#allocation6], 128
    %v2743 = vld [vmem:[%s2742] sm:$0xff]
    %v2744 = vld [vmem:[%s2742 + $0x8] sm:$0xff]
    %v2745 = vld [vmem:[%s2742 + $0x10] sm:$0xff]
    %v2746 = vld [vmem:[%s2742 + $0x18] sm:$0xff]
    %v2747 = vld [vmem:[%s2742 + $0x20] sm:$0xff]
    %v2748 = vld [vmem:[%s2742 + $0x28] sm:$0xff]
    %v2749 = vld [vmem:[%s2742 + $0x30] sm:$0xff]
    %v2750 = vld [vmem:[%s2742 + $0x38] sm:$0xff]
    %v2751 = vld [vmem:[%s2742 + $0x40] sm:$0xff]
    %v2752 = vld [vmem:[%s2742 + $0x48] sm:$0xff]
    %v2753 = vld [vmem:[%s2742 + $0x50] sm:$0xff]
    %v2754 = vld [vmem:[%s2742 + $0x58] sm:$0xff]
    %v2755 = vld [vmem:[%s2742 + $0x60] sm:$0xff]
    %v2756 = vld [vmem:[%s2742 + $0x68] sm:$0xff]
    %v2757 = vld [vmem:[%s2742 + $0x70] sm:$0xff]
    %v2758 = vld [vmem:[%s2742 + $0x78] sm:$0xff]
    %2759 = vmatprep.subr.mxu0 0.0
    %2760 = vmatpush1.msra.mxu0 %v2758
    %2761 = vmatprep.subr.mxu0 0.0
    %2762 = vmatpush1.msra.mxu0 %v2757
    %2763 = vmatprep.subr.mxu0 0.0
    %2764 = vmatpush1.msra.mxu0 %v2756
    %2765 = vmatprep.subr.mxu0 0.0
    %2766 = vmatpush1.msra.mxu0 %v2755
    %2767 = vmatprep.subr.mxu0 0.0
    %2768 = vmatpush1.msra.mxu0 %v2754
    %2769 = vmatprep.subr.mxu0 0.0
    %2770 = vmatpush1.msra.mxu0 %v2753
    %2771 = vmatprep.subr.mxu0 0.0
    %2772 = vmatpush1.msra.mxu0 %v2752
    %2773 = vmatprep.subr.mxu0 0.0
    %2774 = vmatpush1.msra.mxu0 %v2751
    %2775 = vmatprep.subr.mxu0 0.0
    %2776 = vmatpush1.msra.mxu0 %v2750
    %2777 = vmatprep.subr.mxu0 0.0
    %2778 = vmatpush1.msra.mxu0 %v2749
    %2779 = vmatprep.subr.mxu0 0.0
    %2780 = vmatpush1.msra.mxu0 %v2748
    %2781 = vmatprep.subr.mxu0 0.0
    %2782 = vmatpush1.msra.mxu0 %v2747
    %2783 = vmatprep.subr.mxu0 0.0
    %2784 = vmatpush1.msra.mxu0 %v2746
    %2785 = vmatprep.subr.mxu0 0.0
    %2786 = vmatpush1.msra.mxu0 %v2745
    %2787 = vmatprep.subr.mxu0 0.0
    %2788 = vmatpush1.msra.mxu0 %v2744
    %2789 = vmatprep.subr.mxu0 0.0
    %2790 = vmatpush1.msra.mxu0 %v2743
    %2791 = vmatprep.subr.mxu0 0.0
    %2792 = vmatpush2.msra.mxu0 0.0
    %2793 = vmatprep.subr.mxu0 0.0
    %2794 = vmatpush2.msra.mxu0 0.0
    %2795 = vmatprep.subr.mxu0 0.0
    %2796 = vmatpush2.msra.mxu0 0.0
    %2797 = vmatprep.subr.mxu0 0.0
    %2798 = vmatpush2.msra.mxu0 0.0
    %2799 = vmatprep.subr.mxu0 0.0
    %2800 = vmatpush2.msra.mxu0 0.0
    %2801 = vmatprep.subr.mxu0 0.0
    %2802 = vmatpush2.msra.mxu0 0.0
    %2803 = vmatprep.subr.mxu0 0.0
    %2804 = vmatpush2.msra.mxu0 0.0
    %2805 = vmatprep.subr.mxu0 0.0
    %2806 = vmatpush2.msra.mxu0 0.0
    %2807 = vmatprep.subr.mxu0 0.0
    %2808 = vmatpush2.msra.mxu0 0.0
    %2809 = vmatprep.subr.mxu0 0.0
    %2810 = vmatpush2.msra.mxu0 0.0
    %2811 = vmatprep.subr.mxu0 0.0
    %2812 = vmatpush2.msra.mxu0 0.0
    %2813 = vmatprep.subr.mxu0 0.0
    %2814 = vmatpush2.msra.mxu0 0.0
    %2815 = vmatprep.subr.mxu0 0.0
    %2816 = vmatpush2.msra.mxu0 0.0
    %2817 = vmatprep.subr.mxu0 0.0
    %2818 = vmatpush2.msra.mxu0 0.0
    %2819 = vmatprep.subr.mxu0 0.0
    %2820 = vmatpush2.msra.mxu0 0.0
    %2821 = vmatprep.subr.mxu0 0.0
    %2822 = vmatpush2.msra.mxu0 0.0
    %2823 = vmatprep.mubr.f32.mxu0 0.0
    %2824 = vmatmul.mubr.f32.gmra.mxu0 %v2734
    %v2825 = vpop.f32.mrf.mxu0
    %v2826 = vadd.f32 0.0, %v2825
    %v2827 = vpop.f32.mrf.mxu0
    %2828 = vmatprep.mubr.f32.mxu0 0.0
    %2829 = vmatmul.mubr.f32.gmra.mxu0 %v2739
    %v2830 = vpop.f32.mrf.mxu0
    %v2831 = vadd.f32 0.0, %v2830
    %v2832 = vpop.f32.mrf.mxu0
    %2833 = vdwg.mxu0
    %2834 = vmatprep.subr.mxu0 0.0
    %2835 = vmatpush1.msra.mxu0 %v2657
    %2836 = vmatprep.subr.mxu0 0.0
    %2837 = vmatpush1.msra.mxu0 %v2656
    %2838 = vmatprep.subr.mxu0 0.0
    %2839 = vmatpush1.msra.mxu0 %v2655
    %2840 = vmatprep.subr.mxu0 0.0
    %2841 = vmatpush1.msra.mxu0 %v2654
    %2842 = vmatprep.subr.mxu0 0.0
    %2843 = vmatpush1.msra.mxu0 %v2653
    %2844 = vmatprep.subr.mxu0 0.0
    %2845 = vmatpush1.msra.mxu0 %v2652
    %2846 = vmatprep.subr.mxu0 0.0
    %2847 = vmatpush1.msra.mxu0 %v2651
    %2848 = vmatprep.subr.mxu0 0.0
    %2849 = vmatpush1.msra.mxu0 %v2650
    %2850 = vmatprep.subr.mxu0 0.0
    %2851 = vmatpush1.msra.mxu0 %v2649
    %2852 = vmatprep.subr.mxu0 0.0
    %2853 = vmatpush1.msra.mxu0 %v2648
    %2854 = vmatprep.subr.mxu0 0.0
    %2855 = vmatpush1.msra.mxu0 %v2647
    %2856 = vmatprep.subr.mxu0 0.0
    %2857 = vmatpush1.msra.mxu0 %v2646
    %2858 = vmatprep.subr.mxu0 0.0
    %2859 = vmatpush1.msra.mxu0 %v2645
    %2860 = vmatprep.subr.mxu0 0.0
    %2861 = vmatpush1.msra.mxu0 %v2644
    %2862 = vmatprep.subr.mxu0 0.0
    %2863 = vmatpush1.msra.mxu0 %v2643
    %2864 = vmatprep.subr.mxu0 0.0
    %2865 = vmatpush1.msra.mxu0 %v2642
    %2866 = vmatprep.subr.mxu0 0.0
    %2867 = vmatpush2.msra.mxu0 0.0
    %2868 = vmatprep.subr.mxu0 0.0
    %2869 = vmatpush2.msra.mxu0 0.0
    %2870 = vmatprep.subr.mxu0 0.0
    %2871 = vmatpush2.msra.mxu0 0.0
    %2872 = vmatprep.subr.mxu0 0.0
    %2873 = vmatpush2.msra.mxu0 0.0
    %2874 = vmatprep.subr.mxu0 0.0
    %2875 = vmatpush2.msra.mxu0 0.0
    %2876 = vmatprep.subr.mxu0 0.0
    %2877 = vmatpush2.msra.mxu0 0.0
    %2878 = vmatprep.subr.mxu0 0.0
    %2879 = vmatpush2.msra.mxu0 0.0
    %2880 = vmatprep.subr.mxu0 0.0
    %2881 = vmatpush2.msra.mxu0 0.0
    %2882 = vmatprep.subr.mxu0 0.0
    %2883 = vmatpush2.msra.mxu0 0.0
    %2884 = vmatprep.subr.mxu0 0.0
    %2885 = vmatpush2.msra.mxu0 0.0
    %2886 = vmatprep.subr.mxu0 0.0
    %2887 = vmatpush2.msra.mxu0 0.0
    %2888 = vmatprep.subr.mxu0 0.0
    %2889 = vmatpush2.msra.mxu0 0.0
    %2890 = vmatprep.subr.mxu0 0.0
    %2891 = vmatpush2.msra.mxu0 0.0
    %2892 = vmatprep.subr.mxu0 0.0
    %2893 = vmatpush2.msra.mxu0 0.0
    %2894 = vmatprep.subr.mxu0 0.0
    %2895 = vmatpush2.msra.mxu0 0.0
    %2896 = vmatprep.subr.mxu0 0.0
    %2897 = vmatpush2.msra.mxu0 0.0
    %2898 = vmatprep.mubr.f32.mxu0 0.0
    %2899 = vmatmul.mubr.f32.gmra.mxu0 %v2634
    %v2900 = vpop.f32.mrf.mxu0
    %v2901 = vadd.f32 %v2826, %v2900
    %v2902 = vpop.f32.mrf.mxu0
    %2903 = vmatprep.mubr.f32.mxu0 0.0
    %2904 = vmatmul.mubr.f32.gmra.mxu0 %v2639
    %v2905 = vpop.f32.mrf.mxu0
    %v2906 = vadd.f32 %v2831, %v2905
    %v2907 = vpop.f32.mrf.mxu0
    %2908 = vdwg.mxu0
    %s2909 = scalar_lea.vmem %s2, 32
    %v2910 = vld [vmem:[%s2909] sm:$0xff]
    %v2911 = vld [vmem:[%s2909 + $0x8] sm:$0xff]
    %v2913 = vsel %vm2560, %v2910, 0
    %v2916 = vsel %vm2560, %v2911, 0
    %2918 = vmatprep.subr.mxu0 0.0
    %2919 = vmatpush1.msra.mxu0 0.0
    %2920 = vmatprep.subr.mxu0 0.0
    %2921 = vmatpush1.msra.mxu0 0.0
    %2922 = vmatprep.subr.mxu0 0.0
    %2923 = vmatpush1.msra.mxu0 0.0
    %2924 = vmatprep.subr.mxu0 0.0
    %2925 = vmatpush1.msra.mxu0 0.0
    %2926 = vmatprep.subr.mxu0 0.0
    %2927 = vmatpush1.msra.mxu0 0.0
    %2928 = vmatprep.subr.mxu0 0.0
    %2929 = vmatpush1.msra.mxu0 0.0
    %2930 = vmatprep.subr.mxu0 0.0
    %2931 = vmatpush1.msra.mxu0 0.0
    %2932 = vmatprep.subr.mxu0 0.0
    %2933 = vmatpush1.msra.mxu0 0.0
    %2934 = vmatprep.subr.mxu0 0.0
    %2935 = vmatpush1.msra.mxu0 %v2557
    %2936 = vmatprep.subr.mxu0 0.0
    %2937 = vmatpush1.msra.mxu0 %v2556
    %2938 = vmatprep.subr.mxu0 0.0
    %2939 = vmatpush1.msra.mxu0 %v2555
    %2940 = vmatprep.subr.mxu0 0.0
    %2941 = vmatpush1.msra.mxu0 %v2554
    %2942 = vmatprep.subr.mxu0 0.0
    %2943 = vmatpush1.msra.mxu0 %v2553
    %2944 = vmatprep.subr.mxu0 0.0
    %2945 = vmatpush1.msra.mxu0 %v2552
    %2946 = vmatprep.subr.mxu0 0.0
    %2947 = vmatpush1.msra.mxu0 %v2551
    %2948 = vmatprep.subr.mxu0 0.0
    %2949 = vmatpush1.msra.mxu0 %v2550
    %2950 = vmatprep.subr.mxu0 0.0
    %2951 = vmatpush2.msra.mxu0 0.0
    %2952 = vmatprep.subr.mxu0 0.0
    %2953 = vmatpush2.msra.mxu0 0.0
    %2954 = vmatprep.subr.mxu0 0.0
    %2955 = vmatpush2.msra.mxu0 0.0
    %2956 = vmatprep.subr.mxu0 0.0
    %2957 = vmatpush2.msra.mxu0 0.0
    %2958 = vmatprep.subr.mxu0 0.0
    %2959 = vmatpush2.msra.mxu0 0.0
    %2960 = vmatprep.subr.mxu0 0.0
    %2961 = vmatpush2.msra.mxu0 0.0
    %2962 = vmatprep.subr.mxu0 0.0
    %2963 = vmatpush2.msra.mxu0 0.0
    %2964 = vmatprep.subr.mxu0 0.0
    %2965 = vmatpush2.msra.mxu0 0.0
    %2966 = vmatprep.subr.mxu0 0.0
    %2967 = vmatpush2.msra.mxu0 0.0
    %2968 = vmatprep.subr.mxu0 0.0
    %2969 = vmatpush2.msra.mxu0 0.0
    %2970 = vmatprep.subr.mxu0 0.0
    %2971 = vmatpush2.msra.mxu0 0.0
    %2972 = vmatprep.subr.mxu0 0.0
    %2973 = vmatpush2.msra.mxu0 0.0
    %2974 = vmatprep.subr.mxu0 0.0
    %2975 = vmatpush2.msra.mxu0 0.0
    %2976 = vmatprep.subr.mxu0 0.0
    %2977 = vmatpush2.msra.mxu0 0.0
    %2978 = vmatprep.subr.mxu0 0.0
    %2979 = vmatpush2.msra.mxu0 0.0
    %2980 = vmatprep.subr.mxu0 0.0
    %2981 = vmatpush2.msra.mxu0 0.0
    %2982 = vmatprep.mubr.f32.mxu0 0.0
    %2983 = vmatmul.mubr.f32.gmra.mxu0 %v2913
    %v2984 = vpop.f32.mrf.mxu0
    %v2985 = vadd.f32 0.0, %v2984
    %v2986 = vpop.f32.mrf.mxu0
    %2987 = vmatprep.mubr.f32.mxu0 0.0
    %2988 = vmatmul.mubr.f32.gmra.mxu0 %v2916
    %v2989 = vpop.f32.mrf.mxu0
    %v2990 = vadd.f32 0.0, %v2989
    %v2991 = vpop.f32.mrf.mxu0
    %2992 = vdwg.mxu0
    %s2993 = scalar_lea.vmem [#allocation6], 256
    %v2994 = vld [vmem:[%s2993] sm:$0xff]
    %v2995 = vld [vmem:[%s2993 + $0x8] sm:$0xff]
    %v2996 = vld [vmem:[%s2993 + $0x10] sm:$0xff]
    %v2997 = vld [vmem:[%s2993 + $0x18] sm:$0xff]
    %v2998 = vld [vmem:[%s2993 + $0x20] sm:$0xff]
    %v2999 = vld [vmem:[%s2993 + $0x28] sm:$0xff]
    %v3000 = vld [vmem:[%s2993 + $0x30] sm:$0xff]
    %v3001 = vld [vmem:[%s2993 + $0x38] sm:$0xff]
    %v3002 = vld [vmem:[%s2993 + $0x40] sm:$0xff]
    %v3003 = vld [vmem:[%s2993 + $0x48] sm:$0xff]
    %v3004 = vld [vmem:[%s2993 + $0x50] sm:$0xff]
    %v3005 = vld [vmem:[%s2993 + $0x58] sm:$0xff]
    %v3006 = vld [vmem:[%s2993 + $0x60] sm:$0xff]
    %v3007 = vld [vmem:[%s2993 + $0x68] sm:$0xff]
    %v3008 = vld [vmem:[%s2993 + $0x70] sm:$0xff]
    %v3009 = vld [vmem:[%s2993 + $0x78] sm:$0xff]
    %3010 = vmatprep.subr.mxu0 0.0
    %3011 = vmatpush1.msra.mxu0 %v3009
    %3012 = vmatprep.subr.mxu0 0.0
    %3013 = vmatpush1.msra.mxu0 %v3008
    %3014 = vmatprep.subr.mxu0 0.0
    %3015 = vmatpush1.msra.mxu0 %v3007
    %3016 = vmatprep.subr.mxu0 0.0
    %3017 = vmatpush1.msra.mxu0 %v3006
    %3018 = vmatprep.subr.mxu0 0.0
    %3019 = vmatpush1.msra.mxu0 %v3005
    %3020 = vmatprep.subr.mxu0 0.0
    %3021 = vmatpush1.msra.mxu0 %v3004
    %3022 = vmatprep.subr.mxu0 0.0
    %3023 = vmatpush1.msra.mxu0 %v3003
    %3024 = vmatprep.subr.mxu0 0.0
    %3025 = vmatpush1.msra.mxu0 %v3002
    %3026 = vmatprep.subr.mxu0 0.0
    %3027 = vmatpush1.msra.mxu0 %v3001
    %3028 = vmatprep.subr.mxu0 0.0
    %3029 = vmatpush1.msra.mxu0 %v3000
    %3030 = vmatprep.subr.mxu0 0.0
    %3031 = vmatpush1.msra.mxu0 %v2999
    %3032 = vmatprep.subr.mxu0 0.0
    %3033 = vmatpush1.msra.mxu0 %v2998
    %3034 = vmatprep.subr.mxu0 0.0
    %3035 = vmatpush1.msra.mxu0 %v2997
    %3036 = vmatprep.subr.mxu0 0.0
    %3037 = vmatpush1.msra.mxu0 %v2996
    %3038 = vmatprep.subr.mxu0 0.0
    %3039 = vmatpush1.msra.mxu0 %v2995
    %3040 = vmatprep.subr.mxu0 0.0
    %3041 = vmatpush1.msra.mxu0 %v2994
    %3042 = vmatprep.subr.mxu0 0.0
    %3043 = vmatpush2.msra.mxu0 0.0
    %3044 = vmatprep.subr.mxu0 0.0
    %3045 = vmatpush2.msra.mxu0 0.0
    %3046 = vmatprep.subr.mxu0 0.0
    %3047 = vmatpush2.msra.mxu0 0.0
    %3048 = vmatprep.subr.mxu0 0.0
    %3049 = vmatpush2.msra.mxu0 0.0
    %3050 = vmatprep.subr.mxu0 0.0
    %3051 = vmatpush2.msra.mxu0 0.0
    %3052 = vmatprep.subr.mxu0 0.0
    %3053 = vmatpush2.msra.mxu0 0.0
    %3054 = vmatprep.subr.mxu0 0.0
    %3055 = vmatpush2.msra.mxu0 0.0
    %3056 = vmatprep.subr.mxu0 0.0
    %3057 = vmatpush2.msra.mxu0 0.0
    %3058 = vmatprep.subr.mxu0 0.0
    %3059 = vmatpush2.msra.mxu0 0.0
    %3060 = vmatprep.subr.mxu0 0.0
    %3061 = vmatpush2.msra.mxu0 0.0
    %3062 = vmatprep.subr.mxu0 0.0
    %3063 = vmatpush2.msra.mxu0 0.0
    %3064 = vmatprep.subr.mxu0 0.0
    %3065 = vmatpush2.msra.mxu0 0.0
    %3066 = vmatprep.subr.mxu0 0.0
    %3067 = vmatpush2.msra.mxu0 0.0
    %3068 = vmatprep.subr.mxu0 0.0
    %3069 = vmatpush2.msra.mxu0 0.0
    %3070 = vmatprep.subr.mxu0 0.0
    %3071 = vmatpush2.msra.mxu0 0.0
    %3072 = vmatprep.subr.mxu0 0.0
    %3073 = vmatpush2.msra.mxu0 0.0
    %3074 = vmatprep.mubr.f32.mxu0 0.0
    %3075 = vmatmul.mubr.f32.gmra.mxu0 %v2985
    %v3076 = vpop.f32.mrf.mxu0
    %v3077 = vadd.f32 0.0, %v3076
    %v3078 = vpop.f32.mrf.mxu0
    %3079 = vmatprep.mubr.f32.mxu0 0.0
    %3080 = vmatmul.mubr.f32.gmra.mxu0 %v2990
    %v3081 = vpop.f32.mrf.mxu0
    %v3082 = vadd.f32 0.0, %v3081
    %v3083 = vpop.f32.mrf.mxu0
    %3084 = vdwg.mxu0
    %v3085 = vadd.f32 %v2901, %v3077
    %v3086 = vadd.f32 %v2906, %v3082
    %s3087 = scalar_lea.vmem %s2, 48
    %v3088 = vld [vmem:[%s3087] sm:$0xff]
    %v3089 = vld [vmem:[%s3087 + $0x8] sm:$0xff]
    %v3091 = vsel %vm2560, %v3088, 0
    %v3094 = vsel %vm2560, %v3089, 0
    %3096 = vmatprep.subr.mxu0 0.0
    %3097 = vmatpush1.msra.mxu0 0.0
    %3098 = vmatprep.subr.mxu0 0.0
    %3099 = vmatpush1.msra.mxu0 0.0
    %3100 = vmatprep.subr.mxu0 0.0
    %3101 = vmatpush1.msra.mxu0 0.0
    %3102 = vmatprep.subr.mxu0 0.0
    %3103 = vmatpush1.msra.mxu0 0.0
    %3104 = vmatprep.subr.mxu0 0.0
    %3105 = vmatpush1.msra.mxu0 0.0
    %3106 = vmatprep.subr.mxu0 0.0
    %3107 = vmatpush1.msra.mxu0 0.0
    %3108 = vmatprep.subr.mxu0 0.0
    %3109 = vmatpush1.msra.mxu0 0.0
    %3110 = vmatprep.subr.mxu0 0.0
    %3111 = vmatpush1.msra.mxu0 0.0
    %3112 = vmatprep.subr.mxu0 0.0
    %3113 = vmatpush1.msra.mxu0 %v2557
    %3114 = vmatprep.subr.mxu0 0.0
    %3115 = vmatpush1.msra.mxu0 %v2556
    %3116 = vmatprep.subr.mxu0 0.0
    %3117 = vmatpush1.msra.mxu0 %v2555
    %3118 = vmatprep.subr.mxu0 0.0
    %3119 = vmatpush1.msra.mxu0 %v2554
    %3120 = vmatprep.subr.mxu0 0.0
    %3121 = vmatpush1.msra.mxu0 %v2553
    %3122 = vmatprep.subr.mxu0 0.0
    %3123 = vmatpush1.msra.mxu0 %v2552
    %3124 = vmatprep.subr.mxu0 0.0
    %3125 = vmatpush1.msra.mxu0 %v2551
    %3126 = vmatprep.subr.mxu0 0.0
    %3127 = vmatpush1.msra.mxu0 %v2550
    %3128 = vmatprep.subr.mxu0 0.0
    %3129 = vmatpush2.msra.mxu0 0.0
    %3130 = vmatprep.subr.mxu0 0.0
    %3131 = vmatpush2.msra.mxu0 0.0
    %3132 = vmatprep.subr.mxu0 0.0
    %3133 = vmatpush2.msra.mxu0 0.0
    %3134 = vmatprep.subr.mxu0 0.0
    %3135 = vmatpush2.msra.mxu0 0.0
    %3136 = vmatprep.subr.mxu0 0.0
    %3137 = vmatpush2.msra.mxu0 0.0
    %3138 = vmatprep.subr.mxu0 0.0
    %3139 = vmatpush2.msra.mxu0 0.0
    %3140 = vmatprep.subr.mxu0 0.0
    %3141 = vmatpush2.msra.mxu0 0.0
    %3142 = vmatprep.subr.mxu0 0.0
    %3143 = vmatpush2.msra.mxu0 0.0
    %3144 = vmatprep.subr.mxu0 0.0
    %3145 = vmatpush2.msra.mxu0 0.0
    %3146 = vmatprep.subr.mxu0 0.0
    %3147 = vmatpush2.msra.mxu0 0.0
    %3148 = vmatprep.subr.mxu0 0.0
    %3149 = vmatpush2.msra.mxu0 0.0
    %3150 = vmatprep.subr.mxu0 0.0
    %3151 = vmatpush2.msra.mxu0 0.0
    %3152 = vmatprep.subr.mxu0 0.0
    %3153 = vmatpush2.msra.mxu0 0.0
    %3154 = vmatprep.subr.mxu0 0.0
    %3155 = vmatpush2.msra.mxu0 0.0
    %3156 = vmatprep.subr.mxu0 0.0
    %3157 = vmatpush2.msra.mxu0 0.0
    %3158 = vmatprep.subr.mxu0 0.0
    %3159 = vmatpush2.msra.mxu0 0.0
    %3160 = vmatprep.mubr.f32.mxu0 0.0
    %3161 = vmatmul.mubr.f32.gmra.mxu0 %v3091
    %v3162 = vpop.f32.mrf.mxu0
    %v3163 = vadd.f32 0.0, %v3162
    %v3164 = vpop.f32.mrf.mxu0
    %3165 = vmatprep.mubr.f32.mxu0 0.0
    %3166 = vmatmul.mubr.f32.gmra.mxu0 %v3094
    %v3167 = vpop.f32.mrf.mxu0
    %v3168 = vadd.f32 0.0, %v3167
    %v3169 = vpop.f32.mrf.mxu0
    %3170 = vdwg.mxu0
    %s3171 = scalar_lea.vmem [#allocation6], 384
    %v3172 = vld [vmem:[%s3171] sm:$0xff]
    %v3173 = vld [vmem:[%s3171 + $0x8] sm:$0xff]
    %v3174 = vld [vmem:[%s3171 + $0x10] sm:$0xff]
    %v3175 = vld [vmem:[%s3171 + $0x18] sm:$0xff]
    %v3176 = vld [vmem:[%s3171 + $0x20] sm:$0xff]
    %v3177 = vld [vmem:[%s3171 + $0x28] sm:$0xff]
    %v3178 = vld [vmem:[%s3171 + $0x30] sm:$0xff]
    %v3179 = vld [vmem:[%s3171 + $0x38] sm:$0xff]
    %v3180 = vld [vmem:[%s3171 + $0x40] sm:$0xff]
    %v3181 = vld [vmem:[%s3171 + $0x48] sm:$0xff]
    %v3182 = vld [vmem:[%s3171 + $0x50] sm:$0xff]
    %v3183 = vld [vmem:[%s3171 + $0x58] sm:$0xff]
    %v3184 = vld [vmem:[%s3171 + $0x60] sm:$0xff]
    %v3185 = vld [vmem:[%s3171 + $0x68] sm:$0xff]
    %v3186 = vld [vmem:[%s3171 + $0x70] sm:$0xff]
    %v3187 = vld [vmem:[%s3171 + $0x78] sm:$0xff]
    %3188 = vmatprep.subr.mxu0 0.0
    %3189 = vmatpush1.msra.mxu0 %v3187
    %3190 = vmatprep.subr.mxu0 0.0
    %3191 = vmatpush1.msra.mxu0 %v3186
    %3192 = vmatprep.subr.mxu0 0.0
    %3193 = vmatpush1.msra.mxu0 %v3185
    %3194 = vmatprep.subr.mxu0 0.0
    %3195 = vmatpush1.msra.mxu0 %v3184
    %3196 = vmatprep.subr.mxu0 0.0
    %3197 = vmatpush1.msra.mxu0 %v3183
    %3198 = vmatprep.subr.mxu0 0.0
    %3199 = vmatpush1.msra.mxu0 %v3182
    %3200 = vmatprep.subr.mxu0 0.0
    %3201 = vmatpush1.msra.mxu0 %v3181
    %3202 = vmatprep.subr.mxu0 0.0
    %3203 = vmatpush1.msra.mxu0 %v3180
    %3204 = vmatprep.subr.mxu0 0.0
    %3205 = vmatpush1.msra.mxu0 %v3179
    %3206 = vmatprep.subr.mxu0 0.0
    %3207 = vmatpush1.msra.mxu0 %v3178
    %3208 = vmatprep.subr.mxu0 0.0
    %3209 = vmatpush1.msra.mxu0 %v3177
    %3210 = vmatprep.subr.mxu0 0.0
    %3211 = vmatpush1.msra.mxu0 %v3176
    %3212 = vmatprep.subr.mxu0 0.0
    %3213 = vmatpush1.msra.mxu0 %v3175
    %3214 = vmatprep.subr.mxu0 0.0
    %3215 = vmatpush1.msra.mxu0 %v3174
    %3216 = vmatprep.subr.mxu0 0.0
    %3217 = vmatpush1.msra.mxu0 %v3173
    %3218 = vmatprep.subr.mxu0 0.0
    %3219 = vmatpush1.msra.mxu0 %v3172
    %3220 = vmatprep.subr.mxu0 0.0
    %3221 = vmatpush2.msra.mxu0 0.0
    %3222 = vmatprep.subr.mxu0 0.0
    %3223 = vmatpush2.msra.mxu0 0.0
    %3224 = vmatprep.subr.mxu0 0.0
    %3225 = vmatpush2.msra.mxu0 0.0
    %3226 = vmatprep.subr.mxu0 0.0
    %3227 = vmatpush2.msra.mxu0 0.0
    %3228 = vmatprep.subr.mxu0 0.0
    %3229 = vmatpush2.msra.mxu0 0.0
    %3230 = vmatprep.subr.mxu0 0.0
    %3231 = vmatpush2.msra.mxu0 0.0
    %3232 = vmatprep.subr.mxu0 0.0
    %3233 = vmatpush2.msra.mxu0 0.0
    %3234 = vmatprep.subr.mxu0 0.0
    %3235 = vmatpush2.msra.mxu0 0.0
    %3236 = vmatprep.subr.mxu0 0.0
    %3237 = vmatpush2.msra.mxu0 0.0
    %3238 = vmatprep.subr.mxu0 0.0
    %3239 = vmatpush2.msra.mxu0 0.0
    %3240 = vmatprep.subr.mxu0 0.0
    %3241 = vmatpush2.msra.mxu0 0.0
    %3242 = vmatprep.subr.mxu0 0.0
    %3243 = vmatpush2.msra.mxu0 0.0
    %3244 = vmatprep.subr.mxu0 0.0
    %3245 = vmatpush2.msra.mxu0 0.0
    %3246 = vmatprep.subr.mxu0 0.0
    %3247 = vmatpush2.msra.mxu0 0.0
    %3248 = vmatprep.subr.mxu0 0.0
    %3249 = vmatpush2.msra.mxu0 0.0
    %3250 = vmatprep.subr.mxu0 0.0
    %3251 = vmatpush2.msra.mxu0 0.0
    %3252 = vmatprep.mubr.f32.mxu0 0.0
    %3253 = vmatmul.mubr.f32.gmra.mxu0 %v3163
    %v3254 = vpop.f32.mrf.mxu0
    %v3255 = vadd.f32 0.0, %v3254
    %v3256 = vpop.f32.mrf.mxu0
    %3257 = vmatprep.mubr.f32.mxu0 0.0
    %3258 = vmatmul.mubr.f32.gmra.mxu0 %v3168
    %v3259 = vpop.f32.mrf.mxu0
    %v3260 = vadd.f32 0.0, %v3259
    %v3261 = vpop.f32.mrf.mxu0
    %3262 = vdwg.mxu0
    %v3263 = vadd.f32 %v3085, %v3255
    %v3264 = vadd.f32 %v3086, %v3260
    %s3265 = scalar_lea.vmem %s2, 64
    %v3266 = vld [vmem:[%s3265] sm:$0xff]
    %v3267 = vld [vmem:[%s3265 + $0x8] sm:$0xff]
    %v3269 = vsel %vm2560, %v3266, 0
    %v3272 = vsel %vm2560, %v3267, 0
    %3274 = vmatprep.subr.mxu0 0.0
    %3275 = vmatpush1.msra.mxu0 0.0
    %3276 = vmatprep.subr.mxu0 0.0
    %3277 = vmatpush1.msra.mxu0 0.0
    %3278 = vmatprep.subr.mxu0 0.0
    %3279 = vmatpush1.msra.mxu0 0.0
    %3280 = vmatprep.subr.mxu0 0.0
    %3281 = vmatpush1.msra.mxu0 0.0
    %3282 = vmatprep.subr.mxu0 0.0
    %3283 = vmatpush1.msra.mxu0 0.0
    %3284 = vmatprep.subr.mxu0 0.0
    %3285 = vmatpush1.msra.mxu0 0.0
    %3286 = vmatprep.subr.mxu0 0.0
    %3287 = vmatpush1.msra.mxu0 0.0
    %3288 = vmatprep.subr.mxu0 0.0
    %3289 = vmatpush1.msra.mxu0 0.0
    %3290 = vmatprep.subr.mxu0 0.0
    %3291 = vmatpush1.msra.mxu0 %v2557
    %3292 = vmatprep.subr.mxu0 0.0
    %3293 = vmatpush1.msra.mxu0 %v2556
    %3294 = vmatprep.subr.mxu0 0.0
    %3295 = vmatpush1.msra.mxu0 %v2555
    %3296 = vmatprep.subr.mxu0 0.0
    %3297 = vmatpush1.msra.mxu0 %v2554
    %3298 = vmatprep.subr.mxu0 0.0
    %3299 = vmatpush1.msra.mxu0 %v2553
    %3300 = vmatprep.subr.mxu0 0.0
    %3301 = vmatpush1.msra.mxu0 %v2552
    %3302 = vmatprep.subr.mxu0 0.0
    %3303 = vmatpush1.msra.mxu0 %v2551
    %3304 = vmatprep.subr.mxu0 0.0
    %3305 = vmatpush1.msra.mxu0 %v2550
    %3306 = vmatprep.subr.mxu0 0.0
    %3307 = vmatpush2.msra.mxu0 0.0
    %3308 = vmatprep.subr.mxu0 0.0
    %3309 = vmatpush2.msra.mxu0 0.0
    %3310 = vmatprep.subr.mxu0 0.0
    %3311 = vmatpush2.msra.mxu0 0.0
    %3312 = vmatprep.subr.mxu0 0.0
    %3313 = vmatpush2.msra.mxu0 0.0
    %3314 = vmatprep.subr.mxu0 0.0
    %3315 = vmatpush2.msra.mxu0 0.0
    %3316 = vmatprep.subr.mxu0 0.0
    %3317 = vmatpush2.msra.mxu0 0.0
    %3318 = vmatprep.subr.mxu0 0.0
    %3319 = vmatpush2.msra.mxu0 0.0
    %3320 = vmatprep.subr.mxu0 0.0
    %3321 = vmatpush2.msra.mxu0 0.0
    %3322 = vmatprep.subr.mxu0 0.0
    %3323 = vmatpush2.msra.mxu0 0.0
    %3324 = vmatprep.subr.mxu0 0.0
    %3325 = vmatpush2.msra.mxu0 0.0
    %3326 = vmatprep.subr.mxu0 0.0
    %3327 = vmatpush2.msra.mxu0 0.0
    %3328 = vmatprep.subr.mxu0 0.0
    %3329 = vmatpush2.msra.mxu0 0.0
    %3330 = vmatprep.subr.mxu0 0.0
    %3331 = vmatpush2.msra.mxu0 0.0
    %3332 = vmatprep.subr.mxu0 0.0
    %3333 = vmatpush2.msra.mxu0 0.0
    %3334 = vmatprep.subr.mxu0 0.0
    %3335 = vmatpush2.msra.mxu0 0.0
    %3336 = vmatprep.subr.mxu0 0.0
    %3337 = vmatpush2.msra.mxu0 0.0
    %3338 = vmatprep.mubr.f32.mxu0 0.0
    %3339 = vmatmul.mubr.f32.gmra.mxu0 %v3269
    %v3340 = vpop.f32.mrf.mxu0
    %v3341 = vadd.f32 0.0, %v3340
    %v3342 = vpop.f32.mrf.mxu0
    %3343 = vmatprep.mubr.f32.mxu0 0.0
    %3344 = vmatmul.mubr.f32.gmra.mxu0 %v3272
    %v3345 = vpop.f32.mrf.mxu0
    %v3346 = vadd.f32 0.0, %v3345
    %v3347 = vpop.f32.mrf.mxu0
    %3348 = vdwg.mxu0
    %s3349 = scalar_lea.vmem [#allocation6], 512
    %v3350 = vld [vmem:[%s3349] sm:$0xff]
    %v3351 = vld [vmem:[%s3349 + $0x8] sm:$0xff]
    %v3352 = vld [vmem:[%s3349 + $0x10] sm:$0xff]
    %v3353 = vld [vmem:[%s3349 + $0x18] sm:$0xff]
    %v3354 = vld [vmem:[%s3349 + $0x20] sm:$0xff]
    %v3355 = vld [vmem:[%s3349 + $0x28] sm:$0xff]
    %v3356 = vld [vmem:[%s3349 + $0x30] sm:$0xff]
    %v3357 = vld [vmem:[%s3349 + $0x38] sm:$0xff]
    %v3358 = vld [vmem:[%s3349 + $0x40] sm:$0xff]
    %v3359 = vld [vmem:[%s3349 + $0x48] sm:$0xff]
    %v3360 = vld [vmem:[%s3349 + $0x50] sm:$0xff]
    %v3361 = vld [vmem:[%s3349 + $0x58] sm:$0xff]
    %v3362 = vld [vmem:[%s3349 + $0x60] sm:$0xff]
    %v3363 = vld [vmem:[%s3349 + $0x68] sm:$0xff]
    %v3364 = vld [vmem:[%s3349 + $0x70] sm:$0xff]
    %v3365 = vld [vmem:[%s3349 + $0x78] sm:$0xff]
    %3366 = vmatprep.subr.mxu0 0.0
    %3367 = vmatpush1.msra.mxu0 %v3365
    %3368 = vmatprep.subr.mxu0 0.0
    %3369 = vmatpush1.msra.mxu0 %v3364
    %3370 = vmatprep.subr.mxu0 0.0
    %3371 = vmatpush1.msra.mxu0 %v3363
    %3372 = vmatprep.subr.mxu0 0.0
    %3373 = vmatpush1.msra.mxu0 %v3362
    %3374 = vmatprep.subr.mxu0 0.0
    %3375 = vmatpush1.msra.mxu0 %v3361
    %3376 = vmatprep.subr.mxu0 0.0
    %3377 = vmatpush1.msra.mxu0 %v3360
    %3378 = vmatprep.subr.mxu0 0.0
    %3379 = vmatpush1.msra.mxu0 %v3359
    %3380 = vmatprep.subr.mxu0 0.0
    %3381 = vmatpush1.msra.mxu0 %v3358
    %3382 = vmatprep.subr.mxu0 0.0
    %3383 = vmatpush1.msra.mxu0 %v3357
    %3384 = vmatprep.subr.mxu0 0.0
    %3385 = vmatpush1.msra.mxu0 %v3356
    %3386 = vmatprep.subr.mxu0 0.0
    %3387 = vmatpush1.msra.mxu0 %v3355
    %3388 = vmatprep.subr.mxu0 0.0
    %3389 = vmatpush1.msra.mxu0 %v3354
    %3390 = vmatprep.subr.mxu0 0.0
    %3391 = vmatpush1.msra.mxu0 %v3353
    %3392 = vmatprep.subr.mxu0 0.0
    %3393 = vmatpush1.msra.mxu0 %v3352
    %3394 = vmatprep.subr.mxu0 0.0
    %3395 = vmatpush1.msra.mxu0 %v3351
    %3396 = vmatprep.subr.mxu0 0.0
    %3397 = vmatpush1.msra.mxu0 %v3350
    %3398 = vmatprep.subr.mxu0 0.0
    %3399 = vmatpush2.msra.mxu0 0.0
    %3400 = vmatprep.subr.mxu0 0.0
    %3401 = vmatpush2.msra.mxu0 0.0
    %3402 = vmatprep.subr.mxu0 0.0
    %3403 = vmatpush2.msra.mxu0 0.0
    %3404 = vmatprep.subr.mxu0 0.0
    %3405 = vmatpush2.msra.mxu0 0.0
    %3406 = vmatprep.subr.mxu0 0.0
    %3407 = vmatpush2.msra.mxu0 0.0
    %3408 = vmatprep.subr.mxu0 0.0
    %3409 = vmatpush2.msra.mxu0 0.0
    %3410 = vmatprep.subr.mxu0 0.0
    %3411 = vmatpush2.msra.mxu0 0.0
    %3412 = vmatprep.subr.mxu0 0.0
    %3413 = vmatpush2.msra.mxu0 0.0
    %3414 = vmatprep.subr.mxu0 0.0
    %3415 = vmatpush2.msra.mxu0 0.0
    %3416 = vmatprep.subr.mxu0 0.0
    %3417 = vmatpush2.msra.mxu0 0.0
    %3418 = vmatprep.subr.mxu0 0.0
    %3419 = vmatpush2.msra.mxu0 0.0
    %3420 = vmatprep.subr.mxu0 0.0
    %3421 = vmatpush2.msra.mxu0 0.0
    %3422 = vmatprep.subr.mxu0 0.0
    %3423 = vmatpush2.msra.mxu0 0.0
    %3424 = vmatprep.subr.mxu0 0.0
    %3425 = vmatpush2.msra.mxu0 0.0
    %3426 = vmatprep.subr.mxu0 0.0
    %3427 = vmatpush2.msra.mxu0 0.0
    %3428 = vmatprep.subr.mxu0 0.0
    %3429 = vmatpush2.msra.mxu0 0.0
    %3430 = vmatprep.mubr.f32.mxu0 0.0
    %3431 = vmatmul.mubr.f32.gmra.mxu0 %v3341
    %v3432 = vpop.f32.mrf.mxu0
    %v3433 = vadd.f32 0.0, %v3432
    %v3434 = vpop.f32.mrf.mxu0
    %3435 = vmatprep.mubr.f32.mxu0 0.0
    %3436 = vmatmul.mubr.f32.gmra.mxu0 %v3346
    %v3437 = vpop.f32.mrf.mxu0
    %v3438 = vadd.f32 0.0, %v3437
    %v3439 = vpop.f32.mrf.mxu0
    %3440 = vdwg.mxu0
    %v3441 = vadd.f32 %v3263, %v3433
    %v3442 = vadd.f32 %v3264, %v3438
    %s3443 = scalar_lea.vmem %s2, 80
    %v3444 = vld [vmem:[%s3443] sm:$0xff]
    %v3445 = vld [vmem:[%s3443 + $0x8] sm:$0xff]
    %v3447 = vsel %vm2560, %v3444, 0
    %v3450 = vsel %vm2560, %v3445, 0
    %3452 = vmatprep.subr.mxu0 0.0
    %3453 = vmatpush1.msra.mxu0 0.0
    %3454 = vmatprep.subr.mxu0 0.0
    %3455 = vmatpush1.msra.mxu0 0.0
    %3456 = vmatprep.subr.mxu0 0.0
    %3457 = vmatpush1.msra.mxu0 0.0
    %3458 = vmatprep.subr.mxu0 0.0
    %3459 = vmatpush1.msra.mxu0 0.0
    %3460 = vmatprep.subr.mxu0 0.0
    %3461 = vmatpush1.msra.mxu0 0.0
    %3462 = vmatprep.subr.mxu0 0.0
    %3463 = vmatpush1.msra.mxu0 0.0
    %3464 = vmatprep.subr.mxu0 0.0
    %3465 = vmatpush1.msra.mxu0 0.0
    %3466 = vmatprep.subr.mxu0 0.0
    %3467 = vmatpush1.msra.mxu0 0.0
    %3468 = vmatprep.subr.mxu0 0.0
    %3469 = vmatpush1.msra.mxu0 %v2557
    %3470 = vmatprep.subr.mxu0 0.0
    %3471 = vmatpush1.msra.mxu0 %v2556
    %3472 = vmatprep.subr.mxu0 0.0
    %3473 = vmatpush1.msra.mxu0 %v2555
    %3474 = vmatprep.subr.mxu0 0.0
    %3475 = vmatpush1.msra.mxu0 %v2554
    %3476 = vmatprep.subr.mxu0 0.0
    %3477 = vmatpush1.msra.mxu0 %v2553
    %3478 = vmatprep.subr.mxu0 0.0
    %3479 = vmatpush1.msra.mxu0 %v2552
    %3480 = vmatprep.subr.mxu0 0.0
    %3481 = vmatpush1.msra.mxu0 %v2551
    %3482 = vmatprep.subr.mxu0 0.0
    %3483 = vmatpush1.msra.mxu0 %v2550
    %3484 = vmatprep.subr.mxu0 0.0
    %3485 = vmatpush2.msra.mxu0 0.0
    %3486 = vmatprep.subr.mxu0 0.0
    %3487 = vmatpush2.msra.mxu0 0.0
    %3488 = vmatprep.subr.mxu0 0.0
    %3489 = vmatpush2.msra.mxu0 0.0
    %3490 = vmatprep.subr.mxu0 0.0
    %3491 = vmatpush2.msra.mxu0 0.0
    %3492 = vmatprep.subr.mxu0 0.0
    %3493 = vmatpush2.msra.mxu0 0.0
    %3494 = vmatprep.subr.mxu0 0.0
    %3495 = vmatpush2.msra.mxu0 0.0
    %3496 = vmatprep.subr.mxu0 0.0
    %3497 = vmatpush2.msra.mxu0 0.0
    %3498 = vmatprep.subr.mxu0 0.0
    %3499 = vmatpush2.msra.mxu0 0.0
    %3500 = vmatprep.subr.mxu0 0.0
    %3501 = vmatpush2.msra.mxu0 0.0
    %3502 = vmatprep.subr.mxu0 0.0
    %3503 = vmatpush2.msra.mxu0 0.0
    %3504 = vmatprep.subr.mxu0 0.0
    %3505 = vmatpush2.msra.mxu0 0.0
    %3506 = vmatprep.subr.mxu0 0.0
    %3507 = vmatpush2.msra.mxu0 0.0
    %3508 = vmatprep.subr.mxu0 0.0
    %3509 = vmatpush2.msra.mxu0 0.0
    %3510 = vmatprep.subr.mxu0 0.0
    %3511 = vmatpush2.msra.mxu0 0.0
    %3512 = vmatprep.subr.mxu0 0.0
    %3513 = vmatpush2.msra.mxu0 0.0
    %3514 = vmatprep.subr.mxu0 0.0
    %3515 = vmatpush2.msra.mxu0 0.0
    %3516 = vmatprep.mubr.f32.mxu0 0.0
    %3517 = vmatmul.mubr.f32.gmra.mxu0 %v3447
    %v3518 = vpop.f32.mrf.mxu0
    %v3519 = vadd.f32 0.0, %v3518
    %v3520 = vpop.f32.mrf.mxu0
    %3521 = vmatprep.mubr.f32.mxu0 0.0
    %3522 = vmatmul.mubr.f32.gmra.mxu0 %v3450
    %v3523 = vpop.f32.mrf.mxu0
    %v3524 = vadd.f32 0.0, %v3523
    %v3525 = vpop.f32.mrf.mxu0
    %3526 = vdwg.mxu0
    %s3527 = scalar_lea.vmem [#allocation6], 640
    %v3528 = vld [vmem:[%s3527] sm:$0xff]
    %v3529 = vld [vmem:[%s3527 + $0x8] sm:$0xff]
    %v3530 = vld [vmem:[%s3527 + $0x10] sm:$0xff]
    %v3531 = vld [vmem:[%s3527 + $0x18] sm:$0xff]
    %v3532 = vld [vmem:[%s3527 + $0x20] sm:$0xff]
    %v3533 = vld [vmem:[%s3527 + $0x28] sm:$0xff]
    %v3534 = vld [vmem:[%s3527 + $0x30] sm:$0xff]
    %v3535 = vld [vmem:[%s3527 + $0x38] sm:$0xff]
    %v3536 = vld [vmem:[%s3527 + $0x40] sm:$0xff]
    %v3537 = vld [vmem:[%s3527 + $0x48] sm:$0xff]
    %v3538 = vld [vmem:[%s3527 + $0x50] sm:$0xff]
    %v3539 = vld [vmem:[%s3527 + $0x58] sm:$0xff]
    %v3540 = vld [vmem:[%s3527 + $0x60] sm:$0xff]
    %v3541 = vld [vmem:[%s3527 + $0x68] sm:$0xff]
    %v3542 = vld [vmem:[%s3527 + $0x70] sm:$0xff]
    %v3543 = vld [vmem:[%s3527 + $0x78] sm:$0xff]
    %3544 = vmatprep.subr.mxu0 0.0
    %3545 = vmatpush1.msra.mxu0 %v3543
    %3546 = vmatprep.subr.mxu0 0.0
    %3547 = vmatpush1.msra.mxu0 %v3542
    %3548 = vmatprep.subr.mxu0 0.0
    %3549 = vmatpush1.msra.mxu0 %v3541
    %3550 = vmatprep.subr.mxu0 0.0
    %3551 = vmatpush1.msra.mxu0 %v3540
    %3552 = vmatprep.subr.mxu0 0.0
    %3553 = vmatpush1.msra.mxu0 %v3539
    %3554 = vmatprep.subr.mxu0 0.0
    %3555 = vmatpush1.msra.mxu0 %v3538
    %3556 = vmatprep.subr.mxu0 0.0
    %3557 = vmatpush1.msra.mxu0 %v3537
    %3558 = vmatprep.subr.mxu0 0.0
    %3559 = vmatpush1.msra.mxu0 %v3536
    %3560 = vmatprep.subr.mxu0 0.0
    %3561 = vmatpush1.msra.mxu0 %v3535
    %3562 = vmatprep.subr.mxu0 0.0
    %3563 = vmatpush1.msra.mxu0 %v3534
    %3564 = vmatprep.subr.mxu0 0.0
    %3565 = vmatpush1.msra.mxu0 %v3533
    %3566 = vmatprep.subr.mxu0 0.0
    %3567 = vmatpush1.msra.mxu0 %v3532
    %3568 = vmatprep.subr.mxu0 0.0
    %3569 = vmatpush1.msra.mxu0 %v3531
    %3570 = vmatprep.subr.mxu0 0.0
    %3571 = vmatpush1.msra.mxu0 %v3530
    %3572 = vmatprep.subr.mxu0 0.0
    %3573 = vmatpush1.msra.mxu0 %v3529
    %3574 = vmatprep.subr.mxu0 0.0
    %3575 = vmatpush1.msra.mxu0 %v3528
    %3576 = vmatprep.subr.mxu0 0.0
    %3577 = vmatpush2.msra.mxu0 0.0
    %3578 = vmatprep.subr.mxu0 0.0
    %3579 = vmatpush2.msra.mxu0 0.0
    %3580 = vmatprep.subr.mxu0 0.0
    %3581 = vmatpush2.msra.mxu0 0.0
    %3582 = vmatprep.subr.mxu0 0.0
    %3583 = vmatpush2.msra.mxu0 0.0
    %3584 = vmatprep.subr.mxu0 0.0
    %3585 = vmatpush2.msra.mxu0 0.0
    %3586 = vmatprep.subr.mxu0 0.0
    %3587 = vmatpush2.msra.mxu0 0.0
    %3588 = vmatprep.subr.mxu0 0.0
    %3589 = vmatpush2.msra.mxu0 0.0
    %3590 = vmatprep.subr.mxu0 0.0
    %3591 = vmatpush2.msra.mxu0 0.0
    %3592 = vmatprep.subr.mxu0 0.0
    %3593 = vmatpush2.msra.mxu0 0.0
    %3594 = vmatprep.subr.mxu0 0.0
    %3595 = vmatpush2.msra.mxu0 0.0
    %3596 = vmatprep.subr.mxu0 0.0
    %3597 = vmatpush2.msra.mxu0 0.0
    %3598 = vmatprep.subr.mxu0 0.0
    %3599 = vmatpush2.msra.mxu0 0.0
    %3600 = vmatprep.subr.mxu0 0.0
    %3601 = vmatpush2.msra.mxu0 0.0
    %3602 = vmatprep.subr.mxu0 0.0
    %3603 = vmatpush2.msra.mxu0 0.0
    %3604 = vmatprep.subr.mxu0 0.0
    %3605 = vmatpush2.msra.mxu0 0.0
    %3606 = vmatprep.subr.mxu0 0.0
    %3607 = vmatpush2.msra.mxu0 0.0
    %3608 = vmatprep.mubr.f32.mxu0 0.0
    %3609 = vmatmul.mubr.f32.gmra.mxu0 %v3519
    %v3610 = vpop.f32.mrf.mxu0
    %v3611 = vadd.f32 0.0, %v3610
    %v3612 = vpop.f32.mrf.mxu0
    %3613 = vmatprep.mubr.f32.mxu0 0.0
    %3614 = vmatmul.mubr.f32.gmra.mxu0 %v3524
    %v3615 = vpop.f32.mrf.mxu0
    %v3616 = vadd.f32 0.0, %v3615
    %v3617 = vpop.f32.mrf.mxu0
    %3618 = vdwg.mxu0
    %v3619 = vadd.f32 %v3441, %v3611
    %v3620 = vadd.f32 %v3442, %v3616
    %s3621 = scalar_lea.vmem %s2, 96
    %v3622 = vld [vmem:[%s3621] sm:$0xff]
    %v3623 = vld [vmem:[%s3621 + $0x8] sm:$0xff]
    %v3625 = vsel %vm2560, %v3622, 0
    %v3628 = vsel %vm2560, %v3623, 0
    %3630 = vmatprep.subr.mxu0 0.0
    %3631 = vmatpush1.msra.mxu0 0.0
    %3632 = vmatprep.subr.mxu0 0.0
    %3633 = vmatpush1.msra.mxu0 0.0
    %3634 = vmatprep.subr.mxu0 0.0
    %3635 = vmatpush1.msra.mxu0 0.0
    %3636 = vmatprep.subr.mxu0 0.0
    %3637 = vmatpush1.msra.mxu0 0.0
    %3638 = vmatprep.subr.mxu0 0.0
    %3639 = vmatpush1.msra.mxu0 0.0
    %3640 = vmatprep.subr.mxu0 0.0
    %3641 = vmatpush1.msra.mxu0 0.0
    %3642 = vmatprep.subr.mxu0 0.0
    %3643 = vmatpush1.msra.mxu0 0.0
    %3644 = vmatprep.subr.mxu0 0.0
    %3645 = vmatpush1.msra.mxu0 0.0
    %3646 = vmatprep.subr.mxu0 0.0
    %3647 = vmatpush1.msra.mxu0 %v2557
    %3648 = vmatprep.subr.mxu0 0.0
    %3649 = vmatpush1.msra.mxu0 %v2556
    %3650 = vmatprep.subr.mxu0 0.0
    %3651 = vmatpush1.msra.mxu0 %v2555
    %3652 = vmatprep.subr.mxu0 0.0
    %3653 = vmatpush1.msra.mxu0 %v2554
    %3654 = vmatprep.subr.mxu0 0.0
    %3655 = vmatpush1.msra.mxu0 %v2553
    %3656 = vmatprep.subr.mxu0 0.0
    %3657 = vmatpush1.msra.mxu0 %v2552
    %3658 = vmatprep.subr.mxu0 0.0
    %3659 = vmatpush1.msra.mxu0 %v2551
    %3660 = vmatprep.subr.mxu0 0.0
    %3661 = vmatpush1.msra.mxu0 %v2550
    %3662 = vmatprep.subr.mxu0 0.0
    %3663 = vmatpush2.msra.mxu0 0.0
    %3664 = vmatprep.subr.mxu0 0.0
    %3665 = vmatpush2.msra.mxu0 0.0
    %3666 = vmatprep.subr.mxu0 0.0
    %3667 = vmatpush2.msra.mxu0 0.0
    %3668 = vmatprep.subr.mxu0 0.0
    %3669 = vmatpush2.msra.mxu0 0.0
    %3670 = vmatprep.subr.mxu0 0.0
    %3671 = vmatpush2.msra.mxu0 0.0
    %3672 = vmatprep.subr.mxu0 0.0
    %3673 = vmatpush2.msra.mxu0 0.0
    %3674 = vmatprep.subr.mxu0 0.0
    %3675 = vmatpush2.msra.mxu0 0.0
    %3676 = vmatprep.subr.mxu0 0.0
    %3677 = vmatpush2.msra.mxu0 0.0
    %3678 = vmatprep.subr.mxu0 0.0
    %3679 = vmatpush2.msra.mxu0 0.0
    %3680 = vmatprep.subr.mxu0 0.0
    %3681 = vmatpush2.msra.mxu0 0.0
    %3682 = vmatprep.subr.mxu0 0.0
    %3683 = vmatpush2.msra.mxu0 0.0
    %3684 = vmatprep.subr.mxu0 0.0
    %3685 = vmatpush2.msra.mxu0 0.0
    %3686 = vmatprep.subr.mxu0 0.0
    %3687 = vmatpush2.msra.mxu0 0.0
    %3688 = vmatprep.subr.mxu0 0.0
    %3689 = vmatpush2.msra.mxu0 0.0
    %3690 = vmatprep.subr.mxu0 0.0
    %3691 = vmatpush2.msra.mxu0 0.0
    %3692 = vmatprep.subr.mxu0 0.0
    %3693 = vmatpush2.msra.mxu0 0.0
    %3694 = vmatprep.mubr.f32.mxu0 0.0
    %3695 = vmatmul.mubr.f32.gmra.mxu0 %v3625
    %v3696 = vpop.f32.mrf.mxu0
    %v3697 = vadd.f32 0.0, %v3696
    %v3698 = vpop.f32.mrf.mxu0
    %3699 = vmatprep.mubr.f32.mxu0 0.0
    %3700 = vmatmul.mubr.f32.gmra.mxu0 %v3628
    %v3701 = vpop.f32.mrf.mxu0
    %v3702 = vadd.f32 0.0, %v3701
    %v3703 = vpop.f32.mrf.mxu0
    %3704 = vdwg.mxu0
    %s3705 = scalar_lea.vmem [#allocation6], 768
    %v3706 = vld [vmem:[%s3705] sm:$0xff]
    %v3707 = vld [vmem:[%s3705 + $0x8] sm:$0xff]
    %v3708 = vld [vmem:[%s3705 + $0x10] sm:$0xff]
    %v3709 = vld [vmem:[%s3705 + $0x18] sm:$0xff]
    %v3710 = vld [vmem:[%s3705 + $0x20] sm:$0xff]
    %v3711 = vld [vmem:[%s3705 + $0x28] sm:$0xff]
    %v3712 = vld [vmem:[%s3705 + $0x30] sm:$0xff]
    %v3713 = vld [vmem:[%s3705 + $0x38] sm:$0xff]
    %v3714 = vld [vmem:[%s3705 + $0x40] sm:$0xff]
    %v3715 = vld [vmem:[%s3705 + $0x48] sm:$0xff]
    %v3716 = vld [vmem:[%s3705 + $0x50] sm:$0xff]
    %v3717 = vld [vmem:[%s3705 + $0x58] sm:$0xff]
    %v3718 = vld [vmem:[%s3705 + $0x60] sm:$0xff]
    %v3719 = vld [vmem:[%s3705 + $0x68] sm:$0xff]
    %v3720 = vld [vmem:[%s3705 + $0x70] sm:$0xff]
    %v3721 = vld [vmem:[%s3705 + $0x78] sm:$0xff]
    %3722 = vmatprep.subr.mxu0 0.0
    %3723 = vmatpush1.msra.mxu0 %v3721
    %3724 = vmatprep.subr.mxu0 0.0
    %3725 = vmatpush1.msra.mxu0 %v3720
    %3726 = vmatprep.subr.mxu0 0.0
    %3727 = vmatpush1.msra.mxu0 %v3719
    %3728 = vmatprep.subr.mxu0 0.0
    %3729 = vmatpush1.msra.mxu0 %v3718
    %3730 = vmatprep.subr.mxu0 0.0
    %3731 = vmatpush1.msra.mxu0 %v3717
    %3732 = vmatprep.subr.mxu0 0.0
    %3733 = vmatpush1.msra.mxu0 %v3716
    %3734 = vmatprep.subr.mxu0 0.0
    %3735 = vmatpush1.msra.mxu0 %v3715
    %3736 = vmatprep.subr.mxu0 0.0
    %3737 = vmatpush1.msra.mxu0 %v3714
    %3738 = vmatprep.subr.mxu0 0.0
    %3739 = vmatpush1.msra.mxu0 %v3713
    %3740 = vmatprep.subr.mxu0 0.0
    %3741 = vmatpush1.msra.mxu0 %v3712
    %3742 = vmatprep.subr.mxu0 0.0
    %3743 = vmatpush1.msra.mxu0 %v3711
    %3744 = vmatprep.subr.mxu0 0.0
    %3745 = vmatpush1.msra.mxu0 %v3710
    %3746 = vmatprep.subr.mxu0 0.0
    %3747 = vmatpush1.msra.mxu0 %v3709
    %3748 = vmatprep.subr.mxu0 0.0
    %3749 = vmatpush1.msra.mxu0 %v3708
    %3750 = vmatprep.subr.mxu0 0.0
    %3751 = vmatpush1.msra.mxu0 %v3707
    %3752 = vmatprep.subr.mxu0 0.0
    %3753 = vmatpush1.msra.mxu0 %v3706
    %3754 = vmatprep.subr.mxu0 0.0
    %3755 = vmatpush2.msra.mxu0 0.0
    %3756 = vmatprep.subr.mxu0 0.0
    %3757 = vmatpush2.msra.mxu0 0.0
    %3758 = vmatprep.subr.mxu0 0.0
    %3759 = vmatpush2.msra.mxu0 0.0
    %3760 = vmatprep.subr.mxu0 0.0
    %3761 = vmatpush2.msra.mxu0 0.0
    %3762 = vmatprep.subr.mxu0 0.0
    %3763 = vmatpush2.msra.mxu0 0.0
    %3764 = vmatprep.subr.mxu0 0.0
    %3765 = vmatpush2.msra.mxu0 0.0
    %3766 = vmatprep.subr.mxu0 0.0
    %3767 = vmatpush2.msra.mxu0 0.0
    %3768 = vmatprep.subr.mxu0 0.0
    %3769 = vmatpush2.msra.mxu0 0.0
    %3770 = vmatprep.subr.mxu0 0.0
    %3771 = vmatpush2.msra.mxu0 0.0
    %3772 = vmatprep.subr.mxu0 0.0
    %3773 = vmatpush2.msra.mxu0 0.0
    %3774 = vmatprep.subr.mxu0 0.0
    %3775 = vmatpush2.msra.mxu0 0.0
    %3776 = vmatprep.subr.mxu0 0.0
    %3777 = vmatpush2.msra.mxu0 0.0
    %3778 = vmatprep.subr.mxu0 0.0
    %3779 = vmatpush2.msra.mxu0 0.0
    %3780 = vmatprep.subr.mxu0 0.0
    %3781 = vmatpush2.msra.mxu0 0.0
    %3782 = vmatprep.subr.mxu0 0.0
    %3783 = vmatpush2.msra.mxu0 0.0
    %3784 = vmatprep.subr.mxu0 0.0
    %3785 = vmatpush2.msra.mxu0 0.0
    %3786 = vmatprep.mubr.f32.mxu0 0.0
    %3787 = vmatmul.mubr.f32.gmra.mxu0 %v3697
    %v3788 = vpop.f32.mrf.mxu0
    %v3789 = vadd.f32 0.0, %v3788
    %v3790 = vpop.f32.mrf.mxu0
    %3791 = vmatprep.mubr.f32.mxu0 0.0
    %3792 = vmatmul.mubr.f32.gmra.mxu0 %v3702
    %v3793 = vpop.f32.mrf.mxu0
    %v3794 = vadd.f32 0.0, %v3793
    %v3795 = vpop.f32.mrf.mxu0
    %3796 = vdwg.mxu0
    %v3797 = vadd.f32 %v3619, %v3789
    %v3798 = vadd.f32 %v3620, %v3794
    %s3799 = scalar_lea.vmem %s2, 112
    %v3800 = vld [vmem:[%s3799] sm:$0xff]
    %v3801 = vld [vmem:[%s3799 + $0x8] sm:$0xff]
    %v3803 = vsel %vm2560, %v3800, 0
    %v3806 = vsel %vm2560, %v3801, 0
    %3808 = vmatprep.subr.mxu0 0.0
    %3809 = vmatpush1.msra.mxu0 0.0
    %3810 = vmatprep.subr.mxu0 0.0
    %3811 = vmatpush1.msra.mxu0 0.0
    %3812 = vmatprep.subr.mxu0 0.0
    %3813 = vmatpush1.msra.mxu0 0.0
    %3814 = vmatprep.subr.mxu0 0.0
    %3815 = vmatpush1.msra.mxu0 0.0
    %3816 = vmatprep.subr.mxu0 0.0
    %3817 = vmatpush1.msra.mxu0 0.0
    %3818 = vmatprep.subr.mxu0 0.0
    %3819 = vmatpush1.msra.mxu0 0.0
    %3820 = vmatprep.subr.mxu0 0.0
    %3821 = vmatpush1.msra.mxu0 0.0
    %3822 = vmatprep.subr.mxu0 0.0
    %3823 = vmatpush1.msra.mxu0 0.0
    %3824 = vmatprep.subr.mxu0 0.0
    %3825 = vmatpush1.msra.mxu0 %v2557
    %3826 = vmatprep.subr.mxu0 0.0
    %3827 = vmatpush1.msra.mxu0 %v2556
    %3828 = vmatprep.subr.mxu0 0.0
    %3829 = vmatpush1.msra.mxu0 %v2555
    %3830 = vmatprep.subr.mxu0 0.0
    %3831 = vmatpush1.msra.mxu0 %v2554
    %3832 = vmatprep.subr.mxu0 0.0
    %3833 = vmatpush1.msra.mxu0 %v2553
    %3834 = vmatprep.subr.mxu0 0.0
    %3835 = vmatpush1.msra.mxu0 %v2552
    %3836 = vmatprep.subr.mxu0 0.0
    %3837 = vmatpush1.msra.mxu0 %v2551
    %3838 = vmatprep.subr.mxu0 0.0
    %3839 = vmatpush1.msra.mxu0 %v2550
    %3840 = vmatprep.subr.mxu0 0.0
    %3841 = vmatpush2.msra.mxu0 0.0
    %3842 = vmatprep.subr.mxu0 0.0
    %3843 = vmatpush2.msra.mxu0 0.0
    %3844 = vmatprep.subr.mxu0 0.0
    %3845 = vmatpush2.msra.mxu0 0.0
    %3846 = vmatprep.subr.mxu0 0.0
    %3847 = vmatpush2.msra.mxu0 0.0
    %3848 = vmatprep.subr.mxu0 0.0
    %3849 = vmatpush2.msra.mxu0 0.0
    %3850 = vmatprep.subr.mxu0 0.0
    %3851 = vmatpush2.msra.mxu0 0.0
    %3852 = vmatprep.subr.mxu0 0.0
    %3853 = vmatpush2.msra.mxu0 0.0
    %3854 = vmatprep.subr.mxu0 0.0
    %3855 = vmatpush2.msra.mxu0 0.0
    %3856 = vmatprep.subr.mxu0 0.0
    %3857 = vmatpush2.msra.mxu0 0.0
    %3858 = vmatprep.subr.mxu0 0.0
    %3859 = vmatpush2.msra.mxu0 0.0
    %3860 = vmatprep.subr.mxu0 0.0
    %3861 = vmatpush2.msra.mxu0 0.0
    %3862 = vmatprep.subr.mxu0 0.0
    %3863 = vmatpush2.msra.mxu0 0.0
    %3864 = vmatprep.subr.mxu0 0.0
    %3865 = vmatpush2.msra.mxu0 0.0
    %3866 = vmatprep.subr.mxu0 0.0
    %3867 = vmatpush2.msra.mxu0 0.0
    %3868 = vmatprep.subr.mxu0 0.0
    %3869 = vmatpush2.msra.mxu0 0.0
    %3870 = vmatprep.subr.mxu0 0.0
    %3871 = vmatpush2.msra.mxu0 0.0
    %3872 = vmatprep.mubr.f32.mxu0 0.0
    %3873 = vmatmul.mubr.f32.gmra.mxu0 %v3803
    %v3874 = vpop.f32.mrf.mxu0
    %v3875 = vadd.f32 0.0, %v3874
    %v3876 = vpop.f32.mrf.mxu0
    %3877 = vmatprep.mubr.f32.mxu0 0.0
    %3878 = vmatmul.mubr.f32.gmra.mxu0 %v3806
    %v3879 = vpop.f32.mrf.mxu0
    %v3880 = vadd.f32 0.0, %v3879
    %v3881 = vpop.f32.mrf.mxu0
    %3882 = vdwg.mxu0
    %s3883 = scalar_lea.vmem [#allocation6], 896
    %v3884 = vld [vmem:[%s3883] sm:$0xff]
    %v3885 = vld [vmem:[%s3883 + $0x8] sm:$0xff]
    %v3886 = vld [vmem:[%s3883 + $0x10] sm:$0xff]
    %v3887 = vld [vmem:[%s3883 + $0x18] sm:$0xff]
    %v3888 = vld [vmem:[%s3883 + $0x20] sm:$0xff]
    %v3889 = vld [vmem:[%s3883 + $0x28] sm:$0xff]
    %v3890 = vld [vmem:[%s3883 + $0x30] sm:$0xff]
    %v3891 = vld [vmem:[%s3883 + $0x38] sm:$0xff]
    %v3892 = vld [vmem:[%s3883 + $0x40] sm:$0xff]
    %v3893 = vld [vmem:[%s3883 + $0x48] sm:$0xff]
    %v3894 = vld [vmem:[%s3883 + $0x50] sm:$0xff]
    %v3895 = vld [vmem:[%s3883 + $0x58] sm:$0xff]
    %v3896 = vld [vmem:[%s3883 + $0x60] sm:$0xff]
    %v3897 = vld [vmem:[%s3883 + $0x68] sm:$0xff]
    %v3898 = vld [vmem:[%s3883 + $0x70] sm:$0xff]
    %v3899 = vld [vmem:[%s3883 + $0x78] sm:$0xff]
    %3900 = vmatprep.subr.mxu0 0.0
    %3901 = vmatpush1.msra.mxu0 %v3899
    %3902 = vmatprep.subr.mxu0 0.0
    %3903 = vmatpush1.msra.mxu0 %v3898
    %3904 = vmatprep.subr.mxu0 0.0
    %3905 = vmatpush1.msra.mxu0 %v3897
    %3906 = vmatprep.subr.mxu0 0.0
    %3907 = vmatpush1.msra.mxu0 %v3896
    %3908 = vmatprep.subr.mxu0 0.0
    %3909 = vmatpush1.msra.mxu0 %v3895
    %3910 = vmatprep.subr.mxu0 0.0
    %3911 = vmatpush1.msra.mxu0 %v3894
    %3912 = vmatprep.subr.mxu0 0.0
    %3913 = vmatpush1.msra.mxu0 %v3893
    %3914 = vmatprep.subr.mxu0 0.0
    %3915 = vmatpush1.msra.mxu0 %v3892
    %3916 = vmatprep.subr.mxu0 0.0
    %3917 = vmatpush1.msra.mxu0 %v3891
    %3918 = vmatprep.subr.mxu0 0.0
    %3919 = vmatpush1.msra.mxu0 %v3890
    %3920 = vmatprep.subr.mxu0 0.0
    %3921 = vmatpush1.msra.mxu0 %v3889
    %3922 = vmatprep.subr.mxu0 0.0
    %3923 = vmatpush1.msra.mxu0 %v3888
    %3924 = vmatprep.subr.mxu0 0.0
    %3925 = vmatpush1.msra.mxu0 %v3887
    %3926 = vmatprep.subr.mxu0 0.0
    %3927 = vmatpush1.msra.mxu0 %v3886
    %3928 = vmatprep.subr.mxu0 0.0
    %3929 = vmatpush1.msra.mxu0 %v3885
    %3930 = vmatprep.subr.mxu0 0.0
    %3931 = vmatpush1.msra.mxu0 %v3884
    %3932 = vmatprep.subr.mxu0 0.0
    %3933 = vmatpush2.msra.mxu0 0.0
    %3934 = vmatprep.subr.mxu0 0.0
    %3935 = vmatpush2.msra.mxu0 0.0
    %3936 = vmatprep.subr.mxu0 0.0
    %3937 = vmatpush2.msra.mxu0 0.0
    %3938 = vmatprep.subr.mxu0 0.0
    %3939 = vmatpush2.msra.mxu0 0.0
    %3940 = vmatprep.subr.mxu0 0.0
    %3941 = vmatpush2.msra.mxu0 0.0
    %3942 = vmatprep.subr.mxu0 0.0
    %3943 = vmatpush2.msra.mxu0 0.0
    %3944 = vmatprep.subr.mxu0 0.0
    %3945 = vmatpush2.msra.mxu0 0.0
    %3946 = vmatprep.subr.mxu0 0.0
    %3947 = vmatpush2.msra.mxu0 0.0
    %3948 = vmatprep.subr.mxu0 0.0
    %3949 = vmatpush2.msra.mxu0 0.0
    %3950 = vmatprep.subr.mxu0 0.0
    %3951 = vmatpush2.msra.mxu0 0.0
    %3952 = vmatprep.subr.mxu0 0.0
    %3953 = vmatpush2.msra.mxu0 0.0
    %3954 = vmatprep.subr.mxu0 0.0
    %3955 = vmatpush2.msra.mxu0 0.0
    %3956 = vmatprep.subr.mxu0 0.0
    %3957 = vmatpush2.msra.mxu0 0.0
    %3958 = vmatprep.subr.mxu0 0.0
    %3959 = vmatpush2.msra.mxu0 0.0
    %3960 = vmatprep.subr.mxu0 0.0
    %3961 = vmatpush2.msra.mxu0 0.0
    %3962 = vmatprep.subr.mxu0 0.0
    %3963 = vmatpush2.msra.mxu0 0.0
    %3964 = vmatprep.mubr.f32.mxu0 0.0
    %3965 = vmatmul.mubr.f32.gmra.mxu0 %v3875
    %v3966 = vpop.f32.mrf.mxu0
    %v3967 = vadd.f32 0.0, %v3966
    %v3968 = vpop.f32.mrf.mxu0
    %3969 = vmatprep.mubr.f32.mxu0 0.0
    %3970 = vmatmul.mubr.f32.gmra.mxu0 %v3880
    %v3971 = vpop.f32.mrf.mxu0
    %v3972 = vadd.f32 0.0, %v3971
    %v3973 = vpop.f32.mrf.mxu0
    %3974 = vdwg.mxu0
    %v3975 = vadd.f32 %v3797, %v3967
    %v3976 = vadd.f32 %v3798, %v3972
    %s3977 = scalar_lea.vmem %s2, 128
    %v3978 = vld [vmem:[%s3977] sm:$0xff]
    %v3979 = vld [vmem:[%s3977 + $0x8] sm:$0xff]
    %v3981 = vsel %vm2560, %v3978, 0
    %v3984 = vsel %vm2560, %v3979, 0
    %3986 = vmatprep.subr.mxu0 0.0
    %3987 = vmatpush1.msra.mxu0 0.0
    %3988 = vmatprep.subr.mxu0 0.0
    %3989 = vmatpush1.msra.mxu0 0.0
    %3990 = vmatprep.subr.mxu0 0.0
    %3991 = vmatpush1.msra.mxu0 0.0
    %3992 = vmatprep.subr.mxu0 0.0
    %3993 = vmatpush1.msra.mxu0 0.0
    %3994 = vmatprep.subr.mxu0 0.0
    %3995 = vmatpush1.msra.mxu0 0.0
    %3996 = vmatprep.subr.mxu0 0.0
    %3997 = vmatpush1.msra.mxu0 0.0
    %3998 = vmatprep.subr.mxu0 0.0
    %3999 = vmatpush1.msra.mxu0 0.0
    %4000 = vmatprep.subr.mxu0 0.0
    %4001 = vmatpush1.msra.mxu0 0.0
    %4002 = vmatprep.subr.mxu0 0.0
    %4003 = vmatpush1.msra.mxu0 %v2557
    %4004 = vmatprep.subr.mxu0 0.0
    %4005 = vmatpush1.msra.mxu0 %v2556
    %4006 = vmatprep.subr.mxu0 0.0
    %4007 = vmatpush1.msra.mxu0 %v2555
    %4008 = vmatprep.subr.mxu0 0.0
    %4009 = vmatpush1.msra.mxu0 %v2554
    %4010 = vmatprep.subr.mxu0 0.0
    %4011 = vmatpush1.msra.mxu0 %v2553
    %4012 = vmatprep.subr.mxu0 0.0
    %4013 = vmatpush1.msra.mxu0 %v2552
    %4014 = vmatprep.subr.mxu0 0.0
    %4015 = vmatpush1.msra.mxu0 %v2551
    %4016 = vmatprep.subr.mxu0 0.0
    %4017 = vmatpush1.msra.mxu0 %v2550
    %4018 = vmatprep.subr.mxu0 0.0
    %4019 = vmatpush2.msra.mxu0 0.0
    %4020 = vmatprep.subr.mxu0 0.0
    %4021 = vmatpush2.msra.mxu0 0.0
    %4022 = vmatprep.subr.mxu0 0.0
    %4023 = vmatpush2.msra.mxu0 0.0
    %4024 = vmatprep.subr.mxu0 0.0
    %4025 = vmatpush2.msra.mxu0 0.0
    %4026 = vmatprep.subr.mxu0 0.0
    %4027 = vmatpush2.msra.mxu0 0.0
    %4028 = vmatprep.subr.mxu0 0.0
    %4029 = vmatpush2.msra.mxu0 0.0
    %4030 = vmatprep.subr.mxu0 0.0
    %4031 = vmatpush2.msra.mxu0 0.0
    %4032 = vmatprep.subr.mxu0 0.0
    %4033 = vmatpush2.msra.mxu0 0.0
    %4034 = vmatprep.subr.mxu0 0.0
    %4035 = vmatpush2.msra.mxu0 0.0
    %4036 = vmatprep.subr.mxu0 0.0
    %4037 = vmatpush2.msra.mxu0 0.0
    %4038 = vmatprep.subr.mxu0 0.0
    %4039 = vmatpush2.msra.mxu0 0.0
    %4040 = vmatprep.subr.mxu0 0.0
    %4041 = vmatpush2.msra.mxu0 0.0
    %4042 = vmatprep.subr.mxu0 0.0
    %4043 = vmatpush2.msra.mxu0 0.0
    %4044 = vmatprep.subr.mxu0 0.0
    %4045 = vmatpush2.msra.mxu0 0.0
    %4046 = vmatprep.subr.mxu0 0.0
    %4047 = vmatpush2.msra.mxu0 0.0
    %4048 = vmatprep.subr.mxu0 0.0
    %4049 = vmatpush2.msra.mxu0 0.0
    %4050 = vmatprep.mubr.f32.mxu0 0.0
    %4051 = vmatmul.mubr.f32.gmra.mxu0 %v3981
    %v4052 = vpop.f32.mrf.mxu0
    %v4053 = vadd.f32 0.0, %v4052
    %v4054 = vpop.f32.mrf.mxu0
    %4055 = vmatprep.mubr.f32.mxu0 0.0
    %4056 = vmatmul.mubr.f32.gmra.mxu0 %v3984
    %v4057 = vpop.f32.mrf.mxu0
    %v4058 = vadd.f32 0.0, %v4057
    %v4059 = vpop.f32.mrf.mxu0
    %4060 = vdwg.mxu0
    %s4061 = scalar_lea.vmem [#allocation6], 1024
    %v4062 = vld [vmem:[%s4061] sm:$0xff]
    %v4063 = vld [vmem:[%s4061 + $0x8] sm:$0xff]
    %v4064 = vld [vmem:[%s4061 + $0x10] sm:$0xff]
    %v4065 = vld [vmem:[%s4061 + $0x18] sm:$0xff]
    %v4066 = vld [vmem:[%s4061 + $0x20] sm:$0xff]
    %v4067 = vld [vmem:[%s4061 + $0x28] sm:$0xff]
    %v4068 = vld [vmem:[%s4061 + $0x30] sm:$0xff]
    %v4069 = vld [vmem:[%s4061 + $0x38] sm:$0xff]
    %v4070 = vld [vmem:[%s4061 + $0x40] sm:$0xff]
    %v4071 = vld [vmem:[%s4061 + $0x48] sm:$0xff]
    %v4072 = vld [vmem:[%s4061 + $0x50] sm:$0xff]
    %v4073 = vld [vmem:[%s4061 + $0x58] sm:$0xff]
    %v4074 = vld [vmem:[%s4061 + $0x60] sm:$0xff]
    %v4075 = vld [vmem:[%s4061 + $0x68] sm:$0xff]
    %v4076 = vld [vmem:[%s4061 + $0x70] sm:$0xff]
    %v4077 = vld [vmem:[%s4061 + $0x78] sm:$0xff]
    %4078 = vmatprep.subr.mxu0 0.0
    %4079 = vmatpush1.msra.mxu0 %v4077
    %4080 = vmatprep.subr.mxu0 0.0
    %4081 = vmatpush1.msra.mxu0 %v4076
    %4082 = vmatprep.subr.mxu0 0.0
    %4083 = vmatpush1.msra.mxu0 %v4075
    %4084 = vmatprep.subr.mxu0 0.0
    %4085 = vmatpush1.msra.mxu0 %v4074
    %4086 = vmatprep.subr.mxu0 0.0
    %4087 = vmatpush1.msra.mxu0 %v4073
    %4088 = vmatprep.subr.mxu0 0.0
    %4089 = vmatpush1.msra.mxu0 %v4072
    %4090 = vmatprep.subr.mxu0 0.0
    %4091 = vmatpush1.msra.mxu0 %v4071
    %4092 = vmatprep.subr.mxu0 0.0
    %4093 = vmatpush1.msra.mxu0 %v4070
    %4094 = vmatprep.subr.mxu0 0.0
    %4095 = vmatpush1.msra.mxu0 %v4069
    %4096 = vmatprep.subr.mxu0 0.0
    %4097 = vmatpush1.msra.mxu0 %v4068
    %4098 = vmatprep.subr.mxu0 0.0
    %4099 = vmatpush1.msra.mxu0 %v4067
    %4100 = vmatprep.subr.mxu0 0.0
    %4101 = vmatpush1.msra.mxu0 %v4066
    %4102 = vmatprep.subr.mxu0 0.0
    %4103 = vmatpush1.msra.mxu0 %v4065
    %4104 = vmatprep.subr.mxu0 0.0
    %4105 = vmatpush1.msra.mxu0 %v4064
    %4106 = vmatprep.subr.mxu0 0.0
    %4107 = vmatpush1.msra.mxu0 %v4063
    %4108 = vmatprep.subr.mxu0 0.0
    %4109 = vmatpush1.msra.mxu0 %v4062
    %4110 = vmatprep.subr.mxu0 0.0
    %4111 = vmatpush2.msra.mxu0 0.0
    %4112 = vmatprep.subr.mxu0 0.0
    %4113 = vmatpush2.msra.mxu0 0.0
    %4114 = vmatprep.subr.mxu0 0.0
    %4115 = vmatpush2.msra.mxu0 0.0
    %4116 = vmatprep.subr.mxu0 0.0
    %4117 = vmatpush2.msra.mxu0 0.0
    %4118 = vmatprep.subr.mxu0 0.0
    %4119 = vmatpush2.msra.mxu0 0.0
    %4120 = vmatprep.subr.mxu0 0.0
    %4121 = vmatpush2.msra.mxu0 0.0
    %4122 = vmatprep.subr.mxu0 0.0
    %4123 = vmatpush2.msra.mxu0 0.0
    %4124 = vmatprep.subr.mxu0 0.0
    %4125 = vmatpush2.msra.mxu0 0.0
    %4126 = vmatprep.subr.mxu0 0.0
    %4127 = vmatpush2.msra.mxu0 0.0
    %4128 = vmatprep.subr.mxu0 0.0
    %4129 = vmatpush2.msra.mxu0 0.0
    %4130 = vmatprep.subr.mxu0 0.0
    %4131 = vmatpush2.msra.mxu0 0.0
    %4132 = vmatprep.subr.mxu0 0.0
    %4133 = vmatpush2.msra.mxu0 0.0
    %4134 = vmatprep.subr.mxu0 0.0
    %4135 = vmatpush2.msra.mxu0 0.0
    %4136 = vmatprep.subr.mxu0 0.0
    %4137 = vmatpush2.msra.mxu0 0.0
    %4138 = vmatprep.subr.mxu0 0.0
    %4139 = vmatpush2.msra.mxu0 0.0
    %4140 = vmatprep.subr.mxu0 0.0
    %4141 = vmatpush2.msra.mxu0 0.0
    %4142 = vmatprep.mubr.f32.mxu0 0.0
    %4143 = vmatmul.mubr.f32.gmra.mxu0 %v4053
    %v4144 = vpop.f32.mrf.mxu0
    %v4145 = vadd.f32 0.0, %v4144
    %v4146 = vpop.f32.mrf.mxu0
    %4147 = vmatprep.mubr.f32.mxu0 0.0
    %4148 = vmatmul.mubr.f32.gmra.mxu0 %v4058
    %v4149 = vpop.f32.mrf.mxu0
    %v4150 = vadd.f32 0.0, %v4149
    %v4151 = vpop.f32.mrf.mxu0
    %4152 = vdwg.mxu0
    %v4153 = vadd.f32 %v3975, %v4145
    %v4154 = vadd.f32 %v3976, %v4150
    %s4155 = scalar_lea.vmem %s9, 1
    %v4156 = vld [vmem:[%s4155] sm:$0x1]
    %v4158 = vlaneseq
    %v4159 = vshrl.u32 %v4158, 7
    %v4160 = vsub.s32 0, %v4159
    %v4161 = vrot.slane %v4156, %v4160
    %v4163 = vadd.f32 %v4153, %v4161
    %v4164 = vadd.f32 %v4154, %v4161
    %v4165 = vmul.f32 %v4163, 0.2
    %v4166 = vmul.f32 %v4164, 0.2
    %v4167 = vmax.f32 %v4163, %v4165
    %v4168 = vmax.f32 %v4164, %v4166
    %s4169 = scalar_lea.vmem %s10, 1
    %v4170 = vld [vmem:[%s4169] sm:$0x1]
    %v4172 = vlaneseq
    %v4173 = vshrl.u32 %v4172, 7
    %v4174 = vsub.s32 0, %v4173
    %v4175 = vrot.slane %v4170, %v4174
    %v4177 = vmul.f32 %v4167, %v4175
    %v4178 = vmul.f32 %v4168, %v4175
    %s4179 = scalar_lea.vmem %s11, 1
    %v4180 = vld [vmem:[%s4179] sm:$0x1]
    %v4182 = vlaneseq
    %v4183 = vshrl.u32 %v4182, 7
    %v4184 = vsub.s32 0, %v4183
    %v4185 = vrot.slane %v4180, %v4184
    %v4187 = vadd.f32 %v4177, %v4185
    %v4188 = vadd.f32 %v4178, %v4185
    %v4189 = vld [vmem:[%s3] sm:$0xf]
    %vm4190 = vcmask 130048
    %v4192 = vsel %vm4190, %v4189, 0
    %4194 = vmatprep.subr.mxu0 0.0
    %4195 = vmatpush1.msra.mxu0 0.0
    %4196 = vmatprep.subr.mxu0 0.0
    %4197 = vmatpush1.msra.mxu0 0.0
    %4198 = vmatprep.subr.mxu0 0.0
    %4199 = vmatpush1.msra.mxu0 0.0
    %4200 = vmatprep.subr.mxu0 0.0
    %4201 = vmatpush1.msra.mxu0 0.0
    %4202 = vmatprep.subr.mxu0 0.0
    %4203 = vmatpush1.msra.mxu0 0.0
    %4204 = vmatprep.subr.mxu0 0.0
    %4205 = vmatpush1.msra.mxu0 0.0
    %4206 = vmatprep.subr.mxu0 0.0
    %4207 = vmatpush1.msra.mxu0 0.0
    %4208 = vmatprep.subr.mxu0 0.0
    %4209 = vmatpush1.msra.mxu0 0.0
    %4210 = vmatprep.subr.mxu0 0.0
    %4211 = vmatpush1.msra.mxu0 0.0
    %4212 = vmatprep.subr.mxu0 0.0
    %4213 = vmatpush1.msra.mxu0 0.0
    %4214 = vmatprep.subr.mxu0 0.0
    %4215 = vmatpush1.msra.mxu0 0.0
    %4216 = vmatprep.subr.mxu0 0.0
    %4217 = vmatpush1.msra.mxu0 0.0
    %4218 = vmatprep.subr.mxu0 0.0
    %4219 = vmatpush1.msra.mxu0 0.0
    %4220 = vmatprep.subr.mxu0 0.0
    %4221 = vmatpush1.msra.mxu0 0.0
    %4222 = vmatprep.subr.mxu0 0.0
    %4223 = vmatpush1.msra.mxu0 %v4188
    %4224 = vmatprep.subr.mxu0 0.0
    %4225 = vmatpush1.msra.mxu0 %v4187
    %4226 = vmatprep.subr.mxu0 0.0
    %4227 = vmatpush2.msra.mxu0 0.0
    %4228 = vmatprep.subr.mxu0 0.0
    %4229 = vmatpush2.msra.mxu0 0.0
    %4230 = vmatprep.subr.mxu0 0.0
    %4231 = vmatpush2.msra.mxu0 0.0
    %4232 = vmatprep.subr.mxu0 0.0
    %4233 = vmatpush2.msra.mxu0 0.0
    %4234 = vmatprep.subr.mxu0 0.0
    %4235 = vmatpush2.msra.mxu0 0.0
    %4236 = vmatprep.subr.mxu0 0.0
    %4237 = vmatpush2.msra.mxu0 0.0
    %4238 = vmatprep.subr.mxu0 0.0
    %4239 = vmatpush2.msra.mxu0 0.0
    %4240 = vmatprep.subr.mxu0 0.0
    %4241 = vmatpush2.msra.mxu0 0.0
    %4242 = vmatprep.subr.mxu0 0.0
    %4243 = vmatpush2.msra.mxu0 0.0
    %4244 = vmatprep.subr.mxu0 0.0
    %4245 = vmatpush2.msra.mxu0 0.0
    %4246 = vmatprep.subr.mxu0 0.0
    %4247 = vmatpush2.msra.mxu0 0.0
    %4248 = vmatprep.subr.mxu0 0.0
    %4249 = vmatpush2.msra.mxu0 0.0
    %4250 = vmatprep.subr.mxu0 0.0
    %4251 = vmatpush2.msra.mxu0 0.0
    %4252 = vmatprep.subr.mxu0 0.0
    %4253 = vmatpush2.msra.mxu0 0.0
    %4254 = vmatprep.subr.mxu0 0.0
    %4255 = vmatpush2.msra.mxu0 0.0
    %4256 = vmatprep.subr.mxu0 0.0
    %4257 = vmatpush2.msra.mxu0 0.0
    %4258 = vmatprep.mubr.f32.mxu0 0.0
    %4259 = vmatmul.mubr.f32.gmra.mxu0 %v4192
    %v4260 = vpop.f32.mrf.mxu0
    %v4261 = vadd.f32 0.0, %v4260
    %v4262 = vpop.f32.mrf.mxu0
    %4263 = vdwg.mxu0
    %v4264 = vld [vmem:[#allocation8] sm:$0xff]
    %v4265 = vld [vmem:[#allocation8 + $0x8] sm:$0xff]
    %v4266 = vld [vmem:[#allocation8 + $0x10] sm:$0xff]
    %v4267 = vld [vmem:[#allocation8 + $0x18] sm:$0xff]
    %v4268 = vld [vmem:[#allocation8 + $0x20] sm:$0xff]
    %v4269 = vld [vmem:[#allocation8 + $0x28] sm:$0xff]
    %v4270 = vld [vmem:[#allocation8 + $0x30] sm:$0xff]
    %v4271 = vld [vmem:[#allocation8 + $0x38] sm:$0xff]
    %v4272 = vld [vmem:[#allocation8 + $0x40] sm:$0xff]
    %v4273 = vld [vmem:[#allocation8 + $0x48] sm:$0xff]
    %v4274 = vld [vmem:[#allocation8 + $0x50] sm:$0xff]
    %v4275 = vld [vmem:[#allocation8 + $0x58] sm:$0xff]
    %v4276 = vld [vmem:[#allocation8 + $0x60] sm:$0xff]
    %v4277 = vld [vmem:[#allocation8 + $0x68] sm:$0xff]
    %v4278 = vld [vmem:[#allocation8 + $0x70] sm:$0xff]
    %v4279 = vld [vmem:[#allocation8 + $0x78] sm:$0xff]
    %s4280 = scalar_lea.vmem %s3, 4
    %v4281 = vld [vmem:[%s4280] sm:$0xf]
    %v4283 = vsel %vm4190, %v4281, 0
    %4285 = vmatprep.subr.mxu0 0.0
    %4286 = vmatpush1.msra.mxu0 0.0
    %4287 = vmatprep.subr.mxu0 0.0
    %4288 = vmatpush1.msra.mxu0 0.0
    %4289 = vmatprep.subr.mxu0 0.0
    %4290 = vmatpush1.msra.mxu0 0.0
    %4291 = vmatprep.subr.mxu0 0.0
    %4292 = vmatpush1.msra.mxu0 0.0
    %4293 = vmatprep.subr.mxu0 0.0
    %4294 = vmatpush1.msra.mxu0 0.0
    %4295 = vmatprep.subr.mxu0 0.0
    %4296 = vmatpush1.msra.mxu0 0.0
    %4297 = vmatprep.subr.mxu0 0.0
    %4298 = vmatpush1.msra.mxu0 0.0
    %4299 = vmatprep.subr.mxu0 0.0
    %4300 = vmatpush1.msra.mxu0 0.0
    %4301 = vmatprep.subr.mxu0 0.0
    %4302 = vmatpush1.msra.mxu0 0.0
    %4303 = vmatprep.subr.mxu0 0.0
    %4304 = vmatpush1.msra.mxu0 0.0
    %4305 = vmatprep.subr.mxu0 0.0
    %4306 = vmatpush1.msra.mxu0 0.0
    %4307 = vmatprep.subr.mxu0 0.0
    %4308 = vmatpush1.msra.mxu0 0.0
    %4309 = vmatprep.subr.mxu0 0.0
    %4310 = vmatpush1.msra.mxu0 0.0
    %4311 = vmatprep.subr.mxu0 0.0
    %4312 = vmatpush1.msra.mxu0 0.0
    %4313 = vmatprep.subr.mxu0 0.0
    %4314 = vmatpush1.msra.mxu0 %v4188
    %4315 = vmatprep.subr.mxu0 0.0
    %4316 = vmatpush1.msra.mxu0 %v4187
    %4317 = vmatprep.subr.mxu0 0.0
    %4318 = vmatpush2.msra.mxu0 0.0
    %4319 = vmatprep.subr.mxu0 0.0
    %4320 = vmatpush2.msra.mxu0 0.0
    %4321 = vmatprep.subr.mxu0 0.0
    %4322 = vmatpush2.msra.mxu0 0.0
    %4323 = vmatprep.subr.mxu0 0.0
    %4324 = vmatpush2.msra.mxu0 0.0
    %4325 = vmatprep.subr.mxu0 0.0
    %4326 = vmatpush2.msra.mxu0 0.0
    %4327 = vmatprep.subr.mxu0 0.0
    %4328 = vmatpush2.msra.mxu0 0.0
    %4329 = vmatprep.subr.mxu0 0.0
    %4330 = vmatpush2.msra.mxu0 0.0
    %4331 = vmatprep.subr.mxu0 0.0
    %4332 = vmatpush2.msra.mxu0 0.0
    %4333 = vmatprep.subr.mxu0 0.0
    %4334 = vmatpush2.msra.mxu0 0.0
    %4335 = vmatprep.subr.mxu0 0.0
    %4336 = vmatpush2.msra.mxu0 0.0
    %4337 = vmatprep.subr.mxu0 0.0
    %4338 = vmatpush2.msra.mxu0 0.0
    %4339 = vmatprep.subr.mxu0 0.0
    %4340 = vmatpush2.msra.mxu0 0.0
    %4341 = vmatprep.subr.mxu0 0.0
    %4342 = vmatpush2.msra.mxu0 0.0
    %4343 = vmatprep.subr.mxu0 0.0
    %4344 = vmatpush2.msra.mxu0 0.0
    %4345 = vmatprep.subr.mxu0 0.0
    %4346 = vmatpush2.msra.mxu0 0.0
    %4347 = vmatprep.subr.mxu0 0.0
    %4348 = vmatpush2.msra.mxu0 0.0
    %4349 = vmatprep.mubr.f32.mxu0 0.0
    %4350 = vmatmul.mubr.f32.gmra.mxu0 %v4283
    %v4351 = vpop.f32.mrf.mxu0
    %v4352 = vadd.f32 0.0, %v4351
    %v4353 = vpop.f32.mrf.mxu0
    %4354 = vdwg.mxu0
    %s4355 = scalar_lea.vmem [#allocation8], 128
    %v4356 = vld [vmem:[%s4355] sm:$0xff]
    %v4357 = vld [vmem:[%s4355 + $0x8] sm:$0xff]
    %v4358 = vld [vmem:[%s4355 + $0x10] sm:$0xff]
    %v4359 = vld [vmem:[%s4355 + $0x18] sm:$0xff]
    %v4360 = vld [vmem:[%s4355 + $0x20] sm:$0xff]
    %v4361 = vld [vmem:[%s4355 + $0x28] sm:$0xff]
    %v4362 = vld [vmem:[%s4355 + $0x30] sm:$0xff]
    %v4363 = vld [vmem:[%s4355 + $0x38] sm:$0xff]
    %v4364 = vld [vmem:[%s4355 + $0x40] sm:$0xff]
    %v4365 = vld [vmem:[%s4355 + $0x48] sm:$0xff]
    %v4366 = vld [vmem:[%s4355 + $0x50] sm:$0xff]
    %v4367 = vld [vmem:[%s4355 + $0x58] sm:$0xff]
    %v4368 = vld [vmem:[%s4355 + $0x60] sm:$0xff]
    %v4369 = vld [vmem:[%s4355 + $0x68] sm:$0xff]
    %v4370 = vld [vmem:[%s4355 + $0x70] sm:$0xff]
    %v4371 = vld [vmem:[%s4355 + $0x78] sm:$0xff]
    %4372 = vmatprep.subr.mxu0 0.0
    %4373 = vmatpush1.msra.mxu0 %v4371
    %4374 = vmatprep.subr.mxu0 0.0
    %4375 = vmatpush1.msra.mxu0 %v4370
    %4376 = vmatprep.subr.mxu0 0.0
    %4377 = vmatpush1.msra.mxu0 %v4369
    %4378 = vmatprep.subr.mxu0 0.0
    %4379 = vmatpush1.msra.mxu0 %v4368
    %4380 = vmatprep.subr.mxu0 0.0
    %4381 = vmatpush1.msra.mxu0 %v4367
    %4382 = vmatprep.subr.mxu0 0.0
    %4383 = vmatpush1.msra.mxu0 %v4366
    %4384 = vmatprep.subr.mxu0 0.0
    %4385 = vmatpush1.msra.mxu0 %v4365
    %4386 = vmatprep.subr.mxu0 0.0
    %4387 = vmatpush1.msra.mxu0 %v4364
    %4388 = vmatprep.subr.mxu0 0.0
    %4389 = vmatpush1.msra.mxu0 %v4363
    %4390 = vmatprep.subr.mxu0 0.0
    %4391 = vmatpush1.msra.mxu0 %v4362
    %4392 = vmatprep.subr.mxu0 0.0
    %4393 = vmatpush1.msra.mxu0 %v4361
    %4394 = vmatprep.subr.mxu0 0.0
    %4395 = vmatpush1.msra.mxu0 %v4360
    %4396 = vmatprep.subr.mxu0 0.0
    %4397 = vmatpush1.msra.mxu0 %v4359
    %4398 = vmatprep.subr.mxu0 0.0
    %4399 = vmatpush1.msra.mxu0 %v4358
    %4400 = vmatprep.subr.mxu0 0.0
    %4401 = vmatpush1.msra.mxu0 %v4357
    %4402 = vmatprep.subr.mxu0 0.0
    %4403 = vmatpush1.msra.mxu0 %v4356
    %4404 = vmatprep.subr.mxu0 0.0
    %4405 = vmatpush2.msra.mxu0 0.0
    %4406 = vmatprep.subr.mxu0 0.0
    %4407 = vmatpush2.msra.mxu0 0.0
    %4408 = vmatprep.subr.mxu0 0.0
    %4409 = vmatpush2.msra.mxu0 0.0
    %4410 = vmatprep.subr.mxu0 0.0
    %4411 = vmatpush2.msra.mxu0 0.0
    %4412 = vmatprep.subr.mxu0 0.0
    %4413 = vmatpush2.msra.mxu0 0.0
    %4414 = vmatprep.subr.mxu0 0.0
    %4415 = vmatpush2.msra.mxu0 0.0
    %4416 = vmatprep.subr.mxu0 0.0
    %4417 = vmatpush2.msra.mxu0 0.0
    %4418 = vmatprep.subr.mxu0 0.0
    %4419 = vmatpush2.msra.mxu0 0.0
    %4420 = vmatprep.subr.mxu0 0.0
    %4421 = vmatpush2.msra.mxu0 0.0
    %4422 = vmatprep.subr.mxu0 0.0
    %4423 = vmatpush2.msra.mxu0 0.0
    %4424 = vmatprep.subr.mxu0 0.0
    %4425 = vmatpush2.msra.mxu0 0.0
    %4426 = vmatprep.subr.mxu0 0.0
    %4427 = vmatpush2.msra.mxu0 0.0
    %4428 = vmatprep.subr.mxu0 0.0
    %4429 = vmatpush2.msra.mxu0 0.0
    %4430 = vmatprep.subr.mxu0 0.0
    %4431 = vmatpush2.msra.mxu0 0.0
    %4432 = vmatprep.subr.mxu0 0.0
    %4433 = vmatpush2.msra.mxu0 0.0
    %4434 = vmatprep.subr.mxu0 0.0
    %4435 = vmatpush2.msra.mxu0 0.0
    %4436 = vmatprep.mubr.f32.mxu0 0.0
    %4437 = vmatmul.mubr.f32.gmra.mxu0 %v4352
    %v4438 = vpop.f32.mrf.mxu0
    %v4439 = vadd.f32 0.0, %v4438
    %v4440 = vpop.f32.mrf.mxu0
    %4441 = vdwg.mxu0
    %4442 = vmatprep.subr.mxu0 0.0
    %4443 = vmatpush1.msra.mxu0 %v4279
    %4444 = vmatprep.subr.mxu0 0.0
    %4445 = vmatpush1.msra.mxu0 %v4278
    %4446 = vmatprep.subr.mxu0 0.0
    %4447 = vmatpush1.msra.mxu0 %v4277
    %4448 = vmatprep.subr.mxu0 0.0
    %4449 = vmatpush1.msra.mxu0 %v4276
    %4450 = vmatprep.subr.mxu0 0.0
    %4451 = vmatpush1.msra.mxu0 %v4275
    %4452 = vmatprep.subr.mxu0 0.0
    %4453 = vmatpush1.msra.mxu0 %v4274
    %4454 = vmatprep.subr.mxu0 0.0
    %4455 = vmatpush1.msra.mxu0 %v4273
    %4456 = vmatprep.subr.mxu0 0.0
    %4457 = vmatpush1.msra.mxu0 %v4272
    %4458 = vmatprep.subr.mxu0 0.0
    %4459 = vmatpush1.msra.mxu0 %v4271
    %4460 = vmatprep.subr.mxu0 0.0
    %4461 = vmatpush1.msra.mxu0 %v4270
    %4462 = vmatprep.subr.mxu0 0.0
    %4463 = vmatpush1.msra.mxu0 %v4269
    %4464 = vmatprep.subr.mxu0 0.0
    %4465 = vmatpush1.msra.mxu0 %v4268
    %4466 = vmatprep.subr.mxu0 0.0
    %4467 = vmatpush1.msra.mxu0 %v4267
    %4468 = vmatprep.subr.mxu0 0.0
    %4469 = vmatpush1.msra.mxu0 %v4266
    %4470 = vmatprep.subr.mxu0 0.0
    %4471 = vmatpush1.msra.mxu0 %v4265
    %4472 = vmatprep.subr.mxu0 0.0
    %4473 = vmatpush1.msra.mxu0 %v4264
    %4474 = vmatprep.subr.mxu0 0.0
    %4475 = vmatpush2.msra.mxu0 0.0
    %4476 = vmatprep.subr.mxu0 0.0
    %4477 = vmatpush2.msra.mxu0 0.0
    %4478 = vmatprep.subr.mxu0 0.0
    %4479 = vmatpush2.msra.mxu0 0.0
    %4480 = vmatprep.subr.mxu0 0.0
    %4481 = vmatpush2.msra.mxu0 0.0
    %4482 = vmatprep.subr.mxu0 0.0
    %4483 = vmatpush2.msra.mxu0 0.0
    %4484 = vmatprep.subr.mxu0 0.0
    %4485 = vmatpush2.msra.mxu0 0.0
    %4486 = vmatprep.subr.mxu0 0.0
    %4487 = vmatpush2.msra.mxu0 0.0
    %4488 = vmatprep.subr.mxu0 0.0
    %4489 = vmatpush2.msra.mxu0 0.0
    %4490 = vmatprep.subr.mxu0 0.0
    %4491 = vmatpush2.msra.mxu0 0.0
    %4492 = vmatprep.subr.mxu0 0.0
    %4493 = vmatpush2.msra.mxu0 0.0
    %4494 = vmatprep.subr.mxu0 0.0
    %4495 = vmatpush2.msra.mxu0 0.0
    %4496 = vmatprep.subr.mxu0 0.0
    %4497 = vmatpush2.msra.mxu0 0.0
    %4498 = vmatprep.subr.mxu0 0.0
    %4499 = vmatpush2.msra.mxu0 0.0
    %4500 = vmatprep.subr.mxu0 0.0
    %4501 = vmatpush2.msra.mxu0 0.0
    %4502 = vmatprep.subr.mxu0 0.0
    %4503 = vmatpush2.msra.mxu0 0.0
    %4504 = vmatprep.subr.mxu0 0.0
    %4505 = vmatpush2.msra.mxu0 0.0
    %4506 = vmatprep.mubr.f32.mxu0 0.0
    %4507 = vmatmul.mubr.f32.gmra.mxu0 %v4261
    %v4508 = vpop.f32.mrf.mxu0
    %v4509 = vadd.f32 %v4439, %v4508
    %v4510 = vpop.f32.mrf.mxu0
    %4511 = vdwg.mxu0
    %s4512 = scalar_lea.vmem %s3, 8
    %v4513 = vld [vmem:[%s4512] sm:$0xf]
    %v4515 = vsel %vm4190, %v4513, 0
    %4517 = vmatprep.subr.mxu0 0.0
    %4518 = vmatpush1.msra.mxu0 0.0
    %4519 = vmatprep.subr.mxu0 0.0
    %4520 = vmatpush1.msra.mxu0 0.0
    %4521 = vmatprep.subr.mxu0 0.0
    %4522 = vmatpush1.msra.mxu0 0.0
    %4523 = vmatprep.subr.mxu0 0.0
    %4524 = vmatpush1.msra.mxu0 0.0
    %4525 = vmatprep.subr.mxu0 0.0
    %4526 = vmatpush1.msra.mxu0 0.0
    %4527 = vmatprep.subr.mxu0 0.0
    %4528 = vmatpush1.msra.mxu0 0.0
    %4529 = vmatprep.subr.mxu0 0.0
    %4530 = vmatpush1.msra.mxu0 0.0
    %4531 = vmatprep.subr.mxu0 0.0
    %4532 = vmatpush1.msra.mxu0 0.0
    %4533 = vmatprep.subr.mxu0 0.0
    %4534 = vmatpush1.msra.mxu0 0.0
    %4535 = vmatprep.subr.mxu0 0.0
    %4536 = vmatpush1.msra.mxu0 0.0
    %4537 = vmatprep.subr.mxu0 0.0
    %4538 = vmatpush1.msra.mxu0 0.0
    %4539 = vmatprep.subr.mxu0 0.0
    %4540 = vmatpush1.msra.mxu0 0.0
    %4541 = vmatprep.subr.mxu0 0.0
    %4542 = vmatpush1.msra.mxu0 0.0
    %4543 = vmatprep.subr.mxu0 0.0
    %4544 = vmatpush1.msra.mxu0 0.0
    %4545 = vmatprep.subr.mxu0 0.0
    %4546 = vmatpush1.msra.mxu0 %v4188
    %4547 = vmatprep.subr.mxu0 0.0
    %4548 = vmatpush1.msra.mxu0 %v4187
    %4549 = vmatprep.subr.mxu0 0.0
    %4550 = vmatpush2.msra.mxu0 0.0
    %4551 = vmatprep.subr.mxu0 0.0
    %4552 = vmatpush2.msra.mxu0 0.0
    %4553 = vmatprep.subr.mxu0 0.0
    %4554 = vmatpush2.msra.mxu0 0.0
    %4555 = vmatprep.subr.mxu0 0.0
    %4556 = vmatpush2.msra.mxu0 0.0
    %4557 = vmatprep.subr.mxu0 0.0
    %4558 = vmatpush2.msra.mxu0 0.0
    %4559 = vmatprep.subr.mxu0 0.0
    %4560 = vmatpush2.msra.mxu0 0.0
    %4561 = vmatprep.subr.mxu0 0.0
    %4562 = vmatpush2.msra.mxu0 0.0
    %4563 = vmatprep.subr.mxu0 0.0
    %4564 = vmatpush2.msra.mxu0 0.0
    %4565 = vmatprep.subr.mxu0 0.0
    %4566 = vmatpush2.msra.mxu0 0.0
    %4567 = vmatprep.subr.mxu0 0.0
    %4568 = vmatpush2.msra.mxu0 0.0
    %4569 = vmatprep.subr.mxu0 0.0
    %4570 = vmatpush2.msra.mxu0 0.0
    %4571 = vmatprep.subr.mxu0 0.0
    %4572 = vmatpush2.msra.mxu0 0.0
    %4573 = vmatprep.subr.mxu0 0.0
    %4574 = vmatpush2.msra.mxu0 0.0
    %4575 = vmatprep.subr.mxu0 0.0
    %4576 = vmatpush2.msra.mxu0 0.0
    %4577 = vmatprep.subr.mxu0 0.0
    %4578 = vmatpush2.msra.mxu0 0.0
    %4579 = vmatprep.subr.mxu0 0.0
    %4580 = vmatpush2.msra.mxu0 0.0
    %4581 = vmatprep.mubr.f32.mxu0 0.0
    %4582 = vmatmul.mubr.f32.gmra.mxu0 %v4515
    %v4583 = vpop.f32.mrf.mxu0
    %v4584 = vadd.f32 0.0, %v4583
    %v4585 = vpop.f32.mrf.mxu0
    %4586 = vdwg.mxu0
    %s4587 = scalar_lea.vmem [#allocation8], 256
    %v4588 = vld [vmem:[%s4587] sm:$0xff]
    %v4589 = vld [vmem:[%s4587 + $0x8] sm:$0xff]
    %v4590 = vld [vmem:[%s4587 + $0x10] sm:$0xff]
    %v4591 = vld [vmem:[%s4587 + $0x18] sm:$0xff]
    %v4592 = vld [vmem:[%s4587 + $0x20] sm:$0xff]
    %v4593 = vld [vmem:[%s4587 + $0x28] sm:$0xff]
    %v4594 = vld [vmem:[%s4587 + $0x30] sm:$0xff]
    %v4595 = vld [vmem:[%s4587 + $0x38] sm:$0xff]
    %v4596 = vld [vmem:[%s4587 + $0x40] sm:$0xff]
    %v4597 = vld [vmem:[%s4587 + $0x48] sm:$0xff]
    %v4598 = vld [vmem:[%s4587 + $0x50] sm:$0xff]
    %v4599 = vld [vmem:[%s4587 + $0x58] sm:$0xff]
    %v4600 = vld [vmem:[%s4587 + $0x60] sm:$0xff]
    %v4601 = vld [vmem:[%s4587 + $0x68] sm:$0xff]
    %v4602 = vld [vmem:[%s4587 + $0x70] sm:$0xff]
    %v4603 = vld [vmem:[%s4587 + $0x78] sm:$0xff]
    %4604 = vmatprep.subr.mxu0 0.0
    %4605 = vmatpush1.msra.mxu0 %v4603
    %4606 = vmatprep.subr.mxu0 0.0
    %4607 = vmatpush1.msra.mxu0 %v4602
    %4608 = vmatprep.subr.mxu0 0.0
    %4609 = vmatpush1.msra.mxu0 %v4601
    %4610 = vmatprep.subr.mxu0 0.0
    %4611 = vmatpush1.msra.mxu0 %v4600
    %4612 = vmatprep.subr.mxu0 0.0
    %4613 = vmatpush1.msra.mxu0 %v4599
    %4614 = vmatprep.subr.mxu0 0.0
    %4615 = vmatpush1.msra.mxu0 %v4598
    %4616 = vmatprep.subr.mxu0 0.0
    %4617 = vmatpush1.msra.mxu0 %v4597
    %4618 = vmatprep.subr.mxu0 0.0
    %4619 = vmatpush1.msra.mxu0 %v4596
    %4620 = vmatprep.subr.mxu0 0.0
    %4621 = vmatpush1.msra.mxu0 %v4595
    %4622 = vmatprep.subr.mxu0 0.0
    %4623 = vmatpush1.msra.mxu0 %v4594
    %4624 = vmatprep.subr.mxu0 0.0
    %4625 = vmatpush1.msra.mxu0 %v4593
    %4626 = vmatprep.subr.mxu0 0.0
    %4627 = vmatpush1.msra.mxu0 %v4592
    %4628 = vmatprep.subr.mxu0 0.0
    %4629 = vmatpush1.msra.mxu0 %v4591
    %4630 = vmatprep.subr.mxu0 0.0
    %4631 = vmatpush1.msra.mxu0 %v4590
    %4632 = vmatprep.subr.mxu0 0.0
    %4633 = vmatpush1.msra.mxu0 %v4589
    %4634 = vmatprep.subr.mxu0 0.0
    %4635 = vmatpush1.msra.mxu0 %v4588
    %4636 = vmatprep.subr.mxu0 0.0
    %4637 = vmatpush2.msra.mxu0 0.0
    %4638 = vmatprep.subr.mxu0 0.0
    %4639 = vmatpush2.msra.mxu0 0.0
    %4640 = vmatprep.subr.mxu0 0.0
    %4641 = vmatpush2.msra.mxu0 0.0
    %4642 = vmatprep.subr.mxu0 0.0
    %4643 = vmatpush2.msra.mxu0 0.0
    %4644 = vmatprep.subr.mxu0 0.0
    %4645 = vmatpush2.msra.mxu0 0.0
    %4646 = vmatprep.subr.mxu0 0.0
    %4647 = vmatpush2.msra.mxu0 0.0
    %4648 = vmatprep.subr.mxu0 0.0
    %4649 = vmatpush2.msra.mxu0 0.0
    %4650 = vmatprep.subr.mxu0 0.0
    %4651 = vmatpush2.msra.mxu0 0.0
    %4652 = vmatprep.subr.mxu0 0.0
    %4653 = vmatpush2.msra.mxu0 0.0
    %4654 = vmatprep.subr.mxu0 0.0
    %4655 = vmatpush2.msra.mxu0 0.0
    %4656 = vmatprep.subr.mxu0 0.0
    %4657 = vmatpush2.msra.mxu0 0.0
    %4658 = vmatprep.subr.mxu0 0.0
    %4659 = vmatpush2.msra.mxu0 0.0
    %4660 = vmatprep.subr.mxu0 0.0
    %4661 = vmatpush2.msra.mxu0 0.0
    %4662 = vmatprep.subr.mxu0 0.0
    %4663 = vmatpush2.msra.mxu0 0.0
    %4664 = vmatprep.subr.mxu0 0.0
    %4665 = vmatpush2.msra.mxu0 0.0
    %4666 = vmatprep.subr.mxu0 0.0
    %4667 = vmatpush2.msra.mxu0 0.0
    %4668 = vmatprep.mubr.f32.mxu0 0.0
    %4669 = vmatmul.mubr.f32.gmra.mxu0 %v4584
    %v4670 = vpop.f32.mrf.mxu0
    %v4671 = vadd.f32 0.0, %v4670
    %v4672 = vpop.f32.mrf.mxu0
    %4673 = vdwg.mxu0
    %v4674 = vadd.f32 %v4509, %v4671
    %s4675 = scalar_lea.vmem %s3, 12
    %v4676 = vld [vmem:[%s4675] sm:$0xf]
    %v4678 = vsel %vm4190, %v4676, 0
    %4680 = vmatprep.subr.mxu0 0.0
    %4681 = vmatpush1.msra.mxu0 0.0
    %4682 = vmatprep.subr.mxu0 0.0
    %4683 = vmatpush1.msra.mxu0 0.0
    %4684 = vmatprep.subr.mxu0 0.0
    %4685 = vmatpush1.msra.mxu0 0.0
    %4686 = vmatprep.subr.mxu0 0.0
    %4687 = vmatpush1.msra.mxu0 0.0
    %4688 = vmatprep.subr.mxu0 0.0
    %4689 = vmatpush1.msra.mxu0 0.0
    %4690 = vmatprep.subr.mxu0 0.0
    %4691 = vmatpush1.msra.mxu0 0.0
    %4692 = vmatprep.subr.mxu0 0.0
    %4693 = vmatpush1.msra.mxu0 0.0
    %4694 = vmatprep.subr.mxu0 0.0
    %4695 = vmatpush1.msra.mxu0 0.0
    %4696 = vmatprep.subr.mxu0 0.0
    %4697 = vmatpush1.msra.mxu0 0.0
    %4698 = vmatprep.subr.mxu0 0.0
    %4699 = vmatpush1.msra.mxu0 0.0
    %4700 = vmatprep.subr.mxu0 0.0
    %4701 = vmatpush1.msra.mxu0 0.0
    %4702 = vmatprep.subr.mxu0 0.0
    %4703 = vmatpush1.msra.mxu0 0.0
    %4704 = vmatprep.subr.mxu0 0.0
    %4705 = vmatpush1.msra.mxu0 0.0
    %4706 = vmatprep.subr.mxu0 0.0
    %4707 = vmatpush1.msra.mxu0 0.0
    %4708 = vmatprep.subr.mxu0 0.0
    %4709 = vmatpush1.msra.mxu0 %v4188
    %4710 = vmatprep.subr.mxu0 0.0
    %4711 = vmatpush1.msra.mxu0 %v4187
    %4712 = vmatprep.subr.mxu0 0.0
    %4713 = vmatpush2.msra.mxu0 0.0
    %4714 = vmatprep.subr.mxu0 0.0
    %4715 = vmatpush2.msra.mxu0 0.0
    %4716 = vmatprep.subr.mxu0 0.0
    %4717 = vmatpush2.msra.mxu0 0.0
    %4718 = vmatprep.subr.mxu0 0.0
    %4719 = vmatpush2.msra.mxu0 0.0
    %4720 = vmatprep.subr.mxu0 0.0
    %4721 = vmatpush2.msra.mxu0 0.0
    %4722 = vmatprep.subr.mxu0 0.0
    %4723 = vmatpush2.msra.mxu0 0.0
    %4724 = vmatprep.subr.mxu0 0.0
    %4725 = vmatpush2.msra.mxu0 0.0
    %4726 = vmatprep.subr.mxu0 0.0
    %4727 = vmatpush2.msra.mxu0 0.0
    %4728 = vmatprep.subr.mxu0 0.0
    %4729 = vmatpush2.msra.mxu0 0.0
    %4730 = vmatprep.subr.mxu0 0.0
    %4731 = vmatpush2.msra.mxu0 0.0
    %4732 = vmatprep.subr.mxu0 0.0
    %4733 = vmatpush2.msra.mxu0 0.0
    %4734 = vmatprep.subr.mxu0 0.0
    %4735 = vmatpush2.msra.mxu0 0.0
    %4736 = vmatprep.subr.mxu0 0.0
    %4737 = vmatpush2.msra.mxu0 0.0
    %4738 = vmatprep.subr.mxu0 0.0
    %4739 = vmatpush2.msra.mxu0 0.0
    %4740 = vmatprep.subr.mxu0 0.0
    %4741 = vmatpush2.msra.mxu0 0.0
    %4742 = vmatprep.subr.mxu0 0.0
    %4743 = vmatpush2.msra.mxu0 0.0
    %4744 = vmatprep.mubr.f32.mxu0 0.0
    %4745 = vmatmul.mubr.f32.gmra.mxu0 %v4678
    %v4746 = vpop.f32.mrf.mxu0
    %v4747 = vadd.f32 0.0, %v4746
    %v4748 = vpop.f32.mrf.mxu0
    %4749 = vdwg.mxu0
    %s4750 = scalar_lea.vmem [#allocation8], 384
    %v4751 = vld [vmem:[%s4750] sm:$0xff]
    %v4752 = vld [vmem:[%s4750 + $0x8] sm:$0xff]
    %v4753 = vld [vmem:[%s4750 + $0x10] sm:$0xff]
    %v4754 = vld [vmem:[%s4750 + $0x18] sm:$0xff]
    %v4755 = vld [vmem:[%s4750 + $0x20] sm:$0xff]
    %v4756 = vld [vmem:[%s4750 + $0x28] sm:$0xff]
    %v4757 = vld [vmem:[%s4750 + $0x30] sm:$0xff]
    %v4758 = vld [vmem:[%s4750 + $0x38] sm:$0xff]
    %v4759 = vld [vmem:[%s4750 + $0x40] sm:$0xff]
    %v4760 = vld [vmem:[%s4750 + $0x48] sm:$0xff]
    %v4761 = vld [vmem:[%s4750 + $0x50] sm:$0xff]
    %v4762 = vld [vmem:[%s4750 + $0x58] sm:$0xff]
    %v4763 = vld [vmem:[%s4750 + $0x60] sm:$0xff]
    %v4764 = vld [vmem:[%s4750 + $0x68] sm:$0xff]
    %v4765 = vld [vmem:[%s4750 + $0x70] sm:$0xff]
    %v4766 = vld [vmem:[%s4750 + $0x78] sm:$0xff]
    %4767 = vmatprep.subr.mxu0 0.0
    %4768 = vmatpush1.msra.mxu0 %v4766
    %4769 = vmatprep.subr.mxu0 0.0
    %4770 = vmatpush1.msra.mxu0 %v4765
    %4771 = vmatprep.subr.mxu0 0.0
    %4772 = vmatpush1.msra.mxu0 %v4764
    %4773 = vmatprep.subr.mxu0 0.0
    %4774 = vmatpush1.msra.mxu0 %v4763
    %4775 = vmatprep.subr.mxu0 0.0
    %4776 = vmatpush1.msra.mxu0 %v4762
    %4777 = vmatprep.subr.mxu0 0.0
    %4778 = vmatpush1.msra.mxu0 %v4761
    %4779 = vmatprep.subr.mxu0 0.0
    %4780 = vmatpush1.msra.mxu0 %v4760
    %4781 = vmatprep.subr.mxu0 0.0
    %4782 = vmatpush1.msra.mxu0 %v4759
    %4783 = vmatprep.subr.mxu0 0.0
    %4784 = vmatpush1.msra.mxu0 %v4758
    %4785 = vmatprep.subr.mxu0 0.0
    %4786 = vmatpush1.msra.mxu0 %v4757
    %4787 = vmatprep.subr.mxu0 0.0
    %4788 = vmatpush1.msra.mxu0 %v4756
    %4789 = vmatprep.subr.mxu0 0.0
    %4790 = vmatpush1.msra.mxu0 %v4755
    %4791 = vmatprep.subr.mxu0 0.0
    %4792 = vmatpush1.msra.mxu0 %v4754
    %4793 = vmatprep.subr.mxu0 0.0
    %4794 = vmatpush1.msra.mxu0 %v4753
    %4795 = vmatprep.subr.mxu0 0.0
    %4796 = vmatpush1.msra.mxu0 %v4752
    %4797 = vmatprep.subr.mxu0 0.0
    %4798 = vmatpush1.msra.mxu0 %v4751
    %4799 = vmatprep.subr.mxu0 0.0
    %4800 = vmatpush2.msra.mxu0 0.0
    %4801 = vmatprep.subr.mxu0 0.0
    %4802 = vmatpush2.msra.mxu0 0.0
    %4803 = vmatprep.subr.mxu0 0.0
    %4804 = vmatpush2.msra.mxu0 0.0
    %4805 = vmatprep.subr.mxu0 0.0
    %4806 = vmatpush2.msra.mxu0 0.0
    %4807 = vmatprep.subr.mxu0 0.0
    %4808 = vmatpush2.msra.mxu0 0.0
    %4809 = vmatprep.subr.mxu0 0.0
    %4810 = vmatpush2.msra.mxu0 0.0
    %4811 = vmatprep.subr.mxu0 0.0
    %4812 = vmatpush2.msra.mxu0 0.0
    %4813 = vmatprep.subr.mxu0 0.0
    %4814 = vmatpush2.msra.mxu0 0.0
    %4815 = vmatprep.subr.mxu0 0.0
    %4816 = vmatpush2.msra.mxu0 0.0
    %4817 = vmatprep.subr.mxu0 0.0
    %4818 = vmatpush2.msra.mxu0 0.0
    %4819 = vmatprep.subr.mxu0 0.0
    %4820 = vmatpush2.msra.mxu0 0.0
    %4821 = vmatprep.subr.mxu0 0.0
    %4822 = vmatpush2.msra.mxu0 0.0
    %4823 = vmatprep.subr.mxu0 0.0
    %4824 = vmatpush2.msra.mxu0 0.0
    %4825 = vmatprep.subr.mxu0 0.0
    %4826 = vmatpush2.msra.mxu0 0.0
    %4827 = vmatprep.subr.mxu0 0.0
    %4828 = vmatpush2.msra.mxu0 0.0
    %4829 = vmatprep.subr.mxu0 0.0
    %4830 = vmatpush2.msra.mxu0 0.0
    %4831 = vmatprep.mubr.f32.mxu0 0.0
    %4832 = vmatmul.mubr.f32.gmra.mxu0 %v4747
    %v4833 = vpop.f32.mrf.mxu0
    %v4834 = vadd.f32 0.0, %v4833
    %v4835 = vpop.f32.mrf.mxu0
    %4836 = vdwg.mxu0
    %v4837 = vadd.f32 %v4674, %v4834
    %s4838 = scalar_lea.vmem %s3, 16
    %v4839 = vld [vmem:[%s4838] sm:$0xf]
    %v4841 = vsel %vm4190, %v4839, 0
    %4843 = vmatprep.subr.mxu0 0.0
    %4844 = vmatpush1.msra.mxu0 0.0
    %4845 = vmatprep.subr.mxu0 0.0
    %4846 = vmatpush1.msra.mxu0 0.0
    %4847 = vmatprep.subr.mxu0 0.0
    %4848 = vmatpush1.msra.mxu0 0.0
    %4849 = vmatprep.subr.mxu0 0.0
    %4850 = vmatpush1.msra.mxu0 0.0
    %4851 = vmatprep.subr.mxu0 0.0
    %4852 = vmatpush1.msra.mxu0 0.0
    %4853 = vmatprep.subr.mxu0 0.0
    %4854 = vmatpush1.msra.mxu0 0.0
    %4855 = vmatprep.subr.mxu0 0.0
    %4856 = vmatpush1.msra.mxu0 0.0
    %4857 = vmatprep.subr.mxu0 0.0
    %4858 = vmatpush1.msra.mxu0 0.0
    %4859 = vmatprep.subr.mxu0 0.0
    %4860 = vmatpush1.msra.mxu0 0.0
    %4861 = vmatprep.subr.mxu0 0.0
    %4862 = vmatpush1.msra.mxu0 0.0
    %4863 = vmatprep.subr.mxu0 0.0
    %4864 = vmatpush1.msra.mxu0 0.0
    %4865 = vmatprep.subr.mxu0 0.0
    %4866 = vmatpush1.msra.mxu0 0.0
    %4867 = vmatprep.subr.mxu0 0.0
    %4868 = vmatpush1.msra.mxu0 0.0
    %4869 = vmatprep.subr.mxu0 0.0
    %4870 = vmatpush1.msra.mxu0 0.0
    %4871 = vmatprep.subr.mxu0 0.0
    %4872 = vmatpush1.msra.mxu0 %v4188
    %4873 = vmatprep.subr.mxu0 0.0
    %4874 = vmatpush1.msra.mxu0 %v4187
    %4875 = vmatprep.subr.mxu0 0.0
    %4876 = vmatpush2.msra.mxu0 0.0
    %4877 = vmatprep.subr.mxu0 0.0
    %4878 = vmatpush2.msra.mxu0 0.0
    %4879 = vmatprep.subr.mxu0 0.0
    %4880 = vmatpush2.msra.mxu0 0.0
    %4881 = vmatprep.subr.mxu0 0.0
    %4882 = vmatpush2.msra.mxu0 0.0
    %4883 = vmatprep.subr.mxu0 0.0
    %4884 = vmatpush2.msra.mxu0 0.0
    %4885 = vmatprep.subr.mxu0 0.0
    %4886 = vmatpush2.msra.mxu0 0.0
    %4887 = vmatprep.subr.mxu0 0.0
    %4888 = vmatpush2.msra.mxu0 0.0
    %4889 = vmatprep.subr.mxu0 0.0
    %4890 = vmatpush2.msra.mxu0 0.0
    %4891 = vmatprep.subr.mxu0 0.0
    %4892 = vmatpush2.msra.mxu0 0.0
    %4893 = vmatprep.subr.mxu0 0.0
    %4894 = vmatpush2.msra.mxu0 0.0
    %4895 = vmatprep.subr.mxu0 0.0
    %4896 = vmatpush2.msra.mxu0 0.0
    %4897 = vmatprep.subr.mxu0 0.0
    %4898 = vmatpush2.msra.mxu0 0.0
    %4899 = vmatprep.subr.mxu0 0.0
    %4900 = vmatpush2.msra.mxu0 0.0
    %4901 = vmatprep.subr.mxu0 0.0
    %4902 = vmatpush2.msra.mxu0 0.0
    %4903 = vmatprep.subr.mxu0 0.0
    %4904 = vmatpush2.msra.mxu0 0.0
    %4905 = vmatprep.subr.mxu0 0.0
    %4906 = vmatpush2.msra.mxu0 0.0
    %4907 = vmatprep.mubr.f32.mxu0 0.0
    %4908 = vmatmul.mubr.f32.gmra.mxu0 %v4841
    %v4909 = vpop.f32.mrf.mxu0
    %v4910 = vadd.f32 0.0, %v4909
    %v4911 = vpop.f32.mrf.mxu0
    %4912 = vdwg.mxu0
    %s4913 = scalar_lea.vmem [#allocation8], 512
    %v4914 = vld [vmem:[%s4913] sm:$0xff]
    %v4915 = vld [vmem:[%s4913 + $0x8] sm:$0xff]
    %v4916 = vld [vmem:[%s4913 + $0x10] sm:$0xff]
    %v4917 = vld [vmem:[%s4913 + $0x18] sm:$0xff]
    %v4918 = vld [vmem:[%s4913 + $0x20] sm:$0xff]
    %v4919 = vld [vmem:[%s4913 + $0x28] sm:$0xff]
    %v4920 = vld [vmem:[%s4913 + $0x30] sm:$0xff]
    %v4921 = vld [vmem:[%s4913 + $0x38] sm:$0xff]
    %v4922 = vld [vmem:[%s4913 + $0x40] sm:$0xff]
    %v4923 = vld [vmem:[%s4913 + $0x48] sm:$0xff]
    %v4924 = vld [vmem:[%s4913 + $0x50] sm:$0xff]
    %v4925 = vld [vmem:[%s4913 + $0x58] sm:$0xff]
    %v4926 = vld [vmem:[%s4913 + $0x60] sm:$0xff]
    %v4927 = vld [vmem:[%s4913 + $0x68] sm:$0xff]
    %v4928 = vld [vmem:[%s4913 + $0x70] sm:$0xff]
    %v4929 = vld [vmem:[%s4913 + $0x78] sm:$0xff]
    %4930 = vmatprep.subr.mxu0 0.0
    %4931 = vmatpush1.msra.mxu0 %v4929
    %4932 = vmatprep.subr.mxu0 0.0
    %4933 = vmatpush1.msra.mxu0 %v4928
    %4934 = vmatprep.subr.mxu0 0.0
    %4935 = vmatpush1.msra.mxu0 %v4927
    %4936 = vmatprep.subr.mxu0 0.0
    %4937 = vmatpush1.msra.mxu0 %v4926
    %4938 = vmatprep.subr.mxu0 0.0
    %4939 = vmatpush1.msra.mxu0 %v4925
    %4940 = vmatprep.subr.mxu0 0.0
    %4941 = vmatpush1.msra.mxu0 %v4924
    %4942 = vmatprep.subr.mxu0 0.0
    %4943 = vmatpush1.msra.mxu0 %v4923
    %4944 = vmatprep.subr.mxu0 0.0
    %4945 = vmatpush1.msra.mxu0 %v4922
    %4946 = vmatprep.subr.mxu0 0.0
    %4947 = vmatpush1.msra.mxu0 %v4921
    %4948 = vmatprep.subr.mxu0 0.0
    %4949 = vmatpush1.msra.mxu0 %v4920
    %4950 = vmatprep.subr.mxu0 0.0
    %4951 = vmatpush1.msra.mxu0 %v4919
    %4952 = vmatprep.subr.mxu0 0.0
    %4953 = vmatpush1.msra.mxu0 %v4918
    %4954 = vmatprep.subr.mxu0 0.0
    %4955 = vmatpush1.msra.mxu0 %v4917
    %4956 = vmatprep.subr.mxu0 0.0
    %4957 = vmatpush1.msra.mxu0 %v4916
    %4958 = vmatprep.subr.mxu0 0.0
    %4959 = vmatpush1.msra.mxu0 %v4915
    %4960 = vmatprep.subr.mxu0 0.0
    %4961 = vmatpush1.msra.mxu0 %v4914
    %4962 = vmatprep.subr.mxu0 0.0
    %4963 = vmatpush2.msra.mxu0 0.0
    %4964 = vmatprep.subr.mxu0 0.0
    %4965 = vmatpush2.msra.mxu0 0.0
    %4966 = vmatprep.subr.mxu0 0.0
    %4967 = vmatpush2.msra.mxu0 0.0
    %4968 = vmatprep.subr.mxu0 0.0
    %4969 = vmatpush2.msra.mxu0 0.0
    %4970 = vmatprep.subr.mxu0 0.0
    %4971 = vmatpush2.msra.mxu0 0.0
    %4972 = vmatprep.subr.mxu0 0.0
    %4973 = vmatpush2.msra.mxu0 0.0
    %4974 = vmatprep.subr.mxu0 0.0
    %4975 = vmatpush2.msra.mxu0 0.0
    %4976 = vmatprep.subr.mxu0 0.0
    %4977 = vmatpush2.msra.mxu0 0.0
    %4978 = vmatprep.subr.mxu0 0.0
    %4979 = vmatpush2.msra.mxu0 0.0
    %4980 = vmatprep.subr.mxu0 0.0
    %4981 = vmatpush2.msra.mxu0 0.0
    %4982 = vmatprep.subr.mxu0 0.0
    %4983 = vmatpush2.msra.mxu0 0.0
    %4984 = vmatprep.subr.mxu0 0.0
    %4985 = vmatpush2.msra.mxu0 0.0
    %4986 = vmatprep.subr.mxu0 0.0
    %4987 = vmatpush2.msra.mxu0 0.0
    %4988 = vmatprep.subr.mxu0 0.0
    %4989 = vmatpush2.msra.mxu0 0.0
    %4990 = vmatprep.subr.mxu0 0.0
    %4991 = vmatpush2.msra.mxu0 0.0
    %4992 = vmatprep.subr.mxu0 0.0
    %4993 = vmatpush2.msra.mxu0 0.0
    %4994 = vmatprep.mubr.f32.mxu0 0.0
    %4995 = vmatmul.mubr.f32.gmra.mxu0 %v4910
    %v4996 = vpop.f32.mrf.mxu0
    %v4997 = vadd.f32 0.0, %v4996
    %v4998 = vpop.f32.mrf.mxu0
    %4999 = vdwg.mxu0
    %v5000 = vadd.f32 %v4837, %v4997
    %s5001 = scalar_lea.vmem %s3, 20
    %v5002 = vld [vmem:[%s5001] sm:$0xf]
    %v5004 = vsel %vm4190, %v5002, 0
    %5006 = vmatprep.subr.mxu0 0.0
    %5007 = vmatpush1.msra.mxu0 0.0
    %5008 = vmatprep.subr.mxu0 0.0
    %5009 = vmatpush1.msra.mxu0 0.0
    %5010 = vmatprep.subr.mxu0 0.0
    %5011 = vmatpush1.msra.mxu0 0.0
    %5012 = vmatprep.subr.mxu0 0.0
    %5013 = vmatpush1.msra.mxu0 0.0
    %5014 = vmatprep.subr.mxu0 0.0
    %5015 = vmatpush1.msra.mxu0 0.0
    %5016 = vmatprep.subr.mxu0 0.0
    %5017 = vmatpush1.msra.mxu0 0.0
    %5018 = vmatprep.subr.mxu0 0.0
    %5019 = vmatpush1.msra.mxu0 0.0
    %5020 = vmatprep.subr.mxu0 0.0
    %5021 = vmatpush1.msra.mxu0 0.0
    %5022 = vmatprep.subr.mxu0 0.0
    %5023 = vmatpush1.msra.mxu0 0.0
    %5024 = vmatprep.subr.mxu0 0.0
    %5025 = vmatpush1.msra.mxu0 0.0
    %5026 = vmatprep.subr.mxu0 0.0
    %5027 = vmatpush1.msra.mxu0 0.0
    %5028 = vmatprep.subr.mxu0 0.0
    %5029 = vmatpush1.msra.mxu0 0.0
    %5030 = vmatprep.subr.mxu0 0.0
    %5031 = vmatpush1.msra.mxu0 0.0
    %5032 = vmatprep.subr.mxu0 0.0
    %5033 = vmatpush1.msra.mxu0 0.0
    %5034 = vmatprep.subr.mxu0 0.0
    %5035 = vmatpush1.msra.mxu0 %v4188
    %5036 = vmatprep.subr.mxu0 0.0
    %5037 = vmatpush1.msra.mxu0 %v4187
    %5038 = vmatprep.subr.mxu0 0.0
    %5039 = vmatpush2.msra.mxu0 0.0
    %5040 = vmatprep.subr.mxu0 0.0
    %5041 = vmatpush2.msra.mxu0 0.0
    %5042 = vmatprep.subr.mxu0 0.0
    %5043 = vmatpush2.msra.mxu0 0.0
    %5044 = vmatprep.subr.mxu0 0.0
    %5045 = vmatpush2.msra.mxu0 0.0
    %5046 = vmatprep.subr.mxu0 0.0
    %5047 = vmatpush2.msra.mxu0 0.0
    %5048 = vmatprep.subr.mxu0 0.0
    %5049 = vmatpush2.msra.mxu0 0.0
    %5050 = vmatprep.subr.mxu0 0.0
    %5051 = vmatpush2.msra.mxu0 0.0
    %5052 = vmatprep.subr.mxu0 0.0
    %5053 = vmatpush2.msra.mxu0 0.0
    %5054 = vmatprep.subr.mxu0 0.0
    %5055 = vmatpush2.msra.mxu0 0.0
    %5056 = vmatprep.subr.mxu0 0.0
    %5057 = vmatpush2.msra.mxu0 0.0
    %5058 = vmatprep.subr.mxu0 0.0
    %5059 = vmatpush2.msra.mxu0 0.0
    %5060 = vmatprep.subr.mxu0 0.0
    %5061 = vmatpush2.msra.mxu0 0.0
    %5062 = vmatprep.subr.mxu0 0.0
    %5063 = vmatpush2.msra.mxu0 0.0
    %5064 = vmatprep.subr.mxu0 0.0
    %5065 = vmatpush2.msra.mxu0 0.0
    %5066 = vmatprep.subr.mxu0 0.0
    %5067 = vmatpush2.msra.mxu0 0.0
    %5068 = vmatprep.subr.mxu0 0.0
    %5069 = vmatpush2.msra.mxu0 0.0
    %5070 = vmatprep.mubr.f32.mxu0 0.0
    %5071 = vmatmul.mubr.f32.gmra.mxu0 %v5004
    %v5072 = vpop.f32.mrf.mxu0
    %v5073 = vadd.f32 0.0, %v5072
    %v5074 = vpop.f32.mrf.mxu0
    %5075 = vdwg.mxu0
    %s5076 = scalar_lea.vmem [#allocation8], 640
    %v5077 = vld [vmem:[%s5076] sm:$0xff]
    %v5078 = vld [vmem:[%s5076 + $0x8] sm:$0xff]
    %v5079 = vld [vmem:[%s5076 + $0x10] sm:$0xff]
    %v5080 = vld [vmem:[%s5076 + $0x18] sm:$0xff]
    %v5081 = vld [vmem:[%s5076 + $0x20] sm:$0xff]
    %v5082 = vld [vmem:[%s5076 + $0x28] sm:$0xff]
    %v5083 = vld [vmem:[%s5076 + $0x30] sm:$0xff]
    %v5084 = vld [vmem:[%s5076 + $0x38] sm:$0xff]
    %v5085 = vld [vmem:[%s5076 + $0x40] sm:$0xff]
    %v5086 = vld [vmem:[%s5076 + $0x48] sm:$0xff]
    %v5087 = vld [vmem:[%s5076 + $0x50] sm:$0xff]
    %v5088 = vld [vmem:[%s5076 + $0x58] sm:$0xff]
    %v5089 = vld [vmem:[%s5076 + $0x60] sm:$0xff]
    %v5090 = vld [vmem:[%s5076 + $0x68] sm:$0xff]
    %v5091 = vld [vmem:[%s5076 + $0x70] sm:$0xff]
    %v5092 = vld [vmem:[%s5076 + $0x78] sm:$0xff]
    %5093 = vmatprep.subr.mxu0 0.0
    %5094 = vmatpush1.msra.mxu0 %v5092
    %5095 = vmatprep.subr.mxu0 0.0
    %5096 = vmatpush1.msra.mxu0 %v5091
    %5097 = vmatprep.subr.mxu0 0.0
    %5098 = vmatpush1.msra.mxu0 %v5090
    %5099 = vmatprep.subr.mxu0 0.0
    %5100 = vmatpush1.msra.mxu0 %v5089
    %5101 = vmatprep.subr.mxu0 0.0
    %5102 = vmatpush1.msra.mxu0 %v5088
    %5103 = vmatprep.subr.mxu0 0.0
    %5104 = vmatpush1.msra.mxu0 %v5087
    %5105 = vmatprep.subr.mxu0 0.0
    %5106 = vmatpush1.msra.mxu0 %v5086
    %5107 = vmatprep.subr.mxu0 0.0
    %5108 = vmatpush1.msra.mxu0 %v5085
    %5109 = vmatprep.subr.mxu0 0.0
    %5110 = vmatpush1.msra.mxu0 %v5084
    %5111 = vmatprep.subr.mxu0 0.0
    %5112 = vmatpush1.msra.mxu0 %v5083
    %5113 = vmatprep.subr.mxu0 0.0
    %5114 = vmatpush1.msra.mxu0 %v5082
    %5115 = vmatprep.subr.mxu0 0.0
    %5116 = vmatpush1.msra.mxu0 %v5081
    %5117 = vmatprep.subr.mxu0 0.0
    %5118 = vmatpush1.msra.mxu0 %v5080
    %5119 = vmatprep.subr.mxu0 0.0
    %5120 = vmatpush1.msra.mxu0 %v5079
    %5121 = vmatprep.subr.mxu0 0.0
    %5122 = vmatpush1.msra.mxu0 %v5078
    %5123 = vmatprep.subr.mxu0 0.0
    %5124 = vmatpush1.msra.mxu0 %v5077
    %5125 = vmatprep.subr.mxu0 0.0
    %5126 = vmatpush2.msra.mxu0 0.0
    %5127 = vmatprep.subr.mxu0 0.0
    %5128 = vmatpush2.msra.mxu0 0.0
    %5129 = vmatprep.subr.mxu0 0.0
    %5130 = vmatpush2.msra.mxu0 0.0
    %5131 = vmatprep.subr.mxu0 0.0
    %5132 = vmatpush2.msra.mxu0 0.0
    %5133 = vmatprep.subr.mxu0 0.0
    %5134 = vmatpush2.msra.mxu0 0.0
    %5135 = vmatprep.subr.mxu0 0.0
    %5136 = vmatpush2.msra.mxu0 0.0
    %5137 = vmatprep.subr.mxu0 0.0
    %5138 = vmatpush2.msra.mxu0 0.0
    %5139 = vmatprep.subr.mxu0 0.0
    %5140 = vmatpush2.msra.mxu0 0.0
    %5141 = vmatprep.subr.mxu0 0.0
    %5142 = vmatpush2.msra.mxu0 0.0
    %5143 = vmatprep.subr.mxu0 0.0
    %5144 = vmatpush2.msra.mxu0 0.0
    %5145 = vmatprep.subr.mxu0 0.0
    %5146 = vmatpush2.msra.mxu0 0.0
    %5147 = vmatprep.subr.mxu0 0.0
    %5148 = vmatpush2.msra.mxu0 0.0
    %5149 = vmatprep.subr.mxu0 0.0
    %5150 = vmatpush2.msra.mxu0 0.0
    %5151 = vmatprep.subr.mxu0 0.0
    %5152 = vmatpush2.msra.mxu0 0.0
    %5153 = vmatprep.subr.mxu0 0.0
    %5154 = vmatpush2.msra.mxu0 0.0
    %5155 = vmatprep.subr.mxu0 0.0
    %5156 = vmatpush2.msra.mxu0 0.0
    %5157 = vmatprep.mubr.f32.mxu0 0.0
    %5158 = vmatmul.mubr.f32.gmra.mxu0 %v5073
    %v5159 = vpop.f32.mrf.mxu0
    %v5160 = vadd.f32 0.0, %v5159
    %v5161 = vpop.f32.mrf.mxu0
    %5162 = vdwg.mxu0
    %v5163 = vadd.f32 %v5000, %v5160
    %s5164 = scalar_lea.vmem %s3, 24
    %v5165 = vld [vmem:[%s5164] sm:$0xf]
    %v5167 = vsel %vm4190, %v5165, 0
    %5169 = vmatprep.subr.mxu0 0.0
    %5170 = vmatpush1.msra.mxu0 0.0
    %5171 = vmatprep.subr.mxu0 0.0
    %5172 = vmatpush1.msra.mxu0 0.0
    %5173 = vmatprep.subr.mxu0 0.0
    %5174 = vmatpush1.msra.mxu0 0.0
    %5175 = vmatprep.subr.mxu0 0.0
    %5176 = vmatpush1.msra.mxu0 0.0
    %5177 = vmatprep.subr.mxu0 0.0
    %5178 = vmatpush1.msra.mxu0 0.0
    %5179 = vmatprep.subr.mxu0 0.0
    %5180 = vmatpush1.msra.mxu0 0.0
    %5181 = vmatprep.subr.mxu0 0.0
    %5182 = vmatpush1.msra.mxu0 0.0
    %5183 = vmatprep.subr.mxu0 0.0
    %5184 = vmatpush1.msra.mxu0 0.0
    %5185 = vmatprep.subr.mxu0 0.0
    %5186 = vmatpush1.msra.mxu0 0.0
    %5187 = vmatprep.subr.mxu0 0.0
    %5188 = vmatpush1.msra.mxu0 0.0
    %5189 = vmatprep.subr.mxu0 0.0
    %5190 = vmatpush1.msra.mxu0 0.0
    %5191 = vmatprep.subr.mxu0 0.0
    %5192 = vmatpush1.msra.mxu0 0.0
    %5193 = vmatprep.subr.mxu0 0.0
    %5194 = vmatpush1.msra.mxu0 0.0
    %5195 = vmatprep.subr.mxu0 0.0
    %5196 = vmatpush1.msra.mxu0 0.0
    %5197 = vmatprep.subr.mxu0 0.0
    %5198 = vmatpush1.msra.mxu0 %v4188
    %5199 = vmatprep.subr.mxu0 0.0
    %5200 = vmatpush1.msra.mxu0 %v4187
    %5201 = vmatprep.subr.mxu0 0.0
    %5202 = vmatpush2.msra.mxu0 0.0
    %5203 = vmatprep.subr.mxu0 0.0
    %5204 = vmatpush2.msra.mxu0 0.0
    %5205 = vmatprep.subr.mxu0 0.0
    %5206 = vmatpush2.msra.mxu0 0.0
    %5207 = vmatprep.subr.mxu0 0.0
    %5208 = vmatpush2.msra.mxu0 0.0
    %5209 = vmatprep.subr.mxu0 0.0
    %5210 = vmatpush2.msra.mxu0 0.0
    %5211 = vmatprep.subr.mxu0 0.0
    %5212 = vmatpush2.msra.mxu0 0.0
    %5213 = vmatprep.subr.mxu0 0.0
    %5214 = vmatpush2.msra.mxu0 0.0
    %5215 = vmatprep.subr.mxu0 0.0
    %5216 = vmatpush2.msra.mxu0 0.0
    %5217 = vmatprep.subr.mxu0 0.0
    %5218 = vmatpush2.msra.mxu0 0.0
    %5219 = vmatprep.subr.mxu0 0.0
    %5220 = vmatpush2.msra.mxu0 0.0
    %5221 = vmatprep.subr.mxu0 0.0
    %5222 = vmatpush2.msra.mxu0 0.0
    %5223 = vmatprep.subr.mxu0 0.0
    %5224 = vmatpush2.msra.mxu0 0.0
    %5225 = vmatprep.subr.mxu0 0.0
    %5226 = vmatpush2.msra.mxu0 0.0
    %5227 = vmatprep.subr.mxu0 0.0
    %5228 = vmatpush2.msra.mxu0 0.0
    %5229 = vmatprep.subr.mxu0 0.0
    %5230 = vmatpush2.msra.mxu0 0.0
    %5231 = vmatprep.subr.mxu0 0.0
    %5232 = vmatpush2.msra.mxu0 0.0
    %5233 = vmatprep.mubr.f32.mxu0 0.0
    %5234 = vmatmul.mubr.f32.gmra.mxu0 %v5167
    %v5235 = vpop.f32.mrf.mxu0
    %v5236 = vadd.f32 0.0, %v5235
    %v5237 = vpop.f32.mrf.mxu0
    %5238 = vdwg.mxu0
    %s5239 = scalar_lea.vmem [#allocation8], 768
    %v5240 = vld [vmem:[%s5239] sm:$0xff]
    %v5241 = vld [vmem:[%s5239 + $0x8] sm:$0xff]
    %v5242 = vld [vmem:[%s5239 + $0x10] sm:$0xff]
    %v5243 = vld [vmem:[%s5239 + $0x18] sm:$0xff]
    %v5244 = vld [vmem:[%s5239 + $0x20] sm:$0xff]
    %v5245 = vld [vmem:[%s5239 + $0x28] sm:$0xff]
    %v5246 = vld [vmem:[%s5239 + $0x30] sm:$0xff]
    %v5247 = vld [vmem:[%s5239 + $0x38] sm:$0xff]
    %v5248 = vld [vmem:[%s5239 + $0x40] sm:$0xff]
    %v5249 = vld [vmem:[%s5239 + $0x48] sm:$0xff]
    %v5250 = vld [vmem:[%s5239 + $0x50] sm:$0xff]
    %v5251 = vld [vmem:[%s5239 + $0x58] sm:$0xff]
    %v5252 = vld [vmem:[%s5239 + $0x60] sm:$0xff]
    %v5253 = vld [vmem:[%s5239 + $0x68] sm:$0xff]
    %v5254 = vld [vmem:[%s5239 + $0x70] sm:$0xff]
    %v5255 = vld [vmem:[%s5239 + $0x78] sm:$0xff]
    %5256 = vmatprep.subr.mxu0 0.0
    %5257 = vmatpush1.msra.mxu0 %v5255
    %5258 = vmatprep.subr.mxu0 0.0
    %5259 = vmatpush1.msra.mxu0 %v5254
    %5260 = vmatprep.subr.mxu0 0.0
    %5261 = vmatpush1.msra.mxu0 %v5253
    %5262 = vmatprep.subr.mxu0 0.0
    %5263 = vmatpush1.msra.mxu0 %v5252
    %5264 = vmatprep.subr.mxu0 0.0
    %5265 = vmatpush1.msra.mxu0 %v5251
    %5266 = vmatprep.subr.mxu0 0.0
    %5267 = vmatpush1.msra.mxu0 %v5250
    %5268 = vmatprep.subr.mxu0 0.0
    %5269 = vmatpush1.msra.mxu0 %v5249
    %5270 = vmatprep.subr.mxu0 0.0
    %5271 = vmatpush1.msra.mxu0 %v5248
    %5272 = vmatprep.subr.mxu0 0.0
    %5273 = vmatpush1.msra.mxu0 %v5247
    %5274 = vmatprep.subr.mxu0 0.0
    %5275 = vmatpush1.msra.mxu0 %v5246
    %5276 = vmatprep.subr.mxu0 0.0
    %5277 = vmatpush1.msra.mxu0 %v5245
    %5278 = vmatprep.subr.mxu0 0.0
    %5279 = vmatpush1.msra.mxu0 %v5244
    %5280 = vmatprep.subr.mxu0 0.0
    %5281 = vmatpush1.msra.mxu0 %v5243
    %5282 = vmatprep.subr.mxu0 0.0
    %5283 = vmatpush1.msra.mxu0 %v5242
    %5284 = vmatprep.subr.mxu0 0.0
    %5285 = vmatpush1.msra.mxu0 %v5241
    %5286 = vmatprep.subr.mxu0 0.0
    %5287 = vmatpush1.msra.mxu0 %v5240
    %5288 = vmatprep.subr.mxu0 0.0
    %5289 = vmatpush2.msra.mxu0 0.0
    %5290 = vmatprep.subr.mxu0 0.0
    %5291 = vmatpush2.msra.mxu0 0.0
    %5292 = vmatprep.subr.mxu0 0.0
    %5293 = vmatpush2.msra.mxu0 0.0
    %5294 = vmatprep.subr.mxu0 0.0
    %5295 = vmatpush2.msra.mxu0 0.0
    %5296 = vmatprep.subr.mxu0 0.0
    %5297 = vmatpush2.msra.mxu0 0.0
    %5298 = vmatprep.subr.mxu0 0.0
    %5299 = vmatpush2.msra.mxu0 0.0
    %5300 = vmatprep.subr.mxu0 0.0
    %5301 = vmatpush2.msra.mxu0 0.0
    %5302 = vmatprep.subr.mxu0 0.0
    %5303 = vmatpush2.msra.mxu0 0.0
    %5304 = vmatprep.subr.mxu0 0.0
    %5305 = vmatpush2.msra.mxu0 0.0
    %5306 = vmatprep.subr.mxu0 0.0
    %5307 = vmatpush2.msra.mxu0 0.0
    %5308 = vmatprep.subr.mxu0 0.0
    %5309 = vmatpush2.msra.mxu0 0.0
    %5310 = vmatprep.subr.mxu0 0.0
    %5311 = vmatpush2.msra.mxu0 0.0
    %5312 = vmatprep.subr.mxu0 0.0
    %5313 = vmatpush2.msra.mxu0 0.0
    %5314 = vmatprep.subr.mxu0 0.0
    %5315 = vmatpush2.msra.mxu0 0.0
    %5316 = vmatprep.subr.mxu0 0.0
    %5317 = vmatpush2.msra.mxu0 0.0
    %5318 = vmatprep.subr.mxu0 0.0
    %5319 = vmatpush2.msra.mxu0 0.0
    %5320 = vmatprep.mubr.f32.mxu0 0.0
    %5321 = vmatmul.mubr.f32.gmra.mxu0 %v5236
    %v5322 = vpop.f32.mrf.mxu0
    %v5323 = vadd.f32 0.0, %v5322
    %v5324 = vpop.f32.mrf.mxu0
    %5325 = vdwg.mxu0
    %v5326 = vadd.f32 %v5163, %v5323
    %s5327 = scalar_lea.vmem %s3, 28
    %v5328 = vld [vmem:[%s5327] sm:$0xf]
    %v5330 = vsel %vm4190, %v5328, 0
    %5332 = vmatprep.subr.mxu0 0.0
    %5333 = vmatpush1.msra.mxu0 0.0
    %5334 = vmatprep.subr.mxu0 0.0
    %5335 = vmatpush1.msra.mxu0 0.0
    %5336 = vmatprep.subr.mxu0 0.0
    %5337 = vmatpush1.msra.mxu0 0.0
    %5338 = vmatprep.subr.mxu0 0.0
    %5339 = vmatpush1.msra.mxu0 0.0
    %5340 = vmatprep.subr.mxu0 0.0
    %5341 = vmatpush1.msra.mxu0 0.0
    %5342 = vmatprep.subr.mxu0 0.0
    %5343 = vmatpush1.msra.mxu0 0.0
    %5344 = vmatprep.subr.mxu0 0.0
    %5345 = vmatpush1.msra.mxu0 0.0
    %5346 = vmatprep.subr.mxu0 0.0
    %5347 = vmatpush1.msra.mxu0 0.0
    %5348 = vmatprep.subr.mxu0 0.0
    %5349 = vmatpush1.msra.mxu0 0.0
    %5350 = vmatprep.subr.mxu0 0.0
    %5351 = vmatpush1.msra.mxu0 0.0
    %5352 = vmatprep.subr.mxu0 0.0
    %5353 = vmatpush1.msra.mxu0 0.0
    %5354 = vmatprep.subr.mxu0 0.0
    %5355 = vmatpush1.msra.mxu0 0.0
    %5356 = vmatprep.subr.mxu0 0.0
    %5357 = vmatpush1.msra.mxu0 0.0
    %5358 = vmatprep.subr.mxu0 0.0
    %5359 = vmatpush1.msra.mxu0 0.0
    %5360 = vmatprep.subr.mxu0 0.0
    %5361 = vmatpush1.msra.mxu0 %v4188
    %5362 = vmatprep.subr.mxu0 0.0
    %5363 = vmatpush1.msra.mxu0 %v4187
    %5364 = vmatprep.subr.mxu0 0.0
    %5365 = vmatpush2.msra.mxu0 0.0
    %5366 = vmatprep.subr.mxu0 0.0
    %5367 = vmatpush2.msra.mxu0 0.0
    %5368 = vmatprep.subr.mxu0 0.0
    %5369 = vmatpush2.msra.mxu0 0.0
    %5370 = vmatprep.subr.mxu0 0.0
    %5371 = vmatpush2.msra.mxu0 0.0
    %5372 = vmatprep.subr.mxu0 0.0
    %5373 = vmatpush2.msra.mxu0 0.0
    %5374 = vmatprep.subr.mxu0 0.0
    %5375 = vmatpush2.msra.mxu0 0.0
    %5376 = vmatprep.subr.mxu0 0.0
    %5377 = vmatpush2.msra.mxu0 0.0
    %5378 = vmatprep.subr.mxu0 0.0
    %5379 = vmatpush2.msra.mxu0 0.0
    %5380 = vmatprep.subr.mxu0 0.0
    %5381 = vmatpush2.msra.mxu0 0.0
    %5382 = vmatprep.subr.mxu0 0.0
    %5383 = vmatpush2.msra.mxu0 0.0
    %5384 = vmatprep.subr.mxu0 0.0
    %5385 = vmatpush2.msra.mxu0 0.0
    %5386 = vmatprep.subr.mxu0 0.0
    %5387 = vmatpush2.msra.mxu0 0.0
    %5388 = vmatprep.subr.mxu0 0.0
    %5389 = vmatpush2.msra.mxu0 0.0
    %5390 = vmatprep.subr.mxu0 0.0
    %5391 = vmatpush2.msra.mxu0 0.0
    %5392 = vmatprep.subr.mxu0 0.0
    %5393 = vmatpush2.msra.mxu0 0.0
    %5394 = vmatprep.subr.mxu0 0.0
    %5395 = vmatpush2.msra.mxu0 0.0
    %5396 = vmatprep.mubr.f32.mxu0 0.0
    %5397 = vmatmul.mubr.f32.gmra.mxu0 %v5330
    %v5398 = vpop.f32.mrf.mxu0
    %v5399 = vadd.f32 0.0, %v5398
    %v5400 = vpop.f32.mrf.mxu0
    %5401 = vdwg.mxu0
    %s5402 = scalar_lea.vmem [#allocation8], 896
    %v5403 = vld [vmem:[%s5402] sm:$0xff]
    %v5404 = vld [vmem:[%s5402 + $0x8] sm:$0xff]
    %v5405 = vld [vmem:[%s5402 + $0x10] sm:$0xff]
    %v5406 = vld [vmem:[%s5402 + $0x18] sm:$0xff]
    %v5407 = vld [vmem:[%s5402 + $0x20] sm:$0xff]
    %v5408 = vld [vmem:[%s5402 + $0x28] sm:$0xff]
    %v5409 = vld [vmem:[%s5402 + $0x30] sm:$0xff]
    %v5410 = vld [vmem:[%s5402 + $0x38] sm:$0xff]
    %v5411 = vld [vmem:[%s5402 + $0x40] sm:$0xff]
    %v5412 = vld [vmem:[%s5402 + $0x48] sm:$0xff]
    %v5413 = vld [vmem:[%s5402 + $0x50] sm:$0xff]
    %v5414 = vld [vmem:[%s5402 + $0x58] sm:$0xff]
    %v5415 = vld [vmem:[%s5402 + $0x60] sm:$0xff]
    %v5416 = vld [vmem:[%s5402 + $0x68] sm:$0xff]
    %v5417 = vld [vmem:[%s5402 + $0x70] sm:$0xff]
    %v5418 = vld [vmem:[%s5402 + $0x78] sm:$0xff]
    %5419 = vmatprep.subr.mxu0 0.0
    %5420 = vmatpush1.msra.mxu0 %v5418
    %5421 = vmatprep.subr.mxu0 0.0
    %5422 = vmatpush1.msra.mxu0 %v5417
    %5423 = vmatprep.subr.mxu0 0.0
    %5424 = vmatpush1.msra.mxu0 %v5416
    %5425 = vmatprep.subr.mxu0 0.0
    %5426 = vmatpush1.msra.mxu0 %v5415
    %5427 = vmatprep.subr.mxu0 0.0
    %5428 = vmatpush1.msra.mxu0 %v5414
    %5429 = vmatprep.subr.mxu0 0.0
    %5430 = vmatpush1.msra.mxu0 %v5413
    %5431 = vmatprep.subr.mxu0 0.0
    %5432 = vmatpush1.msra.mxu0 %v5412
    %5433 = vmatprep.subr.mxu0 0.0
    %5434 = vmatpush1.msra.mxu0 %v5411
    %5435 = vmatprep.subr.mxu0 0.0
    %5436 = vmatpush1.msra.mxu0 %v5410
    %5437 = vmatprep.subr.mxu0 0.0
    %5438 = vmatpush1.msra.mxu0 %v5409
    %5439 = vmatprep.subr.mxu0 0.0
    %5440 = vmatpush1.msra.mxu0 %v5408
    %5441 = vmatprep.subr.mxu0 0.0
    %5442 = vmatpush1.msra.mxu0 %v5407
    %5443 = vmatprep.subr.mxu0 0.0
    %5444 = vmatpush1.msra.mxu0 %v5406
    %5445 = vmatprep.subr.mxu0 0.0
    %5446 = vmatpush1.msra.mxu0 %v5405
    %5447 = vmatprep.subr.mxu0 0.0
    %5448 = vmatpush1.msra.mxu0 %v5404
    %5449 = vmatprep.subr.mxu0 0.0
    %5450 = vmatpush1.msra.mxu0 %v5403
    %5451 = vmatprep.subr.mxu0 0.0
    %5452 = vmatpush2.msra.mxu0 0.0
    %5453 = vmatprep.subr.mxu0 0.0
    %5454 = vmatpush2.msra.mxu0 0.0
    %5455 = vmatprep.subr.mxu0 0.0
    %5456 = vmatpush2.msra.mxu0 0.0
    %5457 = vmatprep.subr.mxu0 0.0
    %5458 = vmatpush2.msra.mxu0 0.0
    %5459 = vmatprep.subr.mxu0 0.0
    %5460 = vmatpush2.msra.mxu0 0.0
    %5461 = vmatprep.subr.mxu0 0.0
    %5462 = vmatpush2.msra.mxu0 0.0
    %5463 = vmatprep.subr.mxu0 0.0
    %5464 = vmatpush2.msra.mxu0 0.0
    %5465 = vmatprep.subr.mxu0 0.0
    %5466 = vmatpush2.msra.mxu0 0.0
    %5467 = vmatprep.subr.mxu0 0.0
    %5468 = vmatpush2.msra.mxu0 0.0
    %5469 = vmatprep.subr.mxu0 0.0
    %5470 = vmatpush2.msra.mxu0 0.0
    %5471 = vmatprep.subr.mxu0 0.0
    %5472 = vmatpush2.msra.mxu0 0.0
    %5473 = vmatprep.subr.mxu0 0.0
    %5474 = vmatpush2.msra.mxu0 0.0
    %5475 = vmatprep.subr.mxu0 0.0
    %5476 = vmatpush2.msra.mxu0 0.0
    %5477 = vmatprep.subr.mxu0 0.0
    %5478 = vmatpush2.msra.mxu0 0.0
    %5479 = vmatprep.subr.mxu0 0.0
    %5480 = vmatpush2.msra.mxu0 0.0
    %5481 = vmatprep.subr.mxu0 0.0
    %5482 = vmatpush2.msra.mxu0 0.0
    %5483 = vmatprep.mubr.f32.mxu0 0.0
    %5484 = vmatmul.mubr.f32.gmra.mxu0 %v5399
    %v5485 = vpop.f32.mrf.mxu0
    %v5486 = vadd.f32 0.0, %v5485
    %v5487 = vpop.f32.mrf.mxu0
    %5488 = vdwg.mxu0
    %v5489 = vadd.f32 %v5326, %v5486
    %s5490 = scalar_lea.vmem %s3, 32
    %v5491 = vld [vmem:[%s5490] sm:$0xf]
    %v5493 = vsel %vm4190, %v5491, 0
    %5495 = vmatprep.subr.mxu0 0.0
    %5496 = vmatpush1.msra.mxu0 0.0
    %5497 = vmatprep.subr.mxu0 0.0
    %5498 = vmatpush1.msra.mxu0 0.0
    %5499 = vmatprep.subr.mxu0 0.0
    %5500 = vmatpush1.msra.mxu0 0.0
    %5501 = vmatprep.subr.mxu0 0.0
    %5502 = vmatpush1.msra.mxu0 0.0
    %5503 = vmatprep.subr.mxu0 0.0
    %5504 = vmatpush1.msra.mxu0 0.0
    %5505 = vmatprep.subr.mxu0 0.0
    %5506 = vmatpush1.msra.mxu0 0.0
    %5507 = vmatprep.subr.mxu0 0.0
    %5508 = vmatpush1.msra.mxu0 0.0
    %5509 = vmatprep.subr.mxu0 0.0
    %5510 = vmatpush1.msra.mxu0 0.0
    %5511 = vmatprep.subr.mxu0 0.0
    %5512 = vmatpush1.msra.mxu0 0.0
    %5513 = vmatprep.subr.mxu0 0.0
    %5514 = vmatpush1.msra.mxu0 0.0
    %5515 = vmatprep.subr.mxu0 0.0
    %5516 = vmatpush1.msra.mxu0 0.0
    %5517 = vmatprep.subr.mxu0 0.0
    %5518 = vmatpush1.msra.mxu0 0.0
    %5519 = vmatprep.subr.mxu0 0.0
    %5520 = vmatpush1.msra.mxu0 0.0
    %5521 = vmatprep.subr.mxu0 0.0
    %5522 = vmatpush1.msra.mxu0 0.0
    %5523 = vmatprep.subr.mxu0 0.0
    %5524 = vmatpush1.msra.mxu0 %v4188
    %5525 = vmatprep.subr.mxu0 0.0
    %5526 = vmatpush1.msra.mxu0 %v4187
    %5527 = vmatprep.subr.mxu0 0.0
    %5528 = vmatpush2.msra.mxu0 0.0
    %5529 = vmatprep.subr.mxu0 0.0
    %5530 = vmatpush2.msra.mxu0 0.0
    %5531 = vmatprep.subr.mxu0 0.0
    %5532 = vmatpush2.msra.mxu0 0.0
    %5533 = vmatprep.subr.mxu0 0.0
    %5534 = vmatpush2.msra.mxu0 0.0
    %5535 = vmatprep.subr.mxu0 0.0
    %5536 = vmatpush2.msra.mxu0 0.0
    %5537 = vmatprep.subr.mxu0 0.0
    %5538 = vmatpush2.msra.mxu0 0.0
    %5539 = vmatprep.subr.mxu0 0.0
    %5540 = vmatpush2.msra.mxu0 0.0
    %5541 = vmatprep.subr.mxu0 0.0
    %5542 = vmatpush2.msra.mxu0 0.0
    %5543 = vmatprep.subr.mxu0 0.0
    %5544 = vmatpush2.msra.mxu0 0.0
    %5545 = vmatprep.subr.mxu0 0.0
    %5546 = vmatpush2.msra.mxu0 0.0
    %5547 = vmatprep.subr.mxu0 0.0
    %5548 = vmatpush2.msra.mxu0 0.0
    %5549 = vmatprep.subr.mxu0 0.0
    %5550 = vmatpush2.msra.mxu0 0.0
    %5551 = vmatprep.subr.mxu0 0.0
    %5552 = vmatpush2.msra.mxu0 0.0
    %5553 = vmatprep.subr.mxu0 0.0
    %5554 = vmatpush2.msra.mxu0 0.0
    %5555 = vmatprep.subr.mxu0 0.0
    %5556 = vmatpush2.msra.mxu0 0.0
    %5557 = vmatprep.subr.mxu0 0.0
    %5558 = vmatpush2.msra.mxu0 0.0
    %5559 = vmatprep.mubr.f32.mxu0 0.0
    %5560 = vmatmul.mubr.f32.gmra.mxu0 %v5493
    %v5561 = vpop.f32.mrf.mxu0
    %v5562 = vadd.f32 0.0, %v5561
    %v5563 = vpop.f32.mrf.mxu0
    %5564 = vdwg.mxu0
    %s5565 = scalar_lea.vmem [#allocation8], 1024
    %v5566 = vld [vmem:[%s5565] sm:$0xff]
    %v5567 = vld [vmem:[%s5565 + $0x8] sm:$0xff]
    %v5568 = vld [vmem:[%s5565 + $0x10] sm:$0xff]
    %v5569 = vld [vmem:[%s5565 + $0x18] sm:$0xff]
    %v5570 = vld [vmem:[%s5565 + $0x20] sm:$0xff]
    %v5571 = vld [vmem:[%s5565 + $0x28] sm:$0xff]
    %v5572 = vld [vmem:[%s5565 + $0x30] sm:$0xff]
    %v5573 = vld [vmem:[%s5565 + $0x38] sm:$0xff]
    %v5574 = vld [vmem:[%s5565 + $0x40] sm:$0xff]
    %v5575 = vld [vmem:[%s5565 + $0x48] sm:$0xff]
    %v5576 = vld [vmem:[%s5565 + $0x50] sm:$0xff]
    %v5577 = vld [vmem:[%s5565 + $0x58] sm:$0xff]
    %v5578 = vld [vmem:[%s5565 + $0x60] sm:$0xff]
    %v5579 = vld [vmem:[%s5565 + $0x68] sm:$0xff]
    %v5580 = vld [vmem:[%s5565 + $0x70] sm:$0xff]
    %v5581 = vld [vmem:[%s5565 + $0x78] sm:$0xff]
    %5582 = vmatprep.subr.mxu0 0.0
    %5583 = vmatpush1.msra.mxu0 %v5581
    %5584 = vmatprep.subr.mxu0 0.0
    %5585 = vmatpush1.msra.mxu0 %v5580
    %5586 = vmatprep.subr.mxu0 0.0
    %5587 = vmatpush1.msra.mxu0 %v5579
    %5588 = vmatprep.subr.mxu0 0.0
    %5589 = vmatpush1.msra.mxu0 %v5578
    %5590 = vmatprep.subr.mxu0 0.0
    %5591 = vmatpush1.msra.mxu0 %v5577
    %5592 = vmatprep.subr.mxu0 0.0
    %5593 = vmatpush1.msra.mxu0 %v5576
    %5594 = vmatprep.subr.mxu0 0.0
    %5595 = vmatpush1.msra.mxu0 %v5575
    %5596 = vmatprep.subr.mxu0 0.0
    %5597 = vmatpush1.msra.mxu0 %v5574
    %5598 = vmatprep.subr.mxu0 0.0
    %5599 = vmatpush1.msra.mxu0 %v5573
    %5600 = vmatprep.subr.mxu0 0.0
    %5601 = vmatpush1.msra.mxu0 %v5572
    %5602 = vmatprep.subr.mxu0 0.0
    %5603 = vmatpush1.msra.mxu0 %v5571
    %5604 = vmatprep.subr.mxu0 0.0
    %5605 = vmatpush1.msra.mxu0 %v5570
    %5606 = vmatprep.subr.mxu0 0.0
    %5607 = vmatpush1.msra.mxu0 %v5569
    %5608 = vmatprep.subr.mxu0 0.0
    %5609 = vmatpush1.msra.mxu0 %v5568
    %5610 = vmatprep.subr.mxu0 0.0
    %5611 = vmatpush1.msra.mxu0 %v5567
    %5612 = vmatprep.subr.mxu0 0.0
    %5613 = vmatpush1.msra.mxu0 %v5566
    %5614 = vmatprep.subr.mxu0 0.0
    %5615 = vmatpush2.msra.mxu0 0.0
    %5616 = vmatprep.subr.mxu0 0.0
    %5617 = vmatpush2.msra.mxu0 0.0
    %5618 = vmatprep.subr.mxu0 0.0
    %5619 = vmatpush2.msra.mxu0 0.0
    %5620 = vmatprep.subr.mxu0 0.0
    %5621 = vmatpush2.msra.mxu0 0.0
    %5622 = vmatprep.subr.mxu0 0.0
    %5623 = vmatpush2.msra.mxu0 0.0
    %5624 = vmatprep.subr.mxu0 0.0
    %5625 = vmatpush2.msra.mxu0 0.0
    %5626 = vmatprep.subr.mxu0 0.0
    %5627 = vmatpush2.msra.mxu0 0.0
    %5628 = vmatprep.subr.mxu0 0.0
    %5629 = vmatpush2.msra.mxu0 0.0
    %5630 = vmatprep.subr.mxu0 0.0
    %5631 = vmatpush2.msra.mxu0 0.0
    %5632 = vmatprep.subr.mxu0 0.0
    %5633 = vmatpush2.msra.mxu0 0.0
    %5634 = vmatprep.subr.mxu0 0.0
    %5635 = vmatpush2.msra.mxu0 0.0
    %5636 = vmatprep.subr.mxu0 0.0
    %5637 = vmatpush2.msra.mxu0 0.0
    %5638 = vmatprep.subr.mxu0 0.0
    %5639 = vmatpush2.msra.mxu0 0.0
    %5640 = vmatprep.subr.mxu0 0.0
    %5641 = vmatpush2.msra.mxu0 0.0
    %5642 = vmatprep.subr.mxu0 0.0
    %5643 = vmatpush2.msra.mxu0 0.0
    %5644 = vmatprep.subr.mxu0 0.0
    %5645 = vmatpush2.msra.mxu0 0.0
    %5646 = vmatprep.mubr.f32.mxu0 0.0
    %5647 = vmatmul.mubr.f32.gmra.mxu0 %v5562
    %v5648 = vpop.f32.mrf.mxu0
    %v5649 = vadd.f32 0.0, %v5648
    %v5650 = vpop.f32.mrf.mxu0
    %5651 = vdwg.mxu0
    %v5652 = vadd.f32 %v5489, %v5649
    %s5653 = scalar_lea.vmem %s9, 2
    %v5654 = vld [vmem:[%s5653] sm:$0x1]
    %v5656 = vlaneseq
    %v5657 = vshrl.u32 %v5656, 7
    %v5658 = vsub.s32 0, %v5657
    %v5659 = vrot.slane %v5654, %v5658
    %v5661 = vadd.f32 %v5652, %v5659
    %v5662 = vmul.f32 %v5661, 0.2
    %v5663 = vmax.f32 %v5661, %v5662
    %s5664 = scalar_lea.vmem %s10, 2
    %v5665 = vld [vmem:[%s5664] sm:$0x1]
    %v5667 = vlaneseq
    %v5668 = vshrl.u32 %v5667, 7
    %v5669 = vsub.s32 0, %v5668
    %v5670 = vrot.slane %v5665, %v5669
    %v5672 = vmul.f32 %v5663, %v5670
    %s5673 = scalar_lea.vmem %s11, 2
    %v5674 = vld [vmem:[%s5673] sm:$0x1]
    %v5676 = vlaneseq
    %v5677 = vshrl.u32 %v5676, 7
    %v5678 = vsub.s32 0, %v5677
    %v5679 = vrot.slane %v5674, %v5678
    %v5681 = vadd.f32 %v5672, %v5679
    %v5682 = vld [vmem:[%s4] sm:$0x1]
    %vm5683 = vcmask 31744
    %v5685 = vsel %vm5683, %v5682, 0
    %vm5687 = vcmask 1043456
    %v5689 = vsel %vm5687, %v5681, 0
    %5691 = vmatprep.subr.mxu0 0.0
    %5692 = vmatpush1.msra.mxu0 0.0
    %5693 = vmatprep.subr.mxu0 0.0
    %5694 = vmatpush1.msra.mxu0 0.0
    %5695 = vmatprep.subr.mxu0 0.0
    %5696 = vmatpush1.msra.mxu0 0.0
    %5697 = vmatprep.subr.mxu0 0.0
    %5698 = vmatpush1.msra.mxu0 0.0
    %5699 = vmatprep.subr.mxu0 0.0
    %5700 = vmatpush1.msra.mxu0 0.0
    %5701 = vmatprep.subr.mxu0 0.0
    %5702 = vmatpush1.msra.mxu0 0.0
    %5703 = vmatprep.subr.mxu0 0.0
    %5704 = vmatpush1.msra.mxu0 0.0
    %5705 = vmatprep.subr.mxu0 0.0
    %5706 = vmatpush1.msra.mxu0 0.0
    %5707 = vmatprep.subr.mxu0 0.0
    %5708 = vmatpush1.msra.mxu0 0.0
    %5709 = vmatprep.subr.mxu0 0.0
    %5710 = vmatpush1.msra.mxu0 0.0
    %5711 = vmatprep.subr.mxu0 0.0
    %5712 = vmatpush1.msra.mxu0 0.0
    %5713 = vmatprep.subr.mxu0 0.0
    %5714 = vmatpush1.msra.mxu0 0.0
    %5715 = vmatprep.subr.mxu0 0.0
    %5716 = vmatpush1.msra.mxu0 0.0
    %5717 = vmatprep.subr.mxu0 0.0
    %5718 = vmatpush1.msra.mxu0 0.0
    %5719 = vmatprep.subr.mxu0 0.0
    %5720 = vmatpush1.msra.mxu0 0.0
    %5721 = vmatprep.subr.mxu0 0.0
    %5722 = vmatpush1.msra.mxu0 %v5689
    %5723 = vmatprep.subr.mxu0 0.0
    %5724 = vmatpush2.msra.mxu0 0.0
    %5725 = vmatprep.subr.mxu0 0.0
    %5726 = vmatpush2.msra.mxu0 0.0
    %5727 = vmatprep.subr.mxu0 0.0
    %5728 = vmatpush2.msra.mxu0 0.0
    %5729 = vmatprep.subr.mxu0 0.0
    %5730 = vmatpush2.msra.mxu0 0.0
    %5731 = vmatprep.subr.mxu0 0.0
    %5732 = vmatpush2.msra.mxu0 0.0
    %5733 = vmatprep.subr.mxu0 0.0
    %5734 = vmatpush2.msra.mxu0 0.0
    %5735 = vmatprep.subr.mxu0 0.0
    %5736 = vmatpush2.msra.mxu0 0.0
    %5737 = vmatprep.subr.mxu0 0.0
    %5738 = vmatpush2.msra.mxu0 0.0
    %5739 = vmatprep.subr.mxu0 0.0
    %5740 = vmatpush2.msra.mxu0 0.0
    %5741 = vmatprep.subr.mxu0 0.0
    %5742 = vmatpush2.msra.mxu0 0.0
    %5743 = vmatprep.subr.mxu0 0.0
    %5744 = vmatpush2.msra.mxu0 0.0
    %5745 = vmatprep.subr.mxu0 0.0
    %5746 = vmatpush2.msra.mxu0 0.0
    %5747 = vmatprep.subr.mxu0 0.0
    %5748 = vmatpush2.msra.mxu0 0.0
    %5749 = vmatprep.subr.mxu0 0.0
    %5750 = vmatpush2.msra.mxu0 0.0
    %5751 = vmatprep.subr.mxu0 0.0
    %5752 = vmatpush2.msra.mxu0 0.0
    %5753 = vmatprep.subr.mxu0 0.0
    %5754 = vmatpush2.msra.mxu0 0.0
    %5755 = vmatprep.mubr.f32.mxu0 0.0
    %5756 = vmatmul.mubr.f32.gmra.mxu0 %v5685
    %v5757 = vpop.f32.mrf.mxu0
    %v5758 = vadd.f32 0.0, %v5757
    %v5759 = vpop.f32.mrf.mxu0
    %5760 = vdwg.mxu0
    %v5761 = vld [vmem:[#allocation9] sm:$0xff]
    %v5762 = vld [vmem:[#allocation9 + $0x8] sm:$0xff]
    %v5763 = vld [vmem:[#allocation9 + $0x10] sm:$0xff]
    %v5764 = vld [vmem:[#allocation9 + $0x18] sm:$0xff]
    %v5765 = vld [vmem:[#allocation9 + $0x20] sm:$0xff]
    %v5766 = vld [vmem:[#allocation9 + $0x28] sm:$0xff]
    %v5767 = vld [vmem:[#allocation9 + $0x30] sm:$0xff]
    %v5768 = vld [vmem:[#allocation9 + $0x38] sm:$0xff]
    %v5769 = vld [vmem:[#allocation9 + $0x40] sm:$0xff]
    %v5770 = vld [vmem:[#allocation9 + $0x48] sm:$0xff]
    %v5771 = vld [vmem:[#allocation9 + $0x50] sm:$0xff]
    %v5772 = vld [vmem:[#allocation9 + $0x58] sm:$0xff]
    %v5773 = vld [vmem:[#allocation9 + $0x60] sm:$0xff]
    %v5774 = vld [vmem:[#allocation9 + $0x68] sm:$0xff]
    %v5775 = vld [vmem:[#allocation9 + $0x70] sm:$0xff]
    %v5776 = vld [vmem:[#allocation9 + $0x78] sm:$0xff]
    %s5777 = scalar_lea.vmem %s4, 1
    %v5778 = vld [vmem:[%s5777] sm:$0x1]
    %v5780 = vsel %vm5683, %v5778, 0
    %5782 = vmatprep.subr.mxu0 0.0
    %5783 = vmatpush1.msra.mxu0 0.0
    %5784 = vmatprep.subr.mxu0 0.0
    %5785 = vmatpush1.msra.mxu0 0.0
    %5786 = vmatprep.subr.mxu0 0.0
    %5787 = vmatpush1.msra.mxu0 0.0
    %5788 = vmatprep.subr.mxu0 0.0
    %5789 = vmatpush1.msra.mxu0 0.0
    %5790 = vmatprep.subr.mxu0 0.0
    %5791 = vmatpush1.msra.mxu0 0.0
    %5792 = vmatprep.subr.mxu0 0.0
    %5793 = vmatpush1.msra.mxu0 0.0
    %5794 = vmatprep.subr.mxu0 0.0
    %5795 = vmatpush1.msra.mxu0 0.0
    %5796 = vmatprep.subr.mxu0 0.0
    %5797 = vmatpush1.msra.mxu0 0.0
    %5798 = vmatprep.subr.mxu0 0.0
    %5799 = vmatpush1.msra.mxu0 0.0
    %5800 = vmatprep.subr.mxu0 0.0
    %5801 = vmatpush1.msra.mxu0 0.0
    %5802 = vmatprep.subr.mxu0 0.0
    %5803 = vmatpush1.msra.mxu0 0.0
    %5804 = vmatprep.subr.mxu0 0.0
    %5805 = vmatpush1.msra.mxu0 0.0
    %5806 = vmatprep.subr.mxu0 0.0
    %5807 = vmatpush1.msra.mxu0 0.0
    %5808 = vmatprep.subr.mxu0 0.0
    %5809 = vmatpush1.msra.mxu0 0.0
    %5810 = vmatprep.subr.mxu0 0.0
    %5811 = vmatpush1.msra.mxu0 0.0
    %5812 = vmatprep.subr.mxu0 0.0
    %5813 = vmatpush1.msra.mxu0 %v5689
    %5814 = vmatprep.subr.mxu0 0.0
    %5815 = vmatpush2.msra.mxu0 0.0
    %5816 = vmatprep.subr.mxu0 0.0
    %5817 = vmatpush2.msra.mxu0 0.0
    %5818 = vmatprep.subr.mxu0 0.0
    %5819 = vmatpush2.msra.mxu0 0.0
    %5820 = vmatprep.subr.mxu0 0.0
    %5821 = vmatpush2.msra.mxu0 0.0
    %5822 = vmatprep.subr.mxu0 0.0
    %5823 = vmatpush2.msra.mxu0 0.0
    %5824 = vmatprep.subr.mxu0 0.0
    %5825 = vmatpush2.msra.mxu0 0.0
    %5826 = vmatprep.subr.mxu0 0.0
    %5827 = vmatpush2.msra.mxu0 0.0
    %5828 = vmatprep.subr.mxu0 0.0
    %5829 = vmatpush2.msra.mxu0 0.0
    %5830 = vmatprep.subr.mxu0 0.0
    %5831 = vmatpush2.msra.mxu0 0.0
    %5832 = vmatprep.subr.mxu0 0.0
    %5833 = vmatpush2.msra.mxu0 0.0
    %5834 = vmatprep.subr.mxu0 0.0
    %5835 = vmatpush2.msra.mxu0 0.0
    %5836 = vmatprep.subr.mxu0 0.0
    %5837 = vmatpush2.msra.mxu0 0.0
    %5838 = vmatprep.subr.mxu0 0.0
    %5839 = vmatpush2.msra.mxu0 0.0
    %5840 = vmatprep.subr.mxu0 0.0
    %5841 = vmatpush2.msra.mxu0 0.0
    %5842 = vmatprep.subr.mxu0 0.0
    %5843 = vmatpush2.msra.mxu0 0.0
    %5844 = vmatprep.subr.mxu0 0.0
    %5845 = vmatpush2.msra.mxu0 0.0
    %5846 = vmatprep.mubr.f32.mxu0 0.0
    %5847 = vmatmul.mubr.f32.gmra.mxu0 %v5780
    %v5848 = vpop.f32.mrf.mxu0
    %v5849 = vadd.f32 0.0, %v5848
    %v5850 = vpop.f32.mrf.mxu0
    %5851 = vdwg.mxu0
    %s5852 = scalar_lea.vmem [#allocation9], 128
    %v5853 = vld [vmem:[%s5852] sm:$0xff]
    %v5854 = vld [vmem:[%s5852 + $0x8] sm:$0xff]
    %v5855 = vld [vmem:[%s5852 + $0x10] sm:$0xff]
    %v5856 = vld [vmem:[%s5852 + $0x18] sm:$0xff]
    %v5857 = vld [vmem:[%s5852 + $0x20] sm:$0xff]
    %v5858 = vld [vmem:[%s5852 + $0x28] sm:$0xff]
    %v5859 = vld [vmem:[%s5852 + $0x30] sm:$0xff]
    %v5860 = vld [vmem:[%s5852 + $0x38] sm:$0xff]
    %v5861 = vld [vmem:[%s5852 + $0x40] sm:$0xff]
    %v5862 = vld [vmem:[%s5852 + $0x48] sm:$0xff]
    %v5863 = vld [vmem:[%s5852 + $0x50] sm:$0xff]
    %v5864 = vld [vmem:[%s5852 + $0x58] sm:$0xff]
    %v5865 = vld [vmem:[%s5852 + $0x60] sm:$0xff]
    %v5866 = vld [vmem:[%s5852 + $0x68] sm:$0xff]
    %v5867 = vld [vmem:[%s5852 + $0x70] sm:$0xff]
    %v5868 = vld [vmem:[%s5852 + $0x78] sm:$0xff]
    %5869 = vmatprep.subr.mxu0 0.0
    %5870 = vmatpush1.msra.mxu0 %v5868
    %5871 = vmatprep.subr.mxu0 0.0
    %5872 = vmatpush1.msra.mxu0 %v5867
    %5873 = vmatprep.subr.mxu0 0.0
    %5874 = vmatpush1.msra.mxu0 %v5866
    %5875 = vmatprep.subr.mxu0 0.0
    %5876 = vmatpush1.msra.mxu0 %v5865
    %5877 = vmatprep.subr.mxu0 0.0
    %5878 = vmatpush1.msra.mxu0 %v5864
    %5879 = vmatprep.subr.mxu0 0.0
    %5880 = vmatpush1.msra.mxu0 %v5863
    %5881 = vmatprep.subr.mxu0 0.0
    %5882 = vmatpush1.msra.mxu0 %v5862
    %5883 = vmatprep.subr.mxu0 0.0
    %5884 = vmatpush1.msra.mxu0 %v5861
    %5885 = vmatprep.subr.mxu0 0.0
    %5886 = vmatpush1.msra.mxu0 %v5860
    %5887 = vmatprep.subr.mxu0 0.0
    %5888 = vmatpush1.msra.mxu0 %v5859
    %5889 = vmatprep.subr.mxu0 0.0
    %5890 = vmatpush1.msra.mxu0 %v5858
    %5891 = vmatprep.subr.mxu0 0.0
    %5892 = vmatpush1.msra.mxu0 %v5857
    %5893 = vmatprep.subr.mxu0 0.0
    %5894 = vmatpush1.msra.mxu0 %v5856
    %5895 = vmatprep.subr.mxu0 0.0
    %5896 = vmatpush1.msra.mxu0 %v5855
    %5897 = vmatprep.subr.mxu0 0.0
    %5898 = vmatpush1.msra.mxu0 %v5854
    %5899 = vmatprep.subr.mxu0 0.0
    %5900 = vmatpush1.msra.mxu0 %v5853
    %5901 = vmatprep.subr.mxu0 0.0
    %5902 = vmatpush2.msra.mxu0 0.0
    %5903 = vmatprep.subr.mxu0 0.0
    %5904 = vmatpush2.msra.mxu0 0.0
    %5905 = vmatprep.subr.mxu0 0.0
    %5906 = vmatpush2.msra.mxu0 0.0
    %5907 = vmatprep.subr.mxu0 0.0
    %5908 = vmatpush2.msra.mxu0 0.0
    %5909 = vmatprep.subr.mxu0 0.0
    %5910 = vmatpush2.msra.mxu0 0.0
    %5911 = vmatprep.subr.mxu0 0.0
    %5912 = vmatpush2.msra.mxu0 0.0
    %5913 = vmatprep.subr.mxu0 0.0
    %5914 = vmatpush2.msra.mxu0 0.0
    %5915 = vmatprep.subr.mxu0 0.0
    %5916 = vmatpush2.msra.mxu0 0.0
    %5917 = vmatprep.subr.mxu0 0.0
    %5918 = vmatpush2.msra.mxu0 0.0
    %5919 = vmatprep.subr.mxu0 0.0
    %5920 = vmatpush2.msra.mxu0 0.0
    %5921 = vmatprep.subr.mxu0 0.0
    %5922 = vmatpush2.msra.mxu0 0.0
    %5923 = vmatprep.subr.mxu0 0.0
    %5924 = vmatpush2.msra.mxu0 0.0
    %5925 = vmatprep.subr.mxu0 0.0
    %5926 = vmatpush2.msra.mxu0 0.0
    %5927 = vmatprep.subr.mxu0 0.0
    %5928 = vmatpush2.msra.mxu0 0.0
    %5929 = vmatprep.subr.mxu0 0.0
    %5930 = vmatpush2.msra.mxu0 0.0
    %5931 = vmatprep.subr.mxu0 0.0
    %5932 = vmatpush2.msra.mxu0 0.0
    %5933 = vmatprep.mubr.f32.mxu0 0.0
    %5934 = vmatmul.mubr.f32.gmra.mxu0 %v5849
    %v5935 = vpop.f32.mrf.mxu0
    %v5936 = vadd.f32 0.0, %v5935
    %v5937 = vpop.f32.mrf.mxu0
    %5938 = vdwg.mxu0
    %5939 = vmatprep.subr.mxu0 0.0
    %5940 = vmatpush1.msra.mxu0 %v5776
    %5941 = vmatprep.subr.mxu0 0.0
    %5942 = vmatpush1.msra.mxu0 %v5775
    %5943 = vmatprep.subr.mxu0 0.0
    %5944 = vmatpush1.msra.mxu0 %v5774
    %5945 = vmatprep.subr.mxu0 0.0
    %5946 = vmatpush1.msra.mxu0 %v5773
    %5947 = vmatprep.subr.mxu0 0.0
    %5948 = vmatpush1.msra.mxu0 %v5772
    %5949 = vmatprep.subr.mxu0 0.0
    %5950 = vmatpush1.msra.mxu0 %v5771
    %5951 = vmatprep.subr.mxu0 0.0
    %5952 = vmatpush1.msra.mxu0 %v5770
    %5953 = vmatprep.subr.mxu0 0.0
    %5954 = vmatpush1.msra.mxu0 %v5769
    %5955 = vmatprep.subr.mxu0 0.0
    %5956 = vmatpush1.msra.mxu0 %v5768
    %5957 = vmatprep.subr.mxu0 0.0
    %5958 = vmatpush1.msra.mxu0 %v5767
    %5959 = vmatprep.subr.mxu0 0.0
    %5960 = vmatpush1.msra.mxu0 %v5766
    %5961 = vmatprep.subr.mxu0 0.0
    %5962 = vmatpush1.msra.mxu0 %v5765
    %5963 = vmatprep.subr.mxu0 0.0
    %5964 = vmatpush1.msra.mxu0 %v5764
    %5965 = vmatprep.subr.mxu0 0.0
    %5966 = vmatpush1.msra.mxu0 %v5763
    %5967 = vmatprep.subr.mxu0 0.0
    %5968 = vmatpush1.msra.mxu0 %v5762
    %5969 = vmatprep.subr.mxu0 0.0
    %5970 = vmatpush1.msra.mxu0 %v5761
    %5971 = vmatprep.subr.mxu0 0.0
    %5972 = vmatpush2.msra.mxu0 0.0
    %5973 = vmatprep.subr.mxu0 0.0
    %5974 = vmatpush2.msra.mxu0 0.0
    %5975 = vmatprep.subr.mxu0 0.0
    %5976 = vmatpush2.msra.mxu0 0.0
    %5977 = vmatprep.subr.mxu0 0.0
    %5978 = vmatpush2.msra.mxu0 0.0
    %5979 = vmatprep.subr.mxu0 0.0
    %5980 = vmatpush2.msra.mxu0 0.0
    %5981 = vmatprep.subr.mxu0 0.0
    %5982 = vmatpush2.msra.mxu0 0.0
    %5983 = vmatprep.subr.mxu0 0.0
    %5984 = vmatpush2.msra.mxu0 0.0
    %5985 = vmatprep.subr.mxu0 0.0
    %5986 = vmatpush2.msra.mxu0 0.0
    %5987 = vmatprep.subr.mxu0 0.0
    %5988 = vmatpush2.msra.mxu0 0.0
    %5989 = vmatprep.subr.mxu0 0.0
    %5990 = vmatpush2.msra.mxu0 0.0
    %5991 = vmatprep.subr.mxu0 0.0
    %5992 = vmatpush2.msra.mxu0 0.0
    %5993 = vmatprep.subr.mxu0 0.0
    %5994 = vmatpush2.msra.mxu0 0.0
    %5995 = vmatprep.subr.mxu0 0.0
    %5996 = vmatpush2.msra.mxu0 0.0
    %5997 = vmatprep.subr.mxu0 0.0
    %5998 = vmatpush2.msra.mxu0 0.0
    %5999 = vmatprep.subr.mxu0 0.0
    %6000 = vmatpush2.msra.mxu0 0.0
    %6001 = vmatprep.subr.mxu0 0.0
    %6002 = vmatpush2.msra.mxu0 0.0
    %6003 = vmatprep.mubr.f32.mxu0 0.0
    %6004 = vmatmul.mubr.f32.gmra.mxu0 %v5758
    %v6005 = vpop.f32.mrf.mxu0
    %v6006 = vadd.f32 %v5936, %v6005
    %v6007 = vpop.f32.mrf.mxu0
    %6008 = vdwg.mxu0
    %s6009 = scalar_lea.vmem %s4, 2
    %v6010 = vld [vmem:[%s6009] sm:$0x1]
    %v6012 = vsel %vm5683, %v6010, 0
    %6014 = vmatprep.subr.mxu0 0.0
    %6015 = vmatpush1.msra.mxu0 0.0
    %6016 = vmatprep.subr.mxu0 0.0
    %6017 = vmatpush1.msra.mxu0 0.0
    %6018 = vmatprep.subr.mxu0 0.0
    %6019 = vmatpush1.msra.mxu0 0.0
    %6020 = vmatprep.subr.mxu0 0.0
    %6021 = vmatpush1.msra.mxu0 0.0
    %6022 = vmatprep.subr.mxu0 0.0
    %6023 = vmatpush1.msra.mxu0 0.0
    %6024 = vmatprep.subr.mxu0 0.0
    %6025 = vmatpush1.msra.mxu0 0.0
    %6026 = vmatprep.subr.mxu0 0.0
    %6027 = vmatpush1.msra.mxu0 0.0
    %6028 = vmatprep.subr.mxu0 0.0
    %6029 = vmatpush1.msra.mxu0 0.0
    %6030 = vmatprep.subr.mxu0 0.0
    %6031 = vmatpush1.msra.mxu0 0.0
    %6032 = vmatprep.subr.mxu0 0.0
    %6033 = vmatpush1.msra.mxu0 0.0
    %6034 = vmatprep.subr.mxu0 0.0
    %6035 = vmatpush1.msra.mxu0 0.0
    %6036 = vmatprep.subr.mxu0 0.0
    %6037 = vmatpush1.msra.mxu0 0.0
    %6038 = vmatprep.subr.mxu0 0.0
    %6039 = vmatpush1.msra.mxu0 0.0
    %6040 = vmatprep.subr.mxu0 0.0
    %6041 = vmatpush1.msra.mxu0 0.0
    %6042 = vmatprep.subr.mxu0 0.0
    %6043 = vmatpush1.msra.mxu0 0.0
    %6044 = vmatprep.subr.mxu0 0.0
    %6045 = vmatpush1.msra.mxu0 %v5689
    %6046 = vmatprep.subr.mxu0 0.0
    %6047 = vmatpush2.msra.mxu0 0.0
    %6048 = vmatprep.subr.mxu0 0.0
    %6049 = vmatpush2.msra.mxu0 0.0
    %6050 = vmatprep.subr.mxu0 0.0
    %6051 = vmatpush2.msra.mxu0 0.0
    %6052 = vmatprep.subr.mxu0 0.0
    %6053 = vmatpush2.msra.mxu0 0.0
    %6054 = vmatprep.subr.mxu0 0.0
    %6055 = vmatpush2.msra.mxu0 0.0
    %6056 = vmatprep.subr.mxu0 0.0
    %6057 = vmatpush2.msra.mxu0 0.0
    %6058 = vmatprep.subr.mxu0 0.0
    %6059 = vmatpush2.msra.mxu0 0.0
    %6060 = vmatprep.subr.mxu0 0.0
    %6061 = vmatpush2.msra.mxu0 0.0
    %6062 = vmatprep.subr.mxu0 0.0
    %6063 = vmatpush2.msra.mxu0 0.0
    %6064 = vmatprep.subr.mxu0 0.0
    %6065 = vmatpush2.msra.mxu0 0.0
    %6066 = vmatprep.subr.mxu0 0.0
    %6067 = vmatpush2.msra.mxu0 0.0
    %6068 = vmatprep.subr.mxu0 0.0
    %6069 = vmatpush2.msra.mxu0 0.0
    %6070 = vmatprep.subr.mxu0 0.0
    %6071 = vmatpush2.msra.mxu0 0.0
    %6072 = vmatprep.subr.mxu0 0.0
    %6073 = vmatpush2.msra.mxu0 0.0
    %6074 = vmatprep.subr.mxu0 0.0
    %6075 = vmatpush2.msra.mxu0 0.0
    %6076 = vmatprep.subr.mxu0 0.0
    %6077 = vmatpush2.msra.mxu0 0.0
    %6078 = vmatprep.mubr.f32.mxu0 0.0
    %6079 = vmatmul.mubr.f32.gmra.mxu0 %v6012
    %v6080 = vpop.f32.mrf.mxu0
    %v6081 = vadd.f32 0.0, %v6080
    %v6082 = vpop.f32.mrf.mxu0
    %6083 = vdwg.mxu0
    %s6084 = scalar_lea.vmem [#allocation9], 256
    %v6085 = vld [vmem:[%s6084] sm:$0xff]
    %v6086 = vld [vmem:[%s6084 + $0x8] sm:$0xff]
    %v6087 = vld [vmem:[%s6084 + $0x10] sm:$0xff]
    %v6088 = vld [vmem:[%s6084 + $0x18] sm:$0xff]
    %v6089 = vld [vmem:[%s6084 + $0x20] sm:$0xff]
    %v6090 = vld [vmem:[%s6084 + $0x28] sm:$0xff]
    %v6091 = vld [vmem:[%s6084 + $0x30] sm:$0xff]
    %v6092 = vld [vmem:[%s6084 + $0x38] sm:$0xff]
    %v6093 = vld [vmem:[%s6084 + $0x40] sm:$0xff]
    %v6094 = vld [vmem:[%s6084 + $0x48] sm:$0xff]
    %v6095 = vld [vmem:[%s6084 + $0x50] sm:$0xff]
    %v6096 = vld [vmem:[%s6084 + $0x58] sm:$0xff]
    %v6097 = vld [vmem:[%s6084 + $0x60] sm:$0xff]
    %v6098 = vld [vmem:[%s6084 + $0x68] sm:$0xff]
    %v6099 = vld [vmem:[%s6084 + $0x70] sm:$0xff]
    %v6100 = vld [vmem:[%s6084 + $0x78] sm:$0xff]
    %6101 = vmatprep.subr.mxu0 0.0
    %6102 = vmatpush1.msra.mxu0 %v6100
    %6103 = vmatprep.subr.mxu0 0.0
    %6104 = vmatpush1.msra.mxu0 %v6099
    %6105 = vmatprep.subr.mxu0 0.0
    %6106 = vmatpush1.msra.mxu0 %v6098
    %6107 = vmatprep.subr.mxu0 0.0
    %6108 = vmatpush1.msra.mxu0 %v6097
    %6109 = vmatprep.subr.mxu0 0.0
    %6110 = vmatpush1.msra.mxu0 %v6096
    %6111 = vmatprep.subr.mxu0 0.0
    %6112 = vmatpush1.msra.mxu0 %v6095
    %6113 = vmatprep.subr.mxu0 0.0
    %6114 = vmatpush1.msra.mxu0 %v6094
    %6115 = vmatprep.subr.mxu0 0.0
    %6116 = vmatpush1.msra.mxu0 %v6093
    %6117 = vmatprep.subr.mxu0 0.0
    %6118 = vmatpush1.msra.mxu0 %v6092
    %6119 = vmatprep.subr.mxu0 0.0
    %6120 = vmatpush1.msra.mxu0 %v6091
    %6121 = vmatprep.subr.mxu0 0.0
    %6122 = vmatpush1.msra.mxu0 %v6090
    %6123 = vmatprep.subr.mxu0 0.0
    %6124 = vmatpush1.msra.mxu0 %v6089
    %6125 = vmatprep.subr.mxu0 0.0
    %6126 = vmatpush1.msra.mxu0 %v6088
    %6127 = vmatprep.subr.mxu0 0.0
    %6128 = vmatpush1.msra.mxu0 %v6087
    %6129 = vmatprep.subr.mxu0 0.0
    %6130 = vmatpush1.msra.mxu0 %v6086
    %6131 = vmatprep.subr.mxu0 0.0
    %6132 = vmatpush1.msra.mxu0 %v6085
    %6133 = vmatprep.subr.mxu0 0.0
    %6134 = vmatpush2.msra.mxu0 0.0
    %6135 = vmatprep.subr.mxu0 0.0
    %6136 = vmatpush2.msra.mxu0 0.0
    %6137 = vmatprep.subr.mxu0 0.0
    %6138 = vmatpush2.msra.mxu0 0.0
    %6139 = vmatprep.subr.mxu0 0.0
    %6140 = vmatpush2.msra.mxu0 0.0
    %6141 = vmatprep.subr.mxu0 0.0
    %6142 = vmatpush2.msra.mxu0 0.0
    %6143 = vmatprep.subr.mxu0 0.0
    %6144 = vmatpush2.msra.mxu0 0.0
    %6145 = vmatprep.subr.mxu0 0.0
    %6146 = vmatpush2.msra.mxu0 0.0
    %6147 = vmatprep.subr.mxu0 0.0
    %6148 = vmatpush2.msra.mxu0 0.0
    %6149 = vmatprep.subr.mxu0 0.0
    %6150 = vmatpush2.msra.mxu0 0.0
    %6151 = vmatprep.subr.mxu0 0.0
    %6152 = vmatpush2.msra.mxu0 0.0
    %6153 = vmatprep.subr.mxu0 0.0
    %6154 = vmatpush2.msra.mxu0 0.0
    %6155 = vmatprep.subr.mxu0 0.0
    %6156 = vmatpush2.msra.mxu0 0.0
    %6157 = vmatprep.subr.mxu0 0.0
    %6158 = vmatpush2.msra.mxu0 0.0
    %6159 = vmatprep.subr.mxu0 0.0
    %6160 = vmatpush2.msra.mxu0 0.0
    %6161 = vmatprep.subr.mxu0 0.0
    %6162 = vmatpush2.msra.mxu0 0.0
    %6163 = vmatprep.subr.mxu0 0.0
    %6164 = vmatpush2.msra.mxu0 0.0
    %6165 = vmatprep.mubr.f32.mxu0 0.0
    %6166 = vmatmul.mubr.f32.gmra.mxu0 %v6081
    %v6167 = vpop.f32.mrf.mxu0
    %v6168 = vadd.f32 0.0, %v6167
    %v6169 = vpop.f32.mrf.mxu0
    %6170 = vdwg.mxu0
    %v6171 = vadd.f32 %v6006, %v6168
    %s6172 = scalar_lea.vmem %s4, 3
    %v6173 = vld [vmem:[%s6172] sm:$0x1]
    %v6175 = vsel %vm5683, %v6173, 0
    %6177 = vmatprep.subr.mxu0 0.0
    %6178 = vmatpush1.msra.mxu0 0.0
    %6179 = vmatprep.subr.mxu0 0.0
    %6180 = vmatpush1.msra.mxu0 0.0
    %6181 = vmatprep.subr.mxu0 0.0
    %6182 = vmatpush1.msra.mxu0 0.0
    %6183 = vmatprep.subr.mxu0 0.0
    %6184 = vmatpush1.msra.mxu0 0.0
    %6185 = vmatprep.subr.mxu0 0.0
    %6186 = vmatpush1.msra.mxu0 0.0
    %6187 = vmatprep.subr.mxu0 0.0
    %6188 = vmatpush1.msra.mxu0 0.0
    %6189 = vmatprep.subr.mxu0 0.0
    %6190 = vmatpush1.msra.mxu0 0.0
    %6191 = vmatprep.subr.mxu0 0.0
    %6192 = vmatpush1.msra.mxu0 0.0
    %6193 = vmatprep.subr.mxu0 0.0
    %6194 = vmatpush1.msra.mxu0 0.0
    %6195 = vmatprep.subr.mxu0 0.0
    %6196 = vmatpush1.msra.mxu0 0.0
    %6197 = vmatprep.subr.mxu0 0.0
    %6198 = vmatpush1.msra.mxu0 0.0
    %6199 = vmatprep.subr.mxu0 0.0
    %6200 = vmatpush1.msra.mxu0 0.0
    %6201 = vmatprep.subr.mxu0 0.0
    %6202 = vmatpush1.msra.mxu0 0.0
    %6203 = vmatprep.subr.mxu0 0.0
    %6204 = vmatpush1.msra.mxu0 0.0
    %6205 = vmatprep.subr.mxu0 0.0
    %6206 = vmatpush1.msra.mxu0 0.0
    %6207 = vmatprep.subr.mxu0 0.0
    %6208 = vmatpush1.msra.mxu0 %v5689
    %6209 = vmatprep.subr.mxu0 0.0
    %6210 = vmatpush2.msra.mxu0 0.0
    %6211 = vmatprep.subr.mxu0 0.0
    %6212 = vmatpush2.msra.mxu0 0.0
    %6213 = vmatprep.subr.mxu0 0.0
    %6214 = vmatpush2.msra.mxu0 0.0
    %6215 = vmatprep.subr.mxu0 0.0
    %6216 = vmatpush2.msra.mxu0 0.0
    %6217 = vmatprep.subr.mxu0 0.0
    %6218 = vmatpush2.msra.mxu0 0.0
    %6219 = vmatprep.subr.mxu0 0.0
    %6220 = vmatpush2.msra.mxu0 0.0
    %6221 = vmatprep.subr.mxu0 0.0
    %6222 = vmatpush2.msra.mxu0 0.0
    %6223 = vmatprep.subr.mxu0 0.0
    %6224 = vmatpush2.msra.mxu0 0.0
    %6225 = vmatprep.subr.mxu0 0.0
    %6226 = vmatpush2.msra.mxu0 0.0
    %6227 = vmatprep.subr.mxu0 0.0
    %6228 = vmatpush2.msra.mxu0 0.0
    %6229 = vmatprep.subr.mxu0 0.0
    %6230 = vmatpush2.msra.mxu0 0.0
    %6231 = vmatprep.subr.mxu0 0.0
    %6232 = vmatpush2.msra.mxu0 0.0
    %6233 = vmatprep.subr.mxu0 0.0
    %6234 = vmatpush2.msra.mxu0 0.0
    %6235 = vmatprep.subr.mxu0 0.0
    %6236 = vmatpush2.msra.mxu0 0.0
    %6237 = vmatprep.subr.mxu0 0.0
    %6238 = vmatpush2.msra.mxu0 0.0
    %6239 = vmatprep.subr.mxu0 0.0
    %6240 = vmatpush2.msra.mxu0 0.0
    %6241 = vmatprep.mubr.f32.mxu0 0.0
    %6242 = vmatmul.mubr.f32.gmra.mxu0 %v6175
    %v6243 = vpop.f32.mrf.mxu0
    %v6244 = vadd.f32 0.0, %v6243
    %v6245 = vpop.f32.mrf.mxu0
    %6246 = vdwg.mxu0
    %s6247 = scalar_lea.vmem [#allocation9], 384
    %v6248 = vld [vmem:[%s6247] sm:$0xff]
    %v6249 = vld [vmem:[%s6247 + $0x8] sm:$0xff]
    %v6250 = vld [vmem:[%s6247 + $0x10] sm:$0xff]
    %v6251 = vld [vmem:[%s6247 + $0x18] sm:$0xff]
    %v6252 = vld [vmem:[%s6247 + $0x20] sm:$0xff]
    %v6253 = vld [vmem:[%s6247 + $0x28] sm:$0xff]
    %v6254 = vld [vmem:[%s6247 + $0x30] sm:$0xff]
    %v6255 = vld [vmem:[%s6247 + $0x38] sm:$0xff]
    %v6256 = vld [vmem:[%s6247 + $0x40] sm:$0xff]
    %v6257 = vld [vmem:[%s6247 + $0x48] sm:$0xff]
    %v6258 = vld [vmem:[%s6247 + $0x50] sm:$0xff]
    %v6259 = vld [vmem:[%s6247 + $0x58] sm:$0xff]
    %v6260 = vld [vmem:[%s6247 + $0x60] sm:$0xff]
    %v6261 = vld [vmem:[%s6247 + $0x68] sm:$0xff]
    %v6262 = vld [vmem:[%s6247 + $0x70] sm:$0xff]
    %v6263 = vld [vmem:[%s6247 + $0x78] sm:$0xff]
    %6264 = vmatprep.subr.mxu0 0.0
    %6265 = vmatpush1.msra.mxu0 %v6263
    %6266 = vmatprep.subr.mxu0 0.0
    %6267 = vmatpush1.msra.mxu0 %v6262
    %6268 = vmatprep.subr.mxu0 0.0
    %6269 = vmatpush1.msra.mxu0 %v6261
    %6270 = vmatprep.subr.mxu0 0.0
    %6271 = vmatpush1.msra.mxu0 %v6260
    %6272 = vmatprep.subr.mxu0 0.0
    %6273 = vmatpush1.msra.mxu0 %v6259
    %6274 = vmatprep.subr.mxu0 0.0
    %6275 = vmatpush1.msra.mxu0 %v6258
    %6276 = vmatprep.subr.mxu0 0.0
    %6277 = vmatpush1.msra.mxu0 %v6257
    %6278 = vmatprep.subr.mxu0 0.0
    %6279 = vmatpush1.msra.mxu0 %v6256
    %6280 = vmatprep.subr.mxu0 0.0
    %6281 = vmatpush1.msra.mxu0 %v6255
    %6282 = vmatprep.subr.mxu0 0.0
    %6283 = vmatpush1.msra.mxu0 %v6254
    %6284 = vmatprep.subr.mxu0 0.0
    %6285 = vmatpush1.msra.mxu0 %v6253
    %6286 = vmatprep.subr.mxu0 0.0
    %6287 = vmatpush1.msra.mxu0 %v6252
    %6288 = vmatprep.subr.mxu0 0.0
    %6289 = vmatpush1.msra.mxu0 %v6251
    %6290 = vmatprep.subr.mxu0 0.0
    %6291 = vmatpush1.msra.mxu0 %v6250
    %6292 = vmatprep.subr.mxu0 0.0
    %6293 = vmatpush1.msra.mxu0 %v6249
    %6294 = vmatprep.subr.mxu0 0.0
    %6295 = vmatpush1.msra.mxu0 %v6248
    %6296 = vmatprep.subr.mxu0 0.0
    %6297 = vmatpush2.msra.mxu0 0.0
    %6298 = vmatprep.subr.mxu0 0.0
    %6299 = vmatpush2.msra.mxu0 0.0
    %6300 = vmatprep.subr.mxu0 0.0
    %6301 = vmatpush2.msra.mxu0 0.0
    %6302 = vmatprep.subr.mxu0 0.0
    %6303 = vmatpush2.msra.mxu0 0.0
    %6304 = vmatprep.subr.mxu0 0.0
    %6305 = vmatpush2.msra.mxu0 0.0
    %6306 = vmatprep.subr.mxu0 0.0
    %6307 = vmatpush2.msra.mxu0 0.0
    %6308 = vmatprep.subr.mxu0 0.0
    %6309 = vmatpush2.msra.mxu0 0.0
    %6310 = vmatprep.subr.mxu0 0.0
    %6311 = vmatpush2.msra.mxu0 0.0
    %6312 = vmatprep.subr.mxu0 0.0
    %6313 = vmatpush2.msra.mxu0 0.0
    %6314 = vmatprep.subr.mxu0 0.0
    %6315 = vmatpush2.msra.mxu0 0.0
    %6316 = vmatprep.subr.mxu0 0.0
    %6317 = vmatpush2.msra.mxu0 0.0
    %6318 = vmatprep.subr.mxu0 0.0
    %6319 = vmatpush2.msra.mxu0 0.0
    %6320 = vmatprep.subr.mxu0 0.0
    %6321 = vmatpush2.msra.mxu0 0.0
    %6322 = vmatprep.subr.mxu0 0.0
    %6323 = vmatpush2.msra.mxu0 0.0
    %6324 = vmatprep.subr.mxu0 0.0
    %6325 = vmatpush2.msra.mxu0 0.0
    %6326 = vmatprep.subr.mxu0 0.0
    %6327 = vmatpush2.msra.mxu0 0.0
    %6328 = vmatprep.mubr.f32.mxu0 0.0
    %6329 = vmatmul.mubr.f32.gmra.mxu0 %v6244
    %v6330 = vpop.f32.mrf.mxu0
    %v6331 = vadd.f32 0.0, %v6330
    %v6332 = vpop.f32.mrf.mxu0
    %6333 = vdwg.mxu0
    %v6334 = vadd.f32 %v6171, %v6331
    %s6335 = scalar_lea.vmem %s4, 4
    %v6336 = vld [vmem:[%s6335] sm:$0x1]
    %v6338 = vsel %vm5683, %v6336, 0
    %6340 = vmatprep.subr.mxu0 0.0
    %6341 = vmatpush1.msra.mxu0 0.0
    %6342 = vmatprep.subr.mxu0 0.0
    %6343 = vmatpush1.msra.mxu0 0.0
    %6344 = vmatprep.subr.mxu0 0.0
    %6345 = vmatpush1.msra.mxu0 0.0
    %6346 = vmatprep.subr.mxu0 0.0
    %6347 = vmatpush1.msra.mxu0 0.0
    %6348 = vmatprep.subr.mxu0 0.0
    %6349 = vmatpush1.msra.mxu0 0.0
    %6350 = vmatprep.subr.mxu0 0.0
    %6351 = vmatpush1.msra.mxu0 0.0
    %6352 = vmatprep.subr.mxu0 0.0
    %6353 = vmatpush1.msra.mxu0 0.0
    %6354 = vmatprep.subr.mxu0 0.0
    %6355 = vmatpush1.msra.mxu0 0.0
    %6356 = vmatprep.subr.mxu0 0.0
    %6357 = vmatpush1.msra.mxu0 0.0
    %6358 = vmatprep.subr.mxu0 0.0
    %6359 = vmatpush1.msra.mxu0 0.0
    %6360 = vmatprep.subr.mxu0 0.0
    %6361 = vmatpush1.msra.mxu0 0.0
    %6362 = vmatprep.subr.mxu0 0.0
    %6363 = vmatpush1.msra.mxu0 0.0
    %6364 = vmatprep.subr.mxu0 0.0
    %6365 = vmatpush1.msra.mxu0 0.0
    %6366 = vmatprep.subr.mxu0 0.0
    %6367 = vmatpush1.msra.mxu0 0.0
    %6368 = vmatprep.subr.mxu0 0.0
    %6369 = vmatpush1.msra.mxu0 0.0
    %6370 = vmatprep.subr.mxu0 0.0
    %6371 = vmatpush1.msra.mxu0 %v5689
    %6372 = vmatprep.subr.mxu0 0.0
    %6373 = vmatpush2.msra.mxu0 0.0
    %6374 = vmatprep.subr.mxu0 0.0
    %6375 = vmatpush2.msra.mxu0 0.0
    %6376 = vmatprep.subr.mxu0 0.0
    %6377 = vmatpush2.msra.mxu0 0.0
    %6378 = vmatprep.subr.mxu0 0.0
    %6379 = vmatpush2.msra.mxu0 0.0
    %6380 = vmatprep.subr.mxu0 0.0
    %6381 = vmatpush2.msra.mxu0 0.0
    %6382 = vmatprep.subr.mxu0 0.0
    %6383 = vmatpush2.msra.mxu0 0.0
    %6384 = vmatprep.subr.mxu0 0.0
    %6385 = vmatpush2.msra.mxu0 0.0
    %6386 = vmatprep.subr.mxu0 0.0
    %6387 = vmatpush2.msra.mxu0 0.0
    %6388 = vmatprep.subr.mxu0 0.0
    %6389 = vmatpush2.msra.mxu0 0.0
    %6390 = vmatprep.subr.mxu0 0.0
    %6391 = vmatpush2.msra.mxu0 0.0
    %6392 = vmatprep.subr.mxu0 0.0
    %6393 = vmatpush2.msra.mxu0 0.0
    %6394 = vmatprep.subr.mxu0 0.0
    %6395 = vmatpush2.msra.mxu0 0.0
    %6396 = vmatprep.subr.mxu0 0.0
    %6397 = vmatpush2.msra.mxu0 0.0
    %6398 = vmatprep.subr.mxu0 0.0
    %6399 = vmatpush2.msra.mxu0 0.0
    %6400 = vmatprep.subr.mxu0 0.0
    %6401 = vmatpush2.msra.mxu0 0.0
    %6402 = vmatprep.subr.mxu0 0.0
    %6403 = vmatpush2.msra.mxu0 0.0
    %6404 = vmatprep.mubr.f32.mxu0 0.0
    %6405 = vmatmul.mubr.f32.gmra.mxu0 %v6338
    %v6406 = vpop.f32.mrf.mxu0
    %v6407 = vadd.f32 0.0, %v6406
    %v6408 = vpop.f32.mrf.mxu0
    %6409 = vdwg.mxu0
    %s6410 = scalar_lea.vmem [#allocation9], 512
    %v6411 = vld [vmem:[%s6410] sm:$0xff]
    %v6412 = vld [vmem:[%s6410 + $0x8] sm:$0xff]
    %v6413 = vld [vmem:[%s6410 + $0x10] sm:$0xff]
    %v6414 = vld [vmem:[%s6410 + $0x18] sm:$0xff]
    %v6415 = vld [vmem:[%s6410 + $0x20] sm:$0xff]
    %v6416 = vld [vmem:[%s6410 + $0x28] sm:$0xff]
    %v6417 = vld [vmem:[%s6410 + $0x30] sm:$0xff]
    %v6418 = vld [vmem:[%s6410 + $0x38] sm:$0xff]
    %v6419 = vld [vmem:[%s6410 + $0x40] sm:$0xff]
    %v6420 = vld [vmem:[%s6410 + $0x48] sm:$0xff]
    %v6421 = vld [vmem:[%s6410 + $0x50] sm:$0xff]
    %v6422 = vld [vmem:[%s6410 + $0x58] sm:$0xff]
    %v6423 = vld [vmem:[%s6410 + $0x60] sm:$0xff]
    %v6424 = vld [vmem:[%s6410 + $0x68] sm:$0xff]
    %v6425 = vld [vmem:[%s6410 + $0x70] sm:$0xff]
    %v6426 = vld [vmem:[%s6410 + $0x78] sm:$0xff]
    %6427 = vmatprep.subr.mxu0 0.0
    %6428 = vmatpush1.msra.mxu0 %v6426
    %6429 = vmatprep.subr.mxu0 0.0
    %6430 = vmatpush1.msra.mxu0 %v6425
    %6431 = vmatprep.subr.mxu0 0.0
    %6432 = vmatpush1.msra.mxu0 %v6424
    %6433 = vmatprep.subr.mxu0 0.0
    %6434 = vmatpush1.msra.mxu0 %v6423
    %6435 = vmatprep.subr.mxu0 0.0
    %6436 = vmatpush1.msra.mxu0 %v6422
    %6437 = vmatprep.subr.mxu0 0.0
    %6438 = vmatpush1.msra.mxu0 %v6421
    %6439 = vmatprep.subr.mxu0 0.0
    %6440 = vmatpush1.msra.mxu0 %v6420
    %6441 = vmatprep.subr.mxu0 0.0
    %6442 = vmatpush1.msra.mxu0 %v6419
    %6443 = vmatprep.subr.mxu0 0.0
    %6444 = vmatpush1.msra.mxu0 %v6418
    %6445 = vmatprep.subr.mxu0 0.0
    %6446 = vmatpush1.msra.mxu0 %v6417
    %6447 = vmatprep.subr.mxu0 0.0
    %6448 = vmatpush1.msra.mxu0 %v6416
    %6449 = vmatprep.subr.mxu0 0.0
    %6450 = vmatpush1.msra.mxu0 %v6415
    %6451 = vmatprep.subr.mxu0 0.0
    %6452 = vmatpush1.msra.mxu0 %v6414
    %6453 = vmatprep.subr.mxu0 0.0
    %6454 = vmatpush1.msra.mxu0 %v6413
    %6455 = vmatprep.subr.mxu0 0.0
    %6456 = vmatpush1.msra.mxu0 %v6412
    %6457 = vmatprep.subr.mxu0 0.0
    %6458 = vmatpush1.msra.mxu0 %v6411
    %6459 = vmatprep.subr.mxu0 0.0
    %6460 = vmatpush2.msra.mxu0 0.0
    %6461 = vmatprep.subr.mxu0 0.0
    %6462 = vmatpush2.msra.mxu0 0.0
    %6463 = vmatprep.subr.mxu0 0.0
    %6464 = vmatpush2.msra.mxu0 0.0
    %6465 = vmatprep.subr.mxu0 0.0
    %6466 = vmatpush2.msra.mxu0 0.0
    %6467 = vmatprep.subr.mxu0 0.0
    %6468 = vmatpush2.msra.mxu0 0.0
    %6469 = vmatprep.subr.mxu0 0.0
    %6470 = vmatpush2.msra.mxu0 0.0
    %6471 = vmatprep.subr.mxu0 0.0
    %6472 = vmatpush2.msra.mxu0 0.0
    %6473 = vmatprep.subr.mxu0 0.0
    %6474 = vmatpush2.msra.mxu0 0.0
    %6475 = vmatprep.subr.mxu0 0.0
    %6476 = vmatpush2.msra.mxu0 0.0
    %6477 = vmatprep.subr.mxu0 0.0
    %6478 = vmatpush2.msra.mxu0 0.0
    %6479 = vmatprep.subr.mxu0 0.0
    %6480 = vmatpush2.msra.mxu0 0.0
    %6481 = vmatprep.subr.mxu0 0.0
    %6482 = vmatpush2.msra.mxu0 0.0
    %6483 = vmatprep.subr.mxu0 0.0
    %6484 = vmatpush2.msra.mxu0 0.0
    %6485 = vmatprep.subr.mxu0 0.0
    %6486 = vmatpush2.msra.mxu0 0.0
    %6487 = vmatprep.subr.mxu0 0.0
    %6488 = vmatpush2.msra.mxu0 0.0
    %6489 = vmatprep.subr.mxu0 0.0
    %6490 = vmatpush2.msra.mxu0 0.0
    %6491 = vmatprep.mubr.f32.mxu0 0.0
    %6492 = vmatmul.mubr.f32.gmra.mxu0 %v6407
    %v6493 = vpop.f32.mrf.mxu0
    %v6494 = vadd.f32 0.0, %v6493
    %v6495 = vpop.f32.mrf.mxu0
    %6496 = vdwg.mxu0
    %v6497 = vadd.f32 %v6334, %v6494
    %s6498 = scalar_lea.vmem %s4, 5
    %v6499 = vld [vmem:[%s6498] sm:$0x1]
    %v6501 = vsel %vm5683, %v6499, 0
    %6503 = vmatprep.subr.mxu0 0.0
    %6504 = vmatpush1.msra.mxu0 0.0
    %6505 = vmatprep.subr.mxu0 0.0
    %6506 = vmatpush1.msra.mxu0 0.0
    %6507 = vmatprep.subr.mxu0 0.0
    %6508 = vmatpush1.msra.mxu0 0.0
    %6509 = vmatprep.subr.mxu0 0.0
    %6510 = vmatpush1.msra.mxu0 0.0
    %6511 = vmatprep.subr.mxu0 0.0
    %6512 = vmatpush1.msra.mxu0 0.0
    %6513 = vmatprep.subr.mxu0 0.0
    %6514 = vmatpush1.msra.mxu0 0.0
    %6515 = vmatprep.subr.mxu0 0.0
    %6516 = vmatpush1.msra.mxu0 0.0
    %6517 = vmatprep.subr.mxu0 0.0
    %6518 = vmatpush1.msra.mxu0 0.0
    %6519 = vmatprep.subr.mxu0 0.0
    %6520 = vmatpush1.msra.mxu0 0.0
    %6521 = vmatprep.subr.mxu0 0.0
    %6522 = vmatpush1.msra.mxu0 0.0
    %6523 = vmatprep.subr.mxu0 0.0
    %6524 = vmatpush1.msra.mxu0 0.0
    %6525 = vmatprep.subr.mxu0 0.0
    %6526 = vmatpush1.msra.mxu0 0.0
    %6527 = vmatprep.subr.mxu0 0.0
    %6528 = vmatpush1.msra.mxu0 0.0
    %6529 = vmatprep.subr.mxu0 0.0
    %6530 = vmatpush1.msra.mxu0 0.0
    %6531 = vmatprep.subr.mxu0 0.0
    %6532 = vmatpush1.msra.mxu0 0.0
    %6533 = vmatprep.subr.mxu0 0.0
    %6534 = vmatpush1.msra.mxu0 %v5689
    %6535 = vmatprep.subr.mxu0 0.0
    %6536 = vmatpush2.msra.mxu0 0.0
    %6537 = vmatprep.subr.mxu0 0.0
    %6538 = vmatpush2.msra.mxu0 0.0
    %6539 = vmatprep.subr.mxu0 0.0
    %6540 = vmatpush2.msra.mxu0 0.0
    %6541 = vmatprep.subr.mxu0 0.0
    %6542 = vmatpush2.msra.mxu0 0.0
    %6543 = vmatprep.subr.mxu0 0.0
    %6544 = vmatpush2.msra.mxu0 0.0
    %6545 = vmatprep.subr.mxu0 0.0
    %6546 = vmatpush2.msra.mxu0 0.0
    %6547 = vmatprep.subr.mxu0 0.0
    %6548 = vmatpush2.msra.mxu0 0.0
    %6549 = vmatprep.subr.mxu0 0.0
    %6550 = vmatpush2.msra.mxu0 0.0
    %6551 = vmatprep.subr.mxu0 0.0
    %6552 = vmatpush2.msra.mxu0 0.0
    %6553 = vmatprep.subr.mxu0 0.0
    %6554 = vmatpush2.msra.mxu0 0.0
    %6555 = vmatprep.subr.mxu0 0.0
    %6556 = vmatpush2.msra.mxu0 0.0
    %6557 = vmatprep.subr.mxu0 0.0
    %6558 = vmatpush2.msra.mxu0 0.0
    %6559 = vmatprep.subr.mxu0 0.0
    %6560 = vmatpush2.msra.mxu0 0.0
    %6561 = vmatprep.subr.mxu0 0.0
    %6562 = vmatpush2.msra.mxu0 0.0
    %6563 = vmatprep.subr.mxu0 0.0
    %6564 = vmatpush2.msra.mxu0 0.0
    %6565 = vmatprep.subr.mxu0 0.0
    %6566 = vmatpush2.msra.mxu0 0.0
    %6567 = vmatprep.mubr.f32.mxu0 0.0
    %6568 = vmatmul.mubr.f32.gmra.mxu0 %v6501
    %v6569 = vpop.f32.mrf.mxu0
    %v6570 = vadd.f32 0.0, %v6569
    %v6571 = vpop.f32.mrf.mxu0
    %6572 = vdwg.mxu0
    %s6573 = scalar_lea.vmem [#allocation9], 640
    %v6574 = vld [vmem:[%s6573] sm:$0xff]
    %v6575 = vld [vmem:[%s6573 + $0x8] sm:$0xff]
    %v6576 = vld [vmem:[%s6573 + $0x10] sm:$0xff]
    %v6577 = vld [vmem:[%s6573 + $0x18] sm:$0xff]
    %v6578 = vld [vmem:[%s6573 + $0x20] sm:$0xff]
    %v6579 = vld [vmem:[%s6573 + $0x28] sm:$0xff]
    %v6580 = vld [vmem:[%s6573 + $0x30] sm:$0xff]
    %v6581 = vld [vmem:[%s6573 + $0x38] sm:$0xff]
    %v6582 = vld [vmem:[%s6573 + $0x40] sm:$0xff]
    %v6583 = vld [vmem:[%s6573 + $0x48] sm:$0xff]
    %v6584 = vld [vmem:[%s6573 + $0x50] sm:$0xff]
    %v6585 = vld [vmem:[%s6573 + $0x58] sm:$0xff]
    %v6586 = vld [vmem:[%s6573 + $0x60] sm:$0xff]
    %v6587 = vld [vmem:[%s6573 + $0x68] sm:$0xff]
    %v6588 = vld [vmem:[%s6573 + $0x70] sm:$0xff]
    %v6589 = vld [vmem:[%s6573 + $0x78] sm:$0xff]
    %6590 = vmatprep.subr.mxu0 0.0
    %6591 = vmatpush1.msra.mxu0 %v6589
    %6592 = vmatprep.subr.mxu0 0.0
    %6593 = vmatpush1.msra.mxu0 %v6588
    %6594 = vmatprep.subr.mxu0 0.0
    %6595 = vmatpush1.msra.mxu0 %v6587
    %6596 = vmatprep.subr.mxu0 0.0
    %6597 = vmatpush1.msra.mxu0 %v6586
    %6598 = vmatprep.subr.mxu0 0.0
    %6599 = vmatpush1.msra.mxu0 %v6585
    %6600 = vmatprep.subr.mxu0 0.0
    %6601 = vmatpush1.msra.mxu0 %v6584
    %6602 = vmatprep.subr.mxu0 0.0
    %6603 = vmatpush1.msra.mxu0 %v6583
    %6604 = vmatprep.subr.mxu0 0.0
    %6605 = vmatpush1.msra.mxu0 %v6582
    %6606 = vmatprep.subr.mxu0 0.0
    %6607 = vmatpush1.msra.mxu0 %v6581
    %6608 = vmatprep.subr.mxu0 0.0
    %6609 = vmatpush1.msra.mxu0 %v6580
    %6610 = vmatprep.subr.mxu0 0.0
    %6611 = vmatpush1.msra.mxu0 %v6579
    %6612 = vmatprep.subr.mxu0 0.0
    %6613 = vmatpush1.msra.mxu0 %v6578
    %6614 = vmatprep.subr.mxu0 0.0
    %6615 = vmatpush1.msra.mxu0 %v6577
    %6616 = vmatprep.subr.mxu0 0.0
    %6617 = vmatpush1.msra.mxu0 %v6576
    %6618 = vmatprep.subr.mxu0 0.0
    %6619 = vmatpush1.msra.mxu0 %v6575
    %6620 = vmatprep.subr.mxu0 0.0
    %6621 = vmatpush1.msra.mxu0 %v6574
    %6622 = vmatprep.subr.mxu0 0.0
    %6623 = vmatpush2.msra.mxu0 0.0
    %6624 = vmatprep.subr.mxu0 0.0
    %6625 = vmatpush2.msra.mxu0 0.0
    %6626 = vmatprep.subr.mxu0 0.0
    %6627 = vmatpush2.msra.mxu0 0.0
    %6628 = vmatprep.subr.mxu0 0.0
    %6629 = vmatpush2.msra.mxu0 0.0
    %6630 = vmatprep.subr.mxu0 0.0
    %6631 = vmatpush2.msra.mxu0 0.0
    %6632 = vmatprep.subr.mxu0 0.0
    %6633 = vmatpush2.msra.mxu0 0.0
    %6634 = vmatprep.subr.mxu0 0.0
    %6635 = vmatpush2.msra.mxu0 0.0
    %6636 = vmatprep.subr.mxu0 0.0
    %6637 = vmatpush2.msra.mxu0 0.0
    %6638 = vmatprep.subr.mxu0 0.0
    %6639 = vmatpush2.msra.mxu0 0.0
    %6640 = vmatprep.subr.mxu0 0.0
    %6641 = vmatpush2.msra.mxu0 0.0
    %6642 = vmatprep.subr.mxu0 0.0
    %6643 = vmatpush2.msra.mxu0 0.0
    %6644 = vmatprep.subr.mxu0 0.0
    %6645 = vmatpush2.msra.mxu0 0.0
    %6646 = vmatprep.subr.mxu0 0.0
    %6647 = vmatpush2.msra.mxu0 0.0
    %6648 = vmatprep.subr.mxu0 0.0
    %6649 = vmatpush2.msra.mxu0 0.0
    %6650 = vmatprep.subr.mxu0 0.0
    %6651 = vmatpush2.msra.mxu0 0.0
    %6652 = vmatprep.subr.mxu0 0.0
    %6653 = vmatpush2.msra.mxu0 0.0
    %6654 = vmatprep.mubr.f32.mxu0 0.0
    %6655 = vmatmul.mubr.f32.gmra.mxu0 %v6570
    %v6656 = vpop.f32.mrf.mxu0
    %v6657 = vadd.f32 0.0, %v6656
    %v6658 = vpop.f32.mrf.mxu0
    %6659 = vdwg.mxu0
    %v6660 = vadd.f32 %v6497, %v6657
    %s6661 = scalar_lea.vmem %s4, 6
    %v6662 = vld [vmem:[%s6661] sm:$0x1]
    %v6664 = vsel %vm5683, %v6662, 0
    %6666 = vmatprep.subr.mxu0 0.0
    %6667 = vmatpush1.msra.mxu0 0.0
    %6668 = vmatprep.subr.mxu0 0.0
    %6669 = vmatpush1.msra.mxu0 0.0
    %6670 = vmatprep.subr.mxu0 0.0
    %6671 = vmatpush1.msra.mxu0 0.0
    %6672 = vmatprep.subr.mxu0 0.0
    %6673 = vmatpush1.msra.mxu0 0.0
    %6674 = vmatprep.subr.mxu0 0.0
    %6675 = vmatpush1.msra.mxu0 0.0
    %6676 = vmatprep.subr.mxu0 0.0
    %6677 = vmatpush1.msra.mxu0 0.0
    %6678 = vmatprep.subr.mxu0 0.0
    %6679 = vmatpush1.msra.mxu0 0.0
    %6680 = vmatprep.subr.mxu0 0.0
    %6681 = vmatpush1.msra.mxu0 0.0
    %6682 = vmatprep.subr.mxu0 0.0
    %6683 = vmatpush1.msra.mxu0 0.0
    %6684 = vmatprep.subr.mxu0 0.0
    %6685 = vmatpush1.msra.mxu0 0.0
    %6686 = vmatprep.subr.mxu0 0.0
    %6687 = vmatpush1.msra.mxu0 0.0
    %6688 = vmatprep.subr.mxu0 0.0
    %6689 = vmatpush1.msra.mxu0 0.0
    %6690 = vmatprep.subr.mxu0 0.0
    %6691 = vmatpush1.msra.mxu0 0.0
    %6692 = vmatprep.subr.mxu0 0.0
    %6693 = vmatpush1.msra.mxu0 0.0
    %6694 = vmatprep.subr.mxu0 0.0
    %6695 = vmatpush1.msra.mxu0 0.0
    %6696 = vmatprep.subr.mxu0 0.0
    %6697 = vmatpush1.msra.mxu0 %v5689
    %6698 = vmatprep.subr.mxu0 0.0
    %6699 = vmatpush2.msra.mxu0 0.0
    %6700 = vmatprep.subr.mxu0 0.0
    %6701 = vmatpush2.msra.mxu0 0.0
    %6702 = vmatprep.subr.mxu0 0.0
    %6703 = vmatpush2.msra.mxu0 0.0
    %6704 = vmatprep.subr.mxu0 0.0
    %6705 = vmatpush2.msra.mxu0 0.0
    %6706 = vmatprep.subr.mxu0 0.0
    %6707 = vmatpush2.msra.mxu0 0.0
    %6708 = vmatprep.subr.mxu0 0.0
    %6709 = vmatpush2.msra.mxu0 0.0
    %6710 = vmatprep.subr.mxu0 0.0
    %6711 = vmatpush2.msra.mxu0 0.0
    %6712 = vmatprep.subr.mxu0 0.0
    %6713 = vmatpush2.msra.mxu0 0.0
    %6714 = vmatprep.subr.mxu0 0.0
    %6715 = vmatpush2.msra.mxu0 0.0
    %6716 = vmatprep.subr.mxu0 0.0
    %6717 = vmatpush2.msra.mxu0 0.0
    %6718 = vmatprep.subr.mxu0 0.0
    %6719 = vmatpush2.msra.mxu0 0.0
    %6720 = vmatprep.subr.mxu0 0.0
    %6721 = vmatpush2.msra.mxu0 0.0
    %6722 = vmatprep.subr.mxu0 0.0
    %6723 = vmatpush2.msra.mxu0 0.0
    %6724 = vmatprep.subr.mxu0 0.0
    %6725 = vmatpush2.msra.mxu0 0.0
    %6726 = vmatprep.subr.mxu0 0.0
    %6727 = vmatpush2.msra.mxu0 0.0
    %6728 = vmatprep.subr.mxu0 0.0
    %6729 = vmatpush2.msra.mxu0 0.0
    %6730 = vmatprep.mubr.f32.mxu0 0.0
    %6731 = vmatmul.mubr.f32.gmra.mxu0 %v6664
    %v6732 = vpop.f32.mrf.mxu0
    %v6733 = vadd.f32 0.0, %v6732
    %v6734 = vpop.f32.mrf.mxu0
    %6735 = vdwg.mxu0
    %s6736 = scalar_lea.vmem [#allocation9], 768
    %v6737 = vld [vmem:[%s6736] sm:$0xff]
    %v6738 = vld [vmem:[%s6736 + $0x8] sm:$0xff]
    %v6739 = vld [vmem:[%s6736 + $0x10] sm:$0xff]
    %v6740 = vld [vmem:[%s6736 + $0x18] sm:$0xff]
    %v6741 = vld [vmem:[%s6736 + $0x20] sm:$0xff]
    %v6742 = vld [vmem:[%s6736 + $0x28] sm:$0xff]
    %v6743 = vld [vmem:[%s6736 + $0x30] sm:$0xff]
    %v6744 = vld [vmem:[%s6736 + $0x38] sm:$0xff]
    %v6745 = vld [vmem:[%s6736 + $0x40] sm:$0xff]
    %v6746 = vld [vmem:[%s6736 + $0x48] sm:$0xff]
    %v6747 = vld [vmem:[%s6736 + $0x50] sm:$0xff]
    %v6748 = vld [vmem:[%s6736 + $0x58] sm:$0xff]
    %v6749 = vld [vmem:[%s6736 + $0x60] sm:$0xff]
    %v6750 = vld [vmem:[%s6736 + $0x68] sm:$0xff]
    %v6751 = vld [vmem:[%s6736 + $0x70] sm:$0xff]
    %v6752 = vld [vmem:[%s6736 + $0x78] sm:$0xff]
    %6753 = vmatprep.subr.mxu0 0.0
    %6754 = vmatpush1.msra.mxu0 %v6752
    %6755 = vmatprep.subr.mxu0 0.0
    %6756 = vmatpush1.msra.mxu0 %v6751
    %6757 = vmatprep.subr.mxu0 0.0
    %6758 = vmatpush1.msra.mxu0 %v6750
    %6759 = vmatprep.subr.mxu0 0.0
    %6760 = vmatpush1.msra.mxu0 %v6749
    %6761 = vmatprep.subr.mxu0 0.0
    %6762 = vmatpush1.msra.mxu0 %v6748
    %6763 = vmatprep.subr.mxu0 0.0
    %6764 = vmatpush1.msra.mxu0 %v6747
    %6765 = vmatprep.subr.mxu0 0.0
    %6766 = vmatpush1.msra.mxu0 %v6746
    %6767 = vmatprep.subr.mxu0 0.0
    %6768 = vmatpush1.msra.mxu0 %v6745
    %6769 = vmatprep.subr.mxu0 0.0
    %6770 = vmatpush1.msra.mxu0 %v6744
    %6771 = vmatprep.subr.mxu0 0.0
    %6772 = vmatpush1.msra.mxu0 %v6743
    %6773 = vmatprep.subr.mxu0 0.0
    %6774 = vmatpush1.msra.mxu0 %v6742
    %6775 = vmatprep.subr.mxu0 0.0
    %6776 = vmatpush1.msra.mxu0 %v6741
    %6777 = vmatprep.subr.mxu0 0.0
    %6778 = vmatpush1.msra.mxu0 %v6740
    %6779 = vmatprep.subr.mxu0 0.0
    %6780 = vmatpush1.msra.mxu0 %v6739
    %6781 = vmatprep.subr.mxu0 0.0
    %6782 = vmatpush1.msra.mxu0 %v6738
    %6783 = vmatprep.subr.mxu0 0.0
    %6784 = vmatpush1.msra.mxu0 %v6737
    %6785 = vmatprep.subr.mxu0 0.0
    %6786 = vmatpush2.msra.mxu0 0.0
    %6787 = vmatprep.subr.mxu0 0.0
    %6788 = vmatpush2.msra.mxu0 0.0
    %6789 = vmatprep.subr.mxu0 0.0
    %6790 = vmatpush2.msra.mxu0 0.0
    %6791 = vmatprep.subr.mxu0 0.0
    %6792 = vmatpush2.msra.mxu0 0.0
    %6793 = vmatprep.subr.mxu0 0.0
    %6794 = vmatpush2.msra.mxu0 0.0
    %6795 = vmatprep.subr.mxu0 0.0
    %6796 = vmatpush2.msra.mxu0 0.0
    %6797 = vmatprep.subr.mxu0 0.0
    %6798 = vmatpush2.msra.mxu0 0.0
    %6799 = vmatprep.subr.mxu0 0.0
    %6800 = vmatpush2.msra.mxu0 0.0
    %6801 = vmatprep.subr.mxu0 0.0
    %6802 = vmatpush2.msra.mxu0 0.0
    %6803 = vmatprep.subr.mxu0 0.0
    %6804 = vmatpush2.msra.mxu0 0.0
    %6805 = vmatprep.subr.mxu0 0.0
    %6806 = vmatpush2.msra.mxu0 0.0
    %6807 = vmatprep.subr.mxu0 0.0
    %6808 = vmatpush2.msra.mxu0 0.0
    %6809 = vmatprep.subr.mxu0 0.0
    %6810 = vmatpush2.msra.mxu0 0.0
    %6811 = vmatprep.subr.mxu0 0.0
    %6812 = vmatpush2.msra.mxu0 0.0
    %6813 = vmatprep.subr.mxu0 0.0
    %6814 = vmatpush2.msra.mxu0 0.0
    %6815 = vmatprep.subr.mxu0 0.0
    %6816 = vmatpush2.msra.mxu0 0.0
    %6817 = vmatprep.mubr.f32.mxu0 0.0
    %6818 = vmatmul.mubr.f32.gmra.mxu0 %v6733
    %v6819 = vpop.f32.mrf.mxu0
    %v6820 = vadd.f32 0.0, %v6819
    %v6821 = vpop.f32.mrf.mxu0
    %6822 = vdwg.mxu0
    %v6823 = vadd.f32 %v6660, %v6820
    %s6824 = scalar_lea.vmem %s4, 7
    %v6825 = vld [vmem:[%s6824] sm:$0x1]
    %v6827 = vsel %vm5683, %v6825, 0
    %6829 = vmatprep.subr.mxu0 0.0
    %6830 = vmatpush1.msra.mxu0 0.0
    %6831 = vmatprep.subr.mxu0 0.0
    %6832 = vmatpush1.msra.mxu0 0.0
    %6833 = vmatprep.subr.mxu0 0.0
    %6834 = vmatpush1.msra.mxu0 0.0
    %6835 = vmatprep.subr.mxu0 0.0
    %6836 = vmatpush1.msra.mxu0 0.0
    %6837 = vmatprep.subr.mxu0 0.0
    %6838 = vmatpush1.msra.mxu0 0.0
    %6839 = vmatprep.subr.mxu0 0.0
    %6840 = vmatpush1.msra.mxu0 0.0
    %6841 = vmatprep.subr.mxu0 0.0
    %6842 = vmatpush1.msra.mxu0 0.0
    %6843 = vmatprep.subr.mxu0 0.0
    %6844 = vmatpush1.msra.mxu0 0.0
    %6845 = vmatprep.subr.mxu0 0.0
    %6846 = vmatpush1.msra.mxu0 0.0
    %6847 = vmatprep.subr.mxu0 0.0
    %6848 = vmatpush1.msra.mxu0 0.0
    %6849 = vmatprep.subr.mxu0 0.0
    %6850 = vmatpush1.msra.mxu0 0.0
    %6851 = vmatprep.subr.mxu0 0.0
    %6852 = vmatpush1.msra.mxu0 0.0
    %6853 = vmatprep.subr.mxu0 0.0
    %6854 = vmatpush1.msra.mxu0 0.0
    %6855 = vmatprep.subr.mxu0 0.0
    %6856 = vmatpush1.msra.mxu0 0.0
    %6857 = vmatprep.subr.mxu0 0.0
    %6858 = vmatpush1.msra.mxu0 0.0
    %6859 = vmatprep.subr.mxu0 0.0
    %6860 = vmatpush1.msra.mxu0 %v5689
    %6861 = vmatprep.subr.mxu0 0.0
    %6862 = vmatpush2.msra.mxu0 0.0
    %6863 = vmatprep.subr.mxu0 0.0
    %6864 = vmatpush2.msra.mxu0 0.0
    %6865 = vmatprep.subr.mxu0 0.0
    %6866 = vmatpush2.msra.mxu0 0.0
    %6867 = vmatprep.subr.mxu0 0.0
    %6868 = vmatpush2.msra.mxu0 0.0
    %6869 = vmatprep.subr.mxu0 0.0
    %6870 = vmatpush2.msra.mxu0 0.0
    %6871 = vmatprep.subr.mxu0 0.0
    %6872 = vmatpush2.msra.mxu0 0.0
    %6873 = vmatprep.subr.mxu0 0.0
    %6874 = vmatpush2.msra.mxu0 0.0
    %6875 = vmatprep.subr.mxu0 0.0
    %6876 = vmatpush2.msra.mxu0 0.0
    %6877 = vmatprep.subr.mxu0 0.0
    %6878 = vmatpush2.msra.mxu0 0.0
    %6879 = vmatprep.subr.mxu0 0.0
    %6880 = vmatpush2.msra.mxu0 0.0
    %6881 = vmatprep.subr.mxu0 0.0
    %6882 = vmatpush2.msra.mxu0 0.0
    %6883 = vmatprep.subr.mxu0 0.0
    %6884 = vmatpush2.msra.mxu0 0.0
    %6885 = vmatprep.subr.mxu0 0.0
    %6886 = vmatpush2.msra.mxu0 0.0
    %6887 = vmatprep.subr.mxu0 0.0
    %6888 = vmatpush2.msra.mxu0 0.0
    %6889 = vmatprep.subr.mxu0 0.0
    %6890 = vmatpush2.msra.mxu0 0.0
    %6891 = vmatprep.subr.mxu0 0.0
    %6892 = vmatpush2.msra.mxu0 0.0
    %6893 = vmatprep.mubr.f32.mxu0 0.0
    %6894 = vmatmul.mubr.f32.gmra.mxu0 %v6827
    %v6895 = vpop.f32.mrf.mxu0
    %v6896 = vadd.f32 0.0, %v6895
    %v6897 = vpop.f32.mrf.mxu0
    %6898 = vdwg.mxu0
    %s6899 = scalar_lea.vmem [#allocation9], 896
    %v6900 = vld [vmem:[%s6899] sm:$0xff]
    %v6901 = vld [vmem:[%s6899 + $0x8] sm:$0xff]
    %v6902 = vld [vmem:[%s6899 + $0x10] sm:$0xff]
    %v6903 = vld [vmem:[%s6899 + $0x18] sm:$0xff]
    %v6904 = vld [vmem:[%s6899 + $0x20] sm:$0xff]
    %v6905 = vld [vmem:[%s6899 + $0x28] sm:$0xff]
    %v6906 = vld [vmem:[%s6899 + $0x30] sm:$0xff]
    %v6907 = vld [vmem:[%s6899 + $0x38] sm:$0xff]
    %v6908 = vld [vmem:[%s6899 + $0x40] sm:$0xff]
    %v6909 = vld [vmem:[%s6899 + $0x48] sm:$0xff]
    %v6910 = vld [vmem:[%s6899 + $0x50] sm:$0xff]
    %v6911 = vld [vmem:[%s6899 + $0x58] sm:$0xff]
    %v6912 = vld [vmem:[%s6899 + $0x60] sm:$0xff]
    %v6913 = vld [vmem:[%s6899 + $0x68] sm:$0xff]
    %v6914 = vld [vmem:[%s6899 + $0x70] sm:$0xff]
    %v6915 = vld [vmem:[%s6899 + $0x78] sm:$0xff]
    %6916 = vmatprep.subr.mxu0 0.0
    %6917 = vmatpush1.msra.mxu0 %v6915
    %6918 = vmatprep.subr.mxu0 0.0
    %6919 = vmatpush1.msra.mxu0 %v6914
    %6920 = vmatprep.subr.mxu0 0.0
    %6921 = vmatpush1.msra.mxu0 %v6913
    %6922 = vmatprep.subr.mxu0 0.0
    %6923 = vmatpush1.msra.mxu0 %v6912
    %6924 = vmatprep.subr.mxu0 0.0
    %6925 = vmatpush1.msra.mxu0 %v6911
    %6926 = vmatprep.subr.mxu0 0.0
    %6927 = vmatpush1.msra.mxu0 %v6910
    %6928 = vmatprep.subr.mxu0 0.0
    %6929 = vmatpush1.msra.mxu0 %v6909
    %6930 = vmatprep.subr.mxu0 0.0
    %6931 = vmatpush1.msra.mxu0 %v6908
    %6932 = vmatprep.subr.mxu0 0.0
    %6933 = vmatpush1.msra.mxu0 %v6907
    %6934 = vmatprep.subr.mxu0 0.0
    %6935 = vmatpush1.msra.mxu0 %v6906
    %6936 = vmatprep.subr.mxu0 0.0
    %6937 = vmatpush1.msra.mxu0 %v6905
    %6938 = vmatprep.subr.mxu0 0.0
    %6939 = vmatpush1.msra.mxu0 %v6904
    %6940 = vmatprep.subr.mxu0 0.0
    %6941 = vmatpush1.msra.mxu0 %v6903
    %6942 = vmatprep.subr.mxu0 0.0
    %6943 = vmatpush1.msra.mxu0 %v6902
    %6944 = vmatprep.subr.mxu0 0.0
    %6945 = vmatpush1.msra.mxu0 %v6901
    %6946 = vmatprep.subr.mxu0 0.0
    %6947 = vmatpush1.msra.mxu0 %v6900
    %6948 = vmatprep.subr.mxu0 0.0
    %6949 = vmatpush2.msra.mxu0 0.0
    %6950 = vmatprep.subr.mxu0 0.0
    %6951 = vmatpush2.msra.mxu0 0.0
    %6952 = vmatprep.subr.mxu0 0.0
    %6953 = vmatpush2.msra.mxu0 0.0
    %6954 = vmatprep.subr.mxu0 0.0
    %6955 = vmatpush2.msra.mxu0 0.0
    %6956 = vmatprep.subr.mxu0 0.0
    %6957 = vmatpush2.msra.mxu0 0.0
    %6958 = vmatprep.subr.mxu0 0.0
    %6959 = vmatpush2.msra.mxu0 0.0
    %6960 = vmatprep.subr.mxu0 0.0
    %6961 = vmatpush2.msra.mxu0 0.0
    %6962 = vmatprep.subr.mxu0 0.0
    %6963 = vmatpush2.msra.mxu0 0.0
    %6964 = vmatprep.subr.mxu0 0.0
    %6965 = vmatpush2.msra.mxu0 0.0
    %6966 = vmatprep.subr.mxu0 0.0
    %6967 = vmatpush2.msra.mxu0 0.0
    %6968 = vmatprep.subr.mxu0 0.0
    %6969 = vmatpush2.msra.mxu0 0.0
    %6970 = vmatprep.subr.mxu0 0.0
    %6971 = vmatpush2.msra.mxu0 0.0
    %6972 = vmatprep.subr.mxu0 0.0
    %6973 = vmatpush2.msra.mxu0 0.0
    %6974 = vmatprep.subr.mxu0 0.0
    %6975 = vmatpush2.msra.mxu0 0.0
    %6976 = vmatprep.subr.mxu0 0.0
    %6977 = vmatpush2.msra.mxu0 0.0
    %6978 = vmatprep.subr.mxu0 0.0
    %6979 = vmatpush2.msra.mxu0 0.0
    %6980 = vmatprep.mubr.f32.mxu0 0.0
    %6981 = vmatmul.mubr.f32.gmra.mxu0 %v6896
    %v6982 = vpop.f32.mrf.mxu0
    %v6983 = vadd.f32 0.0, %v6982
    %v6984 = vpop.f32.mrf.mxu0
    %6985 = vdwg.mxu0
    %v6986 = vadd.f32 %v6823, %v6983
    %s6987 = scalar_lea.vmem %s4, 8
    %v6988 = vld [vmem:[%s6987] sm:$0x1]
    %v6990 = vsel %vm5683, %v6988, 0
    %6992 = vmatprep.subr.mxu0 0.0
    %6993 = vmatpush1.msra.mxu0 0.0
    %6994 = vmatprep.subr.mxu0 0.0
    %6995 = vmatpush1.msra.mxu0 0.0
    %6996 = vmatprep.subr.mxu0 0.0
    %6997 = vmatpush1.msra.mxu0 0.0
    %6998 = vmatprep.subr.mxu0 0.0
    %6999 = vmatpush1.msra.mxu0 0.0
    %7000 = vmatprep.subr.mxu0 0.0
    %7001 = vmatpush1.msra.mxu0 0.0
    %7002 = vmatprep.subr.mxu0 0.0
    %7003 = vmatpush1.msra.mxu0 0.0
    %7004 = vmatprep.subr.mxu0 0.0
    %7005 = vmatpush1.msra.mxu0 0.0
    %7006 = vmatprep.subr.mxu0 0.0
    %7007 = vmatpush1.msra.mxu0 0.0
    %7008 = vmatprep.subr.mxu0 0.0
    %7009 = vmatpush1.msra.mxu0 0.0
    %7010 = vmatprep.subr.mxu0 0.0
    %7011 = vmatpush1.msra.mxu0 0.0
    %7012 = vmatprep.subr.mxu0 0.0
    %7013 = vmatpush1.msra.mxu0 0.0
    %7014 = vmatprep.subr.mxu0 0.0
    %7015 = vmatpush1.msra.mxu0 0.0
    %7016 = vmatprep.subr.mxu0 0.0
    %7017 = vmatpush1.msra.mxu0 0.0
    %7018 = vmatprep.subr.mxu0 0.0
    %7019 = vmatpush1.msra.mxu0 0.0
    %7020 = vmatprep.subr.mxu0 0.0
    %7021 = vmatpush1.msra.mxu0 0.0
    %7022 = vmatprep.subr.mxu0 0.0
    %7023 = vmatpush1.msra.mxu0 %v5689
    %7024 = vmatprep.subr.mxu0 0.0
    %7025 = vmatpush2.msra.mxu0 0.0
    %7026 = vmatprep.subr.mxu0 0.0
    %7027 = vmatpush2.msra.mxu0 0.0
    %7028 = vmatprep.subr.mxu0 0.0
    %7029 = vmatpush2.msra.mxu0 0.0
    %7030 = vmatprep.subr.mxu0 0.0
    %7031 = vmatpush2.msra.mxu0 0.0
    %7032 = vmatprep.subr.mxu0 0.0
    %7033 = vmatpush2.msra.mxu0 0.0
    %7034 = vmatprep.subr.mxu0 0.0
    %7035 = vmatpush2.msra.mxu0 0.0
    %7036 = vmatprep.subr.mxu0 0.0
    %7037 = vmatpush2.msra.mxu0 0.0
    %7038 = vmatprep.subr.mxu0 0.0
    %7039 = vmatpush2.msra.mxu0 0.0
    %7040 = vmatprep.subr.mxu0 0.0
    %7041 = vmatpush2.msra.mxu0 0.0
    %7042 = vmatprep.subr.mxu0 0.0
    %7043 = vmatpush2.msra.mxu0 0.0
    %7044 = vmatprep.subr.mxu0 0.0
    %7045 = vmatpush2.msra.mxu0 0.0
    %7046 = vmatprep.subr.mxu0 0.0
    %7047 = vmatpush2.msra.mxu0 0.0
    %7048 = vmatprep.subr.mxu0 0.0
    %7049 = vmatpush2.msra.mxu0 0.0
    %7050 = vmatprep.subr.mxu0 0.0
    %7051 = vmatpush2.msra.mxu0 0.0
    %7052 = vmatprep.subr.mxu0 0.0
    %7053 = vmatpush2.msra.mxu0 0.0
    %7054 = vmatprep.subr.mxu0 0.0
    %7055 = vmatpush2.msra.mxu0 0.0
    %7056 = vmatprep.mubr.f32.mxu0 0.0
    %7057 = vmatmul.mubr.f32.gmra.mxu0 %v6990
    %v7058 = vpop.f32.mrf.mxu0
    %v7059 = vadd.f32 0.0, %v7058
    %v7060 = vpop.f32.mrf.mxu0
    %7061 = vdwg.mxu0
    %s7062 = scalar_lea.vmem [#allocation9], 1024
    %v7063 = vld [vmem:[%s7062] sm:$0xff]
    %v7064 = vld [vmem:[%s7062 + $0x8] sm:$0xff]
    %v7065 = vld [vmem:[%s7062 + $0x10] sm:$0xff]
    %v7066 = vld [vmem:[%s7062 + $0x18] sm:$0xff]
    %v7067 = vld [vmem:[%s7062 + $0x20] sm:$0xff]
    %v7068 = vld [vmem:[%s7062 + $0x28] sm:$0xff]
    %v7069 = vld [vmem:[%s7062 + $0x30] sm:$0xff]
    %v7070 = vld [vmem:[%s7062 + $0x38] sm:$0xff]
    %v7071 = vld [vmem:[%s7062 + $0x40] sm:$0xff]
    %v7072 = vld [vmem:[%s7062 + $0x48] sm:$0xff]
    %v7073 = vld [vmem:[%s7062 + $0x50] sm:$0xff]
    %v7074 = vld [vmem:[%s7062 + $0x58] sm:$0xff]
    %v7075 = vld [vmem:[%s7062 + $0x60] sm:$0xff]
    %v7076 = vld [vmem:[%s7062 + $0x68] sm:$0xff]
    %v7077 = vld [vmem:[%s7062 + $0x70] sm:$0xff]
    %v7078 = vld [vmem:[%s7062 + $0x78] sm:$0xff]
    %7079 = vmatprep.subr.mxu0 0.0
    %7080 = vmatpush1.msra.mxu0 %v7078
    %7081 = vmatprep.subr.mxu0 0.0
    %7082 = vmatpush1.msra.mxu0 %v7077
    %7083 = vmatprep.subr.mxu0 0.0
    %7084 = vmatpush1.msra.mxu0 %v7076
    %7085 = vmatprep.subr.mxu0 0.0
    %7086 = vmatpush1.msra.mxu0 %v7075
    %7087 = vmatprep.subr.mxu0 0.0
    %7088 = vmatpush1.msra.mxu0 %v7074
    %7089 = vmatprep.subr.mxu0 0.0
    %7090 = vmatpush1.msra.mxu0 %v7073
    %7091 = vmatprep.subr.mxu0 0.0
    %7092 = vmatpush1.msra.mxu0 %v7072
    %7093 = vmatprep.subr.mxu0 0.0
    %7094 = vmatpush1.msra.mxu0 %v7071
    %7095 = vmatprep.subr.mxu0 0.0
    %7096 = vmatpush1.msra.mxu0 %v7070
    %7097 = vmatprep.subr.mxu0 0.0
    %7098 = vmatpush1.msra.mxu0 %v7069
    %7099 = vmatprep.subr.mxu0 0.0
    %7100 = vmatpush1.msra.mxu0 %v7068
    %7101 = vmatprep.subr.mxu0 0.0
    %7102 = vmatpush1.msra.mxu0 %v7067
    %7103 = vmatprep.subr.mxu0 0.0
    %7104 = vmatpush1.msra.mxu0 %v7066
    %7105 = vmatprep.subr.mxu0 0.0
    %7106 = vmatpush1.msra.mxu0 %v7065
    %7107 = vmatprep.subr.mxu0 0.0
    %7108 = vmatpush1.msra.mxu0 %v7064
    %7109 = vmatprep.subr.mxu0 0.0
    %7110 = vmatpush1.msra.mxu0 %v7063
    %7111 = vmatprep.subr.mxu0 0.0
    %7112 = vmatpush2.msra.mxu0 0.0
    %7113 = vmatprep.subr.mxu0 0.0
    %7114 = vmatpush2.msra.mxu0 0.0
    %7115 = vmatprep.subr.mxu0 0.0
    %7116 = vmatpush2.msra.mxu0 0.0
    %7117 = vmatprep.subr.mxu0 0.0
    %7118 = vmatpush2.msra.mxu0 0.0
    %7119 = vmatprep.subr.mxu0 0.0
    %7120 = vmatpush2.msra.mxu0 0.0
    %7121 = vmatprep.subr.mxu0 0.0
    %7122 = vmatpush2.msra.mxu0 0.0
    %7123 = vmatprep.subr.mxu0 0.0
    %7124 = vmatpush2.msra.mxu0 0.0
    %7125 = vmatprep.subr.mxu0 0.0
    %7126 = vmatpush2.msra.mxu0 0.0
    %7127 = vmatprep.subr.mxu0 0.0
    %7128 = vmatpush2.msra.mxu0 0.0
    %7129 = vmatprep.subr.mxu0 0.0
    %7130 = vmatpush2.msra.mxu0 0.0
    %7131 = vmatprep.subr.mxu0 0.0
    %7132 = vmatpush2.msra.mxu0 0.0
    %7133 = vmatprep.subr.mxu0 0.0
    %7134 = vmatpush2.msra.mxu0 0.0
    %7135 = vmatprep.subr.mxu0 0.0
    %7136 = vmatpush2.msra.mxu0 0.0
    %7137 = vmatprep.subr.mxu0 0.0
    %7138 = vmatpush2.msra.mxu0 0.0
    %7139 = vmatprep.subr.mxu0 0.0
    %7140 = vmatpush2.msra.mxu0 0.0
    %7141 = vmatprep.subr.mxu0 0.0
    %7142 = vmatpush2.msra.mxu0 0.0
    %7143 = vmatprep.mubr.f32.mxu0 0.0
    %7144 = vmatmul.mubr.f32.gmra.mxu0 %v7059
    %v7145 = vpop.f32.mrf.mxu0
    %v7146 = vadd.f32 0.0, %v7145
    %v7147 = vpop.f32.mrf.mxu0
    %7148 = vdwg.mxu0
    %v7149 = vadd.f32 %v6986, %v7146
    %s7150 = scalar_lea.vmem %s9, 3
    %v7151 = vld [vmem:[%s7150] sm:$0x1]
    %v7152 = vadd.f32 %v7149, %v7151
    %v7153 = vmul.f32 %v7152, 0.2
    %v7154 = vmax.f32 %v7152, %v7153
    %s7155 = scalar_lea.vmem %s10, 3
    %v7156 = vld [vmem:[%s7155] sm:$0x1]
    %v7157 = vmul.f32 %v7154, %v7156
    %s7158 = scalar_lea.vmem %s11, 3
    %v7159 = vld [vmem:[%s7158] sm:$0x1]
    %v7160 = vadd.f32 %v7157, %v7159
    %v7161 = vld [vmem:[%s12] sm:$0x1]
    %v7162 = vmul.f32 %v7160, %v7161
    %vm7163 = vcmask 1040384
    %v7164 = vsel %vm7163, %v7162, 0.0
    %7165 = vadd.xlane.f32.xlu0 %v7164
    %v7166 = vpop.xlane.xlu0 %7165
    %v7167 = vadd.f32 %v7166, 0.0
    %v7168 = vld [vmem:[#allocation2] sm:$0x1]
    %v7169 = vadd.f32 %v7167, %v7168
    %v7170 = vsub.f32 0.0, %v7169
    %v7171 = vmul.f32 %v7170, 1.442695
    %v7172 = vpow.pop %v7171
    %v7173 = vadd.f32 %v7172, 1.0
    %v7174 = vrcp.pop %v7173
    %v7175 = vmul.f32 1.0, %v7174
    %vm7176 = vcmask 0
    %7177 = vst.msk [vmem:[#allocation11] sm:$0x1] %vm7176, %v7175
    // Predicated region
    $region74: #{discriminator_forward.1} parent=1 // pred_check
      _
    $region75: #{discriminator_forward.1} parent=1 // pred_check_branch
      %7179 = sbr.rel (0) target = $region77
    $region76: #{discriminator_forward.1} parent=1 // pred_region
      %s7181 = ssub.s32 16, 16
      %7182 = vsyncadd [#allocation5], %s7181
      %s7184 = sshll.u32 [#allocation11], 4
      %s7185 = int_to_ptr.vmem [resolvable:$true] %s7184
      %7187 = dma.vmem_to_hbm [thread:$0]  %s7185, 16, %s14, [#allocation5]
    $region77: #{discriminator_forward.1} parent=1 // pred_fallthru
      _
    // Predicated region
    $region78: #{discriminator_forward.1} parent=1 // pred_check
      _
    $region79: #{discriminator_forward.1} parent=1 // pred_check_branch
      %7189 = sbr.rel (0) target = $region81
    $region80: #{discriminator_forward.1} parent=1 // pred_region
      %7190 = dma.done [#allocation5], 16
    $region81: #{discriminator_forward.1} parent=1 // pred_fallthru
      _
    %7191 = vsyncpa [#allocation4], 1
    %7192 = vsyncpa [#allocation7], 1
    %7193 = vsyncpa [#allocation10], 1
    %7194 = vsyncpa [#allocation5], 1

</llo_original>
